<compile_context>
chip_gen: v5e
topology: v5e:2x2
jax: 0.10.0
libtpu: 0.0.40
codegen_flags: <defaults>
</compile_context>

<pallas_src>
import math
import jax
import jax.numpy as jnp
from jax.experimental import pallas as pl
from jax.experimental.pallas import tpu as pltpu


# ------------------------------- fused kernel --------------------------------

def _make_model_kernel(T, num_layers, C):
    f32, bf16 = jnp.float32, jnp.bfloat16

    def kernel(x_ref, w_in_ref, b_in_ref, wd_ref, w1_ref, bl_ref,
               w_out_ref, b_out_ref, we_ref, w_qkvo_ref,
               w_ff1_ref, b_ff1_ref, w_ff2_ref, wc_ref, bc_ref,
               tvec_ref, o_ref):

        def mm(w_bf, act_f32):
            # bf16 x bf16 MXU matmul with f32 accumulation.
            return jnp.dot(w_bf, act_f32.astype(bf16), preferred_element_type=f32)

        # -------- SingleStageModel: 1x1 in-projection (dim -> num_f_maps) ----
        h = mm(w_in_ref[...], x_ref[0]) + b_in_ref[...]              # (C, T) f32

        # -------- 16 causal dilated residual layers (unrolled) ---------------
        zpad = jnp.zeros((C, T), f32)
        for i in range(num_layers):
            d = 2 ** i
            wd_i = wd_ref[i]                                         # (C, 3C) bf16
            if d < T:
                # Left-zero-padded copy: xp[:, T + t] == h[:, t]  (causal pad 2d).
                xp = jnp.concatenate([zpad, h], axis=1)              # (C, 2T)
                tap0 = xp[:, T - 2 * d: 2 * T - 2 * d]               # h[:, t - 2d]
                tap1 = xp[:, T - d: 2 * T - d]                       # h[:, t -  d]
                stacked = jnp.concatenate([tap0, tap1, h], axis=0)   # (3C, T)
                acc = mm(wd_i, stacked)                              # single K=96 matmul
            else:
                # dilation >= T: shifted taps only ever see the zero padding.
                acc = mm(wd_i[:, 2 * C:], h)
            acc = jnp.maximum(acc + bl_ref[i, 0], 0.0)               # ReLU(conv_dilated)
            h = h + mm(w1_ref[i], acc) + bl_ref[i, 1]                # 1x1 + residual (dropout=id)

        # -------- 1x1 out-projection (num_f_maps -> num_classes) -------------
        f = mm(w_out_ref[...], h) + b_out_ref[...]                   # (256, T) f32

        # -------- Transformer head --------------------------------------------
        be, bo, g1, bt1, b2, g2, bt2 = [tvec_ref[j] for j in range(7)]
        D = w_qkvo_ref.shape[1]
        scale = 1.0 / math.sqrt(D)

        def layer_norm(y, g, b):                                     # over channel axis
            mu = jnp.mean(y, axis=0, keepdims=True)
            var = jnp.mean(jnp.square(y - mu), axis=0, keepdims=True)
            return (y - mu) * jax.lax.rsqrt(var + 1e-5) * g + b

        e = mm(we_ref[...], f) + be                                  # (D, T) f32
        e_bf = e.astype(bf16)
        qkvo = w_qkvo_ref[...]                                       # (4D, D) bf16
        qkv = jnp.dot(qkvo[:3 * D], e_bf, preferred_element_type=f32)  # fused QKV
        q = qkv[0:D] * scale
        k = qkv[D:2 * D]
        v = qkv[2 * D:3 * D]
        # scores[t, s] = sum_c q[c, t] * k[c, s]   (contraction on dim 0, no transposes)
        scores = jax.lax.dot_general(q.astype(bf16), k.astype(bf16),
                                     (((0,), (0,)), ((), ())),
                                     preferred_element_type=f32)     # (T, T)
        m = jnp.max(scores, axis=-1, keepdims=True)
        p = jnp.exp(scores - m)
        # divide hoisted off the (T,T) tile: one (T,1) reciprocal, then a multiply
        a = p * (1.0 / jnp.sum(p, axis=-1, keepdims=True))
        # ctx[c, t] = sum_s v[c, s] * a[t, s]      (contraction on dim 1 of both)
        ctx = jax.lax.dot_general(v.astype(bf16), a.astype(bf16),
                                  (((1,), (1,)), ((), ())),
                                  preferred_element_type=f32)        # (D, T)
        attn = jnp.dot(qkvo[3 * D:], ctx.astype(bf16),
                       preferred_element_type=f32) + bo
        y = layer_norm(e + attn, g1, bt1)
        hid = jnp.maximum(mm(w_ff1_ref[...], y) + b_ff1_ref[...], 0.0)   # (d_ff, T)
        y2 = layer_norm(y + mm(w_ff2_ref[...], hid) + b2, g2, bt2)
        o_ref[0] = mm(wc_ref[...], y2) + bc_ref[...]                 # (out_classes, T)

    return kernel


# --------------------------- parameters & wrapper ----------------------------

def init_params(key, dim=2048, num_f_maps=32, num_classes=256, num_layers=16,
                d_model=32, d_ff=128, out_classes=8):
    keys = iter(jax.random.split(key, 16))

    def w(shape, fan_in):
        v = jax.random.normal(next(keys), shape, dtype=jnp.float32) / math.sqrt(fan_in)
        return v.astype(jnp.bfloat16)            # MXU operands pre-cast to bf16 once

    zcol = lambda r: jnp.zeros((r, 1), jnp.float32)
    C = num_f_maps

    # transformer per-channel vectors packed: [be, bo, g1, bt1, b2, g2, bt2]
    tvec = jnp.zeros((7, d_model, 1), jnp.float32)
    tvec = tvec.at[2].set(1.0).at[5].set(1.0)    # LayerNorm gains g1, g2 = 1

    return {
        # SingleStageModel
        "w_in": w((C, dim), dim), "b_in": zcol(C),
        # dilated conv weights with taps stacked along K:
        #   cols [0:C] -> x[t-2d], cols [C:2C] -> x[t-d], cols [2C:3C] -> x[t]
        "wd": w((num_layers, C, 3 * C), 3 * C),
        "w1": w((num_layers, C, C), C),
        "bl": jnp.zeros((num_layers, 2, C, 1), jnp.float32),   # [:,0]=conv bias, [:,1]=1x1 bias
        "w_out": w((num_classes, C), C), "b_out": zcol(num_classes),
        # Transformer head
        "we": w((d_model, num_classes), num_classes),
        "w_qkvo": w((4 * d_model, d_model), d_model),          # [wq; wk; wv; wo]
        "w_ff1": w((d_ff, d_model), d_model), "b_ff1": zcol(d_ff),
        "w_ff2": w((d_model, d_ff), d_ff),
        "wc": w((out_classes, d_model), d_model), "bc": zcol(out_classes),
        "tvec": tvec,
    }


def _const_spec(shape):
    zeros = (0,) * len(shape)
    return pl.BlockSpec(shape, lambda n, _z=zeros: _z)


_WEIGHT_ORDER = ("w_in", "b_in", "wd", "w1", "bl", "w_out", "b_out",
                 "we", "w_qkvo", "w_ff1", "b_ff1", "w_ff2", "wc", "bc", "tvec")


def spa_tem_forward(params, x):
    N, C_in, T = x.shape
    num_layers, C, _ = params["wd"].shape
    K = params["wc"].shape[0]
    weights = [params[k] for k in _WEIGHT_ORDER]
    kernel = _make_model_kernel(T=T, num_layers=num_layers, C=C)
    return pl.pallas_call(
        kernel,
        out_shape=jax.ShapeDtypeStruct((N, K, T), jnp.float32),
        grid=(N,),
        in_specs=([pl.BlockSpec((1, C_in, T), lambda n: (n, 0, 0))]
                  + [_const_spec(w_.shape) for w_ in weights]),
        out_specs=pl.BlockSpec((1, K, T), lambda n: (n, 0, 0)),
        compiler_params=pltpu.CompilerParams(dimension_semantics=("parallel",)),
    )(x, *weights)


if __name__ == "__main__":
    N, DIM, T = 2, 2048, 128           # batch, input feature dim (fixed by module), time
    OUT_CLASSES = 8                     # args.out_classes (trans_seq == T)

    key = jax.random.PRNGKey(0)
    pkey, xkey = jax.random.split(key)
    params = init_params(pkey, dim=DIM, out_classes=OUT_CLASSES)
    x = jax.random.normal(xkey, (N, DIM, T), dtype=jnp.float32)

    fwd = jax.jit(spa_tem_forward)
    y = jax.block_until_ready(fwd(params, x))

    assert y.shape == (N, OUT_CLASSES, T), y.shape
    assert bool(jnp.all(jnp.isfinite(y)))
    print("KERNEL_OK")
</pallas_src>

<mosaic_0001>
module attributes {stable_mosaic.version = 11 : i64} {
  func.func @kernel(%arg0: i32, %arg1: memref<1x2048x128xf32, #tpu.memory_space<vmem>>, %arg2: memref<32x2048xbf16, #tpu.memory_space<vmem>>, %arg3: memref<32x1xf32, #tpu.memory_space<vmem>>, %arg4: memref<16x32x96xbf16, #tpu.memory_space<vmem>>, %arg5: memref<16x32x32xbf16, #tpu.memory_space<vmem>>, %arg6: memref<16x2x32x1xf32, #tpu.memory_space<vmem>>, %arg7: memref<256x32xbf16, #tpu.memory_space<vmem>>, %arg8: memref<256x1xf32, #tpu.memory_space<vmem>>, %arg9: memref<32x256xbf16, #tpu.memory_space<vmem>>, %arg10: memref<128x32xbf16, #tpu.memory_space<vmem>>, %arg11: memref<128x32xbf16, #tpu.memory_space<vmem>>, %arg12: memref<128x1xf32, #tpu.memory_space<vmem>>, %arg13: memref<32x128xbf16, #tpu.memory_space<vmem>>, %arg14: memref<8x32xbf16, #tpu.memory_space<vmem>>, %arg15: memref<8x1xf32, #tpu.memory_space<vmem>>, %arg16: memref<7x32x1xf32, #tpu.memory_space<vmem>>, %arg17: memref<1x8x128xf32, #tpu.memory_space<vmem>>) attributes {dimension_semantics = [#tpu.dimension_semantics<parallel>], iteration_bounds = array<i64: 2>, scalar_prefetch = 0 : i64, scratch_operands = 0 : i64, tpu.core_type = #tpu.core_type<tc>, window_params = [{transform_indices = @transform_0, window_bounds = array<i64: 1, 2048, 128>}, {pipeline_mode = #tpu.pipeline_mode<synchronous>, transform_indices = @transform_1, window_bounds = array<i64: 32, 2048>}, {pipeline_mode = #tpu.pipeline_mode<synchronous>, transform_indices = @transform_2, window_bounds = array<i64: 32, 1>}, {pipeline_mode = #tpu.pipeline_mode<synchronous>, transform_indices = @transform_3, window_bounds = array<i64: 16, 32, 96>}, {pipeline_mode = #tpu.pipeline_mode<synchronous>, transform_indices = @transform_4, window_bounds = array<i64: 16, 32, 32>}, {pipeline_mode = #tpu.pipeline_mode<synchronous>, transform_indices = @transform_5, window_bounds = array<i64: 16, 2, 32, 1>}, {pipeline_mode = #tpu.pipeline_mode<synchronous>, transform_indices = @transform_6, window_bounds = array<i64: 256, 32>}, {pipeline_mode = #tpu.pipeline_mode<synchronous>, transform_indices = @transform_7, window_bounds = array<i64: 256, 1>}, {pipeline_mode = #tpu.pipeline_mode<synchronous>, transform_indices = @transform_8, window_bounds = array<i64: 32, 256>}, {pipeline_mode = #tpu.pipeline_mode<synchronous>, transform_indices = @transform_9, window_bounds = array<i64: 128, 32>}, {pipeline_mode = #tpu.pipeline_mode<synchronous>, transform_indices = @transform_10, window_bounds = array<i64: 128, 32>}, {pipeline_mode = #tpu.pipeline_mode<synchronous>, transform_indices = @transform_11, window_bounds = array<i64: 128, 1>}, {pipeline_mode = #tpu.pipeline_mode<synchronous>, transform_indices = @transform_12, window_bounds = array<i64: 32, 128>}, {pipeline_mode = #tpu.pipeline_mode<synchronous>, transform_indices = @transform_13, window_bounds = array<i64: 8, 32>}, {pipeline_mode = #tpu.pipeline_mode<synchronous>, transform_indices = @transform_14, window_bounds = array<i64: 8, 1>}, {pipeline_mode = #tpu.pipeline_mode<synchronous>, transform_indices = @transform_15, window_bounds = array<i64: 7, 32, 1>}, {transform_indices = @transform_16, window_bounds = array<i64: 1, 8, 128>}]} {
    %c0 = arith.constant 0 : index
    %c0_0 = arith.constant 0 : index
    %0 = vector.load %arg2[%c0, %c0_0] : memref<32x2048xbf16, #tpu.memory_space<vmem>>, vector<32x2048xbf16>
    %c0_1 = arith.constant 0 : index
    %c0_2 = arith.constant 0 : index
    %c0_3 = arith.constant 0 : index
    %1 = vector.load %arg1[%c0_1, %c0_2, %c0_3] : memref<1x2048x128xf32, #tpu.memory_space<vmem>>, vector<1x2048x128xf32>
    %2 = vector.shape_cast %1 : vector<1x2048x128xf32> to vector<2048x128xf32>
    %3 = arith.truncf %2 : vector<2048x128xf32> to vector<2048x128xbf16>
    %cst = arith.constant dense<0.000000e+00> : vector<32x128xf32>
    %4 = tpu.matmul %0, %3, %cst {dimension_numbers = #tpu.dot_dimension_numbers<[1], [0], [0], [1], [0, 0, 1, 1], [], []>} : vector<32x2048xbf16>, vector<2048x128xbf16>, vector<32x128xf32> -> vector<32x128xf32>
    %c0_4 = arith.constant 0 : index
    %c0_5 = arith.constant 0 : index
    %5 = vector.load %arg3[%c0_4, %c0_5] : memref<32x1xf32, #tpu.memory_space<vmem>>, vector<32x1xf32>
    %6 = vector.broadcast %5 : vector<32x1xf32> to vector<32x128xf32>
    %7 = arith.addf %4, %6 : vector<32x128xf32>
    %cst_6 = arith.constant 0.000000e+00 : f32
    %8 = vector.broadcast %cst_6 : f32 to vector<32x128xf32>
    %c0_7 = arith.constant 0 : index
    %c0_8 = arith.constant 0 : index
    %c0_9 = arith.constant 0 : index
    %9 = vector.load %arg4[%c0_7, %c0_8, %c0_9] : memref<16x32x96xbf16, #tpu.memory_space<vmem>>, vector<1x32x96xbf16>
    %10 = vector.shape_cast %9 : vector<1x32x96xbf16> to vector<32x96xbf16>
    %11 = tpu.concatenate %8, %7 in 1 : vector<32x128xf32>, vector<32x128xf32> -> vector<32x256xf32>
    %12 = vector.extract_strided_slice %11 {offsets = [0, 126], sizes = [32, 128], strides = [1, 1]} : vector<32x256xf32> to vector<32x128xf32>
    %13 = vector.extract_strided_slice %11 {offsets = [0, 127], sizes = [32, 128], strides = [1, 1]} : vector<32x256xf32> to vector<32x128xf32>
    %14 = tpu.concatenate %12, %13, %7 in 0 : vector<32x128xf32>, vector<32x128xf32>, vector<32x128xf32> -> vector<96x128xf32>
    %15 = arith.truncf %14 : vector<96x128xf32> to vector<96x128xbf16>
    %cst_10 = arith.constant dense<0.000000e+00> : vector<32x128xf32>
    %16 = tpu.matmul %10, %15, %cst_10 {dimension_numbers = #tpu.dot_dimension_numbers<[1], [0], [0], [1], [0, 0, 1, 1], [], []>} : vector<32x96xbf16>, vector<96x128xbf16>, vector<32x128xf32> -> vector<32x128xf32>
    %c0_11 = arith.constant 0 : index
    %c0_12 = arith.constant 0 : index
    %c0_13 = arith.constant 0 : index
    %c0_14 = arith.constant 0 : index
    %17 = vector.load %arg6[%c0_11, %c0_12, %c0_13, %c0_14] : memref<16x2x32x1xf32, #tpu.memory_space<vmem>>, vector<1x1x32x1xf32>
    %18 = vector.shape_cast %17 : vector<1x1x32x1xf32> to vector<32x1xf32>
    %19 = vector.broadcast %18 : vector<32x1xf32> to vector<32x128xf32>
    %20 = arith.addf %16, %19 : vector<32x128xf32>
    %cst_15 = arith.constant 0.000000e+00 : f32
    %21 = vector.broadcast %cst_15 : f32 to vector<32x128xf32>
    %22 = arith.maximumf %20, %21 : vector<32x128xf32>
    %c0_16 = arith.constant 0 : index
    %c0_17 = arith.constant 0 : index
    %c0_18 = arith.constant 0 : index
    %23 = vector.load %arg5[%c0_16, %c0_17, %c0_18] : memref<16x32x32xbf16, #tpu.memory_space<vmem>>, vector<1x32x32xbf16>
    %24 = vector.shape_cast %23 : vector<1x32x32xbf16> to vector<32x32xbf16>
    %25 = arith.truncf %22 : vector<32x128xf32> to vector<32x128xbf16>
    %cst_19 = arith.constant dense<0.000000e+00> : vector<32x128xf32>
    %26 = tpu.matmul %24, %25, %cst_19 {dimension_numbers = #tpu.dot_dimension_numbers<[1], [0], [0], [1], [0, 0, 1, 1], [], []>} : vector<32x32xbf16>, vector<32x128xbf16>, vector<32x128xf32> -> vector<32x128xf32>
    %27 = arith.addf %7, %26 : vector<32x128xf32>
    %c0_20 = arith.constant 0 : index
    %c1 = arith.constant 1 : index
    %c0_21 = arith.constant 0 : index
    %c0_22 = arith.constant 0 : index
    %28 = vector.load %arg6[%c0_20, %c1, %c0_21, %c0_22] : memref<16x2x32x1xf32, #tpu.memory_space<vmem>>, vector<1x1x32x1xf32>
    %29 = vector.shape_cast %28 : vector<1x1x32x1xf32> to vector<32x1xf32>
    %30 = vector.broadcast %29 : vector<32x1xf32> to vector<32x128xf32>
    %31 = arith.addf %27, %30 : vector<32x128xf32>
    %c1_23 = arith.constant 1 : index
    %c0_24 = arith.constant 0 : index
    %c0_25 = arith.constant 0 : index
    %32 = vector.load %arg4[%c1_23, %c0_24, %c0_25] : memref<16x32x96xbf16, #tpu.memory_space<vmem>>, vector<1x32x96xbf16>
    %33 = vector.shape_cast %32 : vector<1x32x96xbf16> to vector<32x96xbf16>
    %34 = tpu.concatenate %8, %31 in 1 : vector<32x128xf32>, vector<32x128xf32> -> vector<32x256xf32>
    %35 = vector.extract_strided_slice %34 {offsets = [0, 124], sizes = [32, 128], strides = [1, 1]} : vector<32x256xf32> to vector<32x128xf32>
    %36 = vector.extract_strided_slice %34 {offsets = [0, 126], sizes = [32, 128], strides = [1, 1]} : vector<32x256xf32> to vector<32x128xf32>
    %37 = tpu.concatenate %35, %36, %31 in 0 : vector<32x128xf32>, vector<32x128xf32>, vector<32x128xf32> -> vector<96x128xf32>
    %38 = arith.truncf %37 : vector<96x128xf32> to vector<96x128xbf16>
    %cst_26 = arith.constant dense<0.000000e+00> : vector<32x128xf32>
    %39 = tpu.matmul %33, %38, %cst_26 {dimension_numbers = #tpu.dot_dimension_numbers<[1], [0], [0], [1], [0, 0, 1, 1], [], []>} : vector<32x96xbf16>, vector<96x128xbf16>, vector<32x128xf32> -> vector<32x128xf32>
    %c1_27 = arith.constant 1 : index
    %c0_28 = arith.constant 0 : index
    %c0_29 = arith.constant 0 : index
    %c0_30 = arith.constant 0 : index
    %40 = vector.load %arg6[%c1_27, %c0_28, %c0_29, %c0_30] : memref<16x2x32x1xf32, #tpu.memory_space<vmem>>, vector<1x1x32x1xf32>
    %41 = vector.shape_cast %40 : vector<1x1x32x1xf32> to vector<32x1xf32>
    %42 = vector.broadcast %41 : vector<32x1xf32> to vector<32x128xf32>
    %43 = arith.addf %39, %42 : vector<32x128xf32>
    %cst_31 = arith.constant 0.000000e+00 : f32
    %44 = vector.broadcast %cst_31 : f32 to vector<32x128xf32>
    %45 = arith.maximumf %43, %44 : vector<32x128xf32>
    %c1_32 = arith.constant 1 : index
    %c0_33 = arith.constant 0 : index
    %c0_34 = arith.constant 0 : index
    %46 = vector.load %arg5[%c1_32, %c0_33, %c0_34] : memref<16x32x32xbf16, #tpu.memory_space<vmem>>, vector<1x32x32xbf16>
    %47 = vector.shape_cast %46 : vector<1x32x32xbf16> to vector<32x32xbf16>
    %48 = arith.truncf %45 : vector<32x128xf32> to vector<32x128xbf16>
    %cst_35 = arith.constant dense<0.000000e+00> : vector<32x128xf32>
    %49 = tpu.matmul %47, %48, %cst_35 {dimension_numbers = #tpu.dot_dimension_numbers<[1], [0], [0], [1], [0, 0, 1, 1], [], []>} : vector<32x32xbf16>, vector<32x128xbf16>, vector<32x128xf32> -> vector<32x128xf32>
    %50 = arith.addf %31, %49 : vector<32x128xf32>
    %c1_36 = arith.constant 1 : index
    %c1_37 = arith.constant 1 : index
    %c0_38 = arith.constant 0 : index
    %c0_39 = arith.constant 0 : index
    %51 = vector.load %arg6[%c1_36, %c1_37, %c0_38, %c0_39] : memref<16x2x32x1xf32, #tpu.memory_space<vmem>>, vector<1x1x32x1xf32>
    %52 = vector.shape_cast %51 : vector<1x1x32x1xf32> to vector<32x1xf32>
    %53 = vector.broadcast %52 : vector<32x1xf32> to vector<32x128xf32>
    %54 = arith.addf %50, %53 : vector<32x128xf32>
    %c2 = arith.constant 2 : index
    %c0_40 = arith.constant 0 : index
    %c0_41 = arith.constant 0 : index
    %55 = vector.load %arg4[%c2, %c0_40, %c0_41] : memref<16x32x96xbf16, #tpu.memory_space<vmem>>, vector<1x32x96xbf16>
    %56 = vector.shape_cast %55 : vector<1x32x96xbf16> to vector<32x96xbf16>
    %57 = tpu.concatenate %8, %54 in 1 : vector<32x128xf32>, vector<32x128xf32> -> vector<32x256xf32>
    %58 = vector.extract_strided_slice %57 {offsets = [0, 120], sizes = [32, 128], strides = [1, 1]} : vector<32x256xf32> to vector<32x128xf32>
    %59 = vector.extract_strided_slice %57 {offsets = [0, 124], sizes = [32, 128], strides = [1, 1]} : vector<32x256xf32> to vector<32x128xf32>
    %60 = tpu.concatenate %58, %59, %54 in 0 : vector<32x128xf32>, vector<32x128xf32>, vector<32x128xf32> -> vector<96x128xf32>
    %61 = arith.truncf %60 : vector<96x128xf32> to vector<96x128xbf16>
    %cst_42 = arith.constant dense<0.000000e+00> : vector<32x128xf32>
    %62 = tpu.matmul %56, %61, %cst_42 {dimension_numbers = #tpu.dot_dimension_numbers<[1], [0], [0], [1], [0, 0, 1, 1], [], []>} : vector<32x96xbf16>, vector<96x128xbf16>, vector<32x128xf32> -> vector<32x128xf32>
    %c2_43 = arith.constant 2 : index
    %c0_44 = arith.constant 0 : index
    %c0_45 = arith.constant 0 : index
    %c0_46 = arith.constant 0 : index
    %63 = vector.load %arg6[%c2_43, %c0_44, %c0_45, %c0_46] : memref<16x2x32x1xf32, #tpu.memory_space<vmem>>, vector<1x1x32x1xf32>
    %64 = vector.shape_cast %63 : vector<1x1x32x1xf32> to vector<32x1xf32>
    %65 = vector.broadcast %64 : vector<32x1xf32> to vector<32x128xf32>
    %66 = arith.addf %62, %65 : vector<32x128xf32>
    %cst_47 = arith.constant 0.000000e+00 : f32
    %67 = vector.broadcast %cst_47 : f32 to vector<32x128xf32>
    %68 = arith.maximumf %66, %67 : vector<32x128xf32>
    %c2_48 = arith.constant 2 : index
    %c0_49 = arith.constant 0 : index
    %c0_50 = arith.constant 0 : index
    %69 = vector.load %arg5[%c2_48, %c0_49, %c0_50] : memref<16x32x32xbf16, #tpu.memory_space<vmem>>, vector<1x32x32xbf16>
    %70 = vector.shape_cast %69 : vector<1x32x32xbf16> to vector<32x32xbf16>
    %71 = arith.truncf %68 : vector<32x128xf32> to vector<32x128xbf16>
    %cst_51 = arith.constant dense<0.000000e+00> : vector<32x128xf32>
    %72 = tpu.matmul %70, %71, %cst_51 {dimension_numbers = #tpu.dot_dimension_numbers<[1], [0], [0], [1], [0, 0, 1, 1], [], []>} : vector<32x32xbf16>, vector<32x128xbf16>, vector<32x128xf32> -> vector<32x128xf32>
    %73 = arith.addf %54, %72 : vector<32x128xf32>
    %c2_52 = arith.constant 2 : index
    %c1_53 = arith.constant 1 : index
    %c0_54 = arith.constant 0 : index
    %c0_55 = arith.constant 0 : index
    %74 = vector.load %arg6[%c2_52, %c1_53, %c0_54, %c0_55] : memref<16x2x32x1xf32, #tpu.memory_space<vmem>>, vector<1x1x32x1xf32>
    %75 = vector.shape_cast %74 : vector<1x1x32x1xf32> to vector<32x1xf32>
    %76 = vector.broadcast %75 : vector<32x1xf32> to vector<32x128xf32>
    %77 = arith.addf %73, %76 : vector<32x128xf32>
    %c3 = arith.constant 3 : index
    %c0_56 = arith.constant 0 : index
    %c0_57 = arith.constant 0 : index
    %78 = vector.load %arg4[%c3, %c0_56, %c0_57] : memref<16x32x96xbf16, #tpu.memory_space<vmem>>, vector<1x32x96xbf16>
    %79 = vector.shape_cast %78 : vector<1x32x96xbf16> to vector<32x96xbf16>
    %80 = tpu.concatenate %8, %77 in 1 : vector<32x128xf32>, vector<32x128xf32> -> vector<32x256xf32>
    %81 = vector.extract_strided_slice %80 {offsets = [0, 112], sizes = [32, 128], strides = [1, 1]} : vector<32x256xf32> to vector<32x128xf32>
    %82 = vector.extract_strided_slice %80 {offsets = [0, 120], sizes = [32, 128], strides = [1, 1]} : vector<32x256xf32> to vector<32x128xf32>
    %83 = tpu.concatenate %81, %82, %77 in 0 : vector<32x128xf32>, vector<32x128xf32>, vector<32x128xf32> -> vector<96x128xf32>
    %84 = arith.truncf %83 : vector<96x128xf32> to vector<96x128xbf16>
    %cst_58 = arith.constant dense<0.000000e+00> : vector<32x128xf32>
    %85 = tpu.matmul %79, %84, %cst_58 {dimension_numbers = #tpu.dot_dimension_numbers<[1], [0], [0], [1], [0, 0, 1, 1], [], []>} : vector<32x96xbf16>, vector<96x128xbf16>, vector<32x128xf32> -> vector<32x128xf32>
    %c3_59 = arith.constant 3 : index
    %c0_60 = arith.constant 0 : index
    %c0_61 = arith.constant 0 : index
    %c0_62 = arith.constant 0 : index
    %86 = vector.load %arg6[%c3_59, %c0_60, %c0_61, %c0_62] : memref<16x2x32x1xf32, #tpu.memory_space<vmem>>, vector<1x1x32x1xf32>
    %87 = vector.shape_cast %86 : vector<1x1x32x1xf32> to vector<32x1xf32>
    %88 = vector.broadcast %87 : vector<32x1xf32> to vector<32x128xf32>
    %89 = arith.addf %85, %88 : vector<32x128xf32>
    %cst_63 = arith.constant 0.000000e+00 : f32
    %90 = vector.broadcast %cst_63 : f32 to vector<32x128xf32>
    %91 = arith.maximumf %89, %90 : vector<32x128xf32>
    %c3_64 = arith.constant 3 : index
    %c0_65 = arith.constant 0 : index
    %c0_66 = arith.constant 0 : index
    %92 = vector.load %arg5[%c3_64, %c0_65, %c0_66] : memref<16x32x32xbf16, #tpu.memory_space<vmem>>, vector<1x32x32xbf16>
    %93 = vector.shape_cast %92 : vector<1x32x32xbf16> to vector<32x32xbf16>
    %94 = arith.truncf %91 : vector<32x128xf32> to vector<32x128xbf16>
    %cst_67 = arith.constant dense<0.000000e+00> : vector<32x128xf32>
    %95 = tpu.matmul %93, %94, %cst_67 {dimension_numbers = #tpu.dot_dimension_numbers<[1], [0], [0], [1], [0, 0, 1, 1], [], []>} : vector<32x32xbf16>, vector<32x128xbf16>, vector<32x128xf32> -> vector<32x128xf32>
    %96 = arith.addf %77, %95 : vector<32x128xf32>
    %c3_68 = arith.constant 3 : index
    %c1_69 = arith.constant 1 : index
    %c0_70 = arith.constant 0 : index
    %c0_71 = arith.constant 0 : index
    %97 = vector.load %arg6[%c3_68, %c1_69, %c0_70, %c0_71] : memref<16x2x32x1xf32, #tpu.memory_space<vmem>>, vector<1x1x32x1xf32>
    %98 = vector.shape_cast %97 : vector<1x1x32x1xf32> to vector<32x1xf32>
    %99 = vector.broadcast %98 : vector<32x1xf32> to vector<32x128xf32>
    %100 = arith.addf %96, %99 : vector<32x128xf32>
    %c4 = arith.constant 4 : index
    %c0_72 = arith.constant 0 : index
    %c0_73 = arith.constant 0 : index
    %101 = vector.load %arg4[%c4, %c0_72, %c0_73] : memref<16x32x96xbf16, #tpu.memory_space<vmem>>, vector<1x32x96xbf16>
    %102 = vector.shape_cast %101 : vector<1x32x96xbf16> to vector<32x96xbf16>
    %103 = tpu.concatenate %8, %100 in 1 : vector<32x128xf32>, vector<32x128xf32> -> vector<32x256xf32>
    %104 = vector.extract_strided_slice %103 {offsets = [0, 96], sizes = [32, 128], strides = [1, 1]} : vector<32x256xf32> to vector<32x128xf32>
    %105 = vector.extract_strided_slice %103 {offsets = [0, 112], sizes = [32, 128], strides = [1, 1]} : vector<32x256xf32> to vector<32x128xf32>
    %106 = tpu.concatenate %104, %105, %100 in 0 : vector<32x128xf32>, vector<32x128xf32>, vector<32x128xf32> -> vector<96x128xf32>
    %107 = arith.truncf %106 : vector<96x128xf32> to vector<96x128xbf16>
    %cst_74 = arith.constant dense<0.000000e+00> : vector<32x128xf32>
    %108 = tpu.matmul %102, %107, %cst_74 {dimension_numbers = #tpu.dot_dimension_numbers<[1], [0], [0], [1], [0, 0, 1, 1], [], []>} : vector<32x96xbf16>, vector<96x128xbf16>, vector<32x128xf32> -> vector<32x128xf32>
    %c4_75 = arith.constant 4 : index
    %c0_76 = arith.constant 0 : index
    %c0_77 = arith.constant 0 : index
    %c0_78 = arith.constant 0 : index
    %109 = vector.load %arg6[%c4_75, %c0_76, %c0_77, %c0_78] : memref<16x2x32x1xf32, #tpu.memory_space<vmem>>, vector<1x1x32x1xf32>
    %110 = vector.shape_cast %109 : vector<1x1x32x1xf32> to vector<32x1xf32>
    %111 = vector.broadcast %110 : vector<32x1xf32> to vector<32x128xf32>
    %112 = arith.addf %108, %111 : vector<32x128xf32>
    %cst_79 = arith.constant 0.000000e+00 : f32
    %113 = vector.broadcast %cst_79 : f32 to vector<32x128xf32>
    %114 = arith.maximumf %112, %113 : vector<32x128xf32>
    %c4_80 = arith.constant 4 : index
    %c0_81 = arith.constant 0 : index
    %c0_82 = arith.constant 0 : index
    %115 = vector.load %arg5[%c4_80, %c0_81, %c0_82] : memref<16x32x32xbf16, #tpu.memory_space<vmem>>, vector<1x32x32xbf16>
    %116 = vector.shape_cast %115 : vector<1x32x32xbf16> to vector<32x32xbf16>
    %117 = arith.truncf %114 : vector<32x128xf32> to vector<32x128xbf16>
    %cst_83 = arith.constant dense<0.000000e+00> : vector<32x128xf32>
    %118 = tpu.matmul %116, %117, %cst_83 {dimension_numbers = #tpu.dot_dimension_numbers<[1], [0], [0], [1], [0, 0, 1, 1], [], []>} : vector<32x32xbf16>, vector<32x128xbf16>, vector<32x128xf32> -> vector<32x128xf32>
    %119 = arith.addf %100, %118 : vector<32x128xf32>
    %c4_84 = arith.constant 4 : index
    %c1_85 = arith.constant 1 : index
    %c0_86 = arith.constant 0 : index
    %c0_87 = arith.constant 0 : index
    %120 = vector.load %arg6[%c4_84, %c1_85, %c0_86, %c0_87] : memref<16x2x32x1xf32, #tpu.memory_space<vmem>>, vector<1x1x32x1xf32>
    %121 = vector.shape_cast %120 : vector<1x1x32x1xf32> to vector<32x1xf32>
    %122 = vector.broadcast %121 : vector<32x1xf32> to vector<32x128xf32>
    %123 = arith.addf %119, %122 : vector<32x128xf32>
    %c5 = arith.constant 5 : index
    %c0_88 = arith.constant 0 : index
    %c0_89 = arith.constant 0 : index
    %124 = vector.load %arg4[%c5, %c0_88, %c0_89] : memref<16x32x96xbf16, #tpu.memory_space<vmem>>, vector<1x32x96xbf16>
    %125 = vector.shape_cast %124 : vector<1x32x96xbf16> to vector<32x96xbf16>
    %126 = tpu.concatenate %8, %123 in 1 : vector<32x128xf32>, vector<32x128xf32> -> vector<32x256xf32>
    %127 = vector.extract_strided_slice %126 {offsets = [0, 64], sizes = [32, 128], strides = [1, 1]} : vector<32x256xf32> to vector<32x128xf32>
    %128 = vector.extract_strided_slice %126 {offsets = [0, 96], sizes = [32, 128], strides = [1, 1]} : vector<32x256xf32> to vector<32x128xf32>
    %129 = tpu.concatenate %127, %128, %123 in 0 : vector<32x128xf32>, vector<32x128xf32>, vector<32x128xf32> -> vector<96x128xf32>
    %130 = arith.truncf %129 : vector<96x128xf32> to vector<96x128xbf16>
    %cst_90 = arith.constant dense<0.000000e+00> : vector<32x128xf32>
    %131 = tpu.matmul %125, %130, %cst_90 {dimension_numbers = #tpu.dot_dimension_numbers<[1], [0], [0], [1], [0, 0, 1, 1], [], []>} : vector<32x96xbf16>, vector<96x128xbf16>, vector<32x128xf32> -> vector<32x128xf32>
    %c5_91 = arith.constant 5 : index
    %c0_92 = arith.constant 0 : index
    %c0_93 = arith.constant 0 : index
    %c0_94 = arith.constant 0 : index
    %132 = vector.load %arg6[%c5_91, %c0_92, %c0_93, %c0_94] : memref<16x2x32x1xf32, #tpu.memory_space<vmem>>, vector<1x1x32x1xf32>
    %133 = vector.shape_cast %132 : vector<1x1x32x1xf32> to vector<32x1xf32>
    %134 = vector.broadcast %133 : vector<32x1xf32> to vector<32x128xf32>
    %135 = arith.addf %131, %134 : vector<32x128xf32>
    %cst_95 = arith.constant 0.000000e+00 : f32
    %136 = vector.broadcast %cst_95 : f32 to vector<32x128xf32>
    %137 = arith.maximumf %135, %136 : vector<32x128xf32>
    %c5_96 = arith.constant 5 : index
    %c0_97 = arith.constant 0 : index
    %c0_98 = arith.constant 0 : index
    %138 = vector.load %arg5[%c5_96, %c0_97, %c0_98] : memref<16x32x32xbf16, #tpu.memory_space<vmem>>, vector<1x32x32xbf16>
    %139 = vector.shape_cast %138 : vector<1x32x32xbf16> to vector<32x32xbf16>
    %140 = arith.truncf %137 : vector<32x128xf32> to vector<32x128xbf16>
    %cst_99 = arith.constant dense<0.000000e+00> : vector<32x128xf32>
    %141 = tpu.matmul %139, %140, %cst_99 {dimension_numbers = #tpu.dot_dimension_numbers<[1], [0], [0], [1], [0, 0, 1, 1], [], []>} : vector<32x32xbf16>, vector<32x128xbf16>, vector<32x128xf32> -> vector<32x128xf32>
    %142 = arith.addf %123, %141 : vector<32x128xf32>
    %c5_100 = arith.constant 5 : index
    %c1_101 = arith.constant 1 : index
    %c0_102 = arith.constant 0 : index
    %c0_103 = arith.constant 0 : index
    %143 = vector.load %arg6[%c5_100, %c1_101, %c0_102, %c0_103] : memref<16x2x32x1xf32, #tpu.memory_space<vmem>>, vector<1x1x32x1xf32>
    %144 = vector.shape_cast %143 : vector<1x1x32x1xf32> to vector<32x1xf32>
    %145 = vector.broadcast %144 : vector<32x1xf32> to vector<32x128xf32>
    %146 = arith.addf %142, %145 : vector<32x128xf32>
    %c6 = arith.constant 6 : index
    %c0_104 = arith.constant 0 : index
    %c0_105 = arith.constant 0 : index
    %147 = vector.load %arg4[%c6, %c0_104, %c0_105] : memref<16x32x96xbf16, #tpu.memory_space<vmem>>, vector<1x32x96xbf16>
    %148 = vector.shape_cast %147 : vector<1x32x96xbf16> to vector<32x96xbf16>
    %149 = tpu.concatenate %8, %146 in 1 : vector<32x128xf32>, vector<32x128xf32> -> vector<32x256xf32>
    %150 = vector.extract_strided_slice %149 {offsets = [0, 0], sizes = [32, 128], strides = [1, 1]} : vector<32x256xf32> to vector<32x128xf32>
    %151 = vector.extract_strided_slice %149 {offsets = [0, 64], sizes = [32, 128], strides = [1, 1]} : vector<32x256xf32> to vector<32x128xf32>
    %152 = tpu.concatenate %150, %151, %146 in 0 : vector<32x128xf32>, vector<32x128xf32>, vector<32x128xf32> -> vector<96x128xf32>
    %153 = arith.truncf %152 : vector<96x128xf32> to vector<96x128xbf16>
    %cst_106 = arith.constant dense<0.000000e+00> : vector<32x128xf32>
    %154 = tpu.matmul %148, %153, %cst_106 {dimension_numbers = #tpu.dot_dimension_numbers<[1], [0], [0], [1], [0, 0, 1, 1], [], []>} : vector<32x96xbf16>, vector<96x128xbf16>, vector<32x128xf32> -> vector<32x128xf32>
    %c6_107 = arith.constant 6 : index
    %c0_108 = arith.constant 0 : index
    %c0_109 = arith.constant 0 : index
    %c0_110 = arith.constant 0 : index
    %155 = vector.load %arg6[%c6_107, %c0_108, %c0_109, %c0_110] : memref<16x2x32x1xf32, #tpu.memory_space<vmem>>, vector<1x1x32x1xf32>
    %156 = vector.shape_cast %155 : vector<1x1x32x1xf32> to vector<32x1xf32>
    %157 = vector.broadcast %156 : vector<32x1xf32> to vector<32x128xf32>
    %158 = arith.addf %154, %157 : vector<32x128xf32>
    %cst_111 = arith.constant 0.000000e+00 : f32
    %159 = vector.broadcast %cst_111 : f32 to vector<32x128xf32>
    %160 = arith.maximumf %158, %159 : vector<32x128xf32>
    %c6_112 = arith.constant 6 : index
    %c0_113 = arith.constant 0 : index
    %c0_114 = arith.constant 0 : index
    %161 = vector.load %arg5[%c6_112, %c0_113, %c0_114] : memref<16x32x32xbf16, #tpu.memory_space<vmem>>, vector<1x32x32xbf16>
    %162 = vector.shape_cast %161 : vector<1x32x32xbf16> to vector<32x32xbf16>
    %163 = arith.truncf %160 : vector<32x128xf32> to vector<32x128xbf16>
    %cst_115 = arith.constant dense<0.000000e+00> : vector<32x128xf32>
    %164 = tpu.matmul %162, %163, %cst_115 {dimension_numbers = #tpu.dot_dimension_numbers<[1], [0], [0], [1], [0, 0, 1, 1], [], []>} : vector<32x32xbf16>, vector<32x128xbf16>, vector<32x128xf32> -> vector<32x128xf32>
    %165 = arith.addf %146, %164 : vector<32x128xf32>
    %c6_116 = arith.constant 6 : index
    %c1_117 = arith.constant 1 : index
    %c0_118 = arith.constant 0 : index
    %c0_119 = arith.constant 0 : index
    %166 = vector.load %arg6[%c6_116, %c1_117, %c0_118, %c0_119] : memref<16x2x32x1xf32, #tpu.memory_space<vmem>>, vector<1x1x32x1xf32>
    %167 = vector.shape_cast %166 : vector<1x1x32x1xf32> to vector<32x1xf32>
    %168 = vector.broadcast %167 : vector<32x1xf32> to vector<32x128xf32>
    %169 = arith.addf %165, %168 : vector<32x128xf32>
    %c7 = arith.constant 7 : index
    %c0_120 = arith.constant 0 : index
    %c0_121 = arith.constant 0 : index
    %170 = vector.load %arg4[%c7, %c0_120, %c0_121] : memref<16x32x96xbf16, #tpu.memory_space<vmem>>, vector<1x32x96xbf16>
    %171 = vector.shape_cast %170 : vector<1x32x96xbf16> to vector<32x96xbf16>
    %172 = vector.extract_strided_slice %171 {offsets = [0, 64], sizes = [32, 32], strides = [1, 1]} : vector<32x96xbf16> to vector<32x32xbf16>
    %173 = arith.truncf %169 : vector<32x128xf32> to vector<32x128xbf16>
    %cst_122 = arith.constant dense<0.000000e+00> : vector<32x128xf32>
    %174 = tpu.matmul %172, %173, %cst_122 {dimension_numbers = #tpu.dot_dimension_numbers<[1], [0], [0], [1], [0, 0, 1, 1], [], []>} : vector<32x32xbf16>, vector<32x128xbf16>, vector<32x128xf32> -> vector<32x128xf32>
    %c7_123 = arith.constant 7 : index
    %c0_124 = arith.constant 0 : index
    %c0_125 = arith.constant 0 : index
    %c0_126 = arith.constant 0 : index
    %175 = vector.load %arg6[%c7_123, %c0_124, %c0_125, %c0_126] : memref<16x2x32x1xf32, #tpu.memory_space<vmem>>, vector<1x1x32x1xf32>
    %176 = vector.shape_cast %175 : vector<1x1x32x1xf32> to vector<32x1xf32>
    %177 = vector.broadcast %176 : vector<32x1xf32> to vector<32x128xf32>
    %178 = arith.addf %174, %177 : vector<32x128xf32>
    %cst_127 = arith.constant 0.000000e+00 : f32
    %179 = vector.broadcast %cst_127 : f32 to vector<32x128xf32>
    %180 = arith.maximumf %178, %179 : vector<32x128xf32>
    %c7_128 = arith.constant 7 : index
    %c0_129 = arith.constant 0 : index
    %c0_130 = arith.constant 0 : index
    %181 = vector.load %arg5[%c7_128, %c0_129, %c0_130] : memref<16x32x32xbf16, #tpu.memory_space<vmem>>, vector<1x32x32xbf16>
    %182 = vector.shape_cast %181 : vector<1x32x32xbf16> to vector<32x32xbf16>
    %183 = arith.truncf %180 : vector<32x128xf32> to vector<32x128xbf16>
    %cst_131 = arith.constant dense<0.000000e+00> : vector<32x128xf32>
    %184 = tpu.matmul %182, %183, %cst_131 {dimension_numbers = #tpu.dot_dimension_numbers<[1], [0], [0], [1], [0, 0, 1, 1], [], []>} : vector<32x32xbf16>, vector<32x128xbf16>, vector<32x128xf32> -> vector<32x128xf32>
    %185 = arith.addf %169, %184 : vector<32x128xf32>
    %c7_132 = arith.constant 7 : index
    %c1_133 = arith.constant 1 : index
    %c0_134 = arith.constant 0 : index
    %c0_135 = arith.constant 0 : index
    %186 = vector.load %arg6[%c7_132, %c1_133, %c0_134, %c0_135] : memref<16x2x32x1xf32, #tpu.memory_space<vmem>>, vector<1x1x32x1xf32>
    %187 = vector.shape_cast %186 : vector<1x1x32x1xf32> to vector<32x1xf32>
    %188 = vector.broadcast %187 : vector<32x1xf32> to vector<32x128xf32>
    %189 = arith.addf %185, %188 : vector<32x128xf32>
    %c8 = arith.constant 8 : index
    %c0_136 = arith.constant 0 : index
    %c0_137 = arith.constant 0 : index
    %190 = vector.load %arg4[%c8, %c0_136, %c0_137] : memref<16x32x96xbf16, #tpu.memory_space<vmem>>, vector<1x32x96xbf16>
    %191 = vector.shape_cast %190 : vector<1x32x96xbf16> to vector<32x96xbf16>
    %192 = vector.extract_strided_slice %191 {offsets = [0, 64], sizes = [32, 32], strides = [1, 1]} : vector<32x96xbf16> to vector<32x32xbf16>
    %193 = arith.truncf %189 : vector<32x128xf32> to vector<32x128xbf16>
    %cst_138 = arith.constant dense<0.000000e+00> : vector<32x128xf32>
    %194 = tpu.matmul %192, %193, %cst_138 {dimension_numbers = #tpu.dot_dimension_numbers<[1], [0], [0], [1], [0, 0, 1, 1], [], []>} : vector<32x32xbf16>, vector<32x128xbf16>, vector<32x128xf32> -> vector<32x128xf32>
    %c8_139 = arith.constant 8 : index
    %c0_140 = arith.constant 0 : index
    %c0_141 = arith.constant 0 : index
    %c0_142 = arith.constant 0 : index
    %195 = vector.load %arg6[%c8_139, %c0_140, %c0_141, %c0_142] : memref<16x2x32x1xf32, #tpu.memory_space<vmem>>, vector<1x1x32x1xf32>
    %196 = vector.shape_cast %195 : vector<1x1x32x1xf32> to vector<32x1xf32>
    %197 = vector.broadcast %196 : vector<32x1xf32> to vector<32x128xf32>
    %198 = arith.addf %194, %197 : vector<32x128xf32>
    %cst_143 = arith.constant 0.000000e+00 : f32
    %199 = vector.broadcast %cst_143 : f32 to vector<32x128xf32>
    %200 = arith.maximumf %198, %199 : vector<32x128xf32>
    %c8_144 = arith.constant 8 : index
    %c0_145 = arith.constant 0 : index
    %c0_146 = arith.constant 0 : index
    %201 = vector.load %arg5[%c8_144, %c0_145, %c0_146] : memref<16x32x32xbf16, #tpu.memory_space<vmem>>, vector<1x32x32xbf16>
    %202 = vector.shape_cast %201 : vector<1x32x32xbf16> to vector<32x32xbf16>
    %203 = arith.truncf %200 : vector<32x128xf32> to vector<32x128xbf16>
    %cst_147 = arith.constant dense<0.000000e+00> : vector<32x128xf32>
    %204 = tpu.matmul %202, %203, %cst_147 {dimension_numbers = #tpu.dot_dimension_numbers<[1], [0], [0], [1], [0, 0, 1, 1], [], []>} : vector<32x32xbf16>, vector<32x128xbf16>, vector<32x128xf32> -> vector<32x128xf32>
    %205 = arith.addf %189, %204 : vector<32x128xf32>
    %c8_148 = arith.constant 8 : index
    %c1_149 = arith.constant 1 : index
    %c0_150 = arith.constant 0 : index
    %c0_151 = arith.constant 0 : index
    %206 = vector.load %arg6[%c8_148, %c1_149, %c0_150, %c0_151] : memref<16x2x32x1xf32, #tpu.memory_space<vmem>>, vector<1x1x32x1xf32>
    %207 = vector.shape_cast %206 : vector<1x1x32x1xf32> to vector<32x1xf32>
    %208 = vector.broadcast %207 : vector<32x1xf32> to vector<32x128xf32>
    %209 = arith.addf %205, %208 : vector<32x128xf32>
    %c9 = arith.constant 9 : index
    %c0_152 = arith.constant 0 : index
    %c0_153 = arith.constant 0 : index
    %210 = vector.load %arg4[%c9, %c0_152, %c0_153] : memref<16x32x96xbf16, #tpu.memory_space<vmem>>, vector<1x32x96xbf16>
    %211 = vector.shape_cast %210 : vector<1x32x96xbf16> to vector<32x96xbf16>
    %212 = vector.extract_strided_slice %211 {offsets = [0, 64], sizes = [32, 32], strides = [1, 1]} : vector<32x96xbf16> to vector<32x32xbf16>
    %213 = arith.truncf %209 : vector<32x128xf32> to vector<32x128xbf16>
    %cst_154 = arith.constant dense<0.000000e+00> : vector<32x128xf32>
    %214 = tpu.matmul %212, %213, %cst_154 {dimension_numbers = #tpu.dot_dimension_numbers<[1], [0], [0], [1], [0, 0, 1, 1], [], []>} : vector<32x32xbf16>, vector<32x128xbf16>, vector<32x128xf32> -> vector<32x128xf32>
    %c9_155 = arith.constant 9 : index
    %c0_156 = arith.constant 0 : index
    %c0_157 = arith.constant 0 : index
    %c0_158 = arith.constant 0 : index
    %215 = vector.load %arg6[%c9_155, %c0_156, %c0_157, %c0_158] : memref<16x2x32x1xf32, #tpu.memory_space<vmem>>, vector<1x1x32x1xf32>
    %216 = vector.shape_cast %215 : vector<1x1x32x1xf32> to vector<32x1xf32>
    %217 = vector.broadcast %216 : vector<32x1xf32> to vector<32x128xf32>
    %218 = arith.addf %214, %217 : vector<32x128xf32>
    %cst_159 = arith.constant 0.000000e+00 : f32
    %219 = vector.broadcast %cst_159 : f32 to vector<32x128xf32>
    %220 = arith.maximumf %218, %219 : vector<32x128xf32>
    %c9_160 = arith.constant 9 : index
    %c0_161 = arith.constant 0 : index
    %c0_162 = arith.constant 0 : index
    %221 = vector.load %arg5[%c9_160, %c0_161, %c0_162] : memref<16x32x32xbf16, #tpu.memory_space<vmem>>, vector<1x32x32xbf16>
    %222 = vector.shape_cast %221 : vector<1x32x32xbf16> to vector<32x32xbf16>
    %223 = arith.truncf %220 : vector<32x128xf32> to vector<32x128xbf16>
    %cst_163 = arith.constant dense<0.000000e+00> : vector<32x128xf32>
    %224 = tpu.matmul %222, %223, %cst_163 {dimension_numbers = #tpu.dot_dimension_numbers<[1], [0], [0], [1], [0, 0, 1, 1], [], []>} : vector<32x32xbf16>, vector<32x128xbf16>, vector<32x128xf32> -> vector<32x128xf32>
    %225 = arith.addf %209, %224 : vector<32x128xf32>
    %c9_164 = arith.constant 9 : index
    %c1_165 = arith.constant 1 : index
    %c0_166 = arith.constant 0 : index
    %c0_167 = arith.constant 0 : index
    %226 = vector.load %arg6[%c9_164, %c1_165, %c0_166, %c0_167] : memref<16x2x32x1xf32, #tpu.memory_space<vmem>>, vector<1x1x32x1xf32>
    %227 = vector.shape_cast %226 : vector<1x1x32x1xf32> to vector<32x1xf32>
    %228 = vector.broadcast %227 : vector<32x1xf32> to vector<32x128xf32>
    %229 = arith.addf %225, %228 : vector<32x128xf32>
    %c10 = arith.constant 10 : index
    %c0_168 = arith.constant 0 : index
    %c0_169 = arith.constant 0 : index
    %230 = vector.load %arg4[%c10, %c0_168, %c0_169] : memref<16x32x96xbf16, #tpu.memory_space<vmem>>, vector<1x32x96xbf16>
    %231 = vector.shape_cast %230 : vector<1x32x96xbf16> to vector<32x96xbf16>
    %232 = vector.extract_strided_slice %231 {offsets = [0, 64], sizes = [32, 32], strides = [1, 1]} : vector<32x96xbf16> to vector<32x32xbf16>
    %233 = arith.truncf %229 : vector<32x128xf32> to vector<32x128xbf16>
    %cst_170 = arith.constant dense<0.000000e+00> : vector<32x128xf32>
    %234 = tpu.matmul %232, %233, %cst_170 {dimension_numbers = #tpu.dot_dimension_numbers<[1], [0], [0], [1], [0, 0, 1, 1], [], []>} : vector<32x32xbf16>, vector<32x128xbf16>, vector<32x128xf32> -> vector<32x128xf32>
    %c10_171 = arith.constant 10 : index
    %c0_172 = arith.constant 0 : index
    %c0_173 = arith.constant 0 : index
    %c0_174 = arith.constant 0 : index
    %235 = vector.load %arg6[%c10_171, %c0_172, %c0_173, %c0_174] : memref<16x2x32x1xf32, #tpu.memory_space<vmem>>, vector<1x1x32x1xf32>
    %236 = vector.shape_cast %235 : vector<1x1x32x1xf32> to vector<32x1xf32>
    %237 = vector.broadcast %236 : vector<32x1xf32> to vector<32x128xf32>
    %238 = arith.addf %234, %237 : vector<32x128xf32>
    %cst_175 = arith.constant 0.000000e+00 : f32
    %239 = vector.broadcast %cst_175 : f32 to vector<32x128xf32>
    %240 = arith.maximumf %238, %239 : vector<32x128xf32>
    %c10_176 = arith.constant 10 : index
    %c0_177 = arith.constant 0 : index
    %c0_178 = arith.constant 0 : index
    %241 = vector.load %arg5[%c10_176, %c0_177, %c0_178] : memref<16x32x32xbf16, #tpu.memory_space<vmem>>, vector<1x32x32xbf16>
    %242 = vector.shape_cast %241 : vector<1x32x32xbf16> to vector<32x32xbf16>
    %243 = arith.truncf %240 : vector<32x128xf32> to vector<32x128xbf16>
    %cst_179 = arith.constant dense<0.000000e+00> : vector<32x128xf32>
    %244 = tpu.matmul %242, %243, %cst_179 {dimension_numbers = #tpu.dot_dimension_numbers<[1], [0], [0], [1], [0, 0, 1, 1], [], []>} : vector<32x32xbf16>, vector<32x128xbf16>, vector<32x128xf32> -> vector<32x128xf32>
    %245 = arith.addf %229, %244 : vector<32x128xf32>
    %c10_180 = arith.constant 10 : index
    %c1_181 = arith.constant 1 : index
    %c0_182 = arith.constant 0 : index
    %c0_183 = arith.constant 0 : index
    %246 = vector.load %arg6[%c10_180, %c1_181, %c0_182, %c0_183] : memref<16x2x32x1xf32, #tpu.memory_space<vmem>>, vector<1x1x32x1xf32>
    %247 = vector.shape_cast %246 : vector<1x1x32x1xf32> to vector<32x1xf32>
    %248 = vector.broadcast %247 : vector<32x1xf32> to vector<32x128xf32>
    %249 = arith.addf %245, %248 : vector<32x128xf32>
    %c11 = arith.constant 11 : index
    %c0_184 = arith.constant 0 : index
    %c0_185 = arith.constant 0 : index
    %250 = vector.load %arg4[%c11, %c0_184, %c0_185] : memref<16x32x96xbf16, #tpu.memory_space<vmem>>, vector<1x32x96xbf16>
    %251 = vector.shape_cast %250 : vector<1x32x96xbf16> to vector<32x96xbf16>
    %252 = vector.extract_strided_slice %251 {offsets = [0, 64], sizes = [32, 32], strides = [1, 1]} : vector<32x96xbf16> to vector<32x32xbf16>
    %253 = arith.truncf %249 : vector<32x128xf32> to vector<32x128xbf16>
    %cst_186 = arith.constant dense<0.000000e+00> : vector<32x128xf32>
    %254 = tpu.matmul %252, %253, %cst_186 {dimension_numbers = #tpu.dot_dimension_numbers<[1], [0], [0], [1], [0, 0, 1, 1], [], []>} : vector<32x32xbf16>, vector<32x128xbf16>, vector<32x128xf32> -> vector<32x128xf32>
    %c11_187 = arith.constant 11 : index
    %c0_188 = arith.constant 0 : index
    %c0_189 = arith.constant 0 : index
    %c0_190 = arith.constant 0 : index
    %255 = vector.load %arg6[%c11_187, %c0_188, %c0_189, %c0_190] : memref<16x2x32x1xf32, #tpu.memory_space<vmem>>, vector<1x1x32x1xf32>
    %256 = vector.shape_cast %255 : vector<1x1x32x1xf32> to vector<32x1xf32>
    %257 = vector.broadcast %256 : vector<32x1xf32> to vector<32x128xf32>
    %258 = arith.addf %254, %257 : vector<32x128xf32>
    %cst_191 = arith.constant 0.000000e+00 : f32
    %259 = vector.broadcast %cst_191 : f32 to vector<32x128xf32>
    %260 = arith.maximumf %258, %259 : vector<32x128xf32>
    %c11_192 = arith.constant 11 : index
    %c0_193 = arith.constant 0 : index
    %c0_194 = arith.constant 0 : index
    %261 = vector.load %arg5[%c11_192, %c0_193, %c0_194] : memref<16x32x32xbf16, #tpu.memory_space<vmem>>, vector<1x32x32xbf16>
    %262 = vector.shape_cast %261 : vector<1x32x32xbf16> to vector<32x32xbf16>
    %263 = arith.truncf %260 : vector<32x128xf32> to vector<32x128xbf16>
    %cst_195 = arith.constant dense<0.000000e+00> : vector<32x128xf32>
    %264 = tpu.matmul %262, %263, %cst_195 {dimension_numbers = #tpu.dot_dimension_numbers<[1], [0], [0], [1], [0, 0, 1, 1], [], []>} : vector<32x32xbf16>, vector<32x128xbf16>, vector<32x128xf32> -> vector<32x128xf32>
    %265 = arith.addf %249, %264 : vector<32x128xf32>
    %c11_196 = arith.constant 11 : index
    %c1_197 = arith.constant 1 : index
    %c0_198 = arith.constant 0 : index
    %c0_199 = arith.constant 0 : index
    %266 = vector.load %arg6[%c11_196, %c1_197, %c0_198, %c0_199] : memref<16x2x32x1xf32, #tpu.memory_space<vmem>>, vector<1x1x32x1xf32>
    %267 = vector.shape_cast %266 : vector<1x1x32x1xf32> to vector<32x1xf32>
    %268 = vector.broadcast %267 : vector<32x1xf32> to vector<32x128xf32>
    %269 = arith.addf %265, %268 : vector<32x128xf32>
    %c12 = arith.constant 12 : index
    %c0_200 = arith.constant 0 : index
    %c0_201 = arith.constant 0 : index
    %270 = vector.load %arg4[%c12, %c0_200, %c0_201] : memref<16x32x96xbf16, #tpu.memory_space<vmem>>, vector<1x32x96xbf16>
    %271 = vector.shape_cast %270 : vector<1x32x96xbf16> to vector<32x96xbf16>
    %272 = vector.extract_strided_slice %271 {offsets = [0, 64], sizes = [32, 32], strides = [1, 1]} : vector<32x96xbf16> to vector<32x32xbf16>
    %273 = arith.truncf %269 : vector<32x128xf32> to vector<32x128xbf16>
    %cst_202 = arith.constant dense<0.000000e+00> : vector<32x128xf32>
    %274 = tpu.matmul %272, %273, %cst_202 {dimension_numbers = #tpu.dot_dimension_numbers<[1], [0], [0], [1], [0, 0, 1, 1], [], []>} : vector<32x32xbf16>, vector<32x128xbf16>, vector<32x128xf32> -> vector<32x128xf32>
    %c12_203 = arith.constant 12 : index
    %c0_204 = arith.constant 0 : index
    %c0_205 = arith.constant 0 : index
    %c0_206 = arith.constant 0 : index
    %275 = vector.load %arg6[%c12_203, %c0_204, %c0_205, %c0_206] : memref<16x2x32x1xf32, #tpu.memory_space<vmem>>, vector<1x1x32x1xf32>
    %276 = vector.shape_cast %275 : vector<1x1x32x1xf32> to vector<32x1xf32>
    %277 = vector.broadcast %276 : vector<32x1xf32> to vector<32x128xf32>
    %278 = arith.addf %274, %277 : vector<32x128xf32>
    %cst_207 = arith.constant 0.000000e+00 : f32
    %279 = vector.broadcast %cst_207 : f32 to vector<32x128xf32>
    %280 = arith.maximumf %278, %279 : vector<32x128xf32>
    %c12_208 = arith.constant 12 : index
    %c0_209 = arith.constant 0 : index
    %c0_210 = arith.constant 0 : index
    %281 = vector.load %arg5[%c12_208, %c0_209, %c0_210] : memref<16x32x32xbf16, #tpu.memory_space<vmem>>, vector<1x32x32xbf16>
    %282 = vector.shape_cast %281 : vector<1x32x32xbf16> to vector<32x32xbf16>
    %283 = arith.truncf %280 : vector<32x128xf32> to vector<32x128xbf16>
    %cst_211 = arith.constant dense<0.000000e+00> : vector<32x128xf32>
    %284 = tpu.matmul %282, %283, %cst_211 {dimension_numbers = #tpu.dot_dimension_numbers<[1], [0], [0], [1], [0, 0, 1, 1], [], []>} : vector<32x32xbf16>, vector<32x128xbf16>, vector<32x128xf32> -> vector<32x128xf32>
    %285 = arith.addf %269, %284 : vector<32x128xf32>
    %c12_212 = arith.constant 12 : index
    %c1_213 = arith.constant 1 : index
    %c0_214 = arith.constant 0 : index
    %c0_215 = arith.constant 0 : index
    %286 = vector.load %arg6[%c12_212, %c1_213, %c0_214, %c0_215] : memref<16x2x32x1xf32, #tpu.memory_space<vmem>>, vector<1x1x32x1xf32>
    %287 = vector.shape_cast %286 : vector<1x1x32x1xf32> to vector<32x1xf32>
    %288 = vector.broadcast %287 : vector<32x1xf32> to vector<32x128xf32>
    %289 = arith.addf %285, %288 : vector<32x128xf32>
    %c13 = arith.constant 13 : index
    %c0_216 = arith.constant 0 : index
    %c0_217 = arith.constant 0 : index
    %290 = vector.load %arg4[%c13, %c0_216, %c0_217] : memref<16x32x96xbf16, #tpu.memory_space<vmem>>, vector<1x32x96xbf16>
    %291 = vector.shape_cast %290 : vector<1x32x96xbf16> to vector<32x96xbf16>
    %292 = vector.extract_strided_slice %291 {offsets = [0, 64], sizes = [32, 32], strides = [1, 1]} : vector<32x96xbf16> to vector<32x32xbf16>
    %293 = arith.truncf %289 : vector<32x128xf32> to vector<32x128xbf16>
    %cst_218 = arith.constant dense<0.000000e+00> : vector<32x128xf32>
    %294 = tpu.matmul %292, %293, %cst_218 {dimension_numbers = #tpu.dot_dimension_numbers<[1], [0], [0], [1], [0, 0, 1, 1], [], []>} : vector<32x32xbf16>, vector<32x128xbf16>, vector<32x128xf32> -> vector<32x128xf32>
    %c13_219 = arith.constant 13 : index
    %c0_220 = arith.constant 0 : index
    %c0_221 = arith.constant 0 : index
    %c0_222 = arith.constant 0 : index
    %295 = vector.load %arg6[%c13_219, %c0_220, %c0_221, %c0_222] : memref<16x2x32x1xf32, #tpu.memory_space<vmem>>, vector<1x1x32x1xf32>
    %296 = vector.shape_cast %295 : vector<1x1x32x1xf32> to vector<32x1xf32>
    %297 = vector.broadcast %296 : vector<32x1xf32> to vector<32x128xf32>
    %298 = arith.addf %294, %297 : vector<32x128xf32>
    %cst_223 = arith.constant 0.000000e+00 : f32
    %299 = vector.broadcast %cst_223 : f32 to vector<32x128xf32>
    %300 = arith.maximumf %298, %299 : vector<32x128xf32>
    %c13_224 = arith.constant 13 : index
    %c0_225 = arith.constant 0 : index
    %c0_226 = arith.constant 0 : index
    %301 = vector.load %arg5[%c13_224, %c0_225, %c0_226] : memref<16x32x32xbf16, #tpu.memory_space<vmem>>, vector<1x32x32xbf16>
    %302 = vector.shape_cast %301 : vector<1x32x32xbf16> to vector<32x32xbf16>
    %303 = arith.truncf %300 : vector<32x128xf32> to vector<32x128xbf16>
    %cst_227 = arith.constant dense<0.000000e+00> : vector<32x128xf32>
    %304 = tpu.matmul %302, %303, %cst_227 {dimension_numbers = #tpu.dot_dimension_numbers<[1], [0], [0], [1], [0, 0, 1, 1], [], []>} : vector<32x32xbf16>, vector<32x128xbf16>, vector<32x128xf32> -> vector<32x128xf32>
    %305 = arith.addf %289, %304 : vector<32x128xf32>
    %c13_228 = arith.constant 13 : index
    %c1_229 = arith.constant 1 : index
    %c0_230 = arith.constant 0 : index
    %c0_231 = arith.constant 0 : index
    %306 = vector.load %arg6[%c13_228, %c1_229, %c0_230, %c0_231] : memref<16x2x32x1xf32, #tpu.memory_space<vmem>>, vector<1x1x32x1xf32>
    %307 = vector.shape_cast %306 : vector<1x1x32x1xf32> to vector<32x1xf32>
    %308 = vector.broadcast %307 : vector<32x1xf32> to vector<32x128xf32>
    %309 = arith.addf %305, %308 : vector<32x128xf32>
    %c14 = arith.constant 14 : index
    %c0_232 = arith.constant 0 : index
    %c0_233 = arith.constant 0 : index
    %310 = vector.load %arg4[%c14, %c0_232, %c0_233] : memref<16x32x96xbf16, #tpu.memory_space<vmem>>, vector<1x32x96xbf16>
    %311 = vector.shape_cast %310 : vector<1x32x96xbf16> to vector<32x96xbf16>
    %312 = vector.extract_strided_slice %311 {offsets = [0, 64], sizes = [32, 32], strides = [1, 1]} : vector<32x96xbf16> to vector<32x32xbf16>
    %313 = arith.truncf %309 : vector<32x128xf32> to vector<32x128xbf16>
    %cst_234 = arith.constant dense<0.000000e+00> : vector<32x128xf32>
    %314 = tpu.matmul %312, %313, %cst_234 {dimension_numbers = #tpu.dot_dimension_numbers<[1], [0], [0], [1], [0, 0, 1, 1], [], []>} : vector<32x32xbf16>, vector<32x128xbf16>, vector<32x128xf32> -> vector<32x128xf32>
    %c14_235 = arith.constant 14 : index
    %c0_236 = arith.constant 0 : index
    %c0_237 = arith.constant 0 : index
    %c0_238 = arith.constant 0 : index
    %315 = vector.load %arg6[%c14_235, %c0_236, %c0_237, %c0_238] : memref<16x2x32x1xf32, #tpu.memory_space<vmem>>, vector<1x1x32x1xf32>
    %316 = vector.shape_cast %315 : vector<1x1x32x1xf32> to vector<32x1xf32>
    %317 = vector.broadcast %316 : vector<32x1xf32> to vector<32x128xf32>
    %318 = arith.addf %314, %317 : vector<32x128xf32>
    %cst_239 = arith.constant 0.000000e+00 : f32
    %319 = vector.broadcast %cst_239 : f32 to vector<32x128xf32>
    %320 = arith.maximumf %318, %319 : vector<32x128xf32>
    %c14_240 = arith.constant 14 : index
    %c0_241 = arith.constant 0 : index
    %c0_242 = arith.constant 0 : index
    %321 = vector.load %arg5[%c14_240, %c0_241, %c0_242] : memref<16x32x32xbf16, #tpu.memory_space<vmem>>, vector<1x32x32xbf16>
    %322 = vector.shape_cast %321 : vector<1x32x32xbf16> to vector<32x32xbf16>
    %323 = arith.truncf %320 : vector<32x128xf32> to vector<32x128xbf16>
    %cst_243 = arith.constant dense<0.000000e+00> : vector<32x128xf32>
    %324 = tpu.matmul %322, %323, %cst_243 {dimension_numbers = #tpu.dot_dimension_numbers<[1], [0], [0], [1], [0, 0, 1, 1], [], []>} : vector<32x32xbf16>, vector<32x128xbf16>, vector<32x128xf32> -> vector<32x128xf32>
    %325 = arith.addf %309, %324 : vector<32x128xf32>
    %c14_244 = arith.constant 14 : index
    %c1_245 = arith.constant 1 : index
    %c0_246 = arith.constant 0 : index
    %c0_247 = arith.constant 0 : index
    %326 = vector.load %arg6[%c14_244, %c1_245, %c0_246, %c0_247] : memref<16x2x32x1xf32, #tpu.memory_space<vmem>>, vector<1x1x32x1xf32>
    %327 = vector.shape_cast %326 : vector<1x1x32x1xf32> to vector<32x1xf32>
    %328 = vector.broadcast %327 : vector<32x1xf32> to vector<32x128xf32>
    %329 = arith.addf %325, %328 : vector<32x128xf32>
    %c15 = arith.constant 15 : index
    %c0_248 = arith.constant 0 : index
    %c0_249 = arith.constant 0 : index
    %330 = vector.load %arg4[%c15, %c0_248, %c0_249] : memref<16x32x96xbf16, #tpu.memory_space<vmem>>, vector<1x32x96xbf16>
    %331 = vector.shape_cast %330 : vector<1x32x96xbf16> to vector<32x96xbf16>
    %332 = vector.extract_strided_slice %331 {offsets = [0, 64], sizes = [32, 32], strides = [1, 1]} : vector<32x96xbf16> to vector<32x32xbf16>
    %333 = arith.truncf %329 : vector<32x128xf32> to vector<32x128xbf16>
    %cst_250 = arith.constant dense<0.000000e+00> : vector<32x128xf32>
    %334 = tpu.matmul %332, %333, %cst_250 {dimension_numbers = #tpu.dot_dimension_numbers<[1], [0], [0], [1], [0, 0, 1, 1], [], []>} : vector<32x32xbf16>, vector<32x128xbf16>, vector<32x128xf32> -> vector<32x128xf32>
    %c15_251 = arith.constant 15 : index
    %c0_252 = arith.constant 0 : index
    %c0_253 = arith.constant 0 : index
    %c0_254 = arith.constant 0 : index
    %335 = vector.load %arg6[%c15_251, %c0_252, %c0_253, %c0_254] : memref<16x2x32x1xf32, #tpu.memory_space<vmem>>, vector<1x1x32x1xf32>
    %336 = vector.shape_cast %335 : vector<1x1x32x1xf32> to vector<32x1xf32>
    %337 = vector.broadcast %336 : vector<32x1xf32> to vector<32x128xf32>
    %338 = arith.addf %334, %337 : vector<32x128xf32>
    %cst_255 = arith.constant 0.000000e+00 : f32
    %339 = vector.broadcast %cst_255 : f32 to vector<32x128xf32>
    %340 = arith.maximumf %338, %339 : vector<32x128xf32>
    %c15_256 = arith.constant 15 : index
    %c0_257 = arith.constant 0 : index
    %c0_258 = arith.constant 0 : index
    %341 = vector.load %arg5[%c15_256, %c0_257, %c0_258] : memref<16x32x32xbf16, #tpu.memory_space<vmem>>, vector<1x32x32xbf16>
    %342 = vector.shape_cast %341 : vector<1x32x32xbf16> to vector<32x32xbf16>
    %343 = arith.truncf %340 : vector<32x128xf32> to vector<32x128xbf16>
    %cst_259 = arith.constant dense<0.000000e+00> : vector<32x128xf32>
    %344 = tpu.matmul %342, %343, %cst_259 {dimension_numbers = #tpu.dot_dimension_numbers<[1], [0], [0], [1], [0, 0, 1, 1], [], []>} : vector<32x32xbf16>, vector<32x128xbf16>, vector<32x128xf32> -> vector<32x128xf32>
    %345 = arith.addf %329, %344 : vector<32x128xf32>
    %c15_260 = arith.constant 15 : index
    %c1_261 = arith.constant 1 : index
    %c0_262 = arith.constant 0 : index
    %c0_263 = arith.constant 0 : index
    %346 = vector.load %arg6[%c15_260, %c1_261, %c0_262, %c0_263] : memref<16x2x32x1xf32, #tpu.memory_space<vmem>>, vector<1x1x32x1xf32>
    %347 = vector.shape_cast %346 : vector<1x1x32x1xf32> to vector<32x1xf32>
    %348 = vector.broadcast %347 : vector<32x1xf32> to vector<32x128xf32>
    %349 = arith.addf %345, %348 : vector<32x128xf32>
    %c0_264 = arith.constant 0 : index
    %c0_265 = arith.constant 0 : index
    %350 = vector.load %arg7[%c0_264, %c0_265] : memref<256x32xbf16, #tpu.memory_space<vmem>>, vector<256x32xbf16>
    %351 = arith.truncf %349 : vector<32x128xf32> to vector<32x128xbf16>
    %cst_266 = arith.constant dense<0.000000e+00> : vector<256x128xf32>
    %352 = tpu.matmul %350, %351, %cst_266 {dimension_numbers = #tpu.dot_dimension_numbers<[1], [0], [0], [1], [0, 0, 1, 1], [], []>} : vector<256x32xbf16>, vector<32x128xbf16>, vector<256x128xf32> -> vector<256x128xf32>
    %c0_267 = arith.constant 0 : index
    %c0_268 = arith.constant 0 : index
    %353 = vector.load %arg8[%c0_267, %c0_268] : memref<256x1xf32, #tpu.memory_space<vmem>>, vector<256x1xf32>
    %354 = vector.broadcast %353 : vector<256x1xf32> to vector<256x128xf32>
    %355 = arith.addf %352, %354 : vector<256x128xf32>
    %c0_269 = arith.constant 0 : index
    %c0_270 = arith.constant 0 : index
    %c0_271 = arith.constant 0 : index
    %356 = vector.load %arg16[%c0_269, %c0_270, %c0_271] : memref<7x32x1xf32, #tpu.memory_space<vmem>>, vector<1x32x1xf32>
    %357 = vector.shape_cast %356 : vector<1x32x1xf32> to vector<32x1xf32>
    %c1_272 = arith.constant 1 : index
    %c0_273 = arith.constant 0 : index
    %c0_274 = arith.constant 0 : index
    %358 = vector.load %arg16[%c1_272, %c0_273, %c0_274] : memref<7x32x1xf32, #tpu.memory_space<vmem>>, vector<1x32x1xf32>
    %359 = vector.shape_cast %358 : vector<1x32x1xf32> to vector<32x1xf32>
    %c2_275 = arith.constant 2 : index
    %c0_276 = arith.constant 0 : index
    %c0_277 = arith.constant 0 : index
    %360 = vector.load %arg16[%c2_275, %c0_276, %c0_277] : memref<7x32x1xf32, #tpu.memory_space<vmem>>, vector<1x32x1xf32>
    %361 = vector.shape_cast %360 : vector<1x32x1xf32> to vector<32x1xf32>
    %c3_278 = arith.constant 3 : index
    %c0_279 = arith.constant 0 : index
    %c0_280 = arith.constant 0 : index
    %362 = vector.load %arg16[%c3_278, %c0_279, %c0_280] : memref<7x32x1xf32, #tpu.memory_space<vmem>>, vector<1x32x1xf32>
    %363 = vector.shape_cast %362 : vector<1x32x1xf32> to vector<32x1xf32>
    %c4_281 = arith.constant 4 : index
    %c0_282 = arith.constant 0 : index
    %c0_283 = arith.constant 0 : index
    %364 = vector.load %arg16[%c4_281, %c0_282, %c0_283] : memref<7x32x1xf32, #tpu.memory_space<vmem>>, vector<1x32x1xf32>
    %365 = vector.shape_cast %364 : vector<1x32x1xf32> to vector<32x1xf32>
    %c5_284 = arith.constant 5 : index
    %c0_285 = arith.constant 0 : index
    %c0_286 = arith.constant 0 : index
    %366 = vector.load %arg16[%c5_284, %c0_285, %c0_286] : memref<7x32x1xf32, #tpu.memory_space<vmem>>, vector<1x32x1xf32>
    %367 = vector.shape_cast %366 : vector<1x32x1xf32> to vector<32x1xf32>
    %c6_287 = arith.constant 6 : index
    %c0_288 = arith.constant 0 : index
    %c0_289 = arith.constant 0 : index
    %368 = vector.load %arg16[%c6_287, %c0_288, %c0_289] : memref<7x32x1xf32, #tpu.memory_space<vmem>>, vector<1x32x1xf32>
    %369 = vector.shape_cast %368 : vector<1x32x1xf32> to vector<32x1xf32>
    %c0_290 = arith.constant 0 : index
    %c0_291 = arith.constant 0 : index
    %370 = vector.load %arg9[%c0_290, %c0_291] : memref<32x256xbf16, #tpu.memory_space<vmem>>, vector<32x256xbf16>
    %371 = arith.truncf %355 : vector<256x128xf32> to vector<256x128xbf16>
    %cst_292 = arith.constant dense<0.000000e+00> : vector<32x128xf32>
    %372 = tpu.matmul %370, %371, %cst_292 {dimension_numbers = #tpu.dot_dimension_numbers<[1], [0], [0], [1], [0, 0, 1, 1], [], []>} : vector<32x256xbf16>, vector<256x128xbf16>, vector<32x128xf32> -> vector<32x128xf32>
    %373 = vector.broadcast %357 : vector<32x1xf32> to vector<32x128xf32>
    %374 = arith.addf %372, %373 : vector<32x128xf32>
    %375 = arith.truncf %374 : vector<32x128xf32> to vector<32x128xbf16>
    %c0_293 = arith.constant 0 : index
    %c0_294 = arith.constant 0 : index
    %376 = vector.load %arg10[%c0_293, %c0_294] : memref<128x32xbf16, #tpu.memory_space<vmem>>, vector<128x32xbf16>
    %377 = vector.extract_strided_slice %376 {offsets = [0, 0], sizes = [96, 32], strides = [1, 1]} : vector<128x32xbf16> to vector<96x32xbf16>
    %cst_295 = arith.constant dense<0.000000e+00> : vector<96x128xf32>
    %378 = tpu.matmul %377, %375, %cst_295 {dimension_numbers = #tpu.dot_dimension_numbers<[1], [0], [0], [1], [0, 0, 1, 1], [], []>} : vector<96x32xbf16>, vector<32x128xbf16>, vector<96x128xf32> -> vector<96x128xf32>
    %379 = vector.extract_strided_slice %378 {offsets = [0, 0], sizes = [32, 128], strides = [1, 1]} : vector<96x128xf32> to vector<32x128xf32>
    %cst_296 = arith.constant 0.176776692 : f32
    %380 = vector.broadcast %cst_296 : f32 to vector<32x128xf32>
    %381 = arith.mulf %379, %380 : vector<32x128xf32>
    %382 = vector.extract_strided_slice %378 {offsets = [32, 0], sizes = [32, 128], strides = [1, 1]} : vector<96x128xf32> to vector<32x128xf32>
    %383 = vector.extract_strided_slice %378 {offsets = [64, 0], sizes = [32, 128], strides = [1, 1]} : vector<96x128xf32> to vector<32x128xf32>
    %384 = arith.truncf %381 : vector<32x128xf32> to vector<32x128xbf16>
    %385 = arith.truncf %382 : vector<32x128xf32> to vector<32x128xbf16>
    %cst_297 = arith.constant dense<0.000000e+00> : vector<128x128xf32>
    %386 = tpu.matmul %384, %385, %cst_297 {dimension_numbers = #tpu.dot_dimension_numbers<[0], [0], [1], [1], [0, 1, 1, 1], [], []>} : vector<32x128xbf16>, vector<32x128xbf16>, vector<128x128xf32> -> vector<128x128xf32>
    %cst_298 = arith.constant dense<0xFF800000> : vector<128xf32>
    %387 = vector.multi_reduction <maximumf>, %386, %cst_298 [1] : vector<128x128xf32> to vector<128xf32>
    %388 = vector.shape_cast %387 : vector<128xf32> to vector<128x1xf32>
    %389 = vector.broadcast %388 : vector<128x1xf32> to vector<128x128xf32>
    %390 = arith.subf %386, %389 : vector<128x128xf32>
    %391 = math.exp %390 : vector<128x128xf32>
    %cst_299 = arith.constant dense<0.000000e+00> : vector<128xf32>
    %392 = vector.multi_reduction <add>, %391, %cst_299 [1] : vector<128x128xf32> to vector<128xf32>
    %393 = vector.shape_cast %392 : vector<128xf32> to vector<128x1xf32>
    %cst_300 = arith.constant 1.000000e+00 : f32
    %394 = vector.broadcast %cst_300 : f32 to vector<128x1xf32>
    %395 = arith.divf %394, %393 : vector<128x1xf32>
    %396 = vector.broadcast %395 : vector<128x1xf32> to vector<128x128xf32>
    %397 = arith.mulf %391, %396 : vector<128x128xf32>
    %398 = arith.truncf %383 : vector<32x128xf32> to vector<32x128xbf16>
    %399 = arith.truncf %397 : vector<128x128xf32> to vector<128x128xbf16>
    %cst_301 = arith.constant dense<0.000000e+00> : vector<32x128xf32>
    %400 = tpu.matmul %398, %399, %cst_301 {dimension_numbers = #tpu.dot_dimension_numbers<[1], [1], [0], [0], [0, 0, 1, 0], [], []>} : vector<32x128xbf16>, vector<128x128xbf16>, vector<32x128xf32> -> vector<32x128xf32>
    %401 = vector.extract_strided_slice %376 {offsets = [96, 0], sizes = [32, 32], strides = [1, 1]} : vector<128x32xbf16> to vector<32x32xbf16>
    %402 = arith.truncf %400 : vector<32x128xf32> to vector<32x128xbf16>
    %cst_302 = arith.constant dense<0.000000e+00> : vector<32x128xf32>
    %403 = tpu.matmul %401, %402, %cst_302 {dimension_numbers = #tpu.dot_dimension_numbers<[1], [0], [0], [1], [0, 0, 1, 1], [], []>} : vector<32x32xbf16>, vector<32x128xbf16>, vector<32x128xf32> -> vector<32x128xf32>
    %404 = vector.broadcast %359 : vector<32x1xf32> to vector<32x128xf32>
    %405 = arith.addf %403, %404 : vector<32x128xf32>
    %406 = arith.addf %374, %405 : vector<32x128xf32>
    %cst_303 = arith.constant dense<0.000000e+00> : vector<128xf32>
    %407 = vector.multi_reduction <add>, %406, %cst_303 [0] : vector<32x128xf32> to vector<128xf32>
    %408 = vector.shape_cast %407 : vector<128xf32> to vector<1x128xf32>
    %cst_304 = arith.constant 3.200000e+01 : f32
    %409 = vector.broadcast %cst_304 : f32 to vector<1x128xf32>
    %410 = arith.divf %408, %409 : vector<1x128xf32>
    %411 = vector.broadcast %410 : vector<1x128xf32> to vector<32x128xf32>
    %412 = arith.subf %406, %411 : vector<32x128xf32>
    %413 = arith.mulf %412, %412 : vector<32x128xf32>
    %cst_305 = arith.constant dense<0.000000e+00> : vector<128xf32>
    %414 = vector.multi_reduction <add>, %413, %cst_305 [0] : vector<32x128xf32> to vector<128xf32>
    %415 = vector.shape_cast %414 : vector<128xf32> to vector<1x128xf32>
    %cst_306 = arith.constant 3.200000e+01 : f32
    %416 = vector.broadcast %cst_306 : f32 to vector<1x128xf32>
    %417 = arith.divf %415, %416 : vector<1x128xf32>
    %418 = vector.broadcast %410 : vector<1x128xf32> to vector<32x128xf32>
    %419 = arith.subf %406, %418 : vector<32x128xf32>
    %cst_307 = arith.constant 9.99999974E-6 : f32
    %420 = vector.broadcast %cst_307 : f32 to vector<1x128xf32>
    %421 = arith.addf %417, %420 : vector<1x128xf32>
    %422 = math.rsqrt %421 : vector<1x128xf32>
    %423 = vector.broadcast %422 : vector<1x128xf32> to vector<32x128xf32>
    %424 = arith.mulf %419, %423 : vector<32x128xf32>
    %425 = vector.broadcast %361 : vector<32x1xf32> to vector<32x128xf32>
    %426 = arith.mulf %424, %425 : vector<32x128xf32>
    %427 = vector.broadcast %363 : vector<32x1xf32> to vector<32x128xf32>
    %428 = arith.addf %426, %427 : vector<32x128xf32>
    %c0_308 = arith.constant 0 : index
    %c0_309 = arith.constant 0 : index
    %429 = vector.load %arg11[%c0_308, %c0_309] : memref<128x32xbf16, #tpu.memory_space<vmem>>, vector<128x32xbf16>
    %430 = arith.truncf %428 : vector<32x128xf32> to vector<32x128xbf16>
    %cst_310 = arith.constant dense<0.000000e+00> : vector<128x128xf32>
    %431 = tpu.matmul %429, %430, %cst_310 {dimension_numbers = #tpu.dot_dimension_numbers<[1], [0], [0], [1], [0, 0, 1, 1], [], []>} : vector<128x32xbf16>, vector<32x128xbf16>, vector<128x128xf32> -> vector<128x128xf32>
    %c0_311 = arith.constant 0 : index
    %c0_312 = arith.constant 0 : index
    %432 = vector.load %arg12[%c0_311, %c0_312] : memref<128x1xf32, #tpu.memory_space<vmem>>, vector<128x1xf32>
    %433 = vector.broadcast %432 : vector<128x1xf32> to vector<128x128xf32>
    %434 = arith.addf %431, %433 : vector<128x128xf32>
    %cst_313 = arith.constant 0.000000e+00 : f32
    %435 = vector.broadcast %cst_313 : f32 to vector<128x128xf32>
    %436 = arith.maximumf %434, %435 : vector<128x128xf32>
    %c0_314 = arith.constant 0 : index
    %c0_315 = arith.constant 0 : index
    %437 = vector.load %arg13[%c0_314, %c0_315] : memref<32x128xbf16, #tpu.memory_space<vmem>>, vector<32x128xbf16>
    %438 = arith.truncf %436 : vector<128x128xf32> to vector<128x128xbf16>
    %cst_316 = arith.constant dense<0.000000e+00> : vector<32x128xf32>
    %439 = tpu.matmul %437, %438, %cst_316 {dimension_numbers = #tpu.dot_dimension_numbers<[1], [0], [0], [1], [0, 0, 1, 1], [], []>} : vector<32x128xbf16>, vector<128x128xbf16>, vector<32x128xf32> -> vector<32x128xf32>
    %440 = arith.addf %428, %439 : vector<32x128xf32>
    %441 = vector.broadcast %365 : vector<32x1xf32> to vector<32x128xf32>
    %442 = arith.addf %440, %441 : vector<32x128xf32>
    %cst_317 = arith.constant dense<0.000000e+00> : vector<128xf32>
    %443 = vector.multi_reduction <add>, %442, %cst_317 [0] : vector<32x128xf32> to vector<128xf32>
    %444 = vector.shape_cast %443 : vector<128xf32> to vector<1x128xf32>
    %cst_318 = arith.constant 3.200000e+01 : f32
    %445 = vector.broadcast %cst_318 : f32 to vector<1x128xf32>
    %446 = arith.divf %444, %445 : vector<1x128xf32>
    %447 = vector.broadcast %446 : vector<1x128xf32> to vector<32x128xf32>
    %448 = arith.subf %442, %447 : vector<32x128xf32>
    %449 = arith.mulf %448, %448 : vector<32x128xf32>
    %cst_319 = arith.constant dense<0.000000e+00> : vector<128xf32>
    %450 = vector.multi_reduction <add>, %449, %cst_319 [0] : vector<32x128xf32> to vector<128xf32>
    %451 = vector.shape_cast %450 : vector<128xf32> to vector<1x128xf32>
    %cst_320 = arith.constant 3.200000e+01 : f32
    %452 = vector.broadcast %cst_320 : f32 to vector<1x128xf32>
    %453 = arith.divf %451, %452 : vector<1x128xf32>
    %454 = vector.broadcast %446 : vector<1x128xf32> to vector<32x128xf32>
    %455 = arith.subf %442, %454 : vector<32x128xf32>
    %cst_321 = arith.constant 9.99999974E-6 : f32
    %456 = vector.broadcast %cst_321 : f32 to vector<1x128xf32>
    %457 = arith.addf %453, %456 : vector<1x128xf32>
    %458 = math.rsqrt %457 : vector<1x128xf32>
    %459 = vector.broadcast %458 : vector<1x128xf32> to vector<32x128xf32>
    %460 = arith.mulf %455, %459 : vector<32x128xf32>
    %461 = vector.broadcast %367 : vector<32x1xf32> to vector<32x128xf32>
    %462 = arith.mulf %460, %461 : vector<32x128xf32>
    %463 = vector.broadcast %369 : vector<32x1xf32> to vector<32x128xf32>
    %464 = arith.addf %462, %463 : vector<32x128xf32>
    %c0_322 = arith.constant 0 : index
    %c0_323 = arith.constant 0 : index
    %465 = vector.load %arg14[%c0_322, %c0_323] : memref<8x32xbf16, #tpu.memory_space<vmem>>, vector<8x32xbf16>
    %466 = arith.truncf %464 : vector<32x128xf32> to vector<32x128xbf16>
    %cst_324 = arith.constant dense<0.000000e+00> : vector<8x128xf32>
    %467 = tpu.matmul %465, %466, %cst_324 {dimension_numbers = #tpu.dot_dimension_numbers<[1], [0], [0], [1], [0, 0, 1, 1], [], []>} : vector<8x32xbf16>, vector<32x128xbf16>, vector<8x128xf32> -> vector<8x128xf32>
    %c0_325 = arith.constant 0 : index
    %c0_326 = arith.constant 0 : index
    %468 = vector.load %arg15[%c0_325, %c0_326] : memref<8x1xf32, #tpu.memory_space<vmem>>, vector<8x1xf32>
    %469 = vector.broadcast %468 : vector<8x1xf32> to vector<8x128xf32>
    %470 = arith.addf %467, %469 : vector<8x128xf32>
    %c0_327 = arith.constant 0 : index
    %c0_328 = arith.constant 0 : index
    %c0_329 = arith.constant 0 : index
    %471 = vector.load %arg17[%c0_327, %c0_328, %c0_329] : memref<1x8x128xf32, #tpu.memory_space<vmem>>, vector<1x8x128xf32>
    %472 = vector.shape_cast %471 : vector<1x8x128xf32> to vector<8x128xf32>
    %473 = vector.shape_cast %470 : vector<8x128xf32> to vector<1x8x128xf32>
    tpu.vector_store %arg17[%c0_327, %c0_328, %c0_329], %473 {strides = array<i32>} : memref<1x8x128xf32, #tpu.memory_space<vmem>>, vector<1x8x128xf32>,
    return
  }
  func.func @transform_0(%arg0: i32) -> (i32, i32, i32) {
    %c0_i32 = arith.constant 0 : i32
    %c0_i32_0 = arith.constant 0 : i32
    %c0_i32_1 = arith.constant 0 : i32
    return %arg0, %c0_i32, %c0_i32_0 : i32, i32, i32
  }
  func.func @transform_1(%arg0: i32) -> (i32, i32) {
    %c0_i32 = arith.constant 0 : i32
    %c0_i32_0 = arith.constant 0 : i32
    %c0_i32_1 = arith.constant 0 : i32
    return %c0_i32, %c0_i32_0 : i32, i32
  }
  func.func @transform_2(%arg0: i32) -> (i32, i32) {
    %c0_i32 = arith.constant 0 : i32
    %c0_i32_0 = arith.constant 0 : i32
    %c0_i32_1 = arith.constant 0 : i32
    return %c0_i32, %c0_i32_0 : i32, i32
  }
  func.func @transform_3(%arg0: i32) -> (i32, i32, i32) {
    %c0_i32 = arith.constant 0 : i32
    %c0_i32_0 = arith.constant 0 : i32
    %c0_i32_1 = arith.constant 0 : i32
    %c0_i32_2 = arith.constant 0 : i32
    return %c0_i32, %c0_i32_0, %c0_i32_1 : i32, i32, i32
  }
  func.func @transform_4(%arg0: i32) -> (i32, i32, i32) {
    %c0_i32 = arith.constant 0 : i32
    %c0_i32_0 = arith.constant 0 : i32
    %c0_i32_1 = arith.constant 0 : i32
    %c0_i32_2 = arith.constant 0 : i32
    return %c0_i32, %c0_i32_0, %c0_i32_1 : i32, i32, i32
  }
  func.func @transform_5(%arg0: i32) -> (i32, i32, i32, i32) {
    %c0_i32 = arith.constant 0 : i32
    %c0_i32_0 = arith.constant 0 : i32
    %c0_i32_1 = arith.constant 0 : i32
    %c0_i32_2 = arith.constant 0 : i32
    %c0_i32_3 = arith.constant 0 : i32
    return %c0_i32, %c0_i32_0, %c0_i32_1, %c0_i32_2 : i32, i32, i32, i32
  }
  func.func @transform_6(%arg0: i32) -> (i32, i32) {
    %c0_i32 = arith.constant 0 : i32
    %c0_i32_0 = arith.constant 0 : i32
    %c0_i32_1 = arith.constant 0 : i32
    return %c0_i32, %c0_i32_0 : i32, i32
  }
  func.func @transform_7(%arg0: i32) -> (i32, i32) {
    %c0_i32 = arith.constant 0 : i32
    %c0_i32_0 = arith.constant 0 : i32
    %c0_i32_1 = arith.constant 0 : i32
    return %c0_i32, %c0_i32_0 : i32, i32
  }
  func.func @transform_8(%arg0: i32) -> (i32, i32) {
    %c0_i32 = arith.constant 0 : i32
    %c0_i32_0 = arith.constant 0 : i32
    %c0_i32_1 = arith.constant 0 : i32
    return %c0_i32, %c0_i32_0 : i32, i32
  }
  func.func @transform_9(%arg0: i32) -> (i32, i32) {
    %c0_i32 = arith.constant 0 : i32
    %c0_i32_0 = arith.constant 0 : i32
    %c0_i32_1 = arith.constant 0 : i32
    return %c0_i32, %c0_i32_0 : i32, i32
  }
  func.func @transform_10(%arg0: i32) -> (i32, i32) {
    %c0_i32 = arith.constant 0 : i32
    %c0_i32_0 = arith.constant 0 : i32
    %c0_i32_1 = arith.constant 0 : i32
    return %c0_i32, %c0_i32_0 : i32, i32
  }
  func.func @transform_11(%arg0: i32) -> (i32, i32) {
    %c0_i32 = arith.constant 0 : i32
    %c0_i32_0 = arith.constant 0 : i32
    %c0_i32_1 = arith.constant 0 : i32
    return %c0_i32, %c0_i32_0 : i32, i32
  }
  func.func @transform_12(%arg0: i32) -> (i32, i32) {
    %c0_i32 = arith.constant 0 : i32
    %c0_i32_0 = arith.constant 0 : i32
    %c0_i32_1 = arith.constant 0 : i32
    return %c0_i32, %c0_i32_0 : i32, i32
  }
  func.func @transform_13(%arg0: i32) -> (i32, i32) {
    %c0_i32 = arith.constant 0 : i32
    %c0_i32_0 = arith.constant 0 : i32
    %c0_i32_1 = arith.constant 0 : i32
    return %c0_i32, %c0_i32_0 : i32, i32
  }
  func.func @transform_14(%arg0: i32) -> (i32, i32) {
    %c0_i32 = arith.constant 0 : i32
    %c0_i32_0 = arith.constant 0 : i32
    %c0_i32_1 = arith.constant 0 : i32
    return %c0_i32, %c0_i32_0 : i32, i32
  }
  func.func @transform_15(%arg0: i32) -> (i32, i32, i32) {
    %c0_i32 = arith.constant 0 : i32
    %c0_i32_0 = arith.constant 0 : i32
    %c0_i32_1 = arith.constant 0 : i32
    %c0_i32_2 = arith.constant 0 : i32
    return %c0_i32, %c0_i32_0, %c0_i32_1 : i32, i32, i32
  }
  func.func @transform_16(%arg0: i32) -> (i32, i32, i32) {
    %c0_i32 = arith.constant 0 : i32
    %c0_i32_0 = arith.constant 0 : i32
    %c0_i32_1 = arith.constant 0 : i32
    return %arg0, %c0_i32, %c0_i32_0 : i32, i32, i32
  }
}

</mosaic_0001>

<llo_original>
// kernel: spa_tem_forward.1
$region0: #{spa_tem_forward.1}
  #allocation0 [shape = 'u32[]', space=smem, size = 0x4, offset = 0x4, fixed_abs, tag = 'smem constant byte address 0x4 - core index']
  #allocation1 [shape = 'u32[72,128]{1,0:T(1,128)}', space=vmem, size = 0x9000, scoped, tag = 'internal scratch']
  %s0 = inlined_call_operand.hbm [shape: f32[2,2048,128], index: 0, kind: input, shape index: {}]
  %s1 = inlined_call_operand.hbm [shape: bf16[32,2048], index: 1, kind: input, shape index: {}]
  %s2 = inlined_call_operand.vmem [shape: f32[32,1], index: 2, kind: input, shape index: {}]
  %s3 = inlined_call_operand.hbm [shape: bf16[16,32,96], index: 3, kind: input, shape index: {}]
  %s4 = inlined_call_operand.hbm [shape: bf16[16,32,32], index: 4, kind: input, shape index: {}]
  %s5 = inlined_call_operand.vmem [shape: f32[16,2,32,1], index: 5, kind: input, shape index: {}]
  %s6 = inlined_call_operand.vmem [shape: bf16[256,32], index: 6, kind: input, shape index: {}]
  %s7 = inlined_call_operand.vmem [shape: f32[256,1], index: 7, kind: input, shape index: {}]
  %s8 = inlined_call_operand.hbm [shape: bf16[32,256], index: 8, kind: input, shape index: {}]
  %s9 = inlined_call_operand.vmem [shape: bf16[128,32], index: 9, kind: input, shape index: {}]
  %s10 = inlined_call_operand.vmem [shape: bf16[128,32], index: 10, kind: input, shape index: {}]
  %s11 = inlined_call_operand.vmem [shape: f32[128,1], index: 11, kind: input, shape index: {}]
  %s12 = inlined_call_operand.hbm [shape: bf16[32,128], index: 12, kind: input, shape index: {}]
  %s13 = inlined_call_operand.hbm [shape: bf16[8,32], index: 13, kind: input, shape index: {}]
  %s14 = inlined_call_operand.vmem [shape: f32[8,1], index: 14, kind: input, shape index: {}]
  %s15 = inlined_call_operand.vmem [shape: f32[7,32,1], index: 15, kind: input, shape index: {}]
  %s16 = inlined_call_operand.hbm [shape: f32[2,8,128], index: 16, kind: output, shape index: {}]
  %s17 = sld [smem:[#allocation0]]
  $region125: #{spa_tem_forward.1} parent=0
    _
  %s19 = ssub.s32 1, %s17
  %s20 = scalar_select 0, %s19, %s17
  $region1: #{spa_tem_forward.1} parent=0
    #allocation2 [shape = 'u8[2097152]{0}', space=vmem, size = 0x200000, scoped, tag = 'input window, operand 0']
    #allocation3 [shape = 's32[2]{0}', space=sflag, size = 0x8, scoped, tag = 'scoped memory for spa_tem_forward.1']
    #allocation4 [shape = 's32[2]{0}', space=sflag, size = 0x8, scoped, tag = 'scoped memory for spa_tem_forward.1']
    #allocation5 [shape = 'u8[131072]{0}', space=vmem, size = 0x20000, scoped, tag = 'input window, operand 1, single buffered']
    #allocation6 [shape = 's32[1]{0}', space=sflag, size = 0x4, scoped, tag = 'scoped memory for spa_tem_forward.1']
    #allocation7 [shape = 'u8[131072]{0}', space=vmem, size = 0x20000, scoped, tag = 'input window, operand 3, single buffered']
    #allocation8 [shape = 'u8[131072]{0}', space=vmem, size = 0x20000, scoped, tag = 'input window, operand 4, single buffered']
    #allocation9 [shape = 's32[1]{0}', space=sflag, size = 0x4, scoped, tag = 'scoped memory for spa_tem_forward.1']
    #allocation10 [shape = 'u8[16384]{0}', space=vmem, size = 0x4000, scoped, tag = 'input window, operand 8, single buffered']
    #allocation11 [shape = 'u8[8192]{0}', space=vmem, size = 0x2000, scoped, tag = 'input window, operand 12, single buffered']
    #allocation12 [shape = 's32[1]{0}', space=sflag, size = 0x4, scoped, tag = 'scoped memory for spa_tem_forward.1']
    #allocation13 [shape = 'u8[2048]{0}', space=vmem, size = 0x800, scoped, tag = 'input window, operand 13, single buffered']
    #allocation14 [shape = 'u8[8192]{0}', space=vmem, size = 0x2000, scoped, tag = 'output window, operand 0']
    %21 = vsyncpa [#allocation3], 0
    %s22 = scalar_lea.sflag [#allocation3], 1
    %23 = vsyncpa %s22, 0
    %24 = vsyncpa [#allocation6], 0
    %25 = vsyncpa [#allocation9], 0
    %26 = vsyncpa [#allocation12], 0
    %27 = vsyncpa [#allocation4], 0
    %s28 = scalar_lea.sflag [#allocation4], 1
    %29 = vsyncpa %s28, 0
    loop: start=0, step=1, limit=4
    $region2: #{spa_tem_forward.1} parent=1 // loop_pre_header
      _
    $region3: #{spa_tem_forward.1} parent=1 // loop_header
      %s31 = sphi 0, %s35
      %p32 = scmp.ge.s32.totalorder %s31, 4
      %s41 = sphi 0, %s43
      %s44 = sphi 0, %s41
      %s45 = sphi 0, %s44
      %s61 = sphi 0, %s45
      %s65 = sphi 0, %s65
      %s67 = sphi 0, %s65
      %s68 = sphi 0, %s67
      %s82 = sphi 0, %s68
      %s86 = sphi 0, %s86
      %s88 = sphi 0, %s86
      %s89 = sphi 0, %s88
      %s103 = sphi 0, %s89
      %s107 = sphi 0, %s107
      %s109 = sphi 0, %s107
      %s110 = sphi 0, %s109
      %s124 = sphi 0, %s110
      %s128 = sphi 0, %s128
      %s130 = sphi 0, %s128
      %s131 = sphi 0, %s130
      %s145 = sphi 0, %s131
      %s149 = sphi 0, %s149
      %s151 = sphi 0, %s149
      %s152 = sphi 0, %s151
      %s166 = sphi 0, %s152
      %s170 = sphi 0, %s170
      %s172 = sphi 0, %s170
      %s173 = sphi 0, %s172
      %s187 = sphi 0, %s173
      %s191 = sphi 0, %s191
      %s193 = sphi 0, %s191
      %s194 = sphi 0, %s193
      %s208 = sphi 0, %s194
      %s212 = sphi 0, %s212
      %s214 = sphi 0, %s212
      %s215 = sphi 0, %s214
      %s229 = sphi 0, %s215
      %s233 = sphi 0, %s233
      %s235 = sphi 0, %s233
      %s236 = sphi 0, %s235
      %s250 = sphi 0, %s236
      %s254 = sphi 0, %s254
      %s256 = sphi 0, %s254
      %s257 = sphi 0, %s256
      %s271 = sphi 0, %s257
      %s275 = sphi 0, %s275
      %s277 = sphi 0, %s275
      %s278 = sphi 0, %s277
      %s292 = sphi 0, %s278
      %s296 = sphi 0, %s296
      %s298 = sphi 0, %s296
      %s299 = sphi 0, %s298
      %s313 = sphi 0, %s299
      %s317 = sphi 0, %s317
      %s319 = sphi 0, %s317
      %s320 = sphi 0, %s319
      %s334 = sphi 0, %s320
      %s338 = sphi 0, %s338
      %s340 = sphi 0, %s338
      %s341 = sphi 0, %s340
      %s355 = sphi 0, %s341
      %s359 = sphi 0, %s359
      %s361 = sphi 0, %s359
      %s362 = sphi 0, %s361
      %s376 = sphi 0, %s362
      %s382 = sphi 0, %s384
      %s385 = sphi 0, %s382
      %s386 = sphi 0, %s385
      %s402 = sphi 0, %s386
    $region4: #{spa_tem_forward.1} parent=1 // loop_header_branch
      %34 = sbr.rel (%p32) target = $region8
    $region5: #{spa_tem_forward.1} parent=1 // loop_body
      %s36 = ssub.s32 %s31, 1
      %s37 = ssub.s32 %s31, 2
      %s38 = sadd.s32 %s31, 1
      %s39 = ssub.s32 %s31, %s38
      %p40 = scmp.eq.s32.totalorder %s39, 0
      %s42 = sadd.s32 %s41, 1
      %s43 = scalar_select %p40, %s41, %s42
      %p46 = pneg %p40
      %p47 = scmp.eq.s32.totalorder %s31, 1
      %p48 = por %p46, %p47
      %p49 = scmp.ne.s32.totalorder %s41, %s44
      %p50 = scmp.eq.s32.totalorder %s31, 0
      %p51 = por %p49, %p50
      %p52 = scmp.ne.s32.totalorder %s41, %s44
      %p53 = scmp.eq.s32.totalorder %s36, 1
      %p54 = por %p52, %p53
      %p55 = scmp.ne.s32.totalorder %s44, %s45
      %p56 = scmp.eq.s32.totalorder %s36, 0
      %p57 = por %p55, %p56
      %p58 = scmp.ne.s32.totalorder %s44, %s45
      %p59 = scmp.eq.s32.totalorder %s37, 1
      %p60 = por %p58, %p59
      %p62 = scmp.ne.s32.totalorder %s45, %s61
      %p63 = scmp.eq.s32.totalorder %s37, 0
      %p64 = por %p62, %p63
      %s66 = sadd.s32 %s65, 1
      %p69 = scmp.eq.s32.totalorder %s31, 1
      %p70 = scmp.ne.s32.totalorder %s65, %s67
      %p71 = scmp.eq.s32.totalorder %s31, 0
      %p72 = por %p70, %p71
      %p73 = scmp.ne.s32.totalorder %s65, %s67
      %p74 = scmp.eq.s32.totalorder %s36, 1
      %p75 = por %p73, %p74
      %p76 = scmp.ne.s32.totalorder %s67, %s68
      %p77 = scmp.eq.s32.totalorder %s36, 0
      %p78 = por %p76, %p77
      %p79 = scmp.ne.s32.totalorder %s67, %s68
      %p80 = scmp.eq.s32.totalorder %s37, 1
      %p81 = por %p79, %p80
      %p83 = scmp.ne.s32.totalorder %s68, %s82
      %p84 = scmp.eq.s32.totalorder %s37, 0
      %p85 = por %p83, %p84
      %s87 = sadd.s32 %s86, 1
      %p90 = scmp.eq.s32.totalorder %s31, 1
      %p91 = scmp.ne.s32.totalorder %s86, %s88
      %p92 = scmp.eq.s32.totalorder %s31, 0
      %p93 = por %p91, %p92
      %p94 = scmp.ne.s32.totalorder %s86, %s88
      %p95 = scmp.eq.s32.totalorder %s36, 1
      %p96 = por %p94, %p95
      %p97 = scmp.ne.s32.totalorder %s88, %s89
      %p98 = scmp.eq.s32.totalorder %s36, 0
      %p99 = por %p97, %p98
      %p100 = scmp.ne.s32.totalorder %s88, %s89
      %p101 = scmp.eq.s32.totalorder %s37, 1
      %p102 = por %p100, %p101
      %p104 = scmp.ne.s32.totalorder %s89, %s103
      %p105 = scmp.eq.s32.totalorder %s37, 0
      %p106 = por %p104, %p105
      %s108 = sadd.s32 %s107, 1
      %p111 = scmp.eq.s32.totalorder %s31, 1
      %p112 = scmp.ne.s32.totalorder %s107, %s109
      %p113 = scmp.eq.s32.totalorder %s31, 0
      %p114 = por %p112, %p113
      %p115 = scmp.ne.s32.totalorder %s107, %s109
      %p116 = scmp.eq.s32.totalorder %s36, 1
      %p117 = por %p115, %p116
      %p118 = scmp.ne.s32.totalorder %s109, %s110
      %p119 = scmp.eq.s32.totalorder %s36, 0
      %p120 = por %p118, %p119
      %p121 = scmp.ne.s32.totalorder %s109, %s110
      %p122 = scmp.eq.s32.totalorder %s37, 1
      %p123 = por %p121, %p122
      %p125 = scmp.ne.s32.totalorder %s110, %s124
      %p126 = scmp.eq.s32.totalorder %s37, 0
      %p127 = por %p125, %p126
      %s129 = sadd.s32 %s128, 1
      %p132 = scmp.eq.s32.totalorder %s31, 1
      %p133 = scmp.ne.s32.totalorder %s128, %s130
      %p134 = scmp.eq.s32.totalorder %s31, 0
      %p135 = por %p133, %p134
      %p136 = scmp.ne.s32.totalorder %s128, %s130
      %p137 = scmp.eq.s32.totalorder %s36, 1
      %p138 = por %p136, %p137
      %p139 = scmp.ne.s32.totalorder %s130, %s131
      %p140 = scmp.eq.s32.totalorder %s36, 0
      %p141 = por %p139, %p140
      %p142 = scmp.ne.s32.totalorder %s130, %s131
      %p143 = scmp.eq.s32.totalorder %s37, 1
      %p144 = por %p142, %p143
      %p146 = scmp.ne.s32.totalorder %s131, %s145
      %p147 = scmp.eq.s32.totalorder %s37, 0
      %p148 = por %p146, %p147
      %s150 = sadd.s32 %s149, 1
      %p153 = scmp.eq.s32.totalorder %s31, 1
      %p154 = scmp.ne.s32.totalorder %s149, %s151
      %p155 = scmp.eq.s32.totalorder %s31, 0
      %p156 = por %p154, %p155
      %p157 = scmp.ne.s32.totalorder %s149, %s151
      %p158 = scmp.eq.s32.totalorder %s36, 1
      %p159 = por %p157, %p158
      %p160 = scmp.ne.s32.totalorder %s151, %s152
      %p161 = scmp.eq.s32.totalorder %s36, 0
      %p162 = por %p160, %p161
      %p163 = scmp.ne.s32.totalorder %s151, %s152
      %p164 = scmp.eq.s32.totalorder %s37, 1
      %p165 = por %p163, %p164
      %p167 = scmp.ne.s32.totalorder %s152, %s166
      %p168 = scmp.eq.s32.totalorder %s37, 0
      %p169 = por %p167, %p168
      %s171 = sadd.s32 %s170, 1
      %p174 = scmp.eq.s32.totalorder %s31, 1
      %p175 = scmp.ne.s32.totalorder %s170, %s172
      %p176 = scmp.eq.s32.totalorder %s31, 0
      %p177 = por %p175, %p176
      %p178 = scmp.ne.s32.totalorder %s170, %s172
      %p179 = scmp.eq.s32.totalorder %s36, 1
      %p180 = por %p178, %p179
      %p181 = scmp.ne.s32.totalorder %s172, %s173
      %p182 = scmp.eq.s32.totalorder %s36, 0
      %p183 = por %p181, %p182
      %p184 = scmp.ne.s32.totalorder %s172, %s173
      %p185 = scmp.eq.s32.totalorder %s37, 1
      %p186 = por %p184, %p185
      %p188 = scmp.ne.s32.totalorder %s173, %s187
      %p189 = scmp.eq.s32.totalorder %s37, 0
      %p190 = por %p188, %p189
      %s192 = sadd.s32 %s191, 1
      %p195 = scmp.eq.s32.totalorder %s31, 1
      %p196 = scmp.ne.s32.totalorder %s191, %s193
      %p197 = scmp.eq.s32.totalorder %s31, 0
      %p198 = por %p196, %p197
      %p199 = scmp.ne.s32.totalorder %s191, %s193
      %p200 = scmp.eq.s32.totalorder %s36, 1
      %p201 = por %p199, %p200
      %p202 = scmp.ne.s32.totalorder %s193, %s194
      %p203 = scmp.eq.s32.totalorder %s36, 0
      %p204 = por %p202, %p203
      %p205 = scmp.ne.s32.totalorder %s193, %s194
      %p206 = scmp.eq.s32.totalorder %s37, 1
      %p207 = por %p205, %p206
      %p209 = scmp.ne.s32.totalorder %s194, %s208
      %p210 = scmp.eq.s32.totalorder %s37, 0
      %p211 = por %p209, %p210
      %s213 = sadd.s32 %s212, 1
      %p216 = scmp.eq.s32.totalorder %s31, 1
      %p217 = scmp.ne.s32.totalorder %s212, %s214
      %p218 = scmp.eq.s32.totalorder %s31, 0
      %p219 = por %p217, %p218
      %p220 = scmp.ne.s32.totalorder %s212, %s214
      %p221 = scmp.eq.s32.totalorder %s36, 1
      %p222 = por %p220, %p221
      %p223 = scmp.ne.s32.totalorder %s214, %s215
      %p224 = scmp.eq.s32.totalorder %s36, 0
      %p225 = por %p223, %p224
      %p226 = scmp.ne.s32.totalorder %s214, %s215
      %p227 = scmp.eq.s32.totalorder %s37, 1
      %p228 = por %p226, %p227
      %p230 = scmp.ne.s32.totalorder %s215, %s229
      %p231 = scmp.eq.s32.totalorder %s37, 0
      %p232 = por %p230, %p231
      %s234 = sadd.s32 %s233, 1
      %p237 = scmp.eq.s32.totalorder %s31, 1
      %p238 = scmp.ne.s32.totalorder %s233, %s235
      %p239 = scmp.eq.s32.totalorder %s31, 0
      %p240 = por %p238, %p239
      %p241 = scmp.ne.s32.totalorder %s233, %s235
      %p242 = scmp.eq.s32.totalorder %s36, 1
      %p243 = por %p241, %p242
      %p244 = scmp.ne.s32.totalorder %s235, %s236
      %p245 = scmp.eq.s32.totalorder %s36, 0
      %p246 = por %p244, %p245
      %p247 = scmp.ne.s32.totalorder %s235, %s236
      %p248 = scmp.eq.s32.totalorder %s37, 1
      %p249 = por %p247, %p248
      %p251 = scmp.ne.s32.totalorder %s236, %s250
      %p252 = scmp.eq.s32.totalorder %s37, 0
      %p253 = por %p251, %p252
      %s255 = sadd.s32 %s254, 1
      %p258 = scmp.eq.s32.totalorder %s31, 1
      %p259 = scmp.ne.s32.totalorder %s254, %s256
      %p260 = scmp.eq.s32.totalorder %s31, 0
      %p261 = por %p259, %p260
      %p262 = scmp.ne.s32.totalorder %s254, %s256
      %p263 = scmp.eq.s32.totalorder %s36, 1
      %p264 = por %p262, %p263
      %p265 = scmp.ne.s32.totalorder %s256, %s257
      %p266 = scmp.eq.s32.totalorder %s36, 0
      %p267 = por %p265, %p266
      %p268 = scmp.ne.s32.totalorder %s256, %s257
      %p269 = scmp.eq.s32.totalorder %s37, 1
      %p270 = por %p268, %p269
      %p272 = scmp.ne.s32.totalorder %s257, %s271
      %p273 = scmp.eq.s32.totalorder %s37, 0
      %p274 = por %p272, %p273
      %s276 = sadd.s32 %s275, 1
      %p279 = scmp.eq.s32.totalorder %s31, 1
      %p280 = scmp.ne.s32.totalorder %s275, %s277
      %p281 = scmp.eq.s32.totalorder %s31, 0
      %p282 = por %p280, %p281
      %p283 = scmp.ne.s32.totalorder %s275, %s277
      %p284 = scmp.eq.s32.totalorder %s36, 1
      %p285 = por %p283, %p284
      %p286 = scmp.ne.s32.totalorder %s277, %s278
      %p287 = scmp.eq.s32.totalorder %s36, 0
      %p288 = por %p286, %p287
      %p289 = scmp.ne.s32.totalorder %s277, %s278
      %p290 = scmp.eq.s32.totalorder %s37, 1
      %p291 = por %p289, %p290
      %p293 = scmp.ne.s32.totalorder %s278, %s292
      %p294 = scmp.eq.s32.totalorder %s37, 0
      %p295 = por %p293, %p294
      %s297 = sadd.s32 %s296, 1
      %p300 = scmp.eq.s32.totalorder %s31, 1
      %p301 = scmp.ne.s32.totalorder %s296, %s298
      %p302 = scmp.eq.s32.totalorder %s31, 0
      %p303 = por %p301, %p302
      %p304 = scmp.ne.s32.totalorder %s296, %s298
      %p305 = scmp.eq.s32.totalorder %s36, 1
      %p306 = por %p304, %p305
      %p307 = scmp.ne.s32.totalorder %s298, %s299
      %p308 = scmp.eq.s32.totalorder %s36, 0
      %p309 = por %p307, %p308
      %p310 = scmp.ne.s32.totalorder %s298, %s299
      %p311 = scmp.eq.s32.totalorder %s37, 1
      %p312 = por %p310, %p311
      %p314 = scmp.ne.s32.totalorder %s299, %s313
      %p315 = scmp.eq.s32.totalorder %s37, 0
      %p316 = por %p314, %p315
      %s318 = sadd.s32 %s317, 1
      %p321 = scmp.eq.s32.totalorder %s31, 1
      %p322 = scmp.ne.s32.totalorder %s317, %s319
      %p323 = scmp.eq.s32.totalorder %s31, 0
      %p324 = por %p322, %p323
      %p325 = scmp.ne.s32.totalorder %s317, %s319
      %p326 = scmp.eq.s32.totalorder %s36, 1
      %p327 = por %p325, %p326
      %p328 = scmp.ne.s32.totalorder %s319, %s320
      %p329 = scmp.eq.s32.totalorder %s36, 0
      %p330 = por %p328, %p329
      %p331 = scmp.ne.s32.totalorder %s319, %s320
      %p332 = scmp.eq.s32.totalorder %s37, 1
      %p333 = por %p331, %p332
      %p335 = scmp.ne.s32.totalorder %s320, %s334
      %p336 = scmp.eq.s32.totalorder %s37, 0
      %p337 = por %p335, %p336
      %s339 = sadd.s32 %s338, 1
      %p342 = scmp.eq.s32.totalorder %s31, 1
      %p343 = scmp.ne.s32.totalorder %s338, %s340
      %p344 = scmp.eq.s32.totalorder %s31, 0
      %p345 = por %p343, %p344
      %p346 = scmp.ne.s32.totalorder %s338, %s340
      %p347 = scmp.eq.s32.totalorder %s36, 1
      %p348 = por %p346, %p347
      %p349 = scmp.ne.s32.totalorder %s340, %s341
      %p350 = scmp.eq.s32.totalorder %s36, 0
      %p351 = por %p349, %p350
      %p352 = scmp.ne.s32.totalorder %s340, %s341
      %p353 = scmp.eq.s32.totalorder %s37, 1
      %p354 = por %p352, %p353
      %p356 = scmp.ne.s32.totalorder %s341, %s355
      %p357 = scmp.eq.s32.totalorder %s37, 0
      %p358 = por %p356, %p357
      %s360 = sadd.s32 %s359, 1
      %p363 = scmp.eq.s32.totalorder %s31, 1
      %p364 = scmp.ne.s32.totalorder %s359, %s361
      %p365 = scmp.eq.s32.totalorder %s31, 0
      %p366 = por %p364, %p365
      %p367 = scmp.ne.s32.totalorder %s359, %s361
      %p368 = scmp.eq.s32.totalorder %s36, 1
      %p369 = por %p367, %p368
      %p370 = scmp.ne.s32.totalorder %s361, %s362
      %p371 = scmp.eq.s32.totalorder %s36, 0
      %p372 = por %p370, %p371
      %p373 = scmp.ne.s32.totalorder %s361, %s362
      %p374 = scmp.eq.s32.totalorder %s37, 1
      %p375 = por %p373, %p374
      %p377 = scmp.ne.s32.totalorder %s362, %s376
      %p378 = scmp.eq.s32.totalorder %s37, 0
      %p379 = por %p377, %p378
      %s380 = ssub.s32 %s31, %s38
      %p381 = scmp.eq.s32.totalorder %s380, 0
      %s383 = sadd.s32 %s382, 1
      %s384 = scalar_select %p381, %s382, %s383
      %p387 = pneg %p381
      %p388 = scmp.eq.s32.totalorder %s31, 1
      %p389 = por %p387, %p388
      %p390 = scmp.ne.s32.totalorder %s382, %s385
      %p391 = scmp.eq.s32.totalorder %s31, 0
      %p392 = por %p390, %p391
      %p393 = scmp.ne.s32.totalorder %s382, %s385
      %p394 = scmp.eq.s32.totalorder %s36, 1
      %p395 = por %p393, %p394
      %p396 = scmp.ne.s32.totalorder %s385, %s386
      %p397 = scmp.eq.s32.totalorder %s36, 0
      %p398 = por %p396, %p397
      %p399 = scmp.ne.s32.totalorder %s385, %s386
      %p400 = scmp.eq.s32.totalorder %s37, 1
      %p401 = por %p399, %p400
      %p403 = scmp.ne.s32.totalorder %s386, %s402
      %p404 = scmp.eq.s32.totalorder %s37, 0
      %p405 = por %p403, %p404
      %p406 = scmp.le.s32.totalorder 1, %s31
      %p407 = scmp.lt.s32.totalorder %s31, 3
      %p408 = pnand %p406, %p407
      %p409 = pneg %p408
      // Predicated region
      $region9: #{spa_tem_forward.1} parent=5 // pred_check
        _
      $region10: #{spa_tem_forward.1} parent=5 // pred_check_branch
        %411 = sbr.rel (%p408) target = $region12
      $region11: #{spa_tem_forward.1} parent=5 // pred_region
        %s412 = ssub.s32 %s31, 1
        // Predicated region
        $region13: #{spa_tem_forward.1} parent=11 // pred_check
          %p413 = pneg %p78
        $region14: #{spa_tem_forward.1} parent=11 // pred_check_branch
          %415 = sbr.rel (%p413) target = $region16
        $region15: #{spa_tem_forward.1} parent=11 // pred_region
          %417 = vsyncadd [#allocation6], 0
          %s418 = sshll.u32 %s1, 4
          %s419 = int_to_ptr.hbm [resolvable:$true] %s418
          %s420 = sshll.u32 [#allocation5], 4
          %s421 = int_to_ptr.vmem [resolvable:$true] %s420
          %426 = dma.hbm_to_vmem [thread:$0]  %s419, 4096, %s421, [#allocation6], 1024, 1024, 64
        $region16: #{spa_tem_forward.1} parent=11 // pred_fallthru
          _
        // Predicated region
        $region17: #{spa_tem_forward.1} parent=11 // pred_check
          %p427 = pneg %p99
        $region18: #{spa_tem_forward.1} parent=11 // pred_check_branch
          %429 = sbr.rel (%p427) target = $region20
        $region19: #{spa_tem_forward.1} parent=11 // pred_region
          _
        $region20: #{spa_tem_forward.1} parent=11 // pred_fallthru
          _
        // Predicated region
        $region21: #{spa_tem_forward.1} parent=11 // pred_check
          %p430 = pneg %p120
        $region22: #{spa_tem_forward.1} parent=11 // pred_check_branch
          %432 = sbr.rel (%p430) target = $region24
        $region23: #{spa_tem_forward.1} parent=11 // pred_region
          %434 = vsyncadd [#allocation6], 0
          %s435 = sshll.u32 %s3, 4
          %s436 = int_to_ptr.hbm [resolvable:$true] %s435
          %s437 = sshll.u32 [#allocation7], 4
          %s438 = int_to_ptr.vmem [resolvable:$true] %s437
          %443 = dma.hbm_to_vmem [thread:$0]  %s436, 4096, %s438, [#allocation6], 64, 64, 4
        $region24: #{spa_tem_forward.1} parent=11 // pred_fallthru
          _
        // Predicated region
        $region25: #{spa_tem_forward.1} parent=11 // pred_check
          %p444 = pneg %p141
        $region26: #{spa_tem_forward.1} parent=11 // pred_check_branch
          %446 = sbr.rel (%p444) target = $region28
        $region27: #{spa_tem_forward.1} parent=11 // pred_region
          %448 = vsyncadd [#allocation9], 0
          %s449 = sshll.u32 %s4, 4
          %s450 = int_to_ptr.hbm [resolvable:$true] %s449
          %s451 = sshll.u32 [#allocation8], 4
          %s452 = int_to_ptr.vmem [resolvable:$true] %s451
          %457 = dma.hbm_to_vmem [thread:$0]  %s450, 4096, %s452, [#allocation9], 64, 64, 4
        $region28: #{spa_tem_forward.1} parent=11 // pred_fallthru
          _
        // Predicated region
        $region29: #{spa_tem_forward.1} parent=11 // pred_check
          %p458 = pneg %p162
        $region30: #{spa_tem_forward.1} parent=11 // pred_check_branch
          %460 = sbr.rel (%p458) target = $region32
        $region31: #{spa_tem_forward.1} parent=11 // pred_region
          _
        $region32: #{spa_tem_forward.1} parent=11 // pred_fallthru
          _
        // Predicated region
        $region33: #{spa_tem_forward.1} parent=11 // pred_check
          %p461 = pneg %p183
        $region34: #{spa_tem_forward.1} parent=11 // pred_check_branch
          %463 = sbr.rel (%p461) target = $region36
        $region35: #{spa_tem_forward.1} parent=11 // pred_region
          _
        $region36: #{spa_tem_forward.1} parent=11 // pred_fallthru
          _
        // Predicated region
        $region37: #{spa_tem_forward.1} parent=11 // pred_check
          %p464 = pneg %p204
        $region38: #{spa_tem_forward.1} parent=11 // pred_check_branch
          %466 = sbr.rel (%p464) target = $region40
        $region39: #{spa_tem_forward.1} parent=11 // pred_region
          _
        $region40: #{spa_tem_forward.1} parent=11 // pred_fallthru
          _
        // Predicated region
        $region41: #{spa_tem_forward.1} parent=11 // pred_check
          %p467 = pneg %p225
        $region42: #{spa_tem_forward.1} parent=11 // pred_check_branch
          %469 = sbr.rel (%p467) target = $region44
        $region43: #{spa_tem_forward.1} parent=11 // pred_region
          %471 = vsyncadd [#allocation9], 0
          %s472 = sshll.u32 %s8, 4
          %s473 = int_to_ptr.hbm [resolvable:$true] %s472
          %s474 = sshll.u32 [#allocation10], 4
          %s475 = int_to_ptr.vmem [resolvable:$true] %s474
          %480 = dma.hbm_to_vmem [thread:$0]  %s473, 512, %s475, [#allocation9], 128, 128, 8
        $region44: #{spa_tem_forward.1} parent=11 // pred_fallthru
          _
        // Predicated region
        $region45: #{spa_tem_forward.1} parent=11 // pred_check
          %p481 = pneg %p246
        $region46: #{spa_tem_forward.1} parent=11 // pred_check_branch
          %483 = sbr.rel (%p481) target = $region48
        $region47: #{spa_tem_forward.1} parent=11 // pred_region
          _
        $region48: #{spa_tem_forward.1} parent=11 // pred_fallthru
          _
        // Predicated region
        $region49: #{spa_tem_forward.1} parent=11 // pred_check
          %p484 = pneg %p267
        $region50: #{spa_tem_forward.1} parent=11 // pred_check_branch
          %486 = sbr.rel (%p484) target = $region52
        $region51: #{spa_tem_forward.1} parent=11 // pred_region
          _
        $region52: #{spa_tem_forward.1} parent=11 // pred_fallthru
          _
        // Predicated region
        $region53: #{spa_tem_forward.1} parent=11 // pred_check
          %p487 = pneg %p288
        $region54: #{spa_tem_forward.1} parent=11 // pred_check_branch
          %489 = sbr.rel (%p487) target = $region56
        $region55: #{spa_tem_forward.1} parent=11 // pred_region
          _
        $region56: #{spa_tem_forward.1} parent=11 // pred_fallthru
          _
        // Predicated region
        $region57: #{spa_tem_forward.1} parent=11 // pred_check
          %p490 = pneg %p309
        $region58: #{spa_tem_forward.1} parent=11 // pred_check_branch
          %492 = sbr.rel (%p490) target = $region60
        $region59: #{spa_tem_forward.1} parent=11 // pred_region
          %494 = vsyncadd [#allocation12], 0
          %s495 = sshll.u32 %s12, 4
          %s496 = int_to_ptr.hbm [resolvable:$true] %s495
          %s497 = sshll.u32 [#allocation11], 4
          %s498 = int_to_ptr.vmem [resolvable:$true] %s497
          %503 = dma.hbm_to_vmem [thread:$0]  %s496, 256, %s498, [#allocation12], 64, 64, 4
        $region60: #{spa_tem_forward.1} parent=11 // pred_fallthru
          _
        // Predicated region
        $region61: #{spa_tem_forward.1} parent=11 // pred_check
          %p504 = pneg %p330
        $region62: #{spa_tem_forward.1} parent=11 // pred_check_branch
          %506 = sbr.rel (%p504) target = $region64
        $region63: #{spa_tem_forward.1} parent=11 // pred_region
          %508 = vsyncadd [#allocation12], 0
          %s510 = sshll.u32 %s13, 4
          %s511 = int_to_ptr.hbm [resolvable:$true] %s510
          %s512 = sshll.u32 [#allocation13], 4
          %s513 = int_to_ptr.vmem [resolvable:$true] %s512
          %515 = dma.hbm_to_vmem [thread:$0]  %s511, 64, %s513, [#allocation12]
        $region64: #{spa_tem_forward.1} parent=11 // pred_fallthru
          _
        // Predicated region
        $region65: #{spa_tem_forward.1} parent=11 // pred_check
          %p516 = pneg %p351
        $region66: #{spa_tem_forward.1} parent=11 // pred_check_branch
          %518 = sbr.rel (%p516) target = $region68
        $region67: #{spa_tem_forward.1} parent=11 // pred_region
          _
        $region68: #{spa_tem_forward.1} parent=11 // pred_fallthru
          _
        // Predicated region
        $region69: #{spa_tem_forward.1} parent=11 // pred_check
          %p519 = pneg %p372
        $region70: #{spa_tem_forward.1} parent=11 // pred_check_branch
          %521 = sbr.rel (%p519) target = $region72
        $region71: #{spa_tem_forward.1} parent=11 // pred_region
          _
        $region72: #{spa_tem_forward.1} parent=11 // pred_fallthru
          _
      $region12: #{spa_tem_forward.1} parent=5 // pred_fallthru
        _
      %p522 = scmp.lt.s32.totalorder %s31, 2
      // Predicated region
      $region73: #{spa_tem_forward.1} parent=5 // pred_check
        %p523 = pneg %p522
      $region74: #{spa_tem_forward.1} parent=5 // pred_check_branch
        %525 = sbr.rel (%p523) target = $region76
      $region75: #{spa_tem_forward.1} parent=5 // pred_region
        // Predicated region
        $region77: #{spa_tem_forward.1} parent=75 // pred_check
          %p526 = pneg %p51
        $region78: #{spa_tem_forward.1} parent=75 // pred_check_branch
          %528 = sbr.rel (%p526) target = $region80
        $region79: #{spa_tem_forward.1} parent=75 // pred_region
          %s529 = sand.u32 %s41, 1
          %s530 = scalar_lea.sflag [#allocation3], %s529
          %s531 = sand.u32 %s41, 1
          %s532 = smul.addr %s531, 2048
          %s533 = scalar_lea.vmem [#allocation2], %s532
          %535 = vsyncadd %s530, 0
          %s536 = smul.addr %s31, 256
          %s537 = smul.addr %s536, 8
          %s538 = scalar_lea.hbm %s0, %s537
          %s539 = sshll.u32 %s538, 4
          %s540 = int_to_ptr.hbm [resolvable:$true] %s539
          %s541 = sshll.u32 %s533, 4
          %s542 = int_to_ptr.vmem [resolvable:$true] %s541
          %547 = dma.hbm_to_vmem [thread:$0]  %s540, 32768, %s542, %s530, 128, 128, 8
        $region80: #{spa_tem_forward.1} parent=75 // pred_fallthru
          _
      $region76: #{spa_tem_forward.1} parent=5 // pred_fallthru
        _
      %p548 = scmp.le.s32.totalorder 1, %s31
      %p549 = scmp.lt.s32.totalorder %s31, 3
      %p550 = pnand %p548, %p549
      %p551 = pneg %p550
      // Predicated region
      $region81: #{spa_tem_forward.1} parent=5 // pred_check
        _
      $region82: #{spa_tem_forward.1} parent=5 // pred_check_branch
        %553 = sbr.rel (%p550) target = $region84
      $region83: #{spa_tem_forward.1} parent=5 // pred_region
        %s554 = ssub.s32 %s31, 1
        %s555 = sand.u32 %s44, 1
        %s556 = scalar_lea.sflag [#allocation3], %s555
        %s557 = sand.u32 %s44, 1
        %s558 = smul.addr %s557, 2048
        %s559 = scalar_lea.vmem [#allocation2], %s558
        // Predicated region
        $region85: #{spa_tem_forward.1} parent=83 // pred_check
          %p560 = pneg %p57
        $region86: #{spa_tem_forward.1} parent=83 // pred_check_branch
          %562 = sbr.rel (%p560) target = $region88
        $region87: #{spa_tem_forward.1} parent=83 // pred_region
          %564 = dma.done %s556, 32768
        $region88: #{spa_tem_forward.1} parent=83 // pred_fallthru
          _
        // Predicated region
        $region89: #{spa_tem_forward.1} parent=83 // pred_check
          %p565 = pneg %p78
        $region90: #{spa_tem_forward.1} parent=83 // pred_check_branch
          %567 = sbr.rel (%p565) target = $region92
        $region91: #{spa_tem_forward.1} parent=83 // pred_region
          %569 = dma.done [#allocation6], 4096
        $region92: #{spa_tem_forward.1} parent=83 // pred_fallthru
          _
        // Predicated region
        $region93: #{spa_tem_forward.1} parent=83 // pred_check
          %p570 = pneg %p120
        $region94: #{spa_tem_forward.1} parent=83 // pred_check_branch
          %572 = sbr.rel (%p570) target = $region96
        $region95: #{spa_tem_forward.1} parent=83 // pred_region
          %574 = dma.done [#allocation6], 4096
        $region96: #{spa_tem_forward.1} parent=83 // pred_fallthru
          _
        // Predicated region
        $region97: #{spa_tem_forward.1} parent=83 // pred_check
          %p575 = pneg %p141
        $region98: #{spa_tem_forward.1} parent=83 // pred_check_branch
          %577 = sbr.rel (%p575) target = $region100
        $region99: #{spa_tem_forward.1} parent=83 // pred_region
          %579 = dma.done [#allocation9], 4096
        $region100: #{spa_tem_forward.1} parent=83 // pred_fallthru
          _
        // Predicated region
        $region101: #{spa_tem_forward.1} parent=83 // pred_check
          %p580 = pneg %p225
        $region102: #{spa_tem_forward.1} parent=83 // pred_check_branch
          %582 = sbr.rel (%p580) target = $region104
        $region103: #{spa_tem_forward.1} parent=83 // pred_region
          %584 = dma.done [#allocation9], 512
        $region104: #{spa_tem_forward.1} parent=83 // pred_fallthru
          _
        // Predicated region
        $region105: #{spa_tem_forward.1} parent=83 // pred_check
          %p585 = pneg %p309
        $region106: #{spa_tem_forward.1} parent=83 // pred_check_branch
          %587 = sbr.rel (%p585) target = $region108
        $region107: #{spa_tem_forward.1} parent=83 // pred_region
          %589 = dma.done [#allocation12], 256
        $region108: #{spa_tem_forward.1} parent=83 // pred_fallthru
          _
        // Predicated region
        $region109: #{spa_tem_forward.1} parent=83 // pred_check
          %p590 = pneg %p330
        $region110: #{spa_tem_forward.1} parent=83 // pred_check_branch
          %592 = sbr.rel (%p590) target = $region112
        $region111: #{spa_tem_forward.1} parent=83 // pred_region
          %594 = dma.done [#allocation12], 64
        $region112: #{spa_tem_forward.1} parent=83 // pred_fallthru
          _
        %s595 = sand.u32 %s44, 1
        %s596 = scalar_lea.sflag [#allocation3], %s595
        %s597 = sand.u32 %s44, 1
        %s598 = smul.addr %s597, 2048
        %s599 = scalar_lea.vmem [#allocation2], %s598
        %p600 = pneg %p57
        %p601 = pneg %p54
        %p602 = pneg %p78
        %p603 = pneg %p75
        %p604 = pneg %p99
        %p605 = pneg %p96
        %p606 = pneg %p120
        %p607 = pneg %p117
        %p608 = pneg %p141
        %p609 = pneg %p138
        %p610 = pneg %p162
        %p611 = pneg %p159
        %p612 = pneg %p183
        %p613 = pneg %p180
        %p614 = pneg %p204
        %p615 = pneg %p201
        %p616 = pneg %p225
        %p617 = pneg %p222
        %p618 = pneg %p246
        %p619 = pneg %p243
        %p620 = pneg %p267
        %p621 = pneg %p264
        %p622 = pneg %p288
        %p623 = pneg %p285
        %p624 = pneg %p309
        %p625 = pneg %p306
        %p626 = pneg %p330
        %p627 = pneg %p327
        %p628 = pneg %p351
        %p629 = pneg %p348
        %p630 = pneg %p372
        %p631 = pneg %p369
        %p632 = pneg %p398
        %p633 = pneg %p395
        %s634 = sand.u32 %s385, 1
        %s635 = scalar_lea.sflag [#allocation4], %s634
        %s636 = sand.u32 %s385, 1
        %s637 = smul.addr %s636, 8
        %s638 = scalar_lea.vmem [#allocation14], %s637
        %v640 = vld [vmem:[#allocation5] sm:$0xff]
        %v641 = vld [vmem:[#allocation5 + $0x8] sm:$0xff]
        %v642 = vld [vmem:[#allocation5 + $0x10] sm:$0xff]
        %v643 = vld [vmem:[#allocation5 + $0x18] sm:$0xff]
        %v644 = vld [vmem:[#allocation5 + $0x20] sm:$0xff]
        %v645 = vld [vmem:[#allocation5 + $0x28] sm:$0xff]
        %v646 = vld [vmem:[#allocation5 + $0x30] sm:$0xff]
        %v647 = vld [vmem:[#allocation5 + $0x38] sm:$0xff]
        %v648 = vld [vmem:[#allocation5 + $0x40] sm:$0xff]
        %v649 = vld [vmem:[#allocation5 + $0x48] sm:$0xff]
        %v650 = vld [vmem:[#allocation5 + $0x50] sm:$0xff]
        %v651 = vld [vmem:[#allocation5 + $0x58] sm:$0xff]
        %v652 = vld [vmem:[#allocation5 + $0x60] sm:$0xff]
        %v653 = vld [vmem:[#allocation5 + $0x68] sm:$0xff]
        %v654 = vld [vmem:[#allocation5 + $0x70] sm:$0xff]
        %v655 = vld [vmem:[#allocation5 + $0x78] sm:$0xff]
        %v656 = vld [vmem:[#allocation5 + $0x80] sm:$0xff]
        %v657 = vld [vmem:[#allocation5 + $0x88] sm:$0xff]
        %v658 = vld [vmem:[#allocation5 + $0x90] sm:$0xff]
        %v659 = vld [vmem:[#allocation5 + $0x98] sm:$0xff]
        %v660 = vld [vmem:[#allocation5 + $0xa0] sm:$0xff]
        %v661 = vld [vmem:[#allocation5 + $0xa8] sm:$0xff]
        %v662 = vld [vmem:[#allocation5 + $0xb0] sm:$0xff]
        %v663 = vld [vmem:[#allocation5 + $0xb8] sm:$0xff]
        %v664 = vld [vmem:[#allocation5 + $0xc0] sm:$0xff]
        %v665 = vld [vmem:[#allocation5 + $0xc8] sm:$0xff]
        %v666 = vld [vmem:[#allocation5 + $0xd0] sm:$0xff]
        %v667 = vld [vmem:[#allocation5 + $0xd8] sm:$0xff]
        %v668 = vld [vmem:[#allocation5 + $0xe0] sm:$0xff]
        %v669 = vld [vmem:[#allocation5 + $0xe8] sm:$0xff]
        %v670 = vld [vmem:[#allocation5 + $0xf0] sm:$0xff]
        %v671 = vld [vmem:[#allocation5 + $0xf8] sm:$0xff]
        %v672 = vld [vmem:[%s559] sm:$0xff]
        %v673 = vld [vmem:[%s559 + $0x8] sm:$0xff]
        %v674 = vld [vmem:[%s559 + $0x10] sm:$0xff]
        %v675 = vld [vmem:[%s559 + $0x18] sm:$0xff]
        %v676 = vld [vmem:[%s559 + $0x20] sm:$0xff]
        %v677 = vld [vmem:[%s559 + $0x28] sm:$0xff]
        %v678 = vld [vmem:[%s559 + $0x30] sm:$0xff]
        %v679 = vld [vmem:[%s559 + $0x38] sm:$0xff]
        %v680 = vld [vmem:[%s559 + $0x40] sm:$0xff]
        %v681 = vld [vmem:[%s559 + $0x48] sm:$0xff]
        %v682 = vld [vmem:[%s559 + $0x50] sm:$0xff]
        %v683 = vld [vmem:[%s559 + $0x58] sm:$0xff]
        %v684 = vld [vmem:[%s559 + $0x60] sm:$0xff]
        %v685 = vld [vmem:[%s559 + $0x68] sm:$0xff]
        %v686 = vld [vmem:[%s559 + $0x70] sm:$0xff]
        %v687 = vld [vmem:[%s559 + $0x78] sm:$0xff]
        %v688 = vld [vmem:[%s559 + $0x80] sm:$0xff]
        %v689 = vld [vmem:[%s559 + $0x88] sm:$0xff]
        %v690 = vld [vmem:[%s559 + $0x90] sm:$0xff]
        %v691 = vld [vmem:[%s559 + $0x98] sm:$0xff]
        %v692 = vld [vmem:[%s559 + $0xa0] sm:$0xff]
        %v693 = vld [vmem:[%s559 + $0xa8] sm:$0xff]
        %v694 = vld [vmem:[%s559 + $0xb0] sm:$0xff]
        %v695 = vld [vmem:[%s559 + $0xb8] sm:$0xff]
        %v696 = vld [vmem:[%s559 + $0xc0] sm:$0xff]
        %v697 = vld [vmem:[%s559 + $0xc8] sm:$0xff]
        %v698 = vld [vmem:[%s559 + $0xd0] sm:$0xff]
        %v699 = vld [vmem:[%s559 + $0xd8] sm:$0xff]
        %v700 = vld [vmem:[%s559 + $0xe0] sm:$0xff]
        %v701 = vld [vmem:[%s559 + $0xe8] sm:$0xff]
        %v702 = vld [vmem:[%s559 + $0xf0] sm:$0xff]
        %v703 = vld [vmem:[%s559 + $0xf8] sm:$0xff]
        %v704 = vld [vmem:[%s559 + $0x100] sm:$0xff]
        %v705 = vld [vmem:[%s559 + $0x108] sm:$0xff]
        %v706 = vld [vmem:[%s559 + $0x110] sm:$0xff]
        %v707 = vld [vmem:[%s559 + $0x118] sm:$0xff]
        %v708 = vld [vmem:[%s559 + $0x120] sm:$0xff]
        %v709 = vld [vmem:[%s559 + $0x128] sm:$0xff]
        %v710 = vld [vmem:[%s559 + $0x130] sm:$0xff]
        %v711 = vld [vmem:[%s559 + $0x138] sm:$0xff]
        %v712 = vld [vmem:[%s559 + $0x140] sm:$0xff]
        %v713 = vld [vmem:[%s559 + $0x148] sm:$0xff]
        %v714 = vld [vmem:[%s559 + $0x150] sm:$0xff]
        %v715 = vld [vmem:[%s559 + $0x158] sm:$0xff]
        %v716 = vld [vmem:[%s559 + $0x160] sm:$0xff]
        %v717 = vld [vmem:[%s559 + $0x168] sm:$0xff]
        %v718 = vld [vmem:[%s559 + $0x170] sm:$0xff]
        %v719 = vld [vmem:[%s559 + $0x178] sm:$0xff]
        %v720 = vld [vmem:[%s559 + $0x180] sm:$0xff]
        %v721 = vld [vmem:[%s559 + $0x188] sm:$0xff]
        %v722 = vld [vmem:[%s559 + $0x190] sm:$0xff]
        %v723 = vld [vmem:[%s559 + $0x198] sm:$0xff]
        %v724 = vld [vmem:[%s559 + $0x1a0] sm:$0xff]
        %v725 = vld [vmem:[%s559 + $0x1a8] sm:$0xff]
        %v726 = vld [vmem:[%s559 + $0x1b0] sm:$0xff]
        %v727 = vld [vmem:[%s559 + $0x1b8] sm:$0xff]
        %v728 = vld [vmem:[%s559 + $0x1c0] sm:$0xff]
        %v729 = vld [vmem:[%s559 + $0x1c8] sm:$0xff]
        %v730 = vld [vmem:[%s559 + $0x1d0] sm:$0xff]
        %v731 = vld [vmem:[%s559 + $0x1d8] sm:$0xff]
        %v732 = vld [vmem:[%s559 + $0x1e0] sm:$0xff]
        %v733 = vld [vmem:[%s559 + $0x1e8] sm:$0xff]
        %v734 = vld [vmem:[%s559 + $0x1f0] sm:$0xff]
        %v735 = vld [vmem:[%s559 + $0x1f8] sm:$0xff]
        %v736 = vld [vmem:[%s559 + $0x200] sm:$0xff]
        %v737 = vld [vmem:[%s559 + $0x208] sm:$0xff]
        %v738 = vld [vmem:[%s559 + $0x210] sm:$0xff]
        %v739 = vld [vmem:[%s559 + $0x218] sm:$0xff]
        %v740 = vld [vmem:[%s559 + $0x220] sm:$0xff]
        %v741 = vld [vmem:[%s559 + $0x228] sm:$0xff]
        %v742 = vld [vmem:[%s559 + $0x230] sm:$0xff]
        %v743 = vld [vmem:[%s559 + $0x238] sm:$0xff]
        %v744 = vld [vmem:[%s559 + $0x240] sm:$0xff]
        %v745 = vld [vmem:[%s559 + $0x248] sm:$0xff]
        %v746 = vld [vmem:[%s559 + $0x250] sm:$0xff]
        %v747 = vld [vmem:[%s559 + $0x258] sm:$0xff]
        %v748 = vld [vmem:[%s559 + $0x260] sm:$0xff]
        %v749 = vld [vmem:[%s559 + $0x268] sm:$0xff]
        %v750 = vld [vmem:[%s559 + $0x270] sm:$0xff]
        %v751 = vld [vmem:[%s559 + $0x278] sm:$0xff]
        %v752 = vld [vmem:[%s559 + $0x280] sm:$0xff]
        %v753 = vld [vmem:[%s559 + $0x288] sm:$0xff]
        %v754 = vld [vmem:[%s559 + $0x290] sm:$0xff]
        %v755 = vld [vmem:[%s559 + $0x298] sm:$0xff]
        %v756 = vld [vmem:[%s559 + $0x2a0] sm:$0xff]
        %v757 = vld [vmem:[%s559 + $0x2a8] sm:$0xff]
        %v758 = vld [vmem:[%s559 + $0x2b0] sm:$0xff]
        %v759 = vld [vmem:[%s559 + $0x2b8] sm:$0xff]
        %v760 = vld [vmem:[%s559 + $0x2c0] sm:$0xff]
        %v761 = vld [vmem:[%s559 + $0x2c8] sm:$0xff]
        %v762 = vld [vmem:[%s559 + $0x2d0] sm:$0xff]
        %v763 = vld [vmem:[%s559 + $0x2d8] sm:$0xff]
        %v764 = vld [vmem:[%s559 + $0x2e0] sm:$0xff]
        %v765 = vld [vmem:[%s559 + $0x2e8] sm:$0xff]
        %v766 = vld [vmem:[%s559 + $0x2f0] sm:$0xff]
        %v767 = vld [vmem:[%s559 + $0x2f8] sm:$0xff]
        %v768 = vld [vmem:[%s559 + $0x300] sm:$0xff]
        %v769 = vld [vmem:[%s559 + $0x308] sm:$0xff]
        %v770 = vld [vmem:[%s559 + $0x310] sm:$0xff]
        %v771 = vld [vmem:[%s559 + $0x318] sm:$0xff]
        %v772 = vld [vmem:[%s559 + $0x320] sm:$0xff]
        %v773 = vld [vmem:[%s559 + $0x328] sm:$0xff]
        %v774 = vld [vmem:[%s559 + $0x330] sm:$0xff]
        %v775 = vld [vmem:[%s559 + $0x338] sm:$0xff]
        %v776 = vld [vmem:[%s559 + $0x340] sm:$0xff]
        %v777 = vld [vmem:[%s559 + $0x348] sm:$0xff]
        %v778 = vld [vmem:[%s559 + $0x350] sm:$0xff]
        %v779 = vld [vmem:[%s559 + $0x358] sm:$0xff]
        %v780 = vld [vmem:[%s559 + $0x360] sm:$0xff]
        %v781 = vld [vmem:[%s559 + $0x368] sm:$0xff]
        %v782 = vld [vmem:[%s559 + $0x370] sm:$0xff]
        %v783 = vld [vmem:[%s559 + $0x378] sm:$0xff]
        %v784 = vld [vmem:[%s559 + $0x380] sm:$0xff]
        %v785 = vld [vmem:[%s559 + $0x388] sm:$0xff]
        %v786 = vld [vmem:[%s559 + $0x390] sm:$0xff]
        %v787 = vld [vmem:[%s559 + $0x398] sm:$0xff]
        %v788 = vld [vmem:[%s559 + $0x3a0] sm:$0xff]
        %v789 = vld [vmem:[%s559 + $0x3a8] sm:$0xff]
        %v790 = vld [vmem:[%s559 + $0x3b0] sm:$0xff]
        %v791 = vld [vmem:[%s559 + $0x3b8] sm:$0xff]
        %v792 = vld [vmem:[%s559 + $0x3c0] sm:$0xff]
        %v793 = vld [vmem:[%s559 + $0x3c8] sm:$0xff]
        %v794 = vld [vmem:[%s559 + $0x3d0] sm:$0xff]
        %v795 = vld [vmem:[%s559 + $0x3d8] sm:$0xff]
        %v796 = vld [vmem:[%s559 + $0x3e0] sm:$0xff]
        %v797 = vld [vmem:[%s559 + $0x3e8] sm:$0xff]
        %v798 = vld [vmem:[%s559 + $0x3f0] sm:$0xff]
        %v799 = vld [vmem:[%s559 + $0x3f8] sm:$0xff]
        %v800 = vld [vmem:[%s559 + $0x400] sm:$0xff]
        %v801 = vld [vmem:[%s559 + $0x408] sm:$0xff]
        %v802 = vld [vmem:[%s559 + $0x410] sm:$0xff]
        %v803 = vld [vmem:[%s559 + $0x418] sm:$0xff]
        %v804 = vld [vmem:[%s559 + $0x420] sm:$0xff]
        %v805 = vld [vmem:[%s559 + $0x428] sm:$0xff]
        %v806 = vld [vmem:[%s559 + $0x430] sm:$0xff]
        %v807 = vld [vmem:[%s559 + $0x438] sm:$0xff]
        %v808 = vld [vmem:[%s559 + $0x440] sm:$0xff]
        %v809 = vld [vmem:[%s559 + $0x448] sm:$0xff]
        %v810 = vld [vmem:[%s559 + $0x450] sm:$0xff]
        %v811 = vld [vmem:[%s559 + $0x458] sm:$0xff]
        %v812 = vld [vmem:[%s559 + $0x460] sm:$0xff]
        %v813 = vld [vmem:[%s559 + $0x468] sm:$0xff]
        %v814 = vld [vmem:[%s559 + $0x470] sm:$0xff]
        %v815 = vld [vmem:[%s559 + $0x478] sm:$0xff]
        %v816 = vld [vmem:[%s559 + $0x480] sm:$0xff]
        %v817 = vld [vmem:[%s559 + $0x488] sm:$0xff]
        %v818 = vld [vmem:[%s559 + $0x490] sm:$0xff]
        %v819 = vld [vmem:[%s559 + $0x498] sm:$0xff]
        %v820 = vld [vmem:[%s559 + $0x4a0] sm:$0xff]
        %v821 = vld [vmem:[%s559 + $0x4a8] sm:$0xff]
        %v822 = vld [vmem:[%s559 + $0x4b0] sm:$0xff]
        %v823 = vld [vmem:[%s559 + $0x4b8] sm:$0xff]
        %v824 = vld [vmem:[%s559 + $0x4c0] sm:$0xff]
        %v825 = vld [vmem:[%s559 + $0x4c8] sm:$0xff]
        %v826 = vld [vmem:[%s559 + $0x4d0] sm:$0xff]
        %v827 = vld [vmem:[%s559 + $0x4d8] sm:$0xff]
        %v828 = vld [vmem:[%s559 + $0x4e0] sm:$0xff]
        %v829 = vld [vmem:[%s559 + $0x4e8] sm:$0xff]
        %v830 = vld [vmem:[%s559 + $0x4f0] sm:$0xff]
        %v831 = vld [vmem:[%s559 + $0x4f8] sm:$0xff]
        %v832 = vld [vmem:[%s559 + $0x500] sm:$0xff]
        %v833 = vld [vmem:[%s559 + $0x508] sm:$0xff]
        %v834 = vld [vmem:[%s559 + $0x510] sm:$0xff]
        %v835 = vld [vmem:[%s559 + $0x518] sm:$0xff]
        %v836 = vld [vmem:[%s559 + $0x520] sm:$0xff]
        %v837 = vld [vmem:[%s559 + $0x528] sm:$0xff]
        %v838 = vld [vmem:[%s559 + $0x530] sm:$0xff]
        %v839 = vld [vmem:[%s559 + $0x538] sm:$0xff]
        %v840 = vld [vmem:[%s559 + $0x540] sm:$0xff]
        %v841 = vld [vmem:[%s559 + $0x548] sm:$0xff]
        %v842 = vld [vmem:[%s559 + $0x550] sm:$0xff]
        %v843 = vld [vmem:[%s559 + $0x558] sm:$0xff]
        %v844 = vld [vmem:[%s559 + $0x560] sm:$0xff]
        %v845 = vld [vmem:[%s559 + $0x568] sm:$0xff]
        %v846 = vld [vmem:[%s559 + $0x570] sm:$0xff]
        %v847 = vld [vmem:[%s559 + $0x578] sm:$0xff]
        %v848 = vld [vmem:[%s559 + $0x580] sm:$0xff]
        %v849 = vld [vmem:[%s559 + $0x588] sm:$0xff]
        %v850 = vld [vmem:[%s559 + $0x590] sm:$0xff]
        %v851 = vld [vmem:[%s559 + $0x598] sm:$0xff]
        %v852 = vld [vmem:[%s559 + $0x5a0] sm:$0xff]
        %v853 = vld [vmem:[%s559 + $0x5a8] sm:$0xff]
        %v854 = vld [vmem:[%s559 + $0x5b0] sm:$0xff]
        %v855 = vld [vmem:[%s559 + $0x5b8] sm:$0xff]
        %v856 = vld [vmem:[%s559 + $0x5c0] sm:$0xff]
        %v857 = vld [vmem:[%s559 + $0x5c8] sm:$0xff]
        %v858 = vld [vmem:[%s559 + $0x5d0] sm:$0xff]
        %v859 = vld [vmem:[%s559 + $0x5d8] sm:$0xff]
        %v860 = vld [vmem:[%s559 + $0x5e0] sm:$0xff]
        %v861 = vld [vmem:[%s559 + $0x5e8] sm:$0xff]
        %v862 = vld [vmem:[%s559 + $0x5f0] sm:$0xff]
        %v863 = vld [vmem:[%s559 + $0x5f8] sm:$0xff]
        %v864 = vld [vmem:[%s559 + $0x600] sm:$0xff]
        %v865 = vld [vmem:[%s559 + $0x608] sm:$0xff]
        %v866 = vld [vmem:[%s559 + $0x610] sm:$0xff]
        %v867 = vld [vmem:[%s559 + $0x618] sm:$0xff]
        %v868 = vld [vmem:[%s559 + $0x620] sm:$0xff]
        %v869 = vld [vmem:[%s559 + $0x628] sm:$0xff]
        %v870 = vld [vmem:[%s559 + $0x630] sm:$0xff]
        %v871 = vld [vmem:[%s559 + $0x638] sm:$0xff]
        %v872 = vld [vmem:[%s559 + $0x640] sm:$0xff]
        %v873 = vld [vmem:[%s559 + $0x648] sm:$0xff]
        %v874 = vld [vmem:[%s559 + $0x650] sm:$0xff]
        %v875 = vld [vmem:[%s559 + $0x658] sm:$0xff]
        %v876 = vld [vmem:[%s559 + $0x660] sm:$0xff]
        %v877 = vld [vmem:[%s559 + $0x668] sm:$0xff]
        %v878 = vld [vmem:[%s559 + $0x670] sm:$0xff]
        %v879 = vld [vmem:[%s559 + $0x678] sm:$0xff]
        %v880 = vld [vmem:[%s559 + $0x680] sm:$0xff]
        %v881 = vld [vmem:[%s559 + $0x688] sm:$0xff]
        %v882 = vld [vmem:[%s559 + $0x690] sm:$0xff]
        %v883 = vld [vmem:[%s559 + $0x698] sm:$0xff]
        %v884 = vld [vmem:[%s559 + $0x6a0] sm:$0xff]
        %v885 = vld [vmem:[%s559 + $0x6a8] sm:$0xff]
        %v886 = vld [vmem:[%s559 + $0x6b0] sm:$0xff]
        %v887 = vld [vmem:[%s559 + $0x6b8] sm:$0xff]
        %v888 = vld [vmem:[%s559 + $0x6c0] sm:$0xff]
        %v889 = vld [vmem:[%s559 + $0x6c8] sm:$0xff]
        %v890 = vld [vmem:[%s559 + $0x6d0] sm:$0xff]
        %v891 = vld [vmem:[%s559 + $0x6d8] sm:$0xff]
        %v892 = vld [vmem:[%s559 + $0x6e0] sm:$0xff]
        %v893 = vld [vmem:[%s559 + $0x6e8] sm:$0xff]
        %v894 = vld [vmem:[%s559 + $0x6f0] sm:$0xff]
        %v895 = vld [vmem:[%s559 + $0x6f8] sm:$0xff]
        %v896 = vld [vmem:[%s559 + $0x700] sm:$0xff]
        %v897 = vld [vmem:[%s559 + $0x708] sm:$0xff]
        %v898 = vld [vmem:[%s559 + $0x710] sm:$0xff]
        %v899 = vld [vmem:[%s559 + $0x718] sm:$0xff]
        %v900 = vld [vmem:[%s559 + $0x720] sm:$0xff]
        %v901 = vld [vmem:[%s559 + $0x728] sm:$0xff]
        %v902 = vld [vmem:[%s559 + $0x730] sm:$0xff]
        %v903 = vld [vmem:[%s559 + $0x738] sm:$0xff]
        %v904 = vld [vmem:[%s559 + $0x740] sm:$0xff]
        %v905 = vld [vmem:[%s559 + $0x748] sm:$0xff]
        %v906 = vld [vmem:[%s559 + $0x750] sm:$0xff]
        %v907 = vld [vmem:[%s559 + $0x758] sm:$0xff]
        %v908 = vld [vmem:[%s559 + $0x760] sm:$0xff]
        %v909 = vld [vmem:[%s559 + $0x768] sm:$0xff]
        %v910 = vld [vmem:[%s559 + $0x770] sm:$0xff]
        %v911 = vld [vmem:[%s559 + $0x778] sm:$0xff]
        %v912 = vld [vmem:[%s559 + $0x780] sm:$0xff]
        %v913 = vld [vmem:[%s559 + $0x788] sm:$0xff]
        %v914 = vld [vmem:[%s559 + $0x790] sm:$0xff]
        %v915 = vld [vmem:[%s559 + $0x798] sm:$0xff]
        %v916 = vld [vmem:[%s559 + $0x7a0] sm:$0xff]
        %v917 = vld [vmem:[%s559 + $0x7a8] sm:$0xff]
        %v918 = vld [vmem:[%s559 + $0x7b0] sm:$0xff]
        %v919 = vld [vmem:[%s559 + $0x7b8] sm:$0xff]
        %v920 = vld [vmem:[%s559 + $0x7c0] sm:$0xff]
        %v921 = vld [vmem:[%s559 + $0x7c8] sm:$0xff]
        %v922 = vld [vmem:[%s559 + $0x7d0] sm:$0xff]
        %v923 = vld [vmem:[%s559 + $0x7d8] sm:$0xff]
        %v924 = vld [vmem:[%s559 + $0x7e0] sm:$0xff]
        %v925 = vld [vmem:[%s559 + $0x7e8] sm:$0xff]
        %v926 = vld [vmem:[%s559 + $0x7f0] sm:$0xff]
        %v927 = vld [vmem:[%s559 + $0x7f8] sm:$0xff]
        %v928 = vpack.c.bf16 %v673, %v672
        %v929 = vpack.c.bf16 %v675, %v674
        %v930 = vpack.c.bf16 %v677, %v676
        %v931 = vpack.c.bf16 %v679, %v678
        %v932 = vpack.c.bf16 %v681, %v680
        %v933 = vpack.c.bf16 %v683, %v682
        %v934 = vpack.c.bf16 %v685, %v684
        %v935 = vpack.c.bf16 %v687, %v686
        %v936 = vpack.c.bf16 %v689, %v688
        %v937 = vpack.c.bf16 %v691, %v690
        %v938 = vpack.c.bf16 %v693, %v692
        %v939 = vpack.c.bf16 %v695, %v694
        %v940 = vpack.c.bf16 %v697, %v696
        %v941 = vpack.c.bf16 %v699, %v698
        %v942 = vpack.c.bf16 %v701, %v700
        %v943 = vpack.c.bf16 %v703, %v702
        %v944 = vpack.c.bf16 %v705, %v704
        %v945 = vpack.c.bf16 %v707, %v706
        %v946 = vpack.c.bf16 %v709, %v708
        %v947 = vpack.c.bf16 %v711, %v710
        %v948 = vpack.c.bf16 %v713, %v712
        %v949 = vpack.c.bf16 %v715, %v714
        %v950 = vpack.c.bf16 %v717, %v716
        %v951 = vpack.c.bf16 %v719, %v718
        %v952 = vpack.c.bf16 %v721, %v720
        %v953 = vpack.c.bf16 %v723, %v722
        %v954 = vpack.c.bf16 %v725, %v724
        %v955 = vpack.c.bf16 %v727, %v726
        %v956 = vpack.c.bf16 %v729, %v728
        %v957 = vpack.c.bf16 %v731, %v730
        %v958 = vpack.c.bf16 %v733, %v732
        %v959 = vpack.c.bf16 %v735, %v734
        %v960 = vpack.c.bf16 %v737, %v736
        %v961 = vpack.c.bf16 %v739, %v738
        %v962 = vpack.c.bf16 %v741, %v740
        %v963 = vpack.c.bf16 %v743, %v742
        %v964 = vpack.c.bf16 %v745, %v744
        %v965 = vpack.c.bf16 %v747, %v746
        %v966 = vpack.c.bf16 %v749, %v748
        %v967 = vpack.c.bf16 %v751, %v750
        %v968 = vpack.c.bf16 %v753, %v752
        %v969 = vpack.c.bf16 %v755, %v754
        %v970 = vpack.c.bf16 %v757, %v756
        %v971 = vpack.c.bf16 %v759, %v758
        %v972 = vpack.c.bf16 %v761, %v760
        %v973 = vpack.c.bf16 %v763, %v762
        %v974 = vpack.c.bf16 %v765, %v764
        %v975 = vpack.c.bf16 %v767, %v766
        %v976 = vpack.c.bf16 %v769, %v768
        %v977 = vpack.c.bf16 %v771, %v770
        %v978 = vpack.c.bf16 %v773, %v772
        %v979 = vpack.c.bf16 %v775, %v774
        %v980 = vpack.c.bf16 %v777, %v776
        %v981 = vpack.c.bf16 %v779, %v778
        %v982 = vpack.c.bf16 %v781, %v780
        %v983 = vpack.c.bf16 %v783, %v782
        %v984 = vpack.c.bf16 %v785, %v784
        %v985 = vpack.c.bf16 %v787, %v786
        %v986 = vpack.c.bf16 %v789, %v788
        %v987 = vpack.c.bf16 %v791, %v790
        %v988 = vpack.c.bf16 %v793, %v792
        %v989 = vpack.c.bf16 %v795, %v794
        %v990 = vpack.c.bf16 %v797, %v796
        %v991 = vpack.c.bf16 %v799, %v798
        %v992 = vpack.c.bf16 %v801, %v800
        %v993 = vpack.c.bf16 %v803, %v802
        %v994 = vpack.c.bf16 %v805, %v804
        %v995 = vpack.c.bf16 %v807, %v806
        %v996 = vpack.c.bf16 %v809, %v808
        %v997 = vpack.c.bf16 %v811, %v810
        %v998 = vpack.c.bf16 %v813, %v812
        %v999 = vpack.c.bf16 %v815, %v814
        %v1000 = vpack.c.bf16 %v817, %v816
        %v1001 = vpack.c.bf16 %v819, %v818
        %v1002 = vpack.c.bf16 %v821, %v820
        %v1003 = vpack.c.bf16 %v823, %v822
        %v1004 = vpack.c.bf16 %v825, %v824
        %v1005 = vpack.c.bf16 %v827, %v826
        %v1006 = vpack.c.bf16 %v829, %v828
        %v1007 = vpack.c.bf16 %v831, %v830
        %v1008 = vpack.c.bf16 %v833, %v832
        %v1009 = vpack.c.bf16 %v835, %v834
        %v1010 = vpack.c.bf16 %v837, %v836
        %v1011 = vpack.c.bf16 %v839, %v838
        %v1012 = vpack.c.bf16 %v841, %v840
        %v1013 = vpack.c.bf16 %v843, %v842
        %v1014 = vpack.c.bf16 %v845, %v844
        %v1015 = vpack.c.bf16 %v847, %v846
        %v1016 = vpack.c.bf16 %v849, %v848
        %v1017 = vpack.c.bf16 %v851, %v850
        %v1018 = vpack.c.bf16 %v853, %v852
        %v1019 = vpack.c.bf16 %v855, %v854
        %v1020 = vpack.c.bf16 %v857, %v856
        %v1021 = vpack.c.bf16 %v859, %v858
        %v1022 = vpack.c.bf16 %v861, %v860
        %v1023 = vpack.c.bf16 %v863, %v862
        %v1024 = vpack.c.bf16 %v865, %v864
        %v1025 = vpack.c.bf16 %v867, %v866
        %v1026 = vpack.c.bf16 %v869, %v868
        %v1027 = vpack.c.bf16 %v871, %v870
        %v1028 = vpack.c.bf16 %v873, %v872
        %v1029 = vpack.c.bf16 %v875, %v874
        %v1030 = vpack.c.bf16 %v877, %v876
        %v1031 = vpack.c.bf16 %v879, %v878
        %v1032 = vpack.c.bf16 %v881, %v880
        %v1033 = vpack.c.bf16 %v883, %v882
        %v1034 = vpack.c.bf16 %v885, %v884
        %v1035 = vpack.c.bf16 %v887, %v886
        %v1036 = vpack.c.bf16 %v889, %v888
        %v1037 = vpack.c.bf16 %v891, %v890
        %v1038 = vpack.c.bf16 %v893, %v892
        %v1039 = vpack.c.bf16 %v895, %v894
        %v1040 = vpack.c.bf16 %v897, %v896
        %v1041 = vpack.c.bf16 %v899, %v898
        %v1042 = vpack.c.bf16 %v901, %v900
        %v1043 = vpack.c.bf16 %v903, %v902
        %v1044 = vpack.c.bf16 %v905, %v904
        %v1045 = vpack.c.bf16 %v907, %v906
        %v1046 = vpack.c.bf16 %v909, %v908
        %v1047 = vpack.c.bf16 %v911, %v910
        %v1048 = vpack.c.bf16 %v913, %v912
        %v1049 = vpack.c.bf16 %v915, %v914
        %v1050 = vpack.c.bf16 %v917, %v916
        %v1051 = vpack.c.bf16 %v919, %v918
        %v1052 = vpack.c.bf16 %v921, %v920
        %v1053 = vpack.c.bf16 %v923, %v922
        %v1054 = vpack.c.bf16 %v925, %v924
        %v1055 = vpack.c.bf16 %v927, %v926
        %v1056 = vld [vmem:[%s2] sm:$0xff]
        %v1057 = vld [vmem:[%s2 + $0x8] sm:$0xff]
        %v1058 = vld [vmem:[%s2 + $0x10] sm:$0xff]
        %v1059 = vld [vmem:[%s2 + $0x18] sm:$0xff]
        %1061 = vset.pattern.permute.xlu0 0
        %1062 = vperm.xlu0 %1061, %v1056
        %v1063 = vpop.permute.xlu0 %1062
        %1066 = vset.pattern.permute.xlu0 0
        %1067 = vperm.xlu0 %1066, %v1057
        %v1068 = vpop.permute.xlu0 %1067
        %1071 = vset.pattern.permute.xlu0 0
        %1072 = vperm.xlu0 %1071, %v1058
        %v1073 = vpop.permute.xlu0 %1072
        %1076 = vset.pattern.permute.xlu0 0
        %1077 = vperm.xlu0 %1076, %v1059
        %v1078 = vpop.permute.xlu0 %1077
        %v1112 = vunpack.c.l.b16 %v640
        %v1113 = vunpack.c.h.b16 %v640
        %v1114 = vunpack.c.l.b16 %v641
        %v1115 = vunpack.c.h.b16 %v641
        %v1116 = vunpack.c.l.b16 %v642
        %v1117 = vunpack.c.h.b16 %v642
        %v1118 = vunpack.c.l.b16 %v643
        %v1119 = vunpack.c.h.b16 %v643
        %v1120 = vunpack.c.l.b16 %v644
        %v1121 = vunpack.c.h.b16 %v644
        %v1122 = vunpack.c.l.b16 %v645
        %v1123 = vunpack.c.h.b16 %v645
        %v1124 = vunpack.c.l.b16 %v646
        %v1125 = vunpack.c.h.b16 %v646
        %v1126 = vunpack.c.l.b16 %v647
        %v1127 = vunpack.c.h.b16 %v647
        %v1128 = vunpack.c.l.b16 %v648
        %v1129 = vunpack.c.h.b16 %v648
        %v1130 = vunpack.c.l.b16 %v649
        %v1131 = vunpack.c.h.b16 %v649
        %v1132 = vunpack.c.l.b16 %v650
        %v1133 = vunpack.c.h.b16 %v650
        %v1134 = vunpack.c.l.b16 %v651
        %v1135 = vunpack.c.h.b16 %v651
        %v1136 = vunpack.c.l.b16 %v652
        %v1137 = vunpack.c.h.b16 %v652
        %v1138 = vunpack.c.l.b16 %v653
        %v1139 = vunpack.c.h.b16 %v653
        %v1140 = vunpack.c.l.b16 %v654
        %v1141 = vunpack.c.h.b16 %v654
        %v1142 = vunpack.c.l.b16 %v655
        %v1143 = vunpack.c.h.b16 %v655
        %v1144 = vunpack.c.l.b16 %v656
        %v1145 = vunpack.c.h.b16 %v656
        %v1146 = vunpack.c.l.b16 %v657
        %v1147 = vunpack.c.h.b16 %v657
        %v1148 = vunpack.c.l.b16 %v658
        %v1149 = vunpack.c.h.b16 %v658
        %v1150 = vunpack.c.l.b16 %v659
        %v1151 = vunpack.c.h.b16 %v659
        %v1152 = vunpack.c.l.b16 %v660
        %v1153 = vunpack.c.h.b16 %v660
        %v1154 = vunpack.c.l.b16 %v661
        %v1155 = vunpack.c.h.b16 %v661
        %v1156 = vunpack.c.l.b16 %v662
        %v1157 = vunpack.c.h.b16 %v662
        %v1158 = vunpack.c.l.b16 %v663
        %v1159 = vunpack.c.h.b16 %v663
        %v1160 = vunpack.c.l.b16 %v664
        %v1161 = vunpack.c.h.b16 %v664
        %v1162 = vunpack.c.l.b16 %v665
        %v1163 = vunpack.c.h.b16 %v665
        %v1164 = vunpack.c.l.b16 %v666
        %v1165 = vunpack.c.h.b16 %v666
        %v1166 = vunpack.c.l.b16 %v667
        %v1167 = vunpack.c.h.b16 %v667
        %v1168 = vunpack.c.l.b16 %v668
        %v1169 = vunpack.c.h.b16 %v668
        %v1170 = vunpack.c.l.b16 %v669
        %v1171 = vunpack.c.h.b16 %v669
        %v1172 = vunpack.c.l.b16 %v670
        %v1173 = vunpack.c.h.b16 %v670
        %v1174 = vunpack.c.l.b16 %v671
        %v1175 = vunpack.c.h.b16 %v671
        %v1176 = vpack.c.b16 %v1128, %v1112
        %v1177 = vpack.c.b16 %v1129, %v1113
        %v1178 = vpack.c.b16 %v1130, %v1114
        %v1179 = vpack.c.b16 %v1131, %v1115
        %v1180 = vpack.c.b16 %v1132, %v1116
        %v1181 = vpack.c.b16 %v1133, %v1117
        %v1182 = vpack.c.b16 %v1134, %v1118
        %v1183 = vpack.c.b16 %v1135, %v1119
        %v1184 = vpack.c.b16 %v1136, %v1120
        %v1185 = vpack.c.b16 %v1137, %v1121
        %v1186 = vpack.c.b16 %v1138, %v1122
        %v1187 = vpack.c.b16 %v1139, %v1123
        %v1188 = vpack.c.b16 %v1140, %v1124
        %v1189 = vpack.c.b16 %v1141, %v1125
        %v1190 = vpack.c.b16 %v1142, %v1126
        %v1191 = vpack.c.b16 %v1143, %v1127
        %v1192 = vpack.c.b16 %v1160, %v1144
        %v1193 = vpack.c.b16 %v1161, %v1145
        %v1194 = vpack.c.b16 %v1162, %v1146
        %v1195 = vpack.c.b16 %v1163, %v1147
        %v1196 = vpack.c.b16 %v1164, %v1148
        %v1197 = vpack.c.b16 %v1165, %v1149
        %v1198 = vpack.c.b16 %v1166, %v1150
        %v1199 = vpack.c.b16 %v1167, %v1151
        %v1200 = vpack.c.b16 %v1168, %v1152
        %v1201 = vpack.c.b16 %v1169, %v1153
        %v1202 = vpack.c.b16 %v1170, %v1154
        %v1203 = vpack.c.b16 %v1171, %v1155
        %v1204 = vpack.c.b16 %v1172, %v1156
        %v1205 = vpack.c.b16 %v1173, %v1157
        %v1206 = vpack.c.b16 %v1174, %v1158
        %v1207 = vpack.c.b16 %v1175, %v1159
        %1240 = vmatpush.bf16.msra.mxu0 %v935
        %1241 = vmatpush.bf16.msra.mxu0 %v934
        %1242 = vmatpush.bf16.msra.mxu0 %v933
        %1243 = vmatpush.bf16.msra.mxu0 %v932
        %1244 = vmatpush.bf16.msra.mxu0 %v931
        %1245 = vmatpush.bf16.msra.mxu0 %v930
        %1246 = vmatpush.bf16.msra.mxu0 %v929
        %1247 = vmatpush.bf16.msra.mxu0 %v928
        %1248 = vmatmul.bf16.gmra.mxu0 %v1176
        %v1249 = vpop.f32.mrf.mxu0
        %v1250 = vadd.f32 %v1063, %v1249
        %v1251 = vpop.f32.mrf.mxu0
        %v1252 = vadd.f32 %v1068, %v1251
        %1253 = vmatmul.bf16.gmra.mxu0 %v1192
        %v1254 = vpop.f32.mrf.mxu0
        %v1255 = vadd.f32 %v1073, %v1254
        %v1256 = vpop.f32.mrf.mxu0
        %v1257 = vadd.f32 %v1078, %v1256
        %1258 = vdwg.mxu0
        %1259 = vmatpush.bf16.msra.mxu0 %v943
        %1260 = vmatpush.bf16.msra.mxu0 %v942
        %1261 = vmatpush.bf16.msra.mxu0 %v941
        %1262 = vmatpush.bf16.msra.mxu0 %v940
        %1263 = vmatpush.bf16.msra.mxu0 %v939
        %1264 = vmatpush.bf16.msra.mxu0 %v938
        %1265 = vmatpush.bf16.msra.mxu0 %v937
        %1266 = vmatpush.bf16.msra.mxu0 %v936
        %1267 = vmatmul.bf16.gmra.mxu0 %v1177
        %v1268 = vpop.f32.mrf.mxu0
        %v1269 = vadd.f32 %v1250, %v1268
        %v1270 = vpop.f32.mrf.mxu0
        %v1271 = vadd.f32 %v1252, %v1270
        %1272 = vmatmul.bf16.gmra.mxu0 %v1193
        %v1273 = vpop.f32.mrf.mxu0
        %v1274 = vadd.f32 %v1255, %v1273
        %v1275 = vpop.f32.mrf.mxu0
        %v1276 = vadd.f32 %v1257, %v1275
        %1277 = vdwg.mxu0
        %1278 = vmatpush.bf16.msra.mxu0 %v951
        %1279 = vmatpush.bf16.msra.mxu0 %v950
        %1280 = vmatpush.bf16.msra.mxu0 %v949
        %1281 = vmatpush.bf16.msra.mxu0 %v948
        %1282 = vmatpush.bf16.msra.mxu0 %v947
        %1283 = vmatpush.bf16.msra.mxu0 %v946
        %1284 = vmatpush.bf16.msra.mxu0 %v945
        %1285 = vmatpush.bf16.msra.mxu0 %v944
        %1286 = vmatmul.bf16.gmra.mxu0 %v1178
        %v1287 = vpop.f32.mrf.mxu0
        %v1288 = vadd.f32 %v1269, %v1287
        %v1289 = vpop.f32.mrf.mxu0
        %v1290 = vadd.f32 %v1271, %v1289
        %1291 = vmatmul.bf16.gmra.mxu0 %v1194
        %v1292 = vpop.f32.mrf.mxu0
        %v1293 = vadd.f32 %v1274, %v1292
        %v1294 = vpop.f32.mrf.mxu0
        %v1295 = vadd.f32 %v1276, %v1294
        %1296 = vdwg.mxu0
        %1297 = vmatpush.bf16.msra.mxu0 %v959
        %1298 = vmatpush.bf16.msra.mxu0 %v958
        %1299 = vmatpush.bf16.msra.mxu0 %v957
        %1300 = vmatpush.bf16.msra.mxu0 %v956
        %1301 = vmatpush.bf16.msra.mxu0 %v955
        %1302 = vmatpush.bf16.msra.mxu0 %v954
        %1303 = vmatpush.bf16.msra.mxu0 %v953
        %1304 = vmatpush.bf16.msra.mxu0 %v952
        %1305 = vmatmul.bf16.gmra.mxu0 %v1179
        %v1306 = vpop.f32.mrf.mxu0
        %v1307 = vadd.f32 %v1288, %v1306
        %v1308 = vpop.f32.mrf.mxu0
        %v1309 = vadd.f32 %v1290, %v1308
        %1310 = vmatmul.bf16.gmra.mxu0 %v1195
        %v1311 = vpop.f32.mrf.mxu0
        %v1312 = vadd.f32 %v1293, %v1311
        %v1313 = vpop.f32.mrf.mxu0
        %v1314 = vadd.f32 %v1295, %v1313
        %1315 = vdwg.mxu0
        %1316 = vmatpush.bf16.msra.mxu0 %v967
        %1317 = vmatpush.bf16.msra.mxu0 %v966
        %1318 = vmatpush.bf16.msra.mxu0 %v965
        %1319 = vmatpush.bf16.msra.mxu0 %v964
        %1320 = vmatpush.bf16.msra.mxu0 %v963
        %1321 = vmatpush.bf16.msra.mxu0 %v962
        %1322 = vmatpush.bf16.msra.mxu0 %v961
        %1323 = vmatpush.bf16.msra.mxu0 %v960
        %1324 = vmatmul.bf16.gmra.mxu0 %v1180
        %v1325 = vpop.f32.mrf.mxu0
        %v1326 = vadd.f32 %v1307, %v1325
        %v1327 = vpop.f32.mrf.mxu0
        %v1328 = vadd.f32 %v1309, %v1327
        %1329 = vmatmul.bf16.gmra.mxu0 %v1196
        %v1330 = vpop.f32.mrf.mxu0
        %v1331 = vadd.f32 %v1312, %v1330
        %v1332 = vpop.f32.mrf.mxu0
        %v1333 = vadd.f32 %v1314, %v1332
        %1334 = vdwg.mxu0
        %1335 = vmatpush.bf16.msra.mxu0 %v975
        %1336 = vmatpush.bf16.msra.mxu0 %v974
        %1337 = vmatpush.bf16.msra.mxu0 %v973
        %1338 = vmatpush.bf16.msra.mxu0 %v972
        %1339 = vmatpush.bf16.msra.mxu0 %v971
        %1340 = vmatpush.bf16.msra.mxu0 %v970
        %1341 = vmatpush.bf16.msra.mxu0 %v969
        %1342 = vmatpush.bf16.msra.mxu0 %v968
        %1343 = vmatmul.bf16.gmra.mxu0 %v1181
        %v1344 = vpop.f32.mrf.mxu0
        %v1345 = vadd.f32 %v1326, %v1344
        %v1346 = vpop.f32.mrf.mxu0
        %v1347 = vadd.f32 %v1328, %v1346
        %1348 = vmatmul.bf16.gmra.mxu0 %v1197
        %v1349 = vpop.f32.mrf.mxu0
        %v1350 = vadd.f32 %v1331, %v1349
        %v1351 = vpop.f32.mrf.mxu0
        %v1352 = vadd.f32 %v1333, %v1351
        %1353 = vdwg.mxu0
        %1354 = vmatpush.bf16.msra.mxu0 %v983
        %1355 = vmatpush.bf16.msra.mxu0 %v982
        %1356 = vmatpush.bf16.msra.mxu0 %v981
        %1357 = vmatpush.bf16.msra.mxu0 %v980
        %1358 = vmatpush.bf16.msra.mxu0 %v979
        %1359 = vmatpush.bf16.msra.mxu0 %v978
        %1360 = vmatpush.bf16.msra.mxu0 %v977
        %1361 = vmatpush.bf16.msra.mxu0 %v976
        %1362 = vmatmul.bf16.gmra.mxu0 %v1182
        %v1363 = vpop.f32.mrf.mxu0
        %v1364 = vadd.f32 %v1345, %v1363
        %v1365 = vpop.f32.mrf.mxu0
        %v1366 = vadd.f32 %v1347, %v1365
        %1367 = vmatmul.bf16.gmra.mxu0 %v1198
        %v1368 = vpop.f32.mrf.mxu0
        %v1369 = vadd.f32 %v1350, %v1368
        %v1370 = vpop.f32.mrf.mxu0
        %v1371 = vadd.f32 %v1352, %v1370
        %1372 = vdwg.mxu0
        %1373 = vmatpush.bf16.msra.mxu0 %v991
        %1374 = vmatpush.bf16.msra.mxu0 %v990
        %1375 = vmatpush.bf16.msra.mxu0 %v989
        %1376 = vmatpush.bf16.msra.mxu0 %v988
        %1377 = vmatpush.bf16.msra.mxu0 %v987
        %1378 = vmatpush.bf16.msra.mxu0 %v986
        %1379 = vmatpush.bf16.msra.mxu0 %v985
        %1380 = vmatpush.bf16.msra.mxu0 %v984
        %1381 = vmatmul.bf16.gmra.mxu0 %v1183
        %v1382 = vpop.f32.mrf.mxu0
        %v1383 = vadd.f32 %v1364, %v1382
        %v1384 = vpop.f32.mrf.mxu0
        %v1385 = vadd.f32 %v1366, %v1384
        %1386 = vmatmul.bf16.gmra.mxu0 %v1199
        %v1387 = vpop.f32.mrf.mxu0
        %v1388 = vadd.f32 %v1369, %v1387
        %v1389 = vpop.f32.mrf.mxu0
        %v1390 = vadd.f32 %v1371, %v1389
        %1391 = vdwg.mxu0
        %1392 = vmatpush.bf16.msra.mxu0 %v999
        %1393 = vmatpush.bf16.msra.mxu0 %v998
        %1394 = vmatpush.bf16.msra.mxu0 %v997
        %1395 = vmatpush.bf16.msra.mxu0 %v996
        %1396 = vmatpush.bf16.msra.mxu0 %v995
        %1397 = vmatpush.bf16.msra.mxu0 %v994
        %1398 = vmatpush.bf16.msra.mxu0 %v993
        %1399 = vmatpush.bf16.msra.mxu0 %v992
        %1400 = vmatmul.bf16.gmra.mxu0 %v1184
        %v1401 = vpop.f32.mrf.mxu0
        %v1402 = vadd.f32 %v1383, %v1401
        %v1403 = vpop.f32.mrf.mxu0
        %v1404 = vadd.f32 %v1385, %v1403
        %1405 = vmatmul.bf16.gmra.mxu0 %v1200
        %v1406 = vpop.f32.mrf.mxu0
        %v1407 = vadd.f32 %v1388, %v1406
        %v1408 = vpop.f32.mrf.mxu0
        %v1409 = vadd.f32 %v1390, %v1408
        %1410 = vdwg.mxu0
        %1411 = vmatpush.bf16.msra.mxu0 %v1007
        %1412 = vmatpush.bf16.msra.mxu0 %v1006
        %1413 = vmatpush.bf16.msra.mxu0 %v1005
        %1414 = vmatpush.bf16.msra.mxu0 %v1004
        %1415 = vmatpush.bf16.msra.mxu0 %v1003
        %1416 = vmatpush.bf16.msra.mxu0 %v1002
        %1417 = vmatpush.bf16.msra.mxu0 %v1001
        %1418 = vmatpush.bf16.msra.mxu0 %v1000
        %1419 = vmatmul.bf16.gmra.mxu0 %v1185
        %v1420 = vpop.f32.mrf.mxu0
        %v1421 = vadd.f32 %v1402, %v1420
        %v1422 = vpop.f32.mrf.mxu0
        %v1423 = vadd.f32 %v1404, %v1422
        %1424 = vmatmul.bf16.gmra.mxu0 %v1201
        %v1425 = vpop.f32.mrf.mxu0
        %v1426 = vadd.f32 %v1407, %v1425
        %v1427 = vpop.f32.mrf.mxu0
        %v1428 = vadd.f32 %v1409, %v1427
        %1429 = vdwg.mxu0
        %1430 = vmatpush.bf16.msra.mxu0 %v1015
        %1431 = vmatpush.bf16.msra.mxu0 %v1014
        %1432 = vmatpush.bf16.msra.mxu0 %v1013
        %1433 = vmatpush.bf16.msra.mxu0 %v1012
        %1434 = vmatpush.bf16.msra.mxu0 %v1011
        %1435 = vmatpush.bf16.msra.mxu0 %v1010
        %1436 = vmatpush.bf16.msra.mxu0 %v1009
        %1437 = vmatpush.bf16.msra.mxu0 %v1008
        %1438 = vmatmul.bf16.gmra.mxu0 %v1186
        %v1439 = vpop.f32.mrf.mxu0
        %v1440 = vadd.f32 %v1421, %v1439
        %v1441 = vpop.f32.mrf.mxu0
        %v1442 = vadd.f32 %v1423, %v1441
        %1443 = vmatmul.bf16.gmra.mxu0 %v1202
        %v1444 = vpop.f32.mrf.mxu0
        %v1445 = vadd.f32 %v1426, %v1444
        %v1446 = vpop.f32.mrf.mxu0
        %v1447 = vadd.f32 %v1428, %v1446
        %1448 = vdwg.mxu0
        %1449 = vmatpush.bf16.msra.mxu0 %v1023
        %1450 = vmatpush.bf16.msra.mxu0 %v1022
        %1451 = vmatpush.bf16.msra.mxu0 %v1021
        %1452 = vmatpush.bf16.msra.mxu0 %v1020
        %1453 = vmatpush.bf16.msra.mxu0 %v1019
        %1454 = vmatpush.bf16.msra.mxu0 %v1018
        %1455 = vmatpush.bf16.msra.mxu0 %v1017
        %1456 = vmatpush.bf16.msra.mxu0 %v1016
        %1457 = vmatmul.bf16.gmra.mxu0 %v1187
        %v1458 = vpop.f32.mrf.mxu0
        %v1459 = vadd.f32 %v1440, %v1458
        %v1460 = vpop.f32.mrf.mxu0
        %v1461 = vadd.f32 %v1442, %v1460
        %1462 = vmatmul.bf16.gmra.mxu0 %v1203
        %v1463 = vpop.f32.mrf.mxu0
        %v1464 = vadd.f32 %v1445, %v1463
        %v1465 = vpop.f32.mrf.mxu0
        %v1466 = vadd.f32 %v1447, %v1465
        %1467 = vdwg.mxu0
        %1468 = vmatpush.bf16.msra.mxu0 %v1031
        %1469 = vmatpush.bf16.msra.mxu0 %v1030
        %1470 = vmatpush.bf16.msra.mxu0 %v1029
        %1471 = vmatpush.bf16.msra.mxu0 %v1028
        %1472 = vmatpush.bf16.msra.mxu0 %v1027
        %1473 = vmatpush.bf16.msra.mxu0 %v1026
        %1474 = vmatpush.bf16.msra.mxu0 %v1025
        %1475 = vmatpush.bf16.msra.mxu0 %v1024
        %1476 = vmatmul.bf16.gmra.mxu0 %v1188
        %v1477 = vpop.f32.mrf.mxu0
        %v1478 = vadd.f32 %v1459, %v1477
        %v1479 = vpop.f32.mrf.mxu0
        %v1480 = vadd.f32 %v1461, %v1479
        %1481 = vmatmul.bf16.gmra.mxu0 %v1204
        %v1482 = vpop.f32.mrf.mxu0
        %v1483 = vadd.f32 %v1464, %v1482
        %v1484 = vpop.f32.mrf.mxu0
        %v1485 = vadd.f32 %v1466, %v1484
        %1486 = vdwg.mxu0
        %1487 = vmatpush.bf16.msra.mxu0 %v1039
        %1488 = vmatpush.bf16.msra.mxu0 %v1038
        %1489 = vmatpush.bf16.msra.mxu0 %v1037
        %1490 = vmatpush.bf16.msra.mxu0 %v1036
        %1491 = vmatpush.bf16.msra.mxu0 %v1035
        %1492 = vmatpush.bf16.msra.mxu0 %v1034
        %1493 = vmatpush.bf16.msra.mxu0 %v1033
        %1494 = vmatpush.bf16.msra.mxu0 %v1032
        %1495 = vmatmul.bf16.gmra.mxu0 %v1189
        %v1496 = vpop.f32.mrf.mxu0
        %v1497 = vadd.f32 %v1478, %v1496
        %v1498 = vpop.f32.mrf.mxu0
        %v1499 = vadd.f32 %v1480, %v1498
        %1500 = vmatmul.bf16.gmra.mxu0 %v1205
        %v1501 = vpop.f32.mrf.mxu0
        %v1502 = vadd.f32 %v1483, %v1501
        %v1503 = vpop.f32.mrf.mxu0
        %v1504 = vadd.f32 %v1485, %v1503
        %1505 = vdwg.mxu0
        %1506 = vmatpush.bf16.msra.mxu0 %v1047
        %1507 = vmatpush.bf16.msra.mxu0 %v1046
        %1508 = vmatpush.bf16.msra.mxu0 %v1045
        %1509 = vmatpush.bf16.msra.mxu0 %v1044
        %1510 = vmatpush.bf16.msra.mxu0 %v1043
        %1511 = vmatpush.bf16.msra.mxu0 %v1042
        %1512 = vmatpush.bf16.msra.mxu0 %v1041
        %1513 = vmatpush.bf16.msra.mxu0 %v1040
        %1514 = vmatmul.bf16.gmra.mxu0 %v1190
        %v1515 = vpop.f32.mrf.mxu0
        %v1516 = vadd.f32 %v1497, %v1515
        %v1517 = vpop.f32.mrf.mxu0
        %v1518 = vadd.f32 %v1499, %v1517
        %1519 = vmatmul.bf16.gmra.mxu0 %v1206
        %v1520 = vpop.f32.mrf.mxu0
        %v1521 = vadd.f32 %v1502, %v1520
        %v1522 = vpop.f32.mrf.mxu0
        %v1523 = vadd.f32 %v1504, %v1522
        %1524 = vdwg.mxu0
        %1525 = vmatpush.bf16.msra.mxu0 %v1055
        %1526 = vmatpush.bf16.msra.mxu0 %v1054
        %1527 = vmatpush.bf16.msra.mxu0 %v1053
        %1528 = vmatpush.bf16.msra.mxu0 %v1052
        %1529 = vmatpush.bf16.msra.mxu0 %v1051
        %1530 = vmatpush.bf16.msra.mxu0 %v1050
        %1531 = vmatpush.bf16.msra.mxu0 %v1049
        %1532 = vmatpush.bf16.msra.mxu0 %v1048
        %1533 = vmatmul.bf16.gmra.mxu0 %v1191
        %v1534 = vpop.f32.mrf.mxu0
        %v1535 = vadd.f32 %v1516, %v1534
        %v1536 = vpop.f32.mrf.mxu0
        %v1537 = vadd.f32 %v1518, %v1536
        %1538 = vmatmul.bf16.gmra.mxu0 %v1207
        %v1539 = vpop.f32.mrf.mxu0
        %v1540 = vadd.f32 %v1521, %v1539
        %v1541 = vpop.f32.mrf.mxu0
        %v1542 = vadd.f32 %v1523, %v1541
        %1543 = vdwg.mxu0
        %v1544 = vld [vmem:[#allocation7] sm:$0xf]
        %v1545 = vld [vmem:[#allocation7 + $0x4] sm:$0xf]
        %v1546 = vld [vmem:[#allocation7 + $0x8] sm:$0xf]
        %v1547 = vld [vmem:[#allocation7 + $0xc] sm:$0xf]
        %1553 = vrot.lane.b32.xlu0 0.0, 127
        %v1554 = vpop.permute.xlu0 %1553
        %1555 = vrot.lane.b32.xlu0 %v1535, 127
        %v1556 = vpop.permute.xlu0 %1555
        %1557 = vrot.lane.b32.xlu0 %v1537, 127
        %v1558 = vpop.permute.xlu0 %1557
        %1559 = vrot.lane.b32.xlu0 %v1540, 127
        %v1560 = vpop.permute.xlu0 %1559
        %1561 = vrot.lane.b32.xlu0 %v1542, 127
        %v1562 = vpop.permute.xlu0 %1561
        %vm1563 = vcmask 1039360
        %v1564 = vsel %vm1563, %v1554, %v1556
        %v1565 = vsel %vm1563, %v1554, %v1558
        %v1566 = vsel %vm1563, %v1554, %v1560
        %v1567 = vsel %vm1563, %v1554, %v1562
        %1576 = vrot.lane.b32.xlu0 %v1535, 126
        %v1577 = vpop.permute.xlu0 %1576
        %1578 = vrot.lane.b32.xlu0 %v1537, 126
        %v1579 = vpop.permute.xlu0 %1578
        %1580 = vrot.lane.b32.xlu0 %v1540, 126
        %v1581 = vpop.permute.xlu0 %1580
        %1582 = vrot.lane.b32.xlu0 %v1542, 126
        %v1583 = vpop.permute.xlu0 %1582
        %v1588 = vpack.c.bf16 0.0, 0.0
        %v1589 = vpack.c.bf16 %v1537, %v1535
        %v1590 = vpack.c.bf16 %v1542, %v1540
        %v1591 = vpack.c.bf16 %v1565, %v1564
        %v1592 = vpack.c.bf16 %v1558, %v1556
        %v1593 = vpack.c.bf16 %v1567, %v1566
        %v1594 = vpack.c.bf16 %v1562, %v1560
        %v1595 = vpack.c.bf16 %v1579, %v1577
        %v1596 = vpack.c.bf16 %v1583, %v1581
        %v1597 = vld [vmem:[%s5] sm:$0xff]
        %v1598 = vld [vmem:[%s5 + $0x8] sm:$0xff]
        %v1599 = vld [vmem:[%s5 + $0x10] sm:$0xff]
        %v1600 = vld [vmem:[%s5 + $0x18] sm:$0xff]
        %1602 = vset.pattern.permute.xlu0 0
        %1603 = vperm.xlu0 %1602, %v1597
        %v1604 = vpop.permute.xlu0 %1603
        %1607 = vset.pattern.permute.xlu0 0
        %1608 = vperm.xlu0 %1607, %v1598
        %v1609 = vpop.permute.xlu0 %1608
        %1612 = vset.pattern.permute.xlu0 0
        %1613 = vperm.xlu0 %1612, %v1599
        %v1614 = vpop.permute.xlu0 %1613
        %1617 = vset.pattern.permute.xlu0 0
        %1618 = vperm.xlu0 %1617, %v1600
        %v1619 = vpop.permute.xlu0 %1618
        %v1625 = vunpack.c.l.b16 %v1544
        %v1626 = vunpack.c.l.b16 %v1545
        %v1627 = vunpack.c.l.b16 %v1546
        %v1628 = vunpack.c.l.b16 %v1547
        %v1629 = vpack.c.b16 %v1626, %v1625
        %v1630 = vpack.c.b16 %v1628, %v1627
        %1640 = vrot.lane.b32.xlu0 %v1588, 2
        %v1641 = vpop.permute.xlu0 %1640
        %1642 = vrot.lane.b32.xlu0 %v1589, 2
        %v1643 = vpop.permute.xlu0 %1642
        %1644 = vrot.lane.b32.xlu0 %v1590, 2
        %v1645 = vpop.permute.xlu0 %1644
        %1646 = vrot.lane.b32.xlu0 %v1591, 2
        %v1647 = vpop.permute.xlu0 %1646
        %1648 = vrot.lane.b32.xlu0 %v1592, 2
        %v1649 = vpop.permute.xlu0 %1648
        %1650 = vrot.lane.b32.xlu0 %v1593, 2
        %v1651 = vpop.permute.xlu0 %1650
        %1652 = vrot.lane.b32.xlu0 %v1594, 2
        %v1653 = vpop.permute.xlu0 %1652
        %1654 = vrot.lane.b32.xlu0 %v1595, 2
        %v1655 = vpop.permute.xlu0 %1654
        %1656 = vrot.lane.b32.xlu0 %v1596, 2
        %v1657 = vpop.permute.xlu0 %1656
        %vm1658 = vcmask 15360
        %v1659 = vsel %vm1658, %v1641, %v1643
        %v1660 = vsel %vm1658, %v1641, %v1645
        %v1661 = vsel %vm1658, %v1647, %v1649
        %v1662 = vsel %vm1658, %v1651, %v1653
        %vm1669 = vcmask 785408
        %v1671 = vsel %vm1669, %v1629, 0
        %v1674 = vsel %vm1669, %v1630, 0
        %1676 = vmatpush.bf16.msra.mxu0 0
        %1677 = vmatpush.bf16.msra.mxu0 0
        %1678 = vmatpush.bf16.msra.mxu0 %v1657
        %1679 = vmatpush.bf16.msra.mxu0 %v1655
        %1680 = vmatpush.bf16.msra.mxu0 %v1662
        %1681 = vmatpush.bf16.msra.mxu0 %v1661
        %1682 = vmatpush.bf16.msra.mxu0 %v1660
        %1683 = vmatpush.bf16.msra.mxu0 %v1659
        %1684 = vmatmul.bf16.gmra.mxu0 %v1671
        %v1685 = vpop.f32.mrf.mxu0
        %v1686 = vadd.f32 %v1604, %v1685
        %v1687 = vpop.f32.mrf.mxu0
        %v1688 = vadd.f32 %v1609, %v1687
        %1689 = vmatmul.bf16.gmra.mxu0 %v1674
        %v1690 = vpop.f32.mrf.mxu0
        %v1691 = vadd.f32 %v1614, %v1690
        %v1692 = vpop.f32.mrf.mxu0
        %v1693 = vadd.f32 %v1619, %v1692
        %1694 = vdwg.mxu0
        %v1695 = vmax.f32 %v1686, 0.0
        %v1696 = vmax.f32 %v1688, 0.0
        %v1697 = vmax.f32 %v1691, 0.0
        %v1698 = vmax.f32 %v1693, 0.0
        %v1699 = vld [vmem:[#allocation8] sm:$0xf]
        %v1700 = vld [vmem:[#allocation8 + $0x4] sm:$0xf]
        %v1701 = vld [vmem:[#allocation8 + $0x8] sm:$0xf]
        %v1702 = vld [vmem:[#allocation8 + $0xc] sm:$0xf]
        %v1703 = vpack.c.bf16 %v1696, %v1695
        %v1704 = vpack.c.bf16 %v1698, %v1697
        %v1709 = vunpack.c.l.b16 %v1699
        %v1710 = vunpack.c.l.b16 %v1700
        %v1711 = vunpack.c.l.b16 %v1701
        %v1712 = vunpack.c.l.b16 %v1702
        %v1713 = vpack.c.b16 %v1710, %v1709
        %v1714 = vpack.c.b16 %v1712, %v1711
        %vm1715 = vcmask 261120
        %v1717 = vsel %vm1715, %v1713, 0
        %v1720 = vsel %vm1715, %v1714, 0
        %1722 = vmatpush.bf16.msra.mxu0 0
        %1723 = vmatpush.bf16.msra.mxu0 0
        %1724 = vmatpush.bf16.msra.mxu0 0
        %1725 = vmatpush.bf16.msra.mxu0 0
        %1726 = vmatpush.bf16.msra.mxu0 0
        %1727 = vmatpush.bf16.msra.mxu0 0
        %1728 = vmatpush.bf16.msra.mxu0 %v1704
        %1729 = vmatpush.bf16.msra.mxu0 %v1703
        %1730 = vmatmul.bf16.gmra.mxu0 %v1717
        %v1731 = vpop.f32.mrf.mxu0
        %v1732 = vadd.f32 0.0, %v1731
        %v1733 = vpop.f32.mrf.mxu0
        %v1734 = vadd.f32 0.0, %v1733
        %1735 = vmatmul.bf16.gmra.mxu0 %v1720
        %v1736 = vpop.f32.mrf.mxu0
        %v1737 = vadd.f32 0.0, %v1736
        %v1738 = vpop.f32.mrf.mxu0
        %v1739 = vadd.f32 0.0, %v1738
        %1740 = vdwg.mxu0
        %v1741 = vadd.f32 %v1535, %v1732
        %v1742 = vadd.f32 %v1537, %v1734
        %v1743 = vadd.f32 %v1540, %v1737
        %v1744 = vadd.f32 %v1542, %v1739
        %s1745 = scalar_lea.vmem %s5, 32
        %v1746 = vld [vmem:[%s1745] sm:$0xff]
        %v1747 = vld [vmem:[%s1745 + $0x8] sm:$0xff]
        %v1748 = vld [vmem:[%s1745 + $0x10] sm:$0xff]
        %v1749 = vld [vmem:[%s1745 + $0x18] sm:$0xff]
        %1751 = vset.pattern.permute.xlu0 0
        %1752 = vperm.xlu0 %1751, %v1746
        %v1753 = vpop.permute.xlu0 %1752
        %1756 = vset.pattern.permute.xlu0 0
        %1757 = vperm.xlu0 %1756, %v1747
        %v1758 = vpop.permute.xlu0 %1757
        %1761 = vset.pattern.permute.xlu0 0
        %1762 = vperm.xlu0 %1761, %v1748
        %v1763 = vpop.permute.xlu0 %1762
        %1766 = vset.pattern.permute.xlu0 0
        %1767 = vperm.xlu0 %1766, %v1749
        %v1768 = vpop.permute.xlu0 %1767
        %v1770 = vadd.f32 %v1741, %v1753
        %v1771 = vadd.f32 %v1742, %v1758
        %v1772 = vadd.f32 %v1743, %v1763
        %v1773 = vadd.f32 %v1744, %v1768
        %s1774 = scalar_lea.vmem [#allocation7], 16
        %v1775 = vld [vmem:[%s1774] sm:$0xf]
        %v1776 = vld [vmem:[%s1774 + $0x4] sm:$0xf]
        %v1777 = vld [vmem:[%s1774 + $0x8] sm:$0xf]
        %v1778 = vld [vmem:[%s1774 + $0xc] sm:$0xf]
        %1783 = vrot.lane.b32.xlu0 0.0, 126
        %v1784 = vpop.permute.xlu0 %1783
        %1785 = vrot.lane.b32.xlu0 %v1770, 126
        %v1786 = vpop.permute.xlu0 %1785
        %1787 = vrot.lane.b32.xlu0 %v1771, 126
        %v1788 = vpop.permute.xlu0 %1787
        %1789 = vrot.lane.b32.xlu0 %v1772, 126
        %v1790 = vpop.permute.xlu0 %1789
        %1791 = vrot.lane.b32.xlu0 %v1773, 126
        %v1792 = vpop.permute.xlu0 %1791
        %vm1793 = vcmask 1031168
        %v1794 = vsel %vm1793, %v1784, %v1786
        %v1795 = vsel %vm1793, %v1784, %v1788
        %v1796 = vsel %vm1793, %v1784, %v1790
        %v1797 = vsel %vm1793, %v1784, %v1792
        %1806 = vrot.lane.b32.xlu0 %v1770, 124
        %v1807 = vpop.permute.xlu0 %1806
        %1808 = vrot.lane.b32.xlu0 %v1771, 124
        %v1809 = vpop.permute.xlu0 %1808
        %1810 = vrot.lane.b32.xlu0 %v1772, 124
        %v1811 = vpop.permute.xlu0 %1810
        %1812 = vrot.lane.b32.xlu0 %v1773, 124
        %v1813 = vpop.permute.xlu0 %1812
        %v1818 = vpack.c.bf16 %v1771, %v1770
        %v1819 = vpack.c.bf16 %v1773, %v1772
        %v1820 = vpack.c.bf16 %v1795, %v1794
        %v1821 = vpack.c.bf16 %v1788, %v1786
        %v1822 = vpack.c.bf16 %v1797, %v1796
        %v1823 = vpack.c.bf16 %v1792, %v1790
        %v1824 = vpack.c.bf16 %v1809, %v1807
        %v1825 = vpack.c.bf16 %v1813, %v1811
        %s1826 = scalar_lea.vmem %s5, 64
        %v1827 = vld [vmem:[%s1826] sm:$0xff]
        %v1828 = vld [vmem:[%s1826 + $0x8] sm:$0xff]
        %v1829 = vld [vmem:[%s1826 + $0x10] sm:$0xff]
        %v1830 = vld [vmem:[%s1826 + $0x18] sm:$0xff]
        %1832 = vset.pattern.permute.xlu0 0
        %1833 = vperm.xlu0 %1832, %v1827
        %v1834 = vpop.permute.xlu0 %1833
        %1837 = vset.pattern.permute.xlu0 0
        %1838 = vperm.xlu0 %1837, %v1828
        %v1839 = vpop.permute.xlu0 %1838
        %1842 = vset.pattern.permute.xlu0 0
        %1843 = vperm.xlu0 %1842, %v1829
        %v1844 = vpop.permute.xlu0 %1843
        %1847 = vset.pattern.permute.xlu0 0
        %1848 = vperm.xlu0 %1847, %v1830
        %v1849 = vpop.permute.xlu0 %1848
        %v1855 = vunpack.c.l.b16 %v1775
        %v1856 = vunpack.c.l.b16 %v1776
        %v1857 = vunpack.c.l.b16 %v1777
        %v1858 = vunpack.c.l.b16 %v1778
        %v1859 = vpack.c.b16 %v1856, %v1855
        %v1860 = vpack.c.b16 %v1858, %v1857
        %1869 = vrot.lane.b32.xlu0 %v1588, 4
        %v1870 = vpop.permute.xlu0 %1869
        %1871 = vrot.lane.b32.xlu0 %v1818, 4
        %v1872 = vpop.permute.xlu0 %1871
        %1873 = vrot.lane.b32.xlu0 %v1819, 4
        %v1874 = vpop.permute.xlu0 %1873
        %1875 = vrot.lane.b32.xlu0 %v1820, 4
        %v1876 = vpop.permute.xlu0 %1875
        %1877 = vrot.lane.b32.xlu0 %v1821, 4
        %v1878 = vpop.permute.xlu0 %1877
        %1879 = vrot.lane.b32.xlu0 %v1822, 4
        %v1880 = vpop.permute.xlu0 %1879
        %1881 = vrot.lane.b32.xlu0 %v1823, 4
        %v1882 = vpop.permute.xlu0 %1881
        %1883 = vrot.lane.b32.xlu0 %v1824, 4
        %v1884 = vpop.permute.xlu0 %1883
        %1885 = vrot.lane.b32.xlu0 %v1825, 4
        %v1886 = vpop.permute.xlu0 %1885
        %vm1887 = vcmask 31744
        %v1888 = vsel %vm1887, %v1870, %v1872
        %v1889 = vsel %vm1887, %v1870, %v1874
        %v1890 = vsel %vm1887, %v1876, %v1878
        %v1891 = vsel %vm1887, %v1880, %v1882
        %v1899 = vsel %vm1669, %v1859, 0
        %v1902 = vsel %vm1669, %v1860, 0
        %1904 = vmatpush.bf16.msra.mxu0 0
        %1905 = vmatpush.bf16.msra.mxu0 0
        %1906 = vmatpush.bf16.msra.mxu0 %v1886
        %1907 = vmatpush.bf16.msra.mxu0 %v1884
        %1908 = vmatpush.bf16.msra.mxu0 %v1891
        %1909 = vmatpush.bf16.msra.mxu0 %v1890
        %1910 = vmatpush.bf16.msra.mxu0 %v1889
        %1911 = vmatpush.bf16.msra.mxu0 %v1888
        %1912 = vmatmul.bf16.gmra.mxu0 %v1899
        %v1913 = vpop.f32.mrf.mxu0
        %v1914 = vadd.f32 %v1834, %v1913
        %v1915 = vpop.f32.mrf.mxu0
        %v1916 = vadd.f32 %v1839, %v1915
        %1917 = vmatmul.bf16.gmra.mxu0 %v1902
        %v1918 = vpop.f32.mrf.mxu0
        %v1919 = vadd.f32 %v1844, %v1918
        %v1920 = vpop.f32.mrf.mxu0
        %v1921 = vadd.f32 %v1849, %v1920
        %1922 = vdwg.mxu0
        %v1923 = vmax.f32 %v1914, 0.0
        %v1924 = vmax.f32 %v1916, 0.0
        %v1925 = vmax.f32 %v1919, 0.0
        %v1926 = vmax.f32 %v1921, 0.0
        %s1927 = scalar_lea.vmem [#allocation8], 16
        %v1928 = vld [vmem:[%s1927] sm:$0xf]
        %v1929 = vld [vmem:[%s1927 + $0x4] sm:$0xf]
        %v1930 = vld [vmem:[%s1927 + $0x8] sm:$0xf]
        %v1931 = vld [vmem:[%s1927 + $0xc] sm:$0xf]
        %v1932 = vpack.c.bf16 %v1924, %v1923
        %v1933 = vpack.c.bf16 %v1926, %v1925
        %v1938 = vunpack.c.l.b16 %v1928
        %v1939 = vunpack.c.l.b16 %v1929
        %v1940 = vunpack.c.l.b16 %v1930
        %v1941 = vunpack.c.l.b16 %v1931
        %v1942 = vpack.c.b16 %v1939, %v1938
        %v1943 = vpack.c.b16 %v1941, %v1940
        %v1945 = vsel %vm1715, %v1942, 0
        %v1948 = vsel %vm1715, %v1943, 0
        %1950 = vmatpush.bf16.msra.mxu0 0
        %1951 = vmatpush.bf16.msra.mxu0 0
        %1952 = vmatpush.bf16.msra.mxu0 0
        %1953 = vmatpush.bf16.msra.mxu0 0
        %1954 = vmatpush.bf16.msra.mxu0 0
        %1955 = vmatpush.bf16.msra.mxu0 0
        %1956 = vmatpush.bf16.msra.mxu0 %v1933
        %1957 = vmatpush.bf16.msra.mxu0 %v1932
        %1958 = vmatmul.bf16.gmra.mxu0 %v1945
        %v1959 = vpop.f32.mrf.mxu0
        %v1960 = vadd.f32 0.0, %v1959
        %v1961 = vpop.f32.mrf.mxu0
        %v1962 = vadd.f32 0.0, %v1961
        %1963 = vmatmul.bf16.gmra.mxu0 %v1948
        %v1964 = vpop.f32.mrf.mxu0
        %v1965 = vadd.f32 0.0, %v1964
        %v1966 = vpop.f32.mrf.mxu0
        %v1967 = vadd.f32 0.0, %v1966
        %1968 = vdwg.mxu0
        %v1969 = vadd.f32 %v1770, %v1960
        %v1970 = vadd.f32 %v1771, %v1962
        %v1971 = vadd.f32 %v1772, %v1965
        %v1972 = vadd.f32 %v1773, %v1967
        %s1973 = scalar_lea.vmem %s5, 96
        %v1974 = vld [vmem:[%s1973] sm:$0xff]
        %v1975 = vld [vmem:[%s1973 + $0x8] sm:$0xff]
        %v1976 = vld [vmem:[%s1973 + $0x10] sm:$0xff]
        %v1977 = vld [vmem:[%s1973 + $0x18] sm:$0xff]
        %1979 = vset.pattern.permute.xlu0 0
        %1980 = vperm.xlu0 %1979, %v1974
        %v1981 = vpop.permute.xlu0 %1980
        %1984 = vset.pattern.permute.xlu0 0
        %1985 = vperm.xlu0 %1984, %v1975
        %v1986 = vpop.permute.xlu0 %1985
        %1989 = vset.pattern.permute.xlu0 0
        %1990 = vperm.xlu0 %1989, %v1976
        %v1991 = vpop.permute.xlu0 %1990
        %1994 = vset.pattern.permute.xlu0 0
        %1995 = vperm.xlu0 %1994, %v1977
        %v1996 = vpop.permute.xlu0 %1995
        %v1998 = vadd.f32 %v1969, %v1981
        %v1999 = vadd.f32 %v1970, %v1986
        %v2000 = vadd.f32 %v1971, %v1991
        %v2001 = vadd.f32 %v1972, %v1996
        %s2002 = scalar_lea.vmem [#allocation7], 32
        %v2003 = vld [vmem:[%s2002] sm:$0xf]
        %v2004 = vld [vmem:[%s2002 + $0x4] sm:$0xf]
        %v2005 = vld [vmem:[%s2002 + $0x8] sm:$0xf]
        %v2006 = vld [vmem:[%s2002 + $0xc] sm:$0xf]
        %2011 = vrot.lane.b32.xlu0 0.0, 124
        %v2012 = vpop.permute.xlu0 %2011
        %2013 = vrot.lane.b32.xlu0 %v1998, 124
        %v2014 = vpop.permute.xlu0 %2013
        %2015 = vrot.lane.b32.xlu0 %v1999, 124
        %v2016 = vpop.permute.xlu0 %2015
        %2017 = vrot.lane.b32.xlu0 %v2000, 124
        %v2018 = vpop.permute.xlu0 %2017
        %2019 = vrot.lane.b32.xlu0 %v2001, 124
        %v2020 = vpop.permute.xlu0 %2019
        %vm2021 = vcmask 1014784
        %v2022 = vsel %vm2021, %v2012, %v2014
        %v2023 = vsel %vm2021, %v2012, %v2016
        %v2024 = vsel %vm2021, %v2012, %v2018
        %v2025 = vsel %vm2021, %v2012, %v2020
        %2034 = vrot.lane.b32.xlu0 %v1998, 120
        %v2035 = vpop.permute.xlu0 %2034
        %2036 = vrot.lane.b32.xlu0 %v1999, 120
        %v2037 = vpop.permute.xlu0 %2036
        %2038 = vrot.lane.b32.xlu0 %v2000, 120
        %v2039 = vpop.permute.xlu0 %2038
        %2040 = vrot.lane.b32.xlu0 %v2001, 120
        %v2041 = vpop.permute.xlu0 %2040
        %v2046 = vpack.c.bf16 %v1999, %v1998
        %v2047 = vpack.c.bf16 %v2001, %v2000
        %v2048 = vpack.c.bf16 %v2023, %v2022
        %v2049 = vpack.c.bf16 %v2016, %v2014
        %v2050 = vpack.c.bf16 %v2025, %v2024
        %v2051 = vpack.c.bf16 %v2020, %v2018
        %v2052 = vpack.c.bf16 %v2037, %v2035
        %v2053 = vpack.c.bf16 %v2041, %v2039
        %s2054 = scalar_lea.vmem %s5, 128
        %v2055 = vld [vmem:[%s2054] sm:$0xff]
        %v2056 = vld [vmem:[%s2054 + $0x8] sm:$0xff]
        %v2057 = vld [vmem:[%s2054 + $0x10] sm:$0xff]
        %v2058 = vld [vmem:[%s2054 + $0x18] sm:$0xff]
        %2060 = vset.pattern.permute.xlu0 0
        %2061 = vperm.xlu0 %2060, %v2055
        %v2062 = vpop.permute.xlu0 %2061
        %2065 = vset.pattern.permute.xlu0 0
        %2066 = vperm.xlu0 %2065, %v2056
        %v2067 = vpop.permute.xlu0 %2066
        %2070 = vset.pattern.permute.xlu0 0
        %2071 = vperm.xlu0 %2070, %v2057
        %v2072 = vpop.permute.xlu0 %2071
        %2075 = vset.pattern.permute.xlu0 0
        %2076 = vperm.xlu0 %2075, %v2058
        %v2077 = vpop.permute.xlu0 %2076
        %v2083 = vunpack.c.l.b16 %v2003
        %v2084 = vunpack.c.l.b16 %v2004
        %v2085 = vunpack.c.l.b16 %v2005
        %v2086 = vunpack.c.l.b16 %v2006
        %v2087 = vpack.c.b16 %v2084, %v2083
        %v2088 = vpack.c.b16 %v2086, %v2085
        %2097 = vrot.lane.b32.xlu0 %v1588, 8
        %v2098 = vpop.permute.xlu0 %2097
        %2099 = vrot.lane.b32.xlu0 %v2046, 8
        %v2100 = vpop.permute.xlu0 %2099
        %2101 = vrot.lane.b32.xlu0 %v2047, 8
        %v2102 = vpop.permute.xlu0 %2101
        %2103 = vrot.lane.b32.xlu0 %v2048, 8
        %v2104 = vpop.permute.xlu0 %2103
        %2105 = vrot.lane.b32.xlu0 %v2049, 8
        %v2106 = vpop.permute.xlu0 %2105
        %2107 = vrot.lane.b32.xlu0 %v2050, 8
        %v2108 = vpop.permute.xlu0 %2107
        %2109 = vrot.lane.b32.xlu0 %v2051, 8
        %v2110 = vpop.permute.xlu0 %2109
        %2111 = vrot.lane.b32.xlu0 %v2052, 8
        %v2112 = vpop.permute.xlu0 %2111
        %2113 = vrot.lane.b32.xlu0 %v2053, 8
        %v2114 = vpop.permute.xlu0 %2113
        %vm2115 = vcmask 64512
        %v2116 = vsel %vm2115, %v2098, %v2100
        %v2117 = vsel %vm2115, %v2098, %v2102
        %v2118 = vsel %vm2115, %v2104, %v2106
        %v2119 = vsel %vm2115, %v2108, %v2110
        %v2127 = vsel %vm1669, %v2087, 0
        %v2130 = vsel %vm1669, %v2088, 0
        %2132 = vmatpush.bf16.msra.mxu0 0
        %2133 = vmatpush.bf16.msra.mxu0 0
        %2134 = vmatpush.bf16.msra.mxu0 %v2114
        %2135 = vmatpush.bf16.msra.mxu0 %v2112
        %2136 = vmatpush.bf16.msra.mxu0 %v2119
        %2137 = vmatpush.bf16.msra.mxu0 %v2118
        %2138 = vmatpush.bf16.msra.mxu0 %v2117
        %2139 = vmatpush.bf16.msra.mxu0 %v2116
        %2140 = vmatmul.bf16.gmra.mxu0 %v2127
        %v2141 = vpop.f32.mrf.mxu0
        %v2142 = vadd.f32 %v2062, %v2141
        %v2143 = vpop.f32.mrf.mxu0
        %v2144 = vadd.f32 %v2067, %v2143
        %2145 = vmatmul.bf16.gmra.mxu0 %v2130
        %v2146 = vpop.f32.mrf.mxu0
        %v2147 = vadd.f32 %v2072, %v2146
        %v2148 = vpop.f32.mrf.mxu0
        %v2149 = vadd.f32 %v2077, %v2148
        %2150 = vdwg.mxu0
        %v2151 = vmax.f32 %v2142, 0.0
        %v2152 = vmax.f32 %v2144, 0.0
        %v2153 = vmax.f32 %v2147, 0.0
        %v2154 = vmax.f32 %v2149, 0.0
        %s2155 = scalar_lea.vmem [#allocation8], 32
        %v2156 = vld [vmem:[%s2155] sm:$0xf]
        %v2157 = vld [vmem:[%s2155 + $0x4] sm:$0xf]
        %v2158 = vld [vmem:[%s2155 + $0x8] sm:$0xf]
        %v2159 = vld [vmem:[%s2155 + $0xc] sm:$0xf]
        %v2160 = vpack.c.bf16 %v2152, %v2151
        %v2161 = vpack.c.bf16 %v2154, %v2153
        %v2166 = vunpack.c.l.b16 %v2156
        %v2167 = vunpack.c.l.b16 %v2157
        %v2168 = vunpack.c.l.b16 %v2158
        %v2169 = vunpack.c.l.b16 %v2159
        %v2170 = vpack.c.b16 %v2167, %v2166
        %v2171 = vpack.c.b16 %v2169, %v2168
        %v2173 = vsel %vm1715, %v2170, 0
        %v2176 = vsel %vm1715, %v2171, 0
        %2178 = vmatpush.bf16.msra.mxu0 0
        %2179 = vmatpush.bf16.msra.mxu0 0
        %2180 = vmatpush.bf16.msra.mxu0 0
        %2181 = vmatpush.bf16.msra.mxu0 0
        %2182 = vmatpush.bf16.msra.mxu0 0
        %2183 = vmatpush.bf16.msra.mxu0 0
        %2184 = vmatpush.bf16.msra.mxu0 %v2161
        %2185 = vmatpush.bf16.msra.mxu0 %v2160
        %2186 = vmatmul.bf16.gmra.mxu0 %v2173
        %v2187 = vpop.f32.mrf.mxu0
        %v2188 = vadd.f32 0.0, %v2187
        %v2189 = vpop.f32.mrf.mxu0
        %v2190 = vadd.f32 0.0, %v2189
        %2191 = vmatmul.bf16.gmra.mxu0 %v2176
        %v2192 = vpop.f32.mrf.mxu0
        %v2193 = vadd.f32 0.0, %v2192
        %v2194 = vpop.f32.mrf.mxu0
        %v2195 = vadd.f32 0.0, %v2194
        %2196 = vdwg.mxu0
        %v2197 = vadd.f32 %v1998, %v2188
        %v2198 = vadd.f32 %v1999, %v2190
        %v2199 = vadd.f32 %v2000, %v2193
        %v2200 = vadd.f32 %v2001, %v2195
        %s2201 = scalar_lea.vmem %s5, 160
        %v2202 = vld [vmem:[%s2201] sm:$0xff]
        %v2203 = vld [vmem:[%s2201 + $0x8] sm:$0xff]
        %v2204 = vld [vmem:[%s2201 + $0x10] sm:$0xff]
        %v2205 = vld [vmem:[%s2201 + $0x18] sm:$0xff]
        %2207 = vset.pattern.permute.xlu0 0
        %2208 = vperm.xlu0 %2207, %v2202
        %v2209 = vpop.permute.xlu0 %2208
        %2212 = vset.pattern.permute.xlu0 0
        %2213 = vperm.xlu0 %2212, %v2203
        %v2214 = vpop.permute.xlu0 %2213
        %2217 = vset.pattern.permute.xlu0 0
        %2218 = vperm.xlu0 %2217, %v2204
        %v2219 = vpop.permute.xlu0 %2218
        %2222 = vset.pattern.permute.xlu0 0
        %2223 = vperm.xlu0 %2222, %v2205
        %v2224 = vpop.permute.xlu0 %2223
        %v2226 = vadd.f32 %v2197, %v2209
        %v2227 = vadd.f32 %v2198, %v2214
        %v2228 = vadd.f32 %v2199, %v2219
        %v2229 = vadd.f32 %v2200, %v2224
        %s2230 = scalar_lea.vmem [#allocation7], 48
        %v2231 = vld [vmem:[%s2230] sm:$0xf]
        %v2232 = vld [vmem:[%s2230 + $0x4] sm:$0xf]
        %v2233 = vld [vmem:[%s2230 + $0x8] sm:$0xf]
        %v2234 = vld [vmem:[%s2230 + $0xc] sm:$0xf]
        %2239 = vrot.lane.b32.xlu0 0.0, 120
        %v2240 = vpop.permute.xlu0 %2239
        %2241 = vrot.lane.b32.xlu0 %v2226, 120
        %v2242 = vpop.permute.xlu0 %2241
        %2243 = vrot.lane.b32.xlu0 %v2227, 120
        %v2244 = vpop.permute.xlu0 %2243
        %2245 = vrot.lane.b32.xlu0 %v2228, 120
        %v2246 = vpop.permute.xlu0 %2245
        %2247 = vrot.lane.b32.xlu0 %v2229, 120
        %v2248 = vpop.permute.xlu0 %2247
        %vm2249 = vcmask 982016
        %v2250 = vsel %vm2249, %v2240, %v2242
        %v2251 = vsel %vm2249, %v2240, %v2244
        %v2252 = vsel %vm2249, %v2240, %v2246
        %v2253 = vsel %vm2249, %v2240, %v2248
        %2262 = vrot.lane.b32.xlu0 %v2226, 112
        %v2263 = vpop.permute.xlu0 %2262
        %2264 = vrot.lane.b32.xlu0 %v2227, 112
        %v2265 = vpop.permute.xlu0 %2264
        %2266 = vrot.lane.b32.xlu0 %v2228, 112
        %v2267 = vpop.permute.xlu0 %2266
        %2268 = vrot.lane.b32.xlu0 %v2229, 112
        %v2269 = vpop.permute.xlu0 %2268
        %v2274 = vpack.c.bf16 %v2227, %v2226
        %v2275 = vpack.c.bf16 %v2229, %v2228
        %v2276 = vpack.c.bf16 %v2251, %v2250
        %v2277 = vpack.c.bf16 %v2244, %v2242
        %v2278 = vpack.c.bf16 %v2253, %v2252
        %v2279 = vpack.c.bf16 %v2248, %v2246
        %v2280 = vpack.c.bf16 %v2265, %v2263
        %v2281 = vpack.c.bf16 %v2269, %v2267
        %s2282 = scalar_lea.vmem %s5, 192
        %v2283 = vld [vmem:[%s2282] sm:$0xff]
        %v2284 = vld [vmem:[%s2282 + $0x8] sm:$0xff]
        %v2285 = vld [vmem:[%s2282 + $0x10] sm:$0xff]
        %v2286 = vld [vmem:[%s2282 + $0x18] sm:$0xff]
        %2288 = vset.pattern.permute.xlu0 0
        %2289 = vperm.xlu0 %2288, %v2283
        %v2290 = vpop.permute.xlu0 %2289
        %2293 = vset.pattern.permute.xlu0 0
        %2294 = vperm.xlu0 %2293, %v2284
        %v2295 = vpop.permute.xlu0 %2294
        %2298 = vset.pattern.permute.xlu0 0
        %2299 = vperm.xlu0 %2298, %v2285
        %v2300 = vpop.permute.xlu0 %2299
        %2303 = vset.pattern.permute.xlu0 0
        %2304 = vperm.xlu0 %2303, %v2286
        %v2305 = vpop.permute.xlu0 %2304
        %v2311 = vunpack.c.l.b16 %v2231
        %v2312 = vunpack.c.l.b16 %v2232
        %v2313 = vunpack.c.l.b16 %v2233
        %v2314 = vunpack.c.l.b16 %v2234
        %v2315 = vpack.c.b16 %v2312, %v2311
        %v2316 = vpack.c.b16 %v2314, %v2313
        %2325 = vrot.lane.b32.xlu0 %v1588, 16
        %v2326 = vpop.permute.xlu0 %2325
        %2327 = vrot.lane.b32.xlu0 %v2274, 16
        %v2328 = vpop.permute.xlu0 %2327
        %2329 = vrot.lane.b32.xlu0 %v2275, 16
        %v2330 = vpop.permute.xlu0 %2329
        %2331 = vrot.lane.b32.xlu0 %v2276, 16
        %v2332 = vpop.permute.xlu0 %2331
        %2333 = vrot.lane.b32.xlu0 %v2277, 16
        %v2334 = vpop.permute.xlu0 %2333
        %2335 = vrot.lane.b32.xlu0 %v2278, 16
        %v2336 = vpop.permute.xlu0 %2335
        %2337 = vrot.lane.b32.xlu0 %v2279, 16
        %v2338 = vpop.permute.xlu0 %2337
        %2339 = vrot.lane.b32.xlu0 %v2280, 16
        %v2340 = vpop.permute.xlu0 %2339
        %2341 = vrot.lane.b32.xlu0 %v2281, 16
        %v2342 = vpop.permute.xlu0 %2341
        %vm2343 = vcmask 130048
        %v2344 = vsel %vm2343, %v2326, %v2328
        %v2345 = vsel %vm2343, %v2326, %v2330
        %v2346 = vsel %vm2343, %v2332, %v2334
        %v2347 = vsel %vm2343, %v2336, %v2338
        %v2355 = vsel %vm1669, %v2315, 0
        %v2358 = vsel %vm1669, %v2316, 0
        %2360 = vmatpush.bf16.msra.mxu0 0
        %2361 = vmatpush.bf16.msra.mxu0 0
        %2362 = vmatpush.bf16.msra.mxu0 %v2342
        %2363 = vmatpush.bf16.msra.mxu0 %v2340
        %2364 = vmatpush.bf16.msra.mxu0 %v2347
        %2365 = vmatpush.bf16.msra.mxu0 %v2346
        %2366 = vmatpush.bf16.msra.mxu0 %v2345
        %2367 = vmatpush.bf16.msra.mxu0 %v2344
        %2368 = vmatmul.bf16.gmra.mxu0 %v2355
        %v2369 = vpop.f32.mrf.mxu0
        %v2370 = vadd.f32 %v2290, %v2369
        %v2371 = vpop.f32.mrf.mxu0
        %v2372 = vadd.f32 %v2295, %v2371
        %2373 = vmatmul.bf16.gmra.mxu0 %v2358
        %v2374 = vpop.f32.mrf.mxu0
        %v2375 = vadd.f32 %v2300, %v2374
        %v2376 = vpop.f32.mrf.mxu0
        %v2377 = vadd.f32 %v2305, %v2376
        %2378 = vdwg.mxu0
        %v2379 = vmax.f32 %v2370, 0.0
        %v2380 = vmax.f32 %v2372, 0.0
        %v2381 = vmax.f32 %v2375, 0.0
        %v2382 = vmax.f32 %v2377, 0.0
        %s2383 = scalar_lea.vmem [#allocation8], 48
        %v2384 = vld [vmem:[%s2383] sm:$0xf]
        %v2385 = vld [vmem:[%s2383 + $0x4] sm:$0xf]
        %v2386 = vld [vmem:[%s2383 + $0x8] sm:$0xf]
        %v2387 = vld [vmem:[%s2383 + $0xc] sm:$0xf]
        %v2388 = vpack.c.bf16 %v2380, %v2379
        %v2389 = vpack.c.bf16 %v2382, %v2381
        %v2394 = vunpack.c.l.b16 %v2384
        %v2395 = vunpack.c.l.b16 %v2385
        %v2396 = vunpack.c.l.b16 %v2386
        %v2397 = vunpack.c.l.b16 %v2387
        %v2398 = vpack.c.b16 %v2395, %v2394
        %v2399 = vpack.c.b16 %v2397, %v2396
        %v2401 = vsel %vm1715, %v2398, 0
        %v2404 = vsel %vm1715, %v2399, 0
        %2406 = vmatpush.bf16.msra.mxu0 0
        %2407 = vmatpush.bf16.msra.mxu0 0
        %2408 = vmatpush.bf16.msra.mxu0 0
        %2409 = vmatpush.bf16.msra.mxu0 0
        %2410 = vmatpush.bf16.msra.mxu0 0
        %2411 = vmatpush.bf16.msra.mxu0 0
        %2412 = vmatpush.bf16.msra.mxu0 %v2389
        %2413 = vmatpush.bf16.msra.mxu0 %v2388
        %2414 = vmatmul.bf16.gmra.mxu0 %v2401
        %v2415 = vpop.f32.mrf.mxu0
        %v2416 = vadd.f32 0.0, %v2415
        %v2417 = vpop.f32.mrf.mxu0
        %v2418 = vadd.f32 0.0, %v2417
        %2419 = vmatmul.bf16.gmra.mxu0 %v2404
        %v2420 = vpop.f32.mrf.mxu0
        %v2421 = vadd.f32 0.0, %v2420
        %v2422 = vpop.f32.mrf.mxu0
        %v2423 = vadd.f32 0.0, %v2422
        %2424 = vdwg.mxu0
        %v2425 = vadd.f32 %v2226, %v2416
        %v2426 = vadd.f32 %v2227, %v2418
        %v2427 = vadd.f32 %v2228, %v2421
        %v2428 = vadd.f32 %v2229, %v2423
        %s2429 = scalar_lea.vmem %s5, 224
        %v2430 = vld [vmem:[%s2429] sm:$0xff]
        %v2431 = vld [vmem:[%s2429 + $0x8] sm:$0xff]
        %v2432 = vld [vmem:[%s2429 + $0x10] sm:$0xff]
        %v2433 = vld [vmem:[%s2429 + $0x18] sm:$0xff]
        %2435 = vset.pattern.permute.xlu0 0
        %2436 = vperm.xlu0 %2435, %v2430
        %v2437 = vpop.permute.xlu0 %2436
        %2440 = vset.pattern.permute.xlu0 0
        %2441 = vperm.xlu0 %2440, %v2431
        %v2442 = vpop.permute.xlu0 %2441
        %2445 = vset.pattern.permute.xlu0 0
        %2446 = vperm.xlu0 %2445, %v2432
        %v2447 = vpop.permute.xlu0 %2446
        %2450 = vset.pattern.permute.xlu0 0
        %2451 = vperm.xlu0 %2450, %v2433
        %v2452 = vpop.permute.xlu0 %2451
        %v2454 = vadd.f32 %v2425, %v2437
        %v2455 = vadd.f32 %v2426, %v2442
        %v2456 = vadd.f32 %v2427, %v2447
        %v2457 = vadd.f32 %v2428, %v2452
        %s2458 = scalar_lea.vmem [#allocation7], 64
        %v2459 = vld [vmem:[%s2458] sm:$0xf]
        %v2460 = vld [vmem:[%s2458 + $0x4] sm:$0xf]
        %v2461 = vld [vmem:[%s2458 + $0x8] sm:$0xf]
        %v2462 = vld [vmem:[%s2458 + $0xc] sm:$0xf]
        %2467 = vrot.lane.b32.xlu0 0.0, 112
        %v2468 = vpop.permute.xlu0 %2467
        %2469 = vrot.lane.b32.xlu0 %v2454, 112
        %v2470 = vpop.permute.xlu0 %2469
        %2471 = vrot.lane.b32.xlu0 %v2455, 112
        %v2472 = vpop.permute.xlu0 %2471
        %2473 = vrot.lane.b32.xlu0 %v2456, 112
        %v2474 = vpop.permute.xlu0 %2473
        %2475 = vrot.lane.b32.xlu0 %v2457, 112
        %v2476 = vpop.permute.xlu0 %2475
        %vm2477 = vcmask 916480
        %v2478 = vsel %vm2477, %v2468, %v2470
        %v2479 = vsel %vm2477, %v2468, %v2472
        %v2480 = vsel %vm2477, %v2468, %v2474
        %v2481 = vsel %vm2477, %v2468, %v2476
        %2490 = vrot.lane.b32.xlu0 %v2454, 96
        %v2491 = vpop.permute.xlu0 %2490
        %2492 = vrot.lane.b32.xlu0 %v2455, 96
        %v2493 = vpop.permute.xlu0 %2492
        %2494 = vrot.lane.b32.xlu0 %v2456, 96
        %v2495 = vpop.permute.xlu0 %2494
        %2496 = vrot.lane.b32.xlu0 %v2457, 96
        %v2497 = vpop.permute.xlu0 %2496
        %v2502 = vpack.c.bf16 %v2455, %v2454
        %v2503 = vpack.c.bf16 %v2457, %v2456
        %v2504 = vpack.c.bf16 %v2479, %v2478
        %v2505 = vpack.c.bf16 %v2472, %v2470
        %v2506 = vpack.c.bf16 %v2481, %v2480
        %v2507 = vpack.c.bf16 %v2476, %v2474
        %v2508 = vpack.c.bf16 %v2493, %v2491
        %v2509 = vpack.c.bf16 %v2497, %v2495
        %s2510 = scalar_lea.vmem %s5, 256
        %v2511 = vld [vmem:[%s2510] sm:$0xff]
        %v2512 = vld [vmem:[%s2510 + $0x8] sm:$0xff]
        %v2513 = vld [vmem:[%s2510 + $0x10] sm:$0xff]
        %v2514 = vld [vmem:[%s2510 + $0x18] sm:$0xff]
        %2516 = vset.pattern.permute.xlu0 0
        %2517 = vperm.xlu0 %2516, %v2511
        %v2518 = vpop.permute.xlu0 %2517
        %2521 = vset.pattern.permute.xlu0 0
        %2522 = vperm.xlu0 %2521, %v2512
        %v2523 = vpop.permute.xlu0 %2522
        %2526 = vset.pattern.permute.xlu0 0
        %2527 = vperm.xlu0 %2526, %v2513
        %v2528 = vpop.permute.xlu0 %2527
        %2531 = vset.pattern.permute.xlu0 0
        %2532 = vperm.xlu0 %2531, %v2514
        %v2533 = vpop.permute.xlu0 %2532
        %v2539 = vunpack.c.l.b16 %v2459
        %v2540 = vunpack.c.l.b16 %v2460
        %v2541 = vunpack.c.l.b16 %v2461
        %v2542 = vunpack.c.l.b16 %v2462
        %v2543 = vpack.c.b16 %v2540, %v2539
        %v2544 = vpack.c.b16 %v2542, %v2541
        %2553 = vrot.lane.b32.xlu0 %v1588, 32
        %v2554 = vpop.permute.xlu0 %2553
        %2555 = vrot.lane.b32.xlu0 %v2502, 32
        %v2556 = vpop.permute.xlu0 %2555
        %2557 = vrot.lane.b32.xlu0 %v2503, 32
        %v2558 = vpop.permute.xlu0 %2557
        %2559 = vrot.lane.b32.xlu0 %v2504, 32
        %v2560 = vpop.permute.xlu0 %2559
        %2561 = vrot.lane.b32.xlu0 %v2505, 32
        %v2562 = vpop.permute.xlu0 %2561
        %2563 = vrot.lane.b32.xlu0 %v2506, 32
        %v2564 = vpop.permute.xlu0 %2563
        %2565 = vrot.lane.b32.xlu0 %v2507, 32
        %v2566 = vpop.permute.xlu0 %2565
        %2567 = vrot.lane.b32.xlu0 %v2508, 32
        %v2568 = vpop.permute.xlu0 %2567
        %2569 = vrot.lane.b32.xlu0 %v2509, 32
        %v2570 = vpop.permute.xlu0 %2569
        %vm2571 = vcmask 261120
        %v2572 = vsel %vm2571, %v2554, %v2556
        %v2573 = vsel %vm2571, %v2554, %v2558
        %v2574 = vsel %vm2571, %v2560, %v2562
        %v2575 = vsel %vm2571, %v2564, %v2566
        %v2583 = vsel %vm1669, %v2543, 0
        %v2586 = vsel %vm1669, %v2544, 0
        %2588 = vmatpush.bf16.msra.mxu0 0
        %2589 = vmatpush.bf16.msra.mxu0 0
        %2590 = vmatpush.bf16.msra.mxu0 %v2570
        %2591 = vmatpush.bf16.msra.mxu0 %v2568
        %2592 = vmatpush.bf16.msra.mxu0 %v2575
        %2593 = vmatpush.bf16.msra.mxu0 %v2574
        %2594 = vmatpush.bf16.msra.mxu0 %v2573
        %2595 = vmatpush.bf16.msra.mxu0 %v2572
        %2596 = vmatmul.bf16.gmra.mxu0 %v2583
        %v2597 = vpop.f32.mrf.mxu0
        %v2598 = vadd.f32 %v2518, %v2597
        %v2599 = vpop.f32.mrf.mxu0
        %v2600 = vadd.f32 %v2523, %v2599
        %2601 = vmatmul.bf16.gmra.mxu0 %v2586
        %v2602 = vpop.f32.mrf.mxu0
        %v2603 = vadd.f32 %v2528, %v2602
        %v2604 = vpop.f32.mrf.mxu0
        %v2605 = vadd.f32 %v2533, %v2604
        %2606 = vdwg.mxu0
        %v2607 = vmax.f32 %v2598, 0.0
        %v2608 = vmax.f32 %v2600, 0.0
        %v2609 = vmax.f32 %v2603, 0.0
        %v2610 = vmax.f32 %v2605, 0.0
        %s2611 = scalar_lea.vmem [#allocation8], 64
        %v2612 = vld [vmem:[%s2611] sm:$0xf]
        %v2613 = vld [vmem:[%s2611 + $0x4] sm:$0xf]
        %v2614 = vld [vmem:[%s2611 + $0x8] sm:$0xf]
        %v2615 = vld [vmem:[%s2611 + $0xc] sm:$0xf]
        %v2616 = vpack.c.bf16 %v2608, %v2607
        %v2617 = vpack.c.bf16 %v2610, %v2609
        %v2622 = vunpack.c.l.b16 %v2612
        %v2623 = vunpack.c.l.b16 %v2613
        %v2624 = vunpack.c.l.b16 %v2614
        %v2625 = vunpack.c.l.b16 %v2615
        %v2626 = vpack.c.b16 %v2623, %v2622
        %v2627 = vpack.c.b16 %v2625, %v2624
        %v2629 = vsel %vm1715, %v2626, 0
        %v2632 = vsel %vm1715, %v2627, 0
        %2634 = vmatpush.bf16.msra.mxu0 0
        %2635 = vmatpush.bf16.msra.mxu0 0
        %2636 = vmatpush.bf16.msra.mxu0 0
        %2637 = vmatpush.bf16.msra.mxu0 0
        %2638 = vmatpush.bf16.msra.mxu0 0
        %2639 = vmatpush.bf16.msra.mxu0 0
        %2640 = vmatpush.bf16.msra.mxu0 %v2617
        %2641 = vmatpush.bf16.msra.mxu0 %v2616
        %2642 = vmatmul.bf16.gmra.mxu0 %v2629
        %v2643 = vpop.f32.mrf.mxu0
        %v2644 = vadd.f32 0.0, %v2643
        %v2645 = vpop.f32.mrf.mxu0
        %v2646 = vadd.f32 0.0, %v2645
        %2647 = vmatmul.bf16.gmra.mxu0 %v2632
        %v2648 = vpop.f32.mrf.mxu0
        %v2649 = vadd.f32 0.0, %v2648
        %v2650 = vpop.f32.mrf.mxu0
        %v2651 = vadd.f32 0.0, %v2650
        %2652 = vdwg.mxu0
        %v2653 = vadd.f32 %v2454, %v2644
        %v2654 = vadd.f32 %v2455, %v2646
        %v2655 = vadd.f32 %v2456, %v2649
        %v2656 = vadd.f32 %v2457, %v2651
        %s2657 = scalar_lea.vmem %s5, 288
        %v2658 = vld [vmem:[%s2657] sm:$0xff]
        %v2659 = vld [vmem:[%s2657 + $0x8] sm:$0xff]
        %v2660 = vld [vmem:[%s2657 + $0x10] sm:$0xff]
        %v2661 = vld [vmem:[%s2657 + $0x18] sm:$0xff]
        %2663 = vset.pattern.permute.xlu0 0
        %2664 = vperm.xlu0 %2663, %v2658
        %v2665 = vpop.permute.xlu0 %2664
        %2668 = vset.pattern.permute.xlu0 0
        %2669 = vperm.xlu0 %2668, %v2659
        %v2670 = vpop.permute.xlu0 %2669
        %2673 = vset.pattern.permute.xlu0 0
        %2674 = vperm.xlu0 %2673, %v2660
        %v2675 = vpop.permute.xlu0 %2674
        %2678 = vset.pattern.permute.xlu0 0
        %2679 = vperm.xlu0 %2678, %v2661
        %v2680 = vpop.permute.xlu0 %2679
        %v2682 = vadd.f32 %v2653, %v2665
        %v2683 = vadd.f32 %v2654, %v2670
        %v2684 = vadd.f32 %v2655, %v2675
        %v2685 = vadd.f32 %v2656, %v2680
        %s2686 = scalar_lea.vmem [#allocation7], 80
        %v2687 = vld [vmem:[%s2686] sm:$0xf]
        %v2688 = vld [vmem:[%s2686 + $0x4] sm:$0xf]
        %v2689 = vld [vmem:[%s2686 + $0x8] sm:$0xf]
        %v2690 = vld [vmem:[%s2686 + $0xc] sm:$0xf]
        %2695 = vrot.lane.b32.xlu0 0.0, 96
        %v2696 = vpop.permute.xlu0 %2695
        %2697 = vrot.lane.b32.xlu0 %v2682, 96
        %v2698 = vpop.permute.xlu0 %2697
        %2699 = vrot.lane.b32.xlu0 %v2683, 96
        %v2700 = vpop.permute.xlu0 %2699
        %2701 = vrot.lane.b32.xlu0 %v2684, 96
        %v2702 = vpop.permute.xlu0 %2701
        %2703 = vrot.lane.b32.xlu0 %v2685, 96
        %v2704 = vpop.permute.xlu0 %2703
        %v2705 = vsel %vm1669, %v2696, %v2698
        %v2706 = vsel %vm1669, %v2696, %v2700
        %v2707 = vsel %vm1669, %v2696, %v2702
        %v2708 = vsel %vm1669, %v2696, %v2704
        %2717 = vrot.lane.b32.xlu0 %v2682, 64
        %v2718 = vpop.permute.xlu0 %2717
        %2719 = vrot.lane.b32.xlu0 %v2683, 64
        %v2720 = vpop.permute.xlu0 %2719
        %2721 = vrot.lane.b32.xlu0 %v2684, 64
        %v2722 = vpop.permute.xlu0 %2721
        %2723 = vrot.lane.b32.xlu0 %v2685, 64
        %v2724 = vpop.permute.xlu0 %2723
        %v2729 = vpack.c.bf16 %v2683, %v2682
        %v2730 = vpack.c.bf16 %v2685, %v2684
        %v2731 = vpack.c.bf16 %v2706, %v2705
        %v2732 = vpack.c.bf16 %v2700, %v2698
        %v2733 = vpack.c.bf16 %v2708, %v2707
        %v2734 = vpack.c.bf16 %v2704, %v2702
        %v2735 = vpack.c.bf16 %v2720, %v2718
        %v2736 = vpack.c.bf16 %v2724, %v2722
        %s2737 = scalar_lea.vmem %s5, 320
        %v2738 = vld [vmem:[%s2737] sm:$0xff]
        %v2739 = vld [vmem:[%s2737 + $0x8] sm:$0xff]
        %v2740 = vld [vmem:[%s2737 + $0x10] sm:$0xff]
        %v2741 = vld [vmem:[%s2737 + $0x18] sm:$0xff]
        %2743 = vset.pattern.permute.xlu0 0
        %2744 = vperm.xlu0 %2743, %v2738
        %v2745 = vpop.permute.xlu0 %2744
        %2748 = vset.pattern.permute.xlu0 0
        %2749 = vperm.xlu0 %2748, %v2739
        %v2750 = vpop.permute.xlu0 %2749
        %2753 = vset.pattern.permute.xlu0 0
        %2754 = vperm.xlu0 %2753, %v2740
        %v2755 = vpop.permute.xlu0 %2754
        %2758 = vset.pattern.permute.xlu0 0
        %2759 = vperm.xlu0 %2758, %v2741
        %v2760 = vpop.permute.xlu0 %2759
        %v2766 = vunpack.c.l.b16 %v2687
        %v2767 = vunpack.c.l.b16 %v2688
        %v2768 = vunpack.c.l.b16 %v2689
        %v2769 = vunpack.c.l.b16 %v2690
        %v2770 = vpack.c.b16 %v2767, %v2766
        %v2771 = vpack.c.b16 %v2769, %v2768
        %2780 = vrot.lane.b32.xlu0 %v1588, 64
        %v2781 = vpop.permute.xlu0 %2780
        %2782 = vrot.lane.b32.xlu0 %v2729, 64
        %v2783 = vpop.permute.xlu0 %2782
        %2784 = vrot.lane.b32.xlu0 %v2730, 64
        %v2785 = vpop.permute.xlu0 %2784
        %2786 = vrot.lane.b32.xlu0 %v2731, 64
        %v2787 = vpop.permute.xlu0 %2786
        %2788 = vrot.lane.b32.xlu0 %v2732, 64
        %v2789 = vpop.permute.xlu0 %2788
        %2790 = vrot.lane.b32.xlu0 %v2733, 64
        %v2791 = vpop.permute.xlu0 %2790
        %2792 = vrot.lane.b32.xlu0 %v2734, 64
        %v2793 = vpop.permute.xlu0 %2792
        %2794 = vrot.lane.b32.xlu0 %v2735, 64
        %v2795 = vpop.permute.xlu0 %2794
        %2796 = vrot.lane.b32.xlu0 %v2736, 64
        %v2797 = vpop.permute.xlu0 %2796
        %vm2798 = vcmask 523264
        %v2799 = vsel %vm2798, %v2781, %v2783
        %v2800 = vsel %vm2798, %v2781, %v2785
        %v2801 = vsel %vm2798, %v2787, %v2789
        %v2802 = vsel %vm2798, %v2791, %v2793
        %v2810 = vsel %vm1669, %v2770, 0
        %v2813 = vsel %vm1669, %v2771, 0
        %2815 = vmatpush.bf16.msra.mxu0 0
        %2816 = vmatpush.bf16.msra.mxu0 0
        %2817 = vmatpush.bf16.msra.mxu0 %v2797
        %2818 = vmatpush.bf16.msra.mxu0 %v2795
        %2819 = vmatpush.bf16.msra.mxu0 %v2802
        %2820 = vmatpush.bf16.msra.mxu0 %v2801
        %2821 = vmatpush.bf16.msra.mxu0 %v2800
        %2822 = vmatpush.bf16.msra.mxu0 %v2799
        %2823 = vmatmul.bf16.gmra.mxu0 %v2810
        %v2824 = vpop.f32.mrf.mxu0
        %v2825 = vadd.f32 %v2745, %v2824
        %v2826 = vpop.f32.mrf.mxu0
        %v2827 = vadd.f32 %v2750, %v2826
        %2828 = vmatmul.bf16.gmra.mxu0 %v2813
        %v2829 = vpop.f32.mrf.mxu0
        %v2830 = vadd.f32 %v2755, %v2829
        %v2831 = vpop.f32.mrf.mxu0
        %v2832 = vadd.f32 %v2760, %v2831
        %2833 = vdwg.mxu0
        %v2834 = vmax.f32 %v2825, 0.0
        %v2835 = vmax.f32 %v2827, 0.0
        %v2836 = vmax.f32 %v2830, 0.0
        %v2837 = vmax.f32 %v2832, 0.0
        %s2838 = scalar_lea.vmem [#allocation8], 80
        %v2839 = vld [vmem:[%s2838] sm:$0xf]
        %v2840 = vld [vmem:[%s2838 + $0x4] sm:$0xf]
        %v2841 = vld [vmem:[%s2838 + $0x8] sm:$0xf]
        %v2842 = vld [vmem:[%s2838 + $0xc] sm:$0xf]
        %v2843 = vpack.c.bf16 %v2835, %v2834
        %v2844 = vpack.c.bf16 %v2837, %v2836
        %v2849 = vunpack.c.l.b16 %v2839
        %v2850 = vunpack.c.l.b16 %v2840
        %v2851 = vunpack.c.l.b16 %v2841
        %v2852 = vunpack.c.l.b16 %v2842
        %v2853 = vpack.c.b16 %v2850, %v2849
        %v2854 = vpack.c.b16 %v2852, %v2851
        %v2856 = vsel %vm1715, %v2853, 0
        %v2859 = vsel %vm1715, %v2854, 0
        %2861 = vmatpush.bf16.msra.mxu0 0
        %2862 = vmatpush.bf16.msra.mxu0 0
        %2863 = vmatpush.bf16.msra.mxu0 0
        %2864 = vmatpush.bf16.msra.mxu0 0
        %2865 = vmatpush.bf16.msra.mxu0 0
        %2866 = vmatpush.bf16.msra.mxu0 0
        %2867 = vmatpush.bf16.msra.mxu0 %v2844
        %2868 = vmatpush.bf16.msra.mxu0 %v2843
        %2869 = vmatmul.bf16.gmra.mxu0 %v2856
        %v2870 = vpop.f32.mrf.mxu0
        %v2871 = vadd.f32 0.0, %v2870
        %v2872 = vpop.f32.mrf.mxu0
        %v2873 = vadd.f32 0.0, %v2872
        %2874 = vmatmul.bf16.gmra.mxu0 %v2859
        %v2875 = vpop.f32.mrf.mxu0
        %v2876 = vadd.f32 0.0, %v2875
        %v2877 = vpop.f32.mrf.mxu0
        %v2878 = vadd.f32 0.0, %v2877
        %2879 = vdwg.mxu0
        %v2880 = vadd.f32 %v2682, %v2871
        %v2881 = vadd.f32 %v2683, %v2873
        %v2882 = vadd.f32 %v2684, %v2876
        %v2883 = vadd.f32 %v2685, %v2878
        %s2884 = scalar_lea.vmem %s5, 352
        %v2885 = vld [vmem:[%s2884] sm:$0xff]
        %v2886 = vld [vmem:[%s2884 + $0x8] sm:$0xff]
        %v2887 = vld [vmem:[%s2884 + $0x10] sm:$0xff]
        %v2888 = vld [vmem:[%s2884 + $0x18] sm:$0xff]
        %2890 = vset.pattern.permute.xlu0 0
        %2891 = vperm.xlu0 %2890, %v2885
        %v2892 = vpop.permute.xlu0 %2891
        %2895 = vset.pattern.permute.xlu0 0
        %2896 = vperm.xlu0 %2895, %v2886
        %v2897 = vpop.permute.xlu0 %2896
        %2900 = vset.pattern.permute.xlu0 0
        %2901 = vperm.xlu0 %2900, %v2887
        %v2902 = vpop.permute.xlu0 %2901
        %2905 = vset.pattern.permute.xlu0 0
        %2906 = vperm.xlu0 %2905, %v2888
        %v2907 = vpop.permute.xlu0 %2906
        %v2909 = vadd.f32 %v2880, %v2892
        %v2910 = vadd.f32 %v2881, %v2897
        %v2911 = vadd.f32 %v2882, %v2902
        %v2912 = vadd.f32 %v2883, %v2907
        %s2913 = scalar_lea.vmem [#allocation7], 96
        %v2914 = vld [vmem:[%s2913] sm:$0xf]
        %v2915 = vld [vmem:[%s2913 + $0x4] sm:$0xf]
        %v2916 = vld [vmem:[%s2913 + $0x8] sm:$0xf]
        %v2917 = vld [vmem:[%s2913 + $0xc] sm:$0xf]
        %2922 = vrot.lane.b32.xlu0 0.0, 64
        %v2923 = vpop.permute.xlu0 %2922
        %2924 = vrot.lane.b32.xlu0 %v2909, 64
        %v2925 = vpop.permute.xlu0 %2924
        %2926 = vrot.lane.b32.xlu0 %v2910, 64
        %v2927 = vpop.permute.xlu0 %2926
        %2928 = vrot.lane.b32.xlu0 %v2911, 64
        %v2929 = vpop.permute.xlu0 %2928
        %2930 = vrot.lane.b32.xlu0 %v2912, 64
        %v2931 = vpop.permute.xlu0 %2930
        %vm2932 = vcmask 523264
        %v2933 = vsel %vm2932, %v2923, %v2925
        %v2934 = vsel %vm2932, %v2923, %v2927
        %v2935 = vsel %vm2932, %v2923, %v2929
        %v2936 = vsel %vm2932, %v2923, %v2931
        %v2941 = vpack.c.bf16 %v2934, %v2933
        %v2942 = vpack.c.bf16 %v2936, %v2935
        %v2943 = vpack.c.bf16 %v2910, %v2909
        %v2944 = vpack.c.bf16 %v2912, %v2911
        %s2945 = scalar_lea.vmem %s5, 384
        %v2946 = vld [vmem:[%s2945] sm:$0xff]
        %v2947 = vld [vmem:[%s2945 + $0x8] sm:$0xff]
        %v2948 = vld [vmem:[%s2945 + $0x10] sm:$0xff]
        %v2949 = vld [vmem:[%s2945 + $0x18] sm:$0xff]
        %2951 = vset.pattern.permute.xlu0 0
        %2952 = vperm.xlu0 %2951, %v2946
        %v2953 = vpop.permute.xlu0 %2952
        %2956 = vset.pattern.permute.xlu0 0
        %2957 = vperm.xlu0 %2956, %v2947
        %v2958 = vpop.permute.xlu0 %2957
        %2961 = vset.pattern.permute.xlu0 0
        %2962 = vperm.xlu0 %2961, %v2948
        %v2963 = vpop.permute.xlu0 %2962
        %2966 = vset.pattern.permute.xlu0 0
        %2967 = vperm.xlu0 %2966, %v2949
        %v2968 = vpop.permute.xlu0 %2967
        %v2974 = vunpack.c.l.b16 %v2914
        %v2975 = vunpack.c.l.b16 %v2915
        %v2976 = vunpack.c.l.b16 %v2916
        %v2977 = vunpack.c.l.b16 %v2917
        %v2978 = vpack.c.b16 %v2975, %v2974
        %v2979 = vpack.c.b16 %v2977, %v2976
        %v2981 = vsel %vm1669, %v2978, 0
        %v2984 = vsel %vm1669, %v2979, 0
        %2986 = vmatpush.bf16.msra.mxu0 0
        %2987 = vmatpush.bf16.msra.mxu0 0
        %2988 = vmatpush.bf16.msra.mxu0 %v2944
        %2989 = vmatpush.bf16.msra.mxu0 %v2943
        %2990 = vmatpush.bf16.msra.mxu0 %v2942
        %2991 = vmatpush.bf16.msra.mxu0 %v2941
        %2992 = vmatpush.bf16.msra.mxu0 %v1588
        %2993 = vmatpush.bf16.msra.mxu0 %v1588
        %2994 = vmatmul.bf16.gmra.mxu0 %v2981
        %v2995 = vpop.f32.mrf.mxu0
        %v2996 = vadd.f32 %v2953, %v2995
        %v2997 = vpop.f32.mrf.mxu0
        %v2998 = vadd.f32 %v2958, %v2997
        %2999 = vmatmul.bf16.gmra.mxu0 %v2984
        %v3000 = vpop.f32.mrf.mxu0
        %v3001 = vadd.f32 %v2963, %v3000
        %v3002 = vpop.f32.mrf.mxu0
        %v3003 = vadd.f32 %v2968, %v3002
        %3004 = vdwg.mxu0
        %v3005 = vmax.f32 %v2996, 0.0
        %v3006 = vmax.f32 %v2998, 0.0
        %v3007 = vmax.f32 %v3001, 0.0
        %v3008 = vmax.f32 %v3003, 0.0
        %s3009 = scalar_lea.vmem [#allocation8], 96
        %v3010 = vld [vmem:[%s3009] sm:$0xf]
        %v3011 = vld [vmem:[%s3009 + $0x4] sm:$0xf]
        %v3012 = vld [vmem:[%s3009 + $0x8] sm:$0xf]
        %v3013 = vld [vmem:[%s3009 + $0xc] sm:$0xf]
        %v3014 = vpack.c.bf16 %v3006, %v3005
        %v3015 = vpack.c.bf16 %v3008, %v3007
        %v3020 = vunpack.c.l.b16 %v3010
        %v3021 = vunpack.c.l.b16 %v3011
        %v3022 = vunpack.c.l.b16 %v3012
        %v3023 = vunpack.c.l.b16 %v3013
        %v3024 = vpack.c.b16 %v3021, %v3020
        %v3025 = vpack.c.b16 %v3023, %v3022
        %v3027 = vsel %vm1715, %v3024, 0
        %v3030 = vsel %vm1715, %v3025, 0
        %3032 = vmatpush.bf16.msra.mxu0 0
        %3033 = vmatpush.bf16.msra.mxu0 0
        %3034 = vmatpush.bf16.msra.mxu0 0
        %3035 = vmatpush.bf16.msra.mxu0 0
        %3036 = vmatpush.bf16.msra.mxu0 0
        %3037 = vmatpush.bf16.msra.mxu0 0
        %3038 = vmatpush.bf16.msra.mxu0 %v3015
        %3039 = vmatpush.bf16.msra.mxu0 %v3014
        %3040 = vmatmul.bf16.gmra.mxu0 %v3027
        %v3041 = vpop.f32.mrf.mxu0
        %v3042 = vadd.f32 0.0, %v3041
        %v3043 = vpop.f32.mrf.mxu0
        %v3044 = vadd.f32 0.0, %v3043
        %3045 = vmatmul.bf16.gmra.mxu0 %v3030
        %v3046 = vpop.f32.mrf.mxu0
        %v3047 = vadd.f32 0.0, %v3046
        %v3048 = vpop.f32.mrf.mxu0
        %v3049 = vadd.f32 0.0, %v3048
        %3050 = vdwg.mxu0
        %v3051 = vadd.f32 %v2909, %v3042
        %v3052 = vadd.f32 %v2910, %v3044
        %v3053 = vadd.f32 %v2911, %v3047
        %v3054 = vadd.f32 %v2912, %v3049
        %s3055 = scalar_lea.vmem %s5, 416
        %v3056 = vld [vmem:[%s3055] sm:$0xff]
        %v3057 = vld [vmem:[%s3055 + $0x8] sm:$0xff]
        %v3058 = vld [vmem:[%s3055 + $0x10] sm:$0xff]
        %v3059 = vld [vmem:[%s3055 + $0x18] sm:$0xff]
        %3061 = vset.pattern.permute.xlu0 0
        %3062 = vperm.xlu0 %3061, %v3056
        %v3063 = vpop.permute.xlu0 %3062
        %3066 = vset.pattern.permute.xlu0 0
        %3067 = vperm.xlu0 %3066, %v3057
        %v3068 = vpop.permute.xlu0 %3067
        %3071 = vset.pattern.permute.xlu0 0
        %3072 = vperm.xlu0 %3071, %v3058
        %v3073 = vpop.permute.xlu0 %3072
        %3076 = vset.pattern.permute.xlu0 0
        %3077 = vperm.xlu0 %3076, %v3059
        %v3078 = vpop.permute.xlu0 %3077
        %v3080 = vadd.f32 %v3051, %v3063
        %v3081 = vadd.f32 %v3052, %v3068
        %v3082 = vadd.f32 %v3053, %v3073
        %v3083 = vadd.f32 %v3054, %v3078
        %s3084 = scalar_lea.vmem [#allocation7], 112
        %v3085 = vld [vmem:[%s3084] sm:$0xf]
        %v3086 = vld [vmem:[%s3084 + $0x4] sm:$0xf]
        %v3087 = vld [vmem:[%s3084 + $0x8] sm:$0xf]
        %v3088 = vld [vmem:[%s3084 + $0xc] sm:$0xf]
        %v3089 = vpack.c.bf16 %v3081, %v3080
        %v3090 = vpack.c.bf16 %v3083, %v3082
        %s3091 = scalar_lea.vmem %s5, 448
        %v3092 = vld [vmem:[%s3091] sm:$0xff]
        %v3093 = vld [vmem:[%s3091 + $0x8] sm:$0xff]
        %v3094 = vld [vmem:[%s3091 + $0x10] sm:$0xff]
        %v3095 = vld [vmem:[%s3091 + $0x18] sm:$0xff]
        %3097 = vset.pattern.permute.xlu0 0
        %3098 = vperm.xlu0 %3097, %v3092
        %v3099 = vpop.permute.xlu0 %3098
        %3102 = vset.pattern.permute.xlu0 0
        %3103 = vperm.xlu0 %3102, %v3093
        %v3104 = vpop.permute.xlu0 %3103
        %3107 = vset.pattern.permute.xlu0 0
        %3108 = vperm.xlu0 %3107, %v3094
        %v3109 = vpop.permute.xlu0 %3108
        %3112 = vset.pattern.permute.xlu0 0
        %3113 = vperm.xlu0 %3112, %v3095
        %v3114 = vpop.permute.xlu0 %3113
        %v3120 = vunpack.c.l.b16 %v3085
        %v3121 = vunpack.c.l.b16 %v3086
        %v3122 = vunpack.c.l.b16 %v3087
        %v3123 = vunpack.c.l.b16 %v3088
        %v3124 = vpack.c.b16 %v3121, %v3120
        %v3125 = vpack.c.b16 %v3123, %v3122
        %3126 = vrot.lane.b32.xlu0 %v3124, 64
        %v3127 = vpop.permute.xlu0 %3126
        %3128 = vrot.lane.b32.xlu0 %v3125, 64
        %v3129 = vpop.permute.xlu0 %3128
        %v3131 = vsel %vm1715, %v3127, 0
        %v3134 = vsel %vm1715, %v3129, 0
        %3136 = vmatpush.bf16.msra.mxu0 0
        %3137 = vmatpush.bf16.msra.mxu0 0
        %3138 = vmatpush.bf16.msra.mxu0 0
        %3139 = vmatpush.bf16.msra.mxu0 0
        %3140 = vmatpush.bf16.msra.mxu0 0
        %3141 = vmatpush.bf16.msra.mxu0 0
        %3142 = vmatpush.bf16.msra.mxu0 %v3090
        %3143 = vmatpush.bf16.msra.mxu0 %v3089
        %3144 = vmatmul.bf16.gmra.mxu0 %v3131
        %v3145 = vpop.f32.mrf.mxu0
        %v3146 = vadd.f32 %v3099, %v3145
        %v3147 = vpop.f32.mrf.mxu0
        %v3148 = vadd.f32 %v3104, %v3147
        %3149 = vmatmul.bf16.gmra.mxu0 %v3134
        %v3150 = vpop.f32.mrf.mxu0
        %v3151 = vadd.f32 %v3109, %v3150
        %v3152 = vpop.f32.mrf.mxu0
        %v3153 = vadd.f32 %v3114, %v3152
        %3154 = vdwg.mxu0
        %v3155 = vmax.f32 %v3146, 0.0
        %v3156 = vmax.f32 %v3148, 0.0
        %v3157 = vmax.f32 %v3151, 0.0
        %v3158 = vmax.f32 %v3153, 0.0
        %s3159 = scalar_lea.vmem [#allocation8], 112
        %v3160 = vld [vmem:[%s3159] sm:$0xf]
        %v3161 = vld [vmem:[%s3159 + $0x4] sm:$0xf]
        %v3162 = vld [vmem:[%s3159 + $0x8] sm:$0xf]
        %v3163 = vld [vmem:[%s3159 + $0xc] sm:$0xf]
        %v3164 = vpack.c.bf16 %v3156, %v3155
        %v3165 = vpack.c.bf16 %v3158, %v3157
        %v3170 = vunpack.c.l.b16 %v3160
        %v3171 = vunpack.c.l.b16 %v3161
        %v3172 = vunpack.c.l.b16 %v3162
        %v3173 = vunpack.c.l.b16 %v3163
        %v3174 = vpack.c.b16 %v3171, %v3170
        %v3175 = vpack.c.b16 %v3173, %v3172
        %v3177 = vsel %vm1715, %v3174, 0
        %v3180 = vsel %vm1715, %v3175, 0
        %3182 = vmatpush.bf16.msra.mxu0 0
        %3183 = vmatpush.bf16.msra.mxu0 0
        %3184 = vmatpush.bf16.msra.mxu0 0
        %3185 = vmatpush.bf16.msra.mxu0 0
        %3186 = vmatpush.bf16.msra.mxu0 0
        %3187 = vmatpush.bf16.msra.mxu0 0
        %3188 = vmatpush.bf16.msra.mxu0 %v3165
        %3189 = vmatpush.bf16.msra.mxu0 %v3164
        %3190 = vmatmul.bf16.gmra.mxu0 %v3177
        %v3191 = vpop.f32.mrf.mxu0
        %v3192 = vadd.f32 0.0, %v3191
        %v3193 = vpop.f32.mrf.mxu0
        %v3194 = vadd.f32 0.0, %v3193
        %3195 = vmatmul.bf16.gmra.mxu0 %v3180
        %v3196 = vpop.f32.mrf.mxu0
        %v3197 = vadd.f32 0.0, %v3196
        %v3198 = vpop.f32.mrf.mxu0
        %v3199 = vadd.f32 0.0, %v3198
        %3200 = vdwg.mxu0
        %v3201 = vadd.f32 %v3080, %v3192
        %v3202 = vadd.f32 %v3081, %v3194
        %v3203 = vadd.f32 %v3082, %v3197
        %v3204 = vadd.f32 %v3083, %v3199
        %s3205 = scalar_lea.vmem %s5, 480
        %v3206 = vld [vmem:[%s3205] sm:$0xff]
        %v3207 = vld [vmem:[%s3205 + $0x8] sm:$0xff]
        %v3208 = vld [vmem:[%s3205 + $0x10] sm:$0xff]
        %v3209 = vld [vmem:[%s3205 + $0x18] sm:$0xff]
        %3211 = vset.pattern.permute.xlu0 0
        %3212 = vperm.xlu0 %3211, %v3206
        %v3213 = vpop.permute.xlu0 %3212
        %3216 = vset.pattern.permute.xlu0 0
        %3217 = vperm.xlu0 %3216, %v3207
        %v3218 = vpop.permute.xlu0 %3217
        %3221 = vset.pattern.permute.xlu0 0
        %3222 = vperm.xlu0 %3221, %v3208
        %v3223 = vpop.permute.xlu0 %3222
        %3226 = vset.pattern.permute.xlu0 0
        %3227 = vperm.xlu0 %3226, %v3209
        %v3228 = vpop.permute.xlu0 %3227
        %v3230 = vadd.f32 %v3201, %v3213
        %v3231 = vadd.f32 %v3202, %v3218
        %v3232 = vadd.f32 %v3203, %v3223
        %v3233 = vadd.f32 %v3204, %v3228
        %s3234 = scalar_lea.vmem [#allocation7], 128
        %v3235 = vld [vmem:[%s3234] sm:$0xf]
        %v3236 = vld [vmem:[%s3234 + $0x4] sm:$0xf]
        %v3237 = vld [vmem:[%s3234 + $0x8] sm:$0xf]
        %v3238 = vld [vmem:[%s3234 + $0xc] sm:$0xf]
        %v3239 = vpack.c.bf16 %v3231, %v3230
        %v3240 = vpack.c.bf16 %v3233, %v3232
        %s3241 = scalar_lea.vmem %s5, 512
        %v3242 = vld [vmem:[%s3241] sm:$0xff]
        %v3243 = vld [vmem:[%s3241 + $0x8] sm:$0xff]
        %v3244 = vld [vmem:[%s3241 + $0x10] sm:$0xff]
        %v3245 = vld [vmem:[%s3241 + $0x18] sm:$0xff]
        %3247 = vset.pattern.permute.xlu0 0
        %3248 = vperm.xlu0 %3247, %v3242
        %v3249 = vpop.permute.xlu0 %3248
        %3252 = vset.pattern.permute.xlu0 0
        %3253 = vperm.xlu0 %3252, %v3243
        %v3254 = vpop.permute.xlu0 %3253
        %3257 = vset.pattern.permute.xlu0 0
        %3258 = vperm.xlu0 %3257, %v3244
        %v3259 = vpop.permute.xlu0 %3258
        %3262 = vset.pattern.permute.xlu0 0
        %3263 = vperm.xlu0 %3262, %v3245
        %v3264 = vpop.permute.xlu0 %3263
        %v3270 = vunpack.c.l.b16 %v3235
        %v3271 = vunpack.c.l.b16 %v3236
        %v3272 = vunpack.c.l.b16 %v3237
        %v3273 = vunpack.c.l.b16 %v3238
        %v3274 = vpack.c.b16 %v3271, %v3270
        %v3275 = vpack.c.b16 %v3273, %v3272
        %3276 = vrot.lane.b32.xlu0 %v3274, 64
        %v3277 = vpop.permute.xlu0 %3276
        %3278 = vrot.lane.b32.xlu0 %v3275, 64
        %v3279 = vpop.permute.xlu0 %3278
        %v3281 = vsel %vm1715, %v3277, 0
        %v3284 = vsel %vm1715, %v3279, 0
        %3286 = vmatpush.bf16.msra.mxu0 0
        %3287 = vmatpush.bf16.msra.mxu0 0
        %3288 = vmatpush.bf16.msra.mxu0 0
        %3289 = vmatpush.bf16.msra.mxu0 0
        %3290 = vmatpush.bf16.msra.mxu0 0
        %3291 = vmatpush.bf16.msra.mxu0 0
        %3292 = vmatpush.bf16.msra.mxu0 %v3240
        %3293 = vmatpush.bf16.msra.mxu0 %v3239
        %3294 = vmatmul.bf16.gmra.mxu0 %v3281
        %v3295 = vpop.f32.mrf.mxu0
        %v3296 = vadd.f32 %v3249, %v3295
        %v3297 = vpop.f32.mrf.mxu0
        %v3298 = vadd.f32 %v3254, %v3297
        %3299 = vmatmul.bf16.gmra.mxu0 %v3284
        %v3300 = vpop.f32.mrf.mxu0
        %v3301 = vadd.f32 %v3259, %v3300
        %v3302 = vpop.f32.mrf.mxu0
        %v3303 = vadd.f32 %v3264, %v3302
        %3304 = vdwg.mxu0
        %v3305 = vmax.f32 %v3296, 0.0
        %v3306 = vmax.f32 %v3298, 0.0
        %v3307 = vmax.f32 %v3301, 0.0
        %v3308 = vmax.f32 %v3303, 0.0
        %s3309 = scalar_lea.vmem [#allocation8], 128
        %v3310 = vld [vmem:[%s3309] sm:$0xf]
        %v3311 = vld [vmem:[%s3309 + $0x4] sm:$0xf]
        %v3312 = vld [vmem:[%s3309 + $0x8] sm:$0xf]
        %v3313 = vld [vmem:[%s3309 + $0xc] sm:$0xf]
        %v3314 = vpack.c.bf16 %v3306, %v3305
        %v3315 = vpack.c.bf16 %v3308, %v3307
        %v3320 = vunpack.c.l.b16 %v3310
        %v3321 = vunpack.c.l.b16 %v3311
        %v3322 = vunpack.c.l.b16 %v3312
        %v3323 = vunpack.c.l.b16 %v3313
        %v3324 = vpack.c.b16 %v3321, %v3320
        %v3325 = vpack.c.b16 %v3323, %v3322
        %v3327 = vsel %vm1715, %v3324, 0
        %v3330 = vsel %vm1715, %v3325, 0
        %3332 = vmatpush.bf16.msra.mxu0 0
        %3333 = vmatpush.bf16.msra.mxu0 0
        %3334 = vmatpush.bf16.msra.mxu0 0
        %3335 = vmatpush.bf16.msra.mxu0 0
        %3336 = vmatpush.bf16.msra.mxu0 0
        %3337 = vmatpush.bf16.msra.mxu0 0
        %3338 = vmatpush.bf16.msra.mxu0 %v3315
        %3339 = vmatpush.bf16.msra.mxu0 %v3314
        %3340 = vmatmul.bf16.gmra.mxu0 %v3327
        %v3341 = vpop.f32.mrf.mxu0
        %v3342 = vadd.f32 0.0, %v3341
        %v3343 = vpop.f32.mrf.mxu0
        %v3344 = vadd.f32 0.0, %v3343
        %3345 = vmatmul.bf16.gmra.mxu0 %v3330
        %v3346 = vpop.f32.mrf.mxu0
        %v3347 = vadd.f32 0.0, %v3346
        %v3348 = vpop.f32.mrf.mxu0
        %v3349 = vadd.f32 0.0, %v3348
        %3350 = vdwg.mxu0
        %v3351 = vadd.f32 %v3230, %v3342
        %v3352 = vadd.f32 %v3231, %v3344
        %v3353 = vadd.f32 %v3232, %v3347
        %v3354 = vadd.f32 %v3233, %v3349
        %s3355 = scalar_lea.vmem %s5, 544
        %v3356 = vld [vmem:[%s3355] sm:$0xff]
        %v3357 = vld [vmem:[%s3355 + $0x8] sm:$0xff]
        %v3358 = vld [vmem:[%s3355 + $0x10] sm:$0xff]
        %v3359 = vld [vmem:[%s3355 + $0x18] sm:$0xff]
        %3361 = vset.pattern.permute.xlu0 0
        %3362 = vperm.xlu0 %3361, %v3356
        %v3363 = vpop.permute.xlu0 %3362
        %3366 = vset.pattern.permute.xlu0 0
        %3367 = vperm.xlu0 %3366, %v3357
        %v3368 = vpop.permute.xlu0 %3367
        %3371 = vset.pattern.permute.xlu0 0
        %3372 = vperm.xlu0 %3371, %v3358
        %v3373 = vpop.permute.xlu0 %3372
        %3376 = vset.pattern.permute.xlu0 0
        %3377 = vperm.xlu0 %3376, %v3359
        %v3378 = vpop.permute.xlu0 %3377
        %v3380 = vadd.f32 %v3351, %v3363
        %v3381 = vadd.f32 %v3352, %v3368
        %v3382 = vadd.f32 %v3353, %v3373
        %v3383 = vadd.f32 %v3354, %v3378
        %s3384 = scalar_lea.vmem [#allocation7], 144
        %v3385 = vld [vmem:[%s3384] sm:$0xf]
        %v3386 = vld [vmem:[%s3384 + $0x4] sm:$0xf]
        %v3387 = vld [vmem:[%s3384 + $0x8] sm:$0xf]
        %v3388 = vld [vmem:[%s3384 + $0xc] sm:$0xf]
        %v3389 = vpack.c.bf16 %v3381, %v3380
        %v3390 = vpack.c.bf16 %v3383, %v3382
        %s3391 = scalar_lea.vmem %s5, 576
        %v3392 = vld [vmem:[%s3391] sm:$0xff]
        %v3393 = vld [vmem:[%s3391 + $0x8] sm:$0xff]
        %v3394 = vld [vmem:[%s3391 + $0x10] sm:$0xff]
        %v3395 = vld [vmem:[%s3391 + $0x18] sm:$0xff]
        %3397 = vset.pattern.permute.xlu0 0
        %3398 = vperm.xlu0 %3397, %v3392
        %v3399 = vpop.permute.xlu0 %3398
        %3402 = vset.pattern.permute.xlu0 0
        %3403 = vperm.xlu0 %3402, %v3393
        %v3404 = vpop.permute.xlu0 %3403
        %3407 = vset.pattern.permute.xlu0 0
        %3408 = vperm.xlu0 %3407, %v3394
        %v3409 = vpop.permute.xlu0 %3408
        %3412 = vset.pattern.permute.xlu0 0
        %3413 = vperm.xlu0 %3412, %v3395
        %v3414 = vpop.permute.xlu0 %3413
        %v3420 = vunpack.c.l.b16 %v3385
        %v3421 = vunpack.c.l.b16 %v3386
        %v3422 = vunpack.c.l.b16 %v3387
        %v3423 = vunpack.c.l.b16 %v3388
        %v3424 = vpack.c.b16 %v3421, %v3420
        %v3425 = vpack.c.b16 %v3423, %v3422
        %3426 = vrot.lane.b32.xlu0 %v3424, 64
        %v3427 = vpop.permute.xlu0 %3426
        %3428 = vrot.lane.b32.xlu0 %v3425, 64
        %v3429 = vpop.permute.xlu0 %3428
        %v3431 = vsel %vm1715, %v3427, 0
        %v3434 = vsel %vm1715, %v3429, 0
        %3436 = vmatpush.bf16.msra.mxu0 0
        %3437 = vmatpush.bf16.msra.mxu0 0
        %3438 = vmatpush.bf16.msra.mxu0 0
        %3439 = vmatpush.bf16.msra.mxu0 0
        %3440 = vmatpush.bf16.msra.mxu0 0
        %3441 = vmatpush.bf16.msra.mxu0 0
        %3442 = vmatpush.bf16.msra.mxu0 %v3390
        %3443 = vmatpush.bf16.msra.mxu0 %v3389
        %3444 = vmatmul.bf16.gmra.mxu0 %v3431
        %v3445 = vpop.f32.mrf.mxu0
        %v3446 = vadd.f32 %v3399, %v3445
        %v3447 = vpop.f32.mrf.mxu0
        %v3448 = vadd.f32 %v3404, %v3447
        %3449 = vmatmul.bf16.gmra.mxu0 %v3434
        %v3450 = vpop.f32.mrf.mxu0
        %v3451 = vadd.f32 %v3409, %v3450
        %v3452 = vpop.f32.mrf.mxu0
        %v3453 = vadd.f32 %v3414, %v3452
        %3454 = vdwg.mxu0
        %v3455 = vmax.f32 %v3446, 0.0
        %v3456 = vmax.f32 %v3448, 0.0
        %v3457 = vmax.f32 %v3451, 0.0
        %v3458 = vmax.f32 %v3453, 0.0
        %s3459 = scalar_lea.vmem [#allocation8], 144
        %v3460 = vld [vmem:[%s3459] sm:$0xf]
        %v3461 = vld [vmem:[%s3459 + $0x4] sm:$0xf]
        %v3462 = vld [vmem:[%s3459 + $0x8] sm:$0xf]
        %v3463 = vld [vmem:[%s3459 + $0xc] sm:$0xf]
        %v3464 = vpack.c.bf16 %v3456, %v3455
        %v3465 = vpack.c.bf16 %v3458, %v3457
        %v3470 = vunpack.c.l.b16 %v3460
        %v3471 = vunpack.c.l.b16 %v3461
        %v3472 = vunpack.c.l.b16 %v3462
        %v3473 = vunpack.c.l.b16 %v3463
        %v3474 = vpack.c.b16 %v3471, %v3470
        %v3475 = vpack.c.b16 %v3473, %v3472
        %v3477 = vsel %vm1715, %v3474, 0
        %v3480 = vsel %vm1715, %v3475, 0
        %3482 = vmatpush.bf16.msra.mxu0 0
        %3483 = vmatpush.bf16.msra.mxu0 0
        %3484 = vmatpush.bf16.msra.mxu0 0
        %3485 = vmatpush.bf16.msra.mxu0 0
        %3486 = vmatpush.bf16.msra.mxu0 0
        %3487 = vmatpush.bf16.msra.mxu0 0
        %3488 = vmatpush.bf16.msra.mxu0 %v3465
        %3489 = vmatpush.bf16.msra.mxu0 %v3464
        %3490 = vmatmul.bf16.gmra.mxu0 %v3477
        %v3491 = vpop.f32.mrf.mxu0
        %v3492 = vadd.f32 0.0, %v3491
        %v3493 = vpop.f32.mrf.mxu0
        %v3494 = vadd.f32 0.0, %v3493
        %3495 = vmatmul.bf16.gmra.mxu0 %v3480
        %v3496 = vpop.f32.mrf.mxu0
        %v3497 = vadd.f32 0.0, %v3496
        %v3498 = vpop.f32.mrf.mxu0
        %v3499 = vadd.f32 0.0, %v3498
        %3500 = vdwg.mxu0
        %v3501 = vadd.f32 %v3380, %v3492
        %v3502 = vadd.f32 %v3381, %v3494
        %v3503 = vadd.f32 %v3382, %v3497
        %v3504 = vadd.f32 %v3383, %v3499
        %s3505 = scalar_lea.vmem %s5, 608
        %v3506 = vld [vmem:[%s3505] sm:$0xff]
        %v3507 = vld [vmem:[%s3505 + $0x8] sm:$0xff]
        %v3508 = vld [vmem:[%s3505 + $0x10] sm:$0xff]
        %v3509 = vld [vmem:[%s3505 + $0x18] sm:$0xff]
        %3511 = vset.pattern.permute.xlu0 0
        %3512 = vperm.xlu0 %3511, %v3506
        %v3513 = vpop.permute.xlu0 %3512
        %3516 = vset.pattern.permute.xlu0 0
        %3517 = vperm.xlu0 %3516, %v3507
        %v3518 = vpop.permute.xlu0 %3517
        %3521 = vset.pattern.permute.xlu0 0
        %3522 = vperm.xlu0 %3521, %v3508
        %v3523 = vpop.permute.xlu0 %3522
        %3526 = vset.pattern.permute.xlu0 0
        %3527 = vperm.xlu0 %3526, %v3509
        %v3528 = vpop.permute.xlu0 %3527
        %v3530 = vadd.f32 %v3501, %v3513
        %v3531 = vadd.f32 %v3502, %v3518
        %v3532 = vadd.f32 %v3503, %v3523
        %v3533 = vadd.f32 %v3504, %v3528
        %s3534 = scalar_lea.vmem [#allocation7], 160
        %v3535 = vld [vmem:[%s3534] sm:$0xf]
        %v3536 = vld [vmem:[%s3534 + $0x4] sm:$0xf]
        %v3537 = vld [vmem:[%s3534 + $0x8] sm:$0xf]
        %v3538 = vld [vmem:[%s3534 + $0xc] sm:$0xf]
        %v3539 = vpack.c.bf16 %v3531, %v3530
        %v3540 = vpack.c.bf16 %v3533, %v3532
        %s3541 = scalar_lea.vmem %s5, 640
        %v3542 = vld [vmem:[%s3541] sm:$0xff]
        %v3543 = vld [vmem:[%s3541 + $0x8] sm:$0xff]
        %v3544 = vld [vmem:[%s3541 + $0x10] sm:$0xff]
        %v3545 = vld [vmem:[%s3541 + $0x18] sm:$0xff]
        %3547 = vset.pattern.permute.xlu0 0
        %3548 = vperm.xlu0 %3547, %v3542
        %v3549 = vpop.permute.xlu0 %3548
        %3552 = vset.pattern.permute.xlu0 0
        %3553 = vperm.xlu0 %3552, %v3543
        %v3554 = vpop.permute.xlu0 %3553
        %3557 = vset.pattern.permute.xlu0 0
        %3558 = vperm.xlu0 %3557, %v3544
        %v3559 = vpop.permute.xlu0 %3558
        %3562 = vset.pattern.permute.xlu0 0
        %3563 = vperm.xlu0 %3562, %v3545
        %v3564 = vpop.permute.xlu0 %3563
        %v3570 = vunpack.c.l.b16 %v3535
        %v3571 = vunpack.c.l.b16 %v3536
        %v3572 = vunpack.c.l.b16 %v3537
        %v3573 = vunpack.c.l.b16 %v3538
        %v3574 = vpack.c.b16 %v3571, %v3570
        %v3575 = vpack.c.b16 %v3573, %v3572
        %3576 = vrot.lane.b32.xlu0 %v3574, 64
        %v3577 = vpop.permute.xlu0 %3576
        %3578 = vrot.lane.b32.xlu0 %v3575, 64
        %v3579 = vpop.permute.xlu0 %3578
        %v3581 = vsel %vm1715, %v3577, 0
        %v3584 = vsel %vm1715, %v3579, 0
        %3586 = vmatpush.bf16.msra.mxu0 0
        %3587 = vmatpush.bf16.msra.mxu0 0
        %3588 = vmatpush.bf16.msra.mxu0 0
        %3589 = vmatpush.bf16.msra.mxu0 0
        %3590 = vmatpush.bf16.msra.mxu0 0
        %3591 = vmatpush.bf16.msra.mxu0 0
        %3592 = vmatpush.bf16.msra.mxu0 %v3540
        %3593 = vmatpush.bf16.msra.mxu0 %v3539
        %3594 = vmatmul.bf16.gmra.mxu0 %v3581
        %v3595 = vpop.f32.mrf.mxu0
        %v3596 = vadd.f32 %v3549, %v3595
        %v3597 = vpop.f32.mrf.mxu0
        %v3598 = vadd.f32 %v3554, %v3597
        %3599 = vmatmul.bf16.gmra.mxu0 %v3584
        %v3600 = vpop.f32.mrf.mxu0
        %v3601 = vadd.f32 %v3559, %v3600
        %v3602 = vpop.f32.mrf.mxu0
        %v3603 = vadd.f32 %v3564, %v3602
        %3604 = vdwg.mxu0
        %v3605 = vmax.f32 %v3596, 0.0
        %v3606 = vmax.f32 %v3598, 0.0
        %v3607 = vmax.f32 %v3601, 0.0
        %v3608 = vmax.f32 %v3603, 0.0
        %s3609 = scalar_lea.vmem [#allocation8], 160
        %v3610 = vld [vmem:[%s3609] sm:$0xf]
        %v3611 = vld [vmem:[%s3609 + $0x4] sm:$0xf]
        %v3612 = vld [vmem:[%s3609 + $0x8] sm:$0xf]
        %v3613 = vld [vmem:[%s3609 + $0xc] sm:$0xf]
        %v3614 = vpack.c.bf16 %v3606, %v3605
        %v3615 = vpack.c.bf16 %v3608, %v3607
        %v3620 = vunpack.c.l.b16 %v3610
        %v3621 = vunpack.c.l.b16 %v3611
        %v3622 = vunpack.c.l.b16 %v3612
        %v3623 = vunpack.c.l.b16 %v3613
        %v3624 = vpack.c.b16 %v3621, %v3620
        %v3625 = vpack.c.b16 %v3623, %v3622
        %v3627 = vsel %vm1715, %v3624, 0
        %v3630 = vsel %vm1715, %v3625, 0
        %3632 = vmatpush.bf16.msra.mxu0 0
        %3633 = vmatpush.bf16.msra.mxu0 0
        %3634 = vmatpush.bf16.msra.mxu0 0
        %3635 = vmatpush.bf16.msra.mxu0 0
        %3636 = vmatpush.bf16.msra.mxu0 0
        %3637 = vmatpush.bf16.msra.mxu0 0
        %3638 = vmatpush.bf16.msra.mxu0 %v3615
        %3639 = vmatpush.bf16.msra.mxu0 %v3614
        %3640 = vmatmul.bf16.gmra.mxu0 %v3627
        %v3641 = vpop.f32.mrf.mxu0
        %v3642 = vadd.f32 0.0, %v3641
        %v3643 = vpop.f32.mrf.mxu0
        %v3644 = vadd.f32 0.0, %v3643
        %3645 = vmatmul.bf16.gmra.mxu0 %v3630
        %v3646 = vpop.f32.mrf.mxu0
        %v3647 = vadd.f32 0.0, %v3646
        %v3648 = vpop.f32.mrf.mxu0
        %v3649 = vadd.f32 0.0, %v3648
        %3650 = vdwg.mxu0
        %v3651 = vadd.f32 %v3530, %v3642
        %v3652 = vadd.f32 %v3531, %v3644
        %v3653 = vadd.f32 %v3532, %v3647
        %v3654 = vadd.f32 %v3533, %v3649
        %s3655 = scalar_lea.vmem %s5, 672
        %v3656 = vld [vmem:[%s3655] sm:$0xff]
        %v3657 = vld [vmem:[%s3655 + $0x8] sm:$0xff]
        %v3658 = vld [vmem:[%s3655 + $0x10] sm:$0xff]
        %v3659 = vld [vmem:[%s3655 + $0x18] sm:$0xff]
        %3661 = vset.pattern.permute.xlu0 0
        %3662 = vperm.xlu0 %3661, %v3656
        %v3663 = vpop.permute.xlu0 %3662
        %3666 = vset.pattern.permute.xlu0 0
        %3667 = vperm.xlu0 %3666, %v3657
        %v3668 = vpop.permute.xlu0 %3667
        %3671 = vset.pattern.permute.xlu0 0
        %3672 = vperm.xlu0 %3671, %v3658
        %v3673 = vpop.permute.xlu0 %3672
        %3676 = vset.pattern.permute.xlu0 0
        %3677 = vperm.xlu0 %3676, %v3659
        %v3678 = vpop.permute.xlu0 %3677
        %v3680 = vadd.f32 %v3651, %v3663
        %v3681 = vadd.f32 %v3652, %v3668
        %v3682 = vadd.f32 %v3653, %v3673
        %v3683 = vadd.f32 %v3654, %v3678
        %s3684 = scalar_lea.vmem [#allocation7], 176
        %v3685 = vld [vmem:[%s3684] sm:$0xf]
        %v3686 = vld [vmem:[%s3684 + $0x4] sm:$0xf]
        %v3687 = vld [vmem:[%s3684 + $0x8] sm:$0xf]
        %v3688 = vld [vmem:[%s3684 + $0xc] sm:$0xf]
        %v3689 = vpack.c.bf16 %v3681, %v3680
        %v3690 = vpack.c.bf16 %v3683, %v3682
        %s3691 = scalar_lea.vmem %s5, 704
        %v3692 = vld [vmem:[%s3691] sm:$0xff]
        %v3693 = vld [vmem:[%s3691 + $0x8] sm:$0xff]
        %v3694 = vld [vmem:[%s3691 + $0x10] sm:$0xff]
        %v3695 = vld [vmem:[%s3691 + $0x18] sm:$0xff]
        %3697 = vset.pattern.permute.xlu0 0
        %3698 = vperm.xlu0 %3697, %v3692
        %v3699 = vpop.permute.xlu0 %3698
        %3702 = vset.pattern.permute.xlu0 0
        %3703 = vperm.xlu0 %3702, %v3693
        %v3704 = vpop.permute.xlu0 %3703
        %3707 = vset.pattern.permute.xlu0 0
        %3708 = vperm.xlu0 %3707, %v3694
        %v3709 = vpop.permute.xlu0 %3708
        %3712 = vset.pattern.permute.xlu0 0
        %3713 = vperm.xlu0 %3712, %v3695
        %v3714 = vpop.permute.xlu0 %3713
        %v3720 = vunpack.c.l.b16 %v3685
        %v3721 = vunpack.c.l.b16 %v3686
        %v3722 = vunpack.c.l.b16 %v3687
        %v3723 = vunpack.c.l.b16 %v3688
        %v3724 = vpack.c.b16 %v3721, %v3720
        %v3725 = vpack.c.b16 %v3723, %v3722
        %3726 = vrot.lane.b32.xlu0 %v3724, 64
        %v3727 = vpop.permute.xlu0 %3726
        %3728 = vrot.lane.b32.xlu0 %v3725, 64
        %v3729 = vpop.permute.xlu0 %3728
        %v3731 = vsel %vm1715, %v3727, 0
        %v3734 = vsel %vm1715, %v3729, 0
        %3736 = vmatpush.bf16.msra.mxu0 0
        %3737 = vmatpush.bf16.msra.mxu0 0
        %3738 = vmatpush.bf16.msra.mxu0 0
        %3739 = vmatpush.bf16.msra.mxu0 0
        %3740 = vmatpush.bf16.msra.mxu0 0
        %3741 = vmatpush.bf16.msra.mxu0 0
        %3742 = vmatpush.bf16.msra.mxu0 %v3690
        %3743 = vmatpush.bf16.msra.mxu0 %v3689
        %3744 = vmatmul.bf16.gmra.mxu0 %v3731
        %v3745 = vpop.f32.mrf.mxu0
        %v3746 = vadd.f32 %v3699, %v3745
        %v3747 = vpop.f32.mrf.mxu0
        %v3748 = vadd.f32 %v3704, %v3747
        %3749 = vmatmul.bf16.gmra.mxu0 %v3734
        %v3750 = vpop.f32.mrf.mxu0
        %v3751 = vadd.f32 %v3709, %v3750
        %v3752 = vpop.f32.mrf.mxu0
        %v3753 = vadd.f32 %v3714, %v3752
        %3754 = vdwg.mxu0
        %v3755 = vmax.f32 %v3746, 0.0
        %v3756 = vmax.f32 %v3748, 0.0
        %v3757 = vmax.f32 %v3751, 0.0
        %v3758 = vmax.f32 %v3753, 0.0
        %s3759 = scalar_lea.vmem [#allocation8], 176
        %v3760 = vld [vmem:[%s3759] sm:$0xf]
        %v3761 = vld [vmem:[%s3759 + $0x4] sm:$0xf]
        %v3762 = vld [vmem:[%s3759 + $0x8] sm:$0xf]
        %v3763 = vld [vmem:[%s3759 + $0xc] sm:$0xf]
        %v3764 = vpack.c.bf16 %v3756, %v3755
        %v3765 = vpack.c.bf16 %v3758, %v3757
        %v3770 = vunpack.c.l.b16 %v3760
        %v3771 = vunpack.c.l.b16 %v3761
        %v3772 = vunpack.c.l.b16 %v3762
        %v3773 = vunpack.c.l.b16 %v3763
        %v3774 = vpack.c.b16 %v3771, %v3770
        %v3775 = vpack.c.b16 %v3773, %v3772
        %v3777 = vsel %vm1715, %v3774, 0
        %v3780 = vsel %vm1715, %v3775, 0
        %3782 = vmatpush.bf16.msra.mxu0 0
        %3783 = vmatpush.bf16.msra.mxu0 0
        %3784 = vmatpush.bf16.msra.mxu0 0
        %3785 = vmatpush.bf16.msra.mxu0 0
        %3786 = vmatpush.bf16.msra.mxu0 0
        %3787 = vmatpush.bf16.msra.mxu0 0
        %3788 = vmatpush.bf16.msra.mxu0 %v3765
        %3789 = vmatpush.bf16.msra.mxu0 %v3764
        %3790 = vmatmul.bf16.gmra.mxu0 %v3777
        %v3791 = vpop.f32.mrf.mxu0
        %v3792 = vadd.f32 0.0, %v3791
        %v3793 = vpop.f32.mrf.mxu0
        %v3794 = vadd.f32 0.0, %v3793
        %3795 = vmatmul.bf16.gmra.mxu0 %v3780
        %v3796 = vpop.f32.mrf.mxu0
        %v3797 = vadd.f32 0.0, %v3796
        %v3798 = vpop.f32.mrf.mxu0
        %v3799 = vadd.f32 0.0, %v3798
        %3800 = vdwg.mxu0
        %v3801 = vadd.f32 %v3680, %v3792
        %v3802 = vadd.f32 %v3681, %v3794
        %v3803 = vadd.f32 %v3682, %v3797
        %v3804 = vadd.f32 %v3683, %v3799
        %s3805 = scalar_lea.vmem %s5, 736
        %v3806 = vld [vmem:[%s3805] sm:$0xff]
        %v3807 = vld [vmem:[%s3805 + $0x8] sm:$0xff]
        %v3808 = vld [vmem:[%s3805 + $0x10] sm:$0xff]
        %v3809 = vld [vmem:[%s3805 + $0x18] sm:$0xff]
        %3811 = vset.pattern.permute.xlu0 0
        %3812 = vperm.xlu0 %3811, %v3806
        %v3813 = vpop.permute.xlu0 %3812
        %3816 = vset.pattern.permute.xlu0 0
        %3817 = vperm.xlu0 %3816, %v3807
        %v3818 = vpop.permute.xlu0 %3817
        %3821 = vset.pattern.permute.xlu0 0
        %3822 = vperm.xlu0 %3821, %v3808
        %v3823 = vpop.permute.xlu0 %3822
        %3826 = vset.pattern.permute.xlu0 0
        %3827 = vperm.xlu0 %3826, %v3809
        %v3828 = vpop.permute.xlu0 %3827
        %v3830 = vadd.f32 %v3801, %v3813
        %v3831 = vadd.f32 %v3802, %v3818
        %v3832 = vadd.f32 %v3803, %v3823
        %v3833 = vadd.f32 %v3804, %v3828
        %s3834 = scalar_lea.vmem [#allocation7], 192
        %v3835 = vld [vmem:[%s3834] sm:$0xf]
        %v3836 = vld [vmem:[%s3834 + $0x4] sm:$0xf]
        %v3837 = vld [vmem:[%s3834 + $0x8] sm:$0xf]
        %v3838 = vld [vmem:[%s3834 + $0xc] sm:$0xf]
        %v3839 = vpack.c.bf16 %v3831, %v3830
        %v3840 = vpack.c.bf16 %v3833, %v3832
        %s3841 = scalar_lea.vmem %s5, 768
        %v3842 = vld [vmem:[%s3841] sm:$0xff]
        %v3843 = vld [vmem:[%s3841 + $0x8] sm:$0xff]
        %v3844 = vld [vmem:[%s3841 + $0x10] sm:$0xff]
        %v3845 = vld [vmem:[%s3841 + $0x18] sm:$0xff]
        %3847 = vset.pattern.permute.xlu0 0
        %3848 = vperm.xlu0 %3847, %v3842
        %v3849 = vpop.permute.xlu0 %3848
        %3852 = vset.pattern.permute.xlu0 0
        %3853 = vperm.xlu0 %3852, %v3843
        %v3854 = vpop.permute.xlu0 %3853
        %3857 = vset.pattern.permute.xlu0 0
        %3858 = vperm.xlu0 %3857, %v3844
        %v3859 = vpop.permute.xlu0 %3858
        %3862 = vset.pattern.permute.xlu0 0
        %3863 = vperm.xlu0 %3862, %v3845
        %v3864 = vpop.permute.xlu0 %3863
        %v3870 = vunpack.c.l.b16 %v3835
        %v3871 = vunpack.c.l.b16 %v3836
        %v3872 = vunpack.c.l.b16 %v3837
        %v3873 = vunpack.c.l.b16 %v3838
        %v3874 = vpack.c.b16 %v3871, %v3870
        %v3875 = vpack.c.b16 %v3873, %v3872
        %3876 = vrot.lane.b32.xlu0 %v3874, 64
        %v3877 = vpop.permute.xlu0 %3876
        %3878 = vrot.lane.b32.xlu0 %v3875, 64
        %v3879 = vpop.permute.xlu0 %3878
        %v3881 = vsel %vm1715, %v3877, 0
        %v3884 = vsel %vm1715, %v3879, 0
        %3886 = vmatpush.bf16.msra.mxu0 0
        %3887 = vmatpush.bf16.msra.mxu0 0
        %3888 = vmatpush.bf16.msra.mxu0 0
        %3889 = vmatpush.bf16.msra.mxu0 0
        %3890 = vmatpush.bf16.msra.mxu0 0
        %3891 = vmatpush.bf16.msra.mxu0 0
        %3892 = vmatpush.bf16.msra.mxu0 %v3840
        %3893 = vmatpush.bf16.msra.mxu0 %v3839
        %3894 = vmatmul.bf16.gmra.mxu0 %v3881
        %v3895 = vpop.f32.mrf.mxu0
        %v3896 = vadd.f32 %v3849, %v3895
        %v3897 = vpop.f32.mrf.mxu0
        %v3898 = vadd.f32 %v3854, %v3897
        %3899 = vmatmul.bf16.gmra.mxu0 %v3884
        %v3900 = vpop.f32.mrf.mxu0
        %v3901 = vadd.f32 %v3859, %v3900
        %v3902 = vpop.f32.mrf.mxu0
        %v3903 = vadd.f32 %v3864, %v3902
        %3904 = vdwg.mxu0
        %v3905 = vmax.f32 %v3896, 0.0
        %v3906 = vmax.f32 %v3898, 0.0
        %v3907 = vmax.f32 %v3901, 0.0
        %v3908 = vmax.f32 %v3903, 0.0
        %s3909 = scalar_lea.vmem [#allocation8], 192
        %v3910 = vld [vmem:[%s3909] sm:$0xf]
        %v3911 = vld [vmem:[%s3909 + $0x4] sm:$0xf]
        %v3912 = vld [vmem:[%s3909 + $0x8] sm:$0xf]
        %v3913 = vld [vmem:[%s3909 + $0xc] sm:$0xf]
        %v3914 = vpack.c.bf16 %v3906, %v3905
        %v3915 = vpack.c.bf16 %v3908, %v3907
        %v3920 = vunpack.c.l.b16 %v3910
        %v3921 = vunpack.c.l.b16 %v3911
        %v3922 = vunpack.c.l.b16 %v3912
        %v3923 = vunpack.c.l.b16 %v3913
        %v3924 = vpack.c.b16 %v3921, %v3920
        %v3925 = vpack.c.b16 %v3923, %v3922
        %v3927 = vsel %vm1715, %v3924, 0
        %v3930 = vsel %vm1715, %v3925, 0
        %3932 = vmatpush.bf16.msra.mxu0 0
        %3933 = vmatpush.bf16.msra.mxu0 0
        %3934 = vmatpush.bf16.msra.mxu0 0
        %3935 = vmatpush.bf16.msra.mxu0 0
        %3936 = vmatpush.bf16.msra.mxu0 0
        %3937 = vmatpush.bf16.msra.mxu0 0
        %3938 = vmatpush.bf16.msra.mxu0 %v3915
        %3939 = vmatpush.bf16.msra.mxu0 %v3914
        %3940 = vmatmul.bf16.gmra.mxu0 %v3927
        %v3941 = vpop.f32.mrf.mxu0
        %v3942 = vadd.f32 0.0, %v3941
        %v3943 = vpop.f32.mrf.mxu0
        %v3944 = vadd.f32 0.0, %v3943
        %3945 = vmatmul.bf16.gmra.mxu0 %v3930
        %v3946 = vpop.f32.mrf.mxu0
        %v3947 = vadd.f32 0.0, %v3946
        %v3948 = vpop.f32.mrf.mxu0
        %v3949 = vadd.f32 0.0, %v3948
        %3950 = vdwg.mxu0
        %v3951 = vadd.f32 %v3830, %v3942
        %v3952 = vadd.f32 %v3831, %v3944
        %v3953 = vadd.f32 %v3832, %v3947
        %v3954 = vadd.f32 %v3833, %v3949
        %s3955 = scalar_lea.vmem %s5, 800
        %v3956 = vld [vmem:[%s3955] sm:$0xff]
        %v3957 = vld [vmem:[%s3955 + $0x8] sm:$0xff]
        %v3958 = vld [vmem:[%s3955 + $0x10] sm:$0xff]
        %v3959 = vld [vmem:[%s3955 + $0x18] sm:$0xff]
        %3961 = vset.pattern.permute.xlu0 0
        %3962 = vperm.xlu0 %3961, %v3956
        %v3963 = vpop.permute.xlu0 %3962
        %3966 = vset.pattern.permute.xlu0 0
        %3967 = vperm.xlu0 %3966, %v3957
        %v3968 = vpop.permute.xlu0 %3967
        %3971 = vset.pattern.permute.xlu0 0
        %3972 = vperm.xlu0 %3971, %v3958
        %v3973 = vpop.permute.xlu0 %3972
        %3976 = vset.pattern.permute.xlu0 0
        %3977 = vperm.xlu0 %3976, %v3959
        %v3978 = vpop.permute.xlu0 %3977
        %v3980 = vadd.f32 %v3951, %v3963
        %v3981 = vadd.f32 %v3952, %v3968
        %v3982 = vadd.f32 %v3953, %v3973
        %v3983 = vadd.f32 %v3954, %v3978
        %s3984 = scalar_lea.vmem [#allocation7], 208
        %v3985 = vld [vmem:[%s3984] sm:$0xf]
        %v3986 = vld [vmem:[%s3984 + $0x4] sm:$0xf]
        %v3987 = vld [vmem:[%s3984 + $0x8] sm:$0xf]
        %v3988 = vld [vmem:[%s3984 + $0xc] sm:$0xf]
        %v3989 = vpack.c.bf16 %v3981, %v3980
        %v3990 = vpack.c.bf16 %v3983, %v3982
        %s3991 = scalar_lea.vmem %s5, 832
        %v3992 = vld [vmem:[%s3991] sm:$0xff]
        %v3993 = vld [vmem:[%s3991 + $0x8] sm:$0xff]
        %v3994 = vld [vmem:[%s3991 + $0x10] sm:$0xff]
        %v3995 = vld [vmem:[%s3991 + $0x18] sm:$0xff]
        %3997 = vset.pattern.permute.xlu0 0
        %3998 = vperm.xlu0 %3997, %v3992
        %v3999 = vpop.permute.xlu0 %3998
        %4002 = vset.pattern.permute.xlu0 0
        %4003 = vperm.xlu0 %4002, %v3993
        %v4004 = vpop.permute.xlu0 %4003
        %4007 = vset.pattern.permute.xlu0 0
        %4008 = vperm.xlu0 %4007, %v3994
        %v4009 = vpop.permute.xlu0 %4008
        %4012 = vset.pattern.permute.xlu0 0
        %4013 = vperm.xlu0 %4012, %v3995
        %v4014 = vpop.permute.xlu0 %4013
        %v4020 = vunpack.c.l.b16 %v3985
        %v4021 = vunpack.c.l.b16 %v3986
        %v4022 = vunpack.c.l.b16 %v3987
        %v4023 = vunpack.c.l.b16 %v3988
        %v4024 = vpack.c.b16 %v4021, %v4020
        %v4025 = vpack.c.b16 %v4023, %v4022
        %4026 = vrot.lane.b32.xlu0 %v4024, 64
        %v4027 = vpop.permute.xlu0 %4026
        %4028 = vrot.lane.b32.xlu0 %v4025, 64
        %v4029 = vpop.permute.xlu0 %4028
        %v4031 = vsel %vm1715, %v4027, 0
        %v4034 = vsel %vm1715, %v4029, 0
        %4036 = vmatpush.bf16.msra.mxu0 0
        %4037 = vmatpush.bf16.msra.mxu0 0
        %4038 = vmatpush.bf16.msra.mxu0 0
        %4039 = vmatpush.bf16.msra.mxu0 0
        %4040 = vmatpush.bf16.msra.mxu0 0
        %4041 = vmatpush.bf16.msra.mxu0 0
        %4042 = vmatpush.bf16.msra.mxu0 %v3990
        %4043 = vmatpush.bf16.msra.mxu0 %v3989
        %4044 = vmatmul.bf16.gmra.mxu0 %v4031
        %v4045 = vpop.f32.mrf.mxu0
        %v4046 = vadd.f32 %v3999, %v4045
        %v4047 = vpop.f32.mrf.mxu0
        %v4048 = vadd.f32 %v4004, %v4047
        %4049 = vmatmul.bf16.gmra.mxu0 %v4034
        %v4050 = vpop.f32.mrf.mxu0
        %v4051 = vadd.f32 %v4009, %v4050
        %v4052 = vpop.f32.mrf.mxu0
        %v4053 = vadd.f32 %v4014, %v4052
        %4054 = vdwg.mxu0
        %v4055 = vmax.f32 %v4046, 0.0
        %v4056 = vmax.f32 %v4048, 0.0
        %v4057 = vmax.f32 %v4051, 0.0
        %v4058 = vmax.f32 %v4053, 0.0
        %s4059 = scalar_lea.vmem [#allocation8], 208
        %v4060 = vld [vmem:[%s4059] sm:$0xf]
        %v4061 = vld [vmem:[%s4059 + $0x4] sm:$0xf]
        %v4062 = vld [vmem:[%s4059 + $0x8] sm:$0xf]
        %v4063 = vld [vmem:[%s4059 + $0xc] sm:$0xf]
        %v4064 = vpack.c.bf16 %v4056, %v4055
        %v4065 = vpack.c.bf16 %v4058, %v4057
        %v4070 = vunpack.c.l.b16 %v4060
        %v4071 = vunpack.c.l.b16 %v4061
        %v4072 = vunpack.c.l.b16 %v4062
        %v4073 = vunpack.c.l.b16 %v4063
        %v4074 = vpack.c.b16 %v4071, %v4070
        %v4075 = vpack.c.b16 %v4073, %v4072
        %v4077 = vsel %vm1715, %v4074, 0
        %v4080 = vsel %vm1715, %v4075, 0
        %4082 = vmatpush.bf16.msra.mxu0 0
        %4083 = vmatpush.bf16.msra.mxu0 0
        %4084 = vmatpush.bf16.msra.mxu0 0
        %4085 = vmatpush.bf16.msra.mxu0 0
        %4086 = vmatpush.bf16.msra.mxu0 0
        %4087 = vmatpush.bf16.msra.mxu0 0
        %4088 = vmatpush.bf16.msra.mxu0 %v4065
        %4089 = vmatpush.bf16.msra.mxu0 %v4064
        %4090 = vmatmul.bf16.gmra.mxu0 %v4077
        %v4091 = vpop.f32.mrf.mxu0
        %v4092 = vadd.f32 0.0, %v4091
        %v4093 = vpop.f32.mrf.mxu0
        %v4094 = vadd.f32 0.0, %v4093
        %4095 = vmatmul.bf16.gmra.mxu0 %v4080
        %v4096 = vpop.f32.mrf.mxu0
        %v4097 = vadd.f32 0.0, %v4096
        %v4098 = vpop.f32.mrf.mxu0
        %v4099 = vadd.f32 0.0, %v4098
        %4100 = vdwg.mxu0
        %v4101 = vadd.f32 %v3980, %v4092
        %v4102 = vadd.f32 %v3981, %v4094
        %v4103 = vadd.f32 %v3982, %v4097
        %v4104 = vadd.f32 %v3983, %v4099
        %s4105 = scalar_lea.vmem %s5, 864
        %v4106 = vld [vmem:[%s4105] sm:$0xff]
        %v4107 = vld [vmem:[%s4105 + $0x8] sm:$0xff]
        %v4108 = vld [vmem:[%s4105 + $0x10] sm:$0xff]
        %v4109 = vld [vmem:[%s4105 + $0x18] sm:$0xff]
        %4111 = vset.pattern.permute.xlu0 0
        %4112 = vperm.xlu0 %4111, %v4106
        %v4113 = vpop.permute.xlu0 %4112
        %4116 = vset.pattern.permute.xlu0 0
        %4117 = vperm.xlu0 %4116, %v4107
        %v4118 = vpop.permute.xlu0 %4117
        %4121 = vset.pattern.permute.xlu0 0
        %4122 = vperm.xlu0 %4121, %v4108
        %v4123 = vpop.permute.xlu0 %4122
        %4126 = vset.pattern.permute.xlu0 0
        %4127 = vperm.xlu0 %4126, %v4109
        %v4128 = vpop.permute.xlu0 %4127
        %v4130 = vadd.f32 %v4101, %v4113
        %v4131 = vadd.f32 %v4102, %v4118
        %v4132 = vadd.f32 %v4103, %v4123
        %v4133 = vadd.f32 %v4104, %v4128
        %s4134 = scalar_lea.vmem [#allocation7], 224
        %v4135 = vld [vmem:[%s4134] sm:$0xf]
        %v4136 = vld [vmem:[%s4134 + $0x4] sm:$0xf]
        %v4137 = vld [vmem:[%s4134 + $0x8] sm:$0xf]
        %v4138 = vld [vmem:[%s4134 + $0xc] sm:$0xf]
        %v4139 = vpack.c.bf16 %v4131, %v4130
        %v4140 = vpack.c.bf16 %v4133, %v4132
        %s4141 = scalar_lea.vmem %s5, 896
        %v4142 = vld [vmem:[%s4141] sm:$0xff]
        %v4143 = vld [vmem:[%s4141 + $0x8] sm:$0xff]
        %v4144 = vld [vmem:[%s4141 + $0x10] sm:$0xff]
        %v4145 = vld [vmem:[%s4141 + $0x18] sm:$0xff]
        %4147 = vset.pattern.permute.xlu0 0
        %4148 = vperm.xlu0 %4147, %v4142
        %v4149 = vpop.permute.xlu0 %4148
        %4152 = vset.pattern.permute.xlu0 0
        %4153 = vperm.xlu0 %4152, %v4143
        %v4154 = vpop.permute.xlu0 %4153
        %4157 = vset.pattern.permute.xlu0 0
        %4158 = vperm.xlu0 %4157, %v4144
        %v4159 = vpop.permute.xlu0 %4158
        %4162 = vset.pattern.permute.xlu0 0
        %4163 = vperm.xlu0 %4162, %v4145
        %v4164 = vpop.permute.xlu0 %4163
        %v4170 = vunpack.c.l.b16 %v4135
        %v4171 = vunpack.c.l.b16 %v4136
        %v4172 = vunpack.c.l.b16 %v4137
        %v4173 = vunpack.c.l.b16 %v4138
        %v4174 = vpack.c.b16 %v4171, %v4170
        %v4175 = vpack.c.b16 %v4173, %v4172
        %4176 = vrot.lane.b32.xlu0 %v4174, 64
        %v4177 = vpop.permute.xlu0 %4176
        %4178 = vrot.lane.b32.xlu0 %v4175, 64
        %v4179 = vpop.permute.xlu0 %4178
        %v4181 = vsel %vm1715, %v4177, 0
        %v4184 = vsel %vm1715, %v4179, 0
        %4186 = vmatpush.bf16.msra.mxu0 0
        %4187 = vmatpush.bf16.msra.mxu0 0
        %4188 = vmatpush.bf16.msra.mxu0 0
        %4189 = vmatpush.bf16.msra.mxu0 0
        %4190 = vmatpush.bf16.msra.mxu0 0
        %4191 = vmatpush.bf16.msra.mxu0 0
        %4192 = vmatpush.bf16.msra.mxu0 %v4140
        %4193 = vmatpush.bf16.msra.mxu0 %v4139
        %4194 = vmatmul.bf16.gmra.mxu0 %v4181
        %v4195 = vpop.f32.mrf.mxu0
        %v4196 = vadd.f32 %v4149, %v4195
        %v4197 = vpop.f32.mrf.mxu0
        %v4198 = vadd.f32 %v4154, %v4197
        %4199 = vmatmul.bf16.gmra.mxu0 %v4184
        %v4200 = vpop.f32.mrf.mxu0
        %v4201 = vadd.f32 %v4159, %v4200
        %v4202 = vpop.f32.mrf.mxu0
        %v4203 = vadd.f32 %v4164, %v4202
        %4204 = vdwg.mxu0
        %v4205 = vmax.f32 %v4196, 0.0
        %v4206 = vmax.f32 %v4198, 0.0
        %v4207 = vmax.f32 %v4201, 0.0
        %v4208 = vmax.f32 %v4203, 0.0
        %s4209 = scalar_lea.vmem [#allocation8], 224
        %v4210 = vld [vmem:[%s4209] sm:$0xf]
        %v4211 = vld [vmem:[%s4209 + $0x4] sm:$0xf]
        %v4212 = vld [vmem:[%s4209 + $0x8] sm:$0xf]
        %v4213 = vld [vmem:[%s4209 + $0xc] sm:$0xf]
        %v4214 = vpack.c.bf16 %v4206, %v4205
        %v4215 = vpack.c.bf16 %v4208, %v4207
        %v4220 = vunpack.c.l.b16 %v4210
        %v4221 = vunpack.c.l.b16 %v4211
        %v4222 = vunpack.c.l.b16 %v4212
        %v4223 = vunpack.c.l.b16 %v4213
        %v4224 = vpack.c.b16 %v4221, %v4220
        %v4225 = vpack.c.b16 %v4223, %v4222
        %v4227 = vsel %vm1715, %v4224, 0
        %v4230 = vsel %vm1715, %v4225, 0
        %4232 = vmatpush.bf16.msra.mxu0 0
        %4233 = vmatpush.bf16.msra.mxu0 0
        %4234 = vmatpush.bf16.msra.mxu0 0
        %4235 = vmatpush.bf16.msra.mxu0 0
        %4236 = vmatpush.bf16.msra.mxu0 0
        %4237 = vmatpush.bf16.msra.mxu0 0
        %4238 = vmatpush.bf16.msra.mxu0 %v4215
        %4239 = vmatpush.bf16.msra.mxu0 %v4214
        %4240 = vmatmul.bf16.gmra.mxu0 %v4227
        %v4241 = vpop.f32.mrf.mxu0
        %v4242 = vadd.f32 0.0, %v4241
        %v4243 = vpop.f32.mrf.mxu0
        %v4244 = vadd.f32 0.0, %v4243
        %4245 = vmatmul.bf16.gmra.mxu0 %v4230
        %v4246 = vpop.f32.mrf.mxu0
        %v4247 = vadd.f32 0.0, %v4246
        %v4248 = vpop.f32.mrf.mxu0
        %v4249 = vadd.f32 0.0, %v4248
        %4250 = vdwg.mxu0
        %v4251 = vadd.f32 %v4130, %v4242
        %v4252 = vadd.f32 %v4131, %v4244
        %v4253 = vadd.f32 %v4132, %v4247
        %v4254 = vadd.f32 %v4133, %v4249
        %s4255 = scalar_lea.vmem %s5, 928
        %v4256 = vld [vmem:[%s4255] sm:$0xff]
        %v4257 = vld [vmem:[%s4255 + $0x8] sm:$0xff]
        %v4258 = vld [vmem:[%s4255 + $0x10] sm:$0xff]
        %v4259 = vld [vmem:[%s4255 + $0x18] sm:$0xff]
        %4261 = vset.pattern.permute.xlu0 0
        %4262 = vperm.xlu0 %4261, %v4256
        %v4263 = vpop.permute.xlu0 %4262
        %4266 = vset.pattern.permute.xlu0 0
        %4267 = vperm.xlu0 %4266, %v4257
        %v4268 = vpop.permute.xlu0 %4267
        %4271 = vset.pattern.permute.xlu0 0
        %4272 = vperm.xlu0 %4271, %v4258
        %v4273 = vpop.permute.xlu0 %4272
        %4276 = vset.pattern.permute.xlu0 0
        %4277 = vperm.xlu0 %4276, %v4259
        %v4278 = vpop.permute.xlu0 %4277
        %v4280 = vadd.f32 %v4251, %v4263
        %v4281 = vadd.f32 %v4252, %v4268
        %v4282 = vadd.f32 %v4253, %v4273
        %v4283 = vadd.f32 %v4254, %v4278
        %s4284 = scalar_lea.vmem [#allocation7], 240
        %v4285 = vld [vmem:[%s4284] sm:$0xf]
        %v4286 = vld [vmem:[%s4284 + $0x4] sm:$0xf]
        %v4287 = vld [vmem:[%s4284 + $0x8] sm:$0xf]
        %v4288 = vld [vmem:[%s4284 + $0xc] sm:$0xf]
        %v4289 = vpack.c.bf16 %v4281, %v4280
        %v4290 = vpack.c.bf16 %v4283, %v4282
        %s4291 = scalar_lea.vmem %s5, 960
        %v4292 = vld [vmem:[%s4291] sm:$0xff]
        %v4293 = vld [vmem:[%s4291 + $0x8] sm:$0xff]
        %v4294 = vld [vmem:[%s4291 + $0x10] sm:$0xff]
        %v4295 = vld [vmem:[%s4291 + $0x18] sm:$0xff]
        %4297 = vset.pattern.permute.xlu0 0
        %4298 = vperm.xlu0 %4297, %v4292
        %v4299 = vpop.permute.xlu0 %4298
        %4302 = vset.pattern.permute.xlu0 0
        %4303 = vperm.xlu0 %4302, %v4293
        %v4304 = vpop.permute.xlu0 %4303
        %4307 = vset.pattern.permute.xlu0 0
        %4308 = vperm.xlu0 %4307, %v4294
        %v4309 = vpop.permute.xlu0 %4308
        %4312 = vset.pattern.permute.xlu0 0
        %4313 = vperm.xlu0 %4312, %v4295
        %v4314 = vpop.permute.xlu0 %4313
        %v4320 = vunpack.c.l.b16 %v4285
        %v4321 = vunpack.c.l.b16 %v4286
        %v4322 = vunpack.c.l.b16 %v4287
        %v4323 = vunpack.c.l.b16 %v4288
        %v4324 = vpack.c.b16 %v4321, %v4320
        %v4325 = vpack.c.b16 %v4323, %v4322
        %4326 = vrot.lane.b32.xlu0 %v4324, 64
        %v4327 = vpop.permute.xlu0 %4326
        %4328 = vrot.lane.b32.xlu0 %v4325, 64
        %v4329 = vpop.permute.xlu0 %4328
        %v4331 = vsel %vm1715, %v4327, 0
        %v4334 = vsel %vm1715, %v4329, 0
        %4336 = vmatpush.bf16.msra.mxu0 0
        %4337 = vmatpush.bf16.msra.mxu0 0
        %4338 = vmatpush.bf16.msra.mxu0 0
        %4339 = vmatpush.bf16.msra.mxu0 0
        %4340 = vmatpush.bf16.msra.mxu0 0
        %4341 = vmatpush.bf16.msra.mxu0 0
        %4342 = vmatpush.bf16.msra.mxu0 %v4290
        %4343 = vmatpush.bf16.msra.mxu0 %v4289
        %4344 = vmatmul.bf16.gmra.mxu0 %v4331
        %v4345 = vpop.f32.mrf.mxu0
        %v4346 = vadd.f32 %v4299, %v4345
        %v4347 = vpop.f32.mrf.mxu0
        %v4348 = vadd.f32 %v4304, %v4347
        %4349 = vmatmul.bf16.gmra.mxu0 %v4334
        %v4350 = vpop.f32.mrf.mxu0
        %v4351 = vadd.f32 %v4309, %v4350
        %v4352 = vpop.f32.mrf.mxu0
        %v4353 = vadd.f32 %v4314, %v4352
        %4354 = vdwg.mxu0
        %v4355 = vmax.f32 %v4346, 0.0
        %v4356 = vmax.f32 %v4348, 0.0
        %v4357 = vmax.f32 %v4351, 0.0
        %v4358 = vmax.f32 %v4353, 0.0
        %s4359 = scalar_lea.vmem [#allocation8], 240
        %v4360 = vld [vmem:[%s4359] sm:$0xf]
        %v4361 = vld [vmem:[%s4359 + $0x4] sm:$0xf]
        %v4362 = vld [vmem:[%s4359 + $0x8] sm:$0xf]
        %v4363 = vld [vmem:[%s4359 + $0xc] sm:$0xf]
        %v4364 = vpack.c.bf16 %v4356, %v4355
        %v4365 = vpack.c.bf16 %v4358, %v4357
        %v4370 = vunpack.c.l.b16 %v4360
        %v4371 = vunpack.c.l.b16 %v4361
        %v4372 = vunpack.c.l.b16 %v4362
        %v4373 = vunpack.c.l.b16 %v4363
        %v4374 = vpack.c.b16 %v4371, %v4370
        %v4375 = vpack.c.b16 %v4373, %v4372
        %v4377 = vsel %vm1715, %v4374, 0
        %v4380 = vsel %vm1715, %v4375, 0
        %4382 = vmatpush.bf16.msra.mxu0 0
        %4383 = vmatpush.bf16.msra.mxu0 0
        %4384 = vmatpush.bf16.msra.mxu0 0
        %4385 = vmatpush.bf16.msra.mxu0 0
        %4386 = vmatpush.bf16.msra.mxu0 0
        %4387 = vmatpush.bf16.msra.mxu0 0
        %4388 = vmatpush.bf16.msra.mxu0 %v4365
        %4389 = vmatpush.bf16.msra.mxu0 %v4364
        %4390 = vmatmul.bf16.gmra.mxu0 %v4377
        %v4391 = vpop.f32.mrf.mxu0
        %v4392 = vadd.f32 0.0, %v4391
        %v4393 = vpop.f32.mrf.mxu0
        %v4394 = vadd.f32 0.0, %v4393
        %4395 = vmatmul.bf16.gmra.mxu0 %v4380
        %v4396 = vpop.f32.mrf.mxu0
        %v4397 = vadd.f32 0.0, %v4396
        %v4398 = vpop.f32.mrf.mxu0
        %v4399 = vadd.f32 0.0, %v4398
        %4400 = vdwg.mxu0
        %v4401 = vadd.f32 %v4280, %v4392
        %v4402 = vadd.f32 %v4281, %v4394
        %v4403 = vadd.f32 %v4282, %v4397
        %v4404 = vadd.f32 %v4283, %v4399
        %s4405 = scalar_lea.vmem %s5, 992
        %v4406 = vld [vmem:[%s4405] sm:$0xff]
        %v4407 = vld [vmem:[%s4405 + $0x8] sm:$0xff]
        %v4408 = vld [vmem:[%s4405 + $0x10] sm:$0xff]
        %v4409 = vld [vmem:[%s4405 + $0x18] sm:$0xff]
        %4411 = vset.pattern.permute.xlu0 0
        %4412 = vperm.xlu0 %4411, %v4406
        %v4413 = vpop.permute.xlu0 %4412
        %4416 = vset.pattern.permute.xlu0 0
        %4417 = vperm.xlu0 %4416, %v4407
        %v4418 = vpop.permute.xlu0 %4417
        %4421 = vset.pattern.permute.xlu0 0
        %4422 = vperm.xlu0 %4421, %v4408
        %v4423 = vpop.permute.xlu0 %4422
        %4426 = vset.pattern.permute.xlu0 0
        %4427 = vperm.xlu0 %4426, %v4409
        %v4428 = vpop.permute.xlu0 %4427
        %v4430 = vadd.f32 %v4401, %v4413
        %v4431 = vadd.f32 %v4402, %v4418
        %v4432 = vadd.f32 %v4403, %v4423
        %v4433 = vadd.f32 %v4404, %v4428
        %v4434 = vld [vmem:[%s6] sm:$0xf]
        %v4435 = vld [vmem:[%s6 + $0x4] sm:$0xf]
        %v4436 = vld [vmem:[%s6 + $0x8] sm:$0xf]
        %v4437 = vld [vmem:[%s6 + $0xc] sm:$0xf]
        %v4438 = vld [vmem:[%s6 + $0x10] sm:$0xf]
        %v4439 = vld [vmem:[%s6 + $0x14] sm:$0xf]
        %v4440 = vld [vmem:[%s6 + $0x18] sm:$0xf]
        %v4441 = vld [vmem:[%s6 + $0x1c] sm:$0xf]
        %v4442 = vld [vmem:[%s6 + $0x20] sm:$0xf]
        %v4443 = vld [vmem:[%s6 + $0x24] sm:$0xf]
        %v4444 = vld [vmem:[%s6 + $0x28] sm:$0xf]
        %v4445 = vld [vmem:[%s6 + $0x2c] sm:$0xf]
        %v4446 = vld [vmem:[%s6 + $0x30] sm:$0xf]
        %v4447 = vld [vmem:[%s6 + $0x34] sm:$0xf]
        %v4448 = vld [vmem:[%s6 + $0x38] sm:$0xf]
        %v4449 = vld [vmem:[%s6 + $0x3c] sm:$0xf]
        %v4450 = vld [vmem:[%s6 + $0x40] sm:$0xf]
        %v4451 = vld [vmem:[%s6 + $0x44] sm:$0xf]
        %v4452 = vld [vmem:[%s6 + $0x48] sm:$0xf]
        %v4453 = vld [vmem:[%s6 + $0x4c] sm:$0xf]
        %v4454 = vld [vmem:[%s6 + $0x50] sm:$0xf]
        %v4455 = vld [vmem:[%s6 + $0x54] sm:$0xf]
        %v4456 = vld [vmem:[%s6 + $0x58] sm:$0xf]
        %v4457 = vld [vmem:[%s6 + $0x5c] sm:$0xf]
        %v4458 = vld [vmem:[%s6 + $0x60] sm:$0xf]
        %v4459 = vld [vmem:[%s6 + $0x64] sm:$0xf]
        %v4460 = vld [vmem:[%s6 + $0x68] sm:$0xf]
        %v4461 = vld [vmem:[%s6 + $0x6c] sm:$0xf]
        %v4462 = vld [vmem:[%s6 + $0x70] sm:$0xf]
        %v4463 = vld [vmem:[%s6 + $0x74] sm:$0xf]
        %v4464 = vld [vmem:[%s6 + $0x78] sm:$0xf]
        %v4465 = vld [vmem:[%s6 + $0x7c] sm:$0xf]
        %v4466 = vpack.c.bf16 %v4431, %v4430
        %v4467 = vpack.c.bf16 %v4433, %v4432
        %v4468 = vld [vmem:[%s7] sm:$0xff]
        %v4469 = vld [vmem:[%s7 + $0x8] sm:$0xff]
        %v4470 = vld [vmem:[%s7 + $0x10] sm:$0xff]
        %v4471 = vld [vmem:[%s7 + $0x18] sm:$0xff]
        %v4472 = vld [vmem:[%s7 + $0x20] sm:$0xff]
        %v4473 = vld [vmem:[%s7 + $0x28] sm:$0xff]
        %v4474 = vld [vmem:[%s7 + $0x30] sm:$0xff]
        %v4475 = vld [vmem:[%s7 + $0x38] sm:$0xff]
        %v4476 = vld [vmem:[%s7 + $0x40] sm:$0xff]
        %v4477 = vld [vmem:[%s7 + $0x48] sm:$0xff]
        %v4478 = vld [vmem:[%s7 + $0x50] sm:$0xff]
        %v4479 = vld [vmem:[%s7 + $0x58] sm:$0xff]
        %v4480 = vld [vmem:[%s7 + $0x60] sm:$0xff]
        %v4481 = vld [vmem:[%s7 + $0x68] sm:$0xff]
        %v4482 = vld [vmem:[%s7 + $0x70] sm:$0xff]
        %v4483 = vld [vmem:[%s7 + $0x78] sm:$0xff]
        %v4484 = vld [vmem:[%s7 + $0x80] sm:$0xff]
        %v4485 = vld [vmem:[%s7 + $0x88] sm:$0xff]
        %v4486 = vld [vmem:[%s7 + $0x90] sm:$0xff]
        %v4487 = vld [vmem:[%s7 + $0x98] sm:$0xff]
        %v4488 = vld [vmem:[%s7 + $0xa0] sm:$0xff]
        %v4489 = vld [vmem:[%s7 + $0xa8] sm:$0xff]
        %v4490 = vld [vmem:[%s7 + $0xb0] sm:$0xff]
        %v4491 = vld [vmem:[%s7 + $0xb8] sm:$0xff]
        %v4492 = vld [vmem:[%s7 + $0xc0] sm:$0xff]
        %v4493 = vld [vmem:[%s7 + $0xc8] sm:$0xff]
        %v4494 = vld [vmem:[%s7 + $0xd0] sm:$0xff]
        %v4495 = vld [vmem:[%s7 + $0xd8] sm:$0xff]
        %v4496 = vld [vmem:[%s7 + $0xe0] sm:$0xff]
        %v4497 = vld [vmem:[%s7 + $0xe8] sm:$0xff]
        %v4498 = vld [vmem:[%s7 + $0xf0] sm:$0xff]
        %v4499 = vld [vmem:[%s7 + $0xf8] sm:$0xff]
        %4501 = vset.pattern.permute.xlu0 0
        %4502 = vperm.xlu0 %4501, %v4468
        %v4503 = vpop.permute.xlu0 %4502
        %4506 = vset.pattern.permute.xlu0 0
        %4507 = vperm.xlu0 %4506, %v4469
        %v4508 = vpop.permute.xlu0 %4507
        %4511 = vset.pattern.permute.xlu0 0
        %4512 = vperm.xlu0 %4511, %v4470
        %v4513 = vpop.permute.xlu0 %4512
        %4516 = vset.pattern.permute.xlu0 0
        %4517 = vperm.xlu0 %4516, %v4471
        %v4518 = vpop.permute.xlu0 %4517
        %4521 = vset.pattern.permute.xlu0 0
        %4522 = vperm.xlu0 %4521, %v4472
        %v4523 = vpop.permute.xlu0 %4522
        %4526 = vset.pattern.permute.xlu0 0
        %4527 = vperm.xlu0 %4526, %v4473
        %v4528 = vpop.permute.xlu0 %4527
        %4531 = vset.pattern.permute.xlu0 0
        %4532 = vperm.xlu0 %4531, %v4474
        %v4533 = vpop.permute.xlu0 %4532
        %4536 = vset.pattern.permute.xlu0 0
        %4537 = vperm.xlu0 %4536, %v4475
        %v4538 = vpop.permute.xlu0 %4537
        %4541 = vset.pattern.permute.xlu0 0
        %4542 = vperm.xlu0 %4541, %v4476
        %v4543 = vpop.permute.xlu0 %4542
        %4546 = vset.pattern.permute.xlu0 0
        %4547 = vperm.xlu0 %4546, %v4477
        %v4548 = vpop.permute.xlu0 %4547
        %4551 = vset.pattern.permute.xlu0 0
        %4552 = vperm.xlu0 %4551, %v4478
        %v4553 = vpop.permute.xlu0 %4552
        %4556 = vset.pattern.permute.xlu0 0
        %4557 = vperm.xlu0 %4556, %v4479
        %v4558 = vpop.permute.xlu0 %4557
        %4561 = vset.pattern.permute.xlu0 0
        %4562 = vperm.xlu0 %4561, %v4480
        %v4563 = vpop.permute.xlu0 %4562
        %4566 = vset.pattern.permute.xlu0 0
        %4567 = vperm.xlu0 %4566, %v4481
        %v4568 = vpop.permute.xlu0 %4567
        %4571 = vset.pattern.permute.xlu0 0
        %4572 = vperm.xlu0 %4571, %v4482
        %v4573 = vpop.permute.xlu0 %4572
        %4576 = vset.pattern.permute.xlu0 0
        %4577 = vperm.xlu0 %4576, %v4483
        %v4578 = vpop.permute.xlu0 %4577
        %4581 = vset.pattern.permute.xlu0 0
        %4582 = vperm.xlu0 %4581, %v4484
        %v4583 = vpop.permute.xlu0 %4582
        %4586 = vset.pattern.permute.xlu0 0
        %4587 = vperm.xlu0 %4586, %v4485
        %v4588 = vpop.permute.xlu0 %4587
        %4591 = vset.pattern.permute.xlu0 0
        %4592 = vperm.xlu0 %4591, %v4486
        %v4593 = vpop.permute.xlu0 %4592
        %4596 = vset.pattern.permute.xlu0 0
        %4597 = vperm.xlu0 %4596, %v4487
        %v4598 = vpop.permute.xlu0 %4597
        %4601 = vset.pattern.permute.xlu0 0
        %4602 = vperm.xlu0 %4601, %v4488
        %v4603 = vpop.permute.xlu0 %4602
        %4606 = vset.pattern.permute.xlu0 0
        %4607 = vperm.xlu0 %4606, %v4489
        %v4608 = vpop.permute.xlu0 %4607
        %4611 = vset.pattern.permute.xlu0 0
        %4612 = vperm.xlu0 %4611, %v4490
        %v4613 = vpop.permute.xlu0 %4612
        %4616 = vset.pattern.permute.xlu0 0
        %4617 = vperm.xlu0 %4616, %v4491
        %v4618 = vpop.permute.xlu0 %4617
        %4621 = vset.pattern.permute.xlu0 0
        %4622 = vperm.xlu0 %4621, %v4492
        %v4623 = vpop.permute.xlu0 %4622
        %4626 = vset.pattern.permute.xlu0 0
        %4627 = vperm.xlu0 %4626, %v4493
        %v4628 = vpop.permute.xlu0 %4627
        %4631 = vset.pattern.permute.xlu0 0
        %4632 = vperm.xlu0 %4631, %v4494
        %v4633 = vpop.permute.xlu0 %4632
        %4636 = vset.pattern.permute.xlu0 0
        %4637 = vperm.xlu0 %4636, %v4495
        %v4638 = vpop.permute.xlu0 %4637
        %4641 = vset.pattern.permute.xlu0 0
        %4642 = vperm.xlu0 %4641, %v4496
        %v4643 = vpop.permute.xlu0 %4642
        %4646 = vset.pattern.permute.xlu0 0
        %4647 = vperm.xlu0 %4646, %v4497
        %v4648 = vpop.permute.xlu0 %4647
        %4651 = vset.pattern.permute.xlu0 0
        %4652 = vperm.xlu0 %4651, %v4498
        %v4653 = vpop.permute.xlu0 %4652
        %4656 = vset.pattern.permute.xlu0 0
        %4657 = vperm.xlu0 %4656, %v4499
        %v4658 = vpop.permute.xlu0 %4657
        %v4692 = vunpack.c.l.b16 %v4434
        %v4693 = vunpack.c.l.b16 %v4435
        %v4694 = vunpack.c.l.b16 %v4436
        %v4695 = vunpack.c.l.b16 %v4437
        %v4696 = vunpack.c.l.b16 %v4438
        %v4697 = vunpack.c.l.b16 %v4439
        %v4698 = vunpack.c.l.b16 %v4440
        %v4699 = vunpack.c.l.b16 %v4441
        %v4700 = vunpack.c.l.b16 %v4442
        %v4701 = vunpack.c.l.b16 %v4443
        %v4702 = vunpack.c.l.b16 %v4444
        %v4703 = vunpack.c.l.b16 %v4445
        %v4704 = vunpack.c.l.b16 %v4446
        %v4705 = vunpack.c.l.b16 %v4447
        %v4706 = vunpack.c.l.b16 %v4448
        %v4707 = vunpack.c.l.b16 %v4449
        %v4708 = vunpack.c.l.b16 %v4450
        %v4709 = vunpack.c.l.b16 %v4451
        %v4710 = vunpack.c.l.b16 %v4452
        %v4711 = vunpack.c.l.b16 %v4453
        %v4712 = vunpack.c.l.b16 %v4454
        %v4713 = vunpack.c.l.b16 %v4455
        %v4714 = vunpack.c.l.b16 %v4456
        %v4715 = vunpack.c.l.b16 %v4457
        %v4716 = vunpack.c.l.b16 %v4458
        %v4717 = vunpack.c.l.b16 %v4459
        %v4718 = vunpack.c.l.b16 %v4460
        %v4719 = vunpack.c.l.b16 %v4461
        %v4720 = vunpack.c.l.b16 %v4462
        %v4721 = vunpack.c.l.b16 %v4463
        %v4722 = vunpack.c.l.b16 %v4464
        %v4723 = vunpack.c.l.b16 %v4465
        %v4724 = vpack.c.b16 %v4693, %v4692
        %v4725 = vpack.c.b16 %v4695, %v4694
        %v4726 = vpack.c.b16 %v4697, %v4696
        %v4727 = vpack.c.b16 %v4699, %v4698
        %v4728 = vpack.c.b16 %v4701, %v4700
        %v4729 = vpack.c.b16 %v4703, %v4702
        %v4730 = vpack.c.b16 %v4705, %v4704
        %v4731 = vpack.c.b16 %v4707, %v4706
        %v4732 = vpack.c.b16 %v4709, %v4708
        %v4733 = vpack.c.b16 %v4711, %v4710
        %v4734 = vpack.c.b16 %v4713, %v4712
        %v4735 = vpack.c.b16 %v4715, %v4714
        %v4736 = vpack.c.b16 %v4717, %v4716
        %v4737 = vpack.c.b16 %v4719, %v4718
        %v4738 = vpack.c.b16 %v4721, %v4720
        %v4739 = vpack.c.b16 %v4723, %v4722
        %v4741 = vsel %vm1715, %v4724, 0
        %v4744 = vsel %vm1715, %v4725, 0
        %v4747 = vsel %vm1715, %v4726, 0
        %v4750 = vsel %vm1715, %v4727, 0
        %v4753 = vsel %vm1715, %v4728, 0
        %v4756 = vsel %vm1715, %v4729, 0
        %v4759 = vsel %vm1715, %v4730, 0
        %v4762 = vsel %vm1715, %v4731, 0
        %v4765 = vsel %vm1715, %v4732, 0
        %v4768 = vsel %vm1715, %v4733, 0
        %v4771 = vsel %vm1715, %v4734, 0
        %v4774 = vsel %vm1715, %v4735, 0
        %v4777 = vsel %vm1715, %v4736, 0
        %v4780 = vsel %vm1715, %v4737, 0
        %v4783 = vsel %vm1715, %v4738, 0
        %v4786 = vsel %vm1715, %v4739, 0
        %4788 = vmatpush.bf16.msra.mxu0 0
        %4789 = vmatpush.bf16.msra.mxu0 0
        %4790 = vmatpush.bf16.msra.mxu0 0
        %4791 = vmatpush.bf16.msra.mxu0 0
        %4792 = vmatpush.bf16.msra.mxu0 0
        %4793 = vmatpush.bf16.msra.mxu0 0
        %4794 = vmatpush.bf16.msra.mxu0 %v4467
        %4795 = vmatpush.bf16.msra.mxu0 %v4466
        %4796 = vmatmul.bf16.gmra.mxu0 %v4741
        %v4797 = vpop.f32.mrf.mxu0
        %v4798 = vadd.f32 %v4503, %v4797
        %v4799 = vpop.f32.mrf.mxu0
        %v4800 = vadd.f32 %v4508, %v4799
        %4801 = vmatmul.bf16.gmra.mxu0 %v4744
        %v4802 = vpop.f32.mrf.mxu0
        %v4803 = vadd.f32 %v4513, %v4802
        %v4804 = vpop.f32.mrf.mxu0
        %v4805 = vadd.f32 %v4518, %v4804
        %4806 = vmatmul.bf16.gmra.mxu0 %v4747
        %v4807 = vpop.f32.mrf.mxu0
        %v4808 = vadd.f32 %v4523, %v4807
        %v4809 = vpop.f32.mrf.mxu0
        %v4810 = vadd.f32 %v4528, %v4809
        %4811 = vmatmul.bf16.gmra.mxu0 %v4750
        %v4812 = vpop.f32.mrf.mxu0
        %v4813 = vadd.f32 %v4533, %v4812
        %v4814 = vpop.f32.mrf.mxu0
        %v4815 = vadd.f32 %v4538, %v4814
        %4816 = vmatmul.bf16.gmra.mxu0 %v4753
        %v4817 = vpop.f32.mrf.mxu0
        %v4818 = vadd.f32 %v4543, %v4817
        %v4819 = vpop.f32.mrf.mxu0
        %v4820 = vadd.f32 %v4548, %v4819
        %4821 = vmatmul.bf16.gmra.mxu0 %v4756
        %v4822 = vpop.f32.mrf.mxu0
        %v4823 = vadd.f32 %v4553, %v4822
        %v4824 = vpop.f32.mrf.mxu0
        %v4825 = vadd.f32 %v4558, %v4824
        %4826 = vmatmul.bf16.gmra.mxu0 %v4759
        %v4827 = vpop.f32.mrf.mxu0
        %v4828 = vadd.f32 %v4563, %v4827
        %v4829 = vpop.f32.mrf.mxu0
        %v4830 = vadd.f32 %v4568, %v4829
        %4831 = vmatmul.bf16.gmra.mxu0 %v4762
        %v4832 = vpop.f32.mrf.mxu0
        %v4833 = vadd.f32 %v4573, %v4832
        %v4834 = vpop.f32.mrf.mxu0
        %v4835 = vadd.f32 %v4578, %v4834
        %4836 = vmatmul.bf16.gmra.mxu0 %v4765
        %v4837 = vpop.f32.mrf.mxu0
        %v4838 = vadd.f32 %v4583, %v4837
        %v4839 = vpop.f32.mrf.mxu0
        %v4840 = vadd.f32 %v4588, %v4839
        %4841 = vmatmul.bf16.gmra.mxu0 %v4768
        %v4842 = vpop.f32.mrf.mxu0
        %v4843 = vadd.f32 %v4593, %v4842
        %v4844 = vpop.f32.mrf.mxu0
        %v4845 = vadd.f32 %v4598, %v4844
        %4846 = vmatmul.bf16.gmra.mxu0 %v4771
        %v4847 = vpop.f32.mrf.mxu0
        %v4848 = vadd.f32 %v4603, %v4847
        %v4849 = vpop.f32.mrf.mxu0
        %v4850 = vadd.f32 %v4608, %v4849
        %4851 = vmatmul.bf16.gmra.mxu0 %v4774
        %v4852 = vpop.f32.mrf.mxu0
        %v4853 = vadd.f32 %v4613, %v4852
        %v4854 = vpop.f32.mrf.mxu0
        %v4855 = vadd.f32 %v4618, %v4854
        %4856 = vmatmul.bf16.gmra.mxu0 %v4777
        %v4857 = vpop.f32.mrf.mxu0
        %v4858 = vadd.f32 %v4623, %v4857
        %v4859 = vpop.f32.mrf.mxu0
        %v4860 = vadd.f32 %v4628, %v4859
        %4861 = vmatmul.bf16.gmra.mxu0 %v4780
        %v4862 = vpop.f32.mrf.mxu0
        %v4863 = vadd.f32 %v4633, %v4862
        %v4864 = vpop.f32.mrf.mxu0
        %v4865 = vadd.f32 %v4638, %v4864
        %4866 = vmatmul.bf16.gmra.mxu0 %v4783
        %v4867 = vpop.f32.mrf.mxu0
        %v4868 = vadd.f32 %v4643, %v4867
        %v4869 = vpop.f32.mrf.mxu0
        %v4870 = vadd.f32 %v4648, %v4869
        %4871 = vmatmul.bf16.gmra.mxu0 %v4786
        %v4872 = vpop.f32.mrf.mxu0
        %v4873 = vadd.f32 %v4653, %v4872
        %v4874 = vpop.f32.mrf.mxu0
        %v4875 = vadd.f32 %v4658, %v4874
        %4876 = vdwg.mxu0
        %v4877 = vld [vmem:[%s15] sm:$0xff]
        %v4878 = vld [vmem:[%s15 + $0x8] sm:$0xff]
        %v4879 = vld [vmem:[%s15 + $0x10] sm:$0xff]
        %v4880 = vld [vmem:[%s15 + $0x18] sm:$0xff]
        %s4881 = scalar_lea.vmem %s15, 32
        %v4882 = vld [vmem:[%s4881] sm:$0xff]
        %v4883 = vld [vmem:[%s4881 + $0x8] sm:$0xff]
        %v4884 = vld [vmem:[%s4881 + $0x10] sm:$0xff]
        %v4885 = vld [vmem:[%s4881 + $0x18] sm:$0xff]
        %s4886 = scalar_lea.vmem %s15, 64
        %v4887 = vld [vmem:[%s4886] sm:$0xff]
        %v4888 = vld [vmem:[%s4886 + $0x8] sm:$0xff]
        %v4889 = vld [vmem:[%s4886 + $0x10] sm:$0xff]
        %v4890 = vld [vmem:[%s4886 + $0x18] sm:$0xff]
        %s4891 = scalar_lea.vmem %s15, 96
        %v4892 = vld [vmem:[%s4891] sm:$0xff]
        %v4893 = vld [vmem:[%s4891 + $0x8] sm:$0xff]
        %v4894 = vld [vmem:[%s4891 + $0x10] sm:$0xff]
        %v4895 = vld [vmem:[%s4891 + $0x18] sm:$0xff]
        %s4896 = scalar_lea.vmem %s15, 128
        %v4897 = vld [vmem:[%s4896] sm:$0xff]
        %v4898 = vld [vmem:[%s4896 + $0x8] sm:$0xff]
        %v4899 = vld [vmem:[%s4896 + $0x10] sm:$0xff]
        %v4900 = vld [vmem:[%s4896 + $0x18] sm:$0xff]
        %s4901 = scalar_lea.vmem %s15, 160
        %v4902 = vld [vmem:[%s4901] sm:$0xff]
        %v4903 = vld [vmem:[%s4901 + $0x8] sm:$0xff]
        %v4904 = vld [vmem:[%s4901 + $0x10] sm:$0xff]
        %v4905 = vld [vmem:[%s4901 + $0x18] sm:$0xff]
        %s4906 = scalar_lea.vmem %s15, 192
        %v4907 = vld [vmem:[%s4906] sm:$0xff]
        %v4908 = vld [vmem:[%s4906 + $0x8] sm:$0xff]
        %v4909 = vld [vmem:[%s4906 + $0x10] sm:$0xff]
        %v4910 = vld [vmem:[%s4906 + $0x18] sm:$0xff]
        %v4911 = vld [vmem:[#allocation10] sm:$0xff]
        %v4912 = vld [vmem:[#allocation10 + $0x8] sm:$0xff]
        %v4913 = vld [vmem:[#allocation10 + $0x10] sm:$0xff]
        %v4914 = vld [vmem:[#allocation10 + $0x18] sm:$0xff]
        %v4915 = vpack.c.bf16 %v4800, %v4798
        %v4916 = vpack.c.bf16 %v4805, %v4803
        %v4917 = vpack.c.bf16 %v4810, %v4808
        %v4918 = vpack.c.bf16 %v4815, %v4813
        %v4919 = vpack.c.bf16 %v4820, %v4818
        %v4920 = vpack.c.bf16 %v4825, %v4823
        %v4921 = vpack.c.bf16 %v4830, %v4828
        %v4922 = vpack.c.bf16 %v4835, %v4833
        %v4923 = vpack.c.bf16 %v4840, %v4838
        %v4924 = vpack.c.bf16 %v4845, %v4843
        %v4925 = vpack.c.bf16 %v4850, %v4848
        %v4926 = vpack.c.bf16 %v4855, %v4853
        %v4927 = vpack.c.bf16 %v4860, %v4858
        %v4928 = vpack.c.bf16 %v4865, %v4863
        %v4929 = vpack.c.bf16 %v4870, %v4868
        %v4930 = vpack.c.bf16 %v4875, %v4873
        %4932 = vset.pattern.permute.xlu0 0
        %4933 = vperm.xlu0 %4932, %v4877
        %v4934 = vpop.permute.xlu0 %4933
        %4937 = vset.pattern.permute.xlu0 0
        %4938 = vperm.xlu0 %4937, %v4878
        %v4939 = vpop.permute.xlu0 %4938
        %4942 = vset.pattern.permute.xlu0 0
        %4943 = vperm.xlu0 %4942, %v4879
        %v4944 = vpop.permute.xlu0 %4943
        %4947 = vset.pattern.permute.xlu0 0
        %4948 = vperm.xlu0 %4947, %v4880
        %v4949 = vpop.permute.xlu0 %4948
        %v4955 = vunpack.c.l.b16 %v4911
        %v4956 = vunpack.c.h.b16 %v4911
        %v4957 = vunpack.c.l.b16 %v4912
        %v4958 = vunpack.c.h.b16 %v4912
        %v4959 = vunpack.c.l.b16 %v4913
        %v4960 = vunpack.c.h.b16 %v4913
        %v4961 = vunpack.c.l.b16 %v4914
        %v4962 = vunpack.c.h.b16 %v4914
        %v4963 = vpack.c.b16 %v4957, %v4955
        %v4964 = vpack.c.b16 %v4958, %v4956
        %v4965 = vpack.c.b16 %v4961, %v4959
        %v4966 = vpack.c.b16 %v4962, %v4960
        %4971 = vmatpush.bf16.msra.mxu0 %v4922
        %4972 = vmatpush.bf16.msra.mxu0 %v4921
        %4973 = vmatpush.bf16.msra.mxu0 %v4920
        %4974 = vmatpush.bf16.msra.mxu0 %v4919
        %4975 = vmatpush.bf16.msra.mxu0 %v4918
        %4976 = vmatpush.bf16.msra.mxu0 %v4917
        %4977 = vmatpush.bf16.msra.mxu0 %v4916
        %4978 = vmatpush.bf16.msra.mxu0 %v4915
        %4979 = vmatmul.bf16.gmra.mxu0 %v4963
        %v4980 = vpop.f32.mrf.mxu0
        %v4981 = vadd.f32 %v4934, %v4980
        %v4982 = vpop.f32.mrf.mxu0
        %v4983 = vadd.f32 %v4939, %v4982
        %4984 = vmatmul.bf16.gmra.mxu0 %v4965
        %v4985 = vpop.f32.mrf.mxu0
        %v4986 = vadd.f32 %v4944, %v4985
        %v4987 = vpop.f32.mrf.mxu0
        %v4988 = vadd.f32 %v4949, %v4987
        %4989 = vdwg.mxu0
        %4990 = vmatpush.bf16.msra.mxu0 %v4930
        %4991 = vmatpush.bf16.msra.mxu0 %v4929
        %4992 = vmatpush.bf16.msra.mxu0 %v4928
        %4993 = vmatpush.bf16.msra.mxu0 %v4927
        %4994 = vmatpush.bf16.msra.mxu0 %v4926
        %4995 = vmatpush.bf16.msra.mxu0 %v4925
        %4996 = vmatpush.bf16.msra.mxu0 %v4924
        %4997 = vmatpush.bf16.msra.mxu0 %v4923
        %4998 = vmatmul.bf16.gmra.mxu0 %v4964
        %v4999 = vpop.f32.mrf.mxu0
        %v5000 = vadd.f32 %v4981, %v4999
        %v5001 = vpop.f32.mrf.mxu0
        %v5002 = vadd.f32 %v4983, %v5001
        %5003 = vmatmul.bf16.gmra.mxu0 %v4966
        %v5004 = vpop.f32.mrf.mxu0
        %v5005 = vadd.f32 %v4986, %v5004
        %v5006 = vpop.f32.mrf.mxu0
        %v5007 = vadd.f32 %v4988, %v5006
        %5008 = vdwg.mxu0
        %v5009 = vpack.c.bf16 %v5002, %v5000
        %v5010 = vpack.c.bf16 %v5007, %v5005
        %v5011 = vld [vmem:[%s9] sm:$0xf]
        %v5012 = vld [vmem:[%s9 + $0x4] sm:$0xf]
        %v5013 = vld [vmem:[%s9 + $0x8] sm:$0xf]
        %v5014 = vld [vmem:[%s9 + $0xc] sm:$0xf]
        %v5015 = vld [vmem:[%s9 + $0x10] sm:$0xf]
        %v5016 = vld [vmem:[%s9 + $0x14] sm:$0xf]
        %v5017 = vld [vmem:[%s9 + $0x18] sm:$0xf]
        %v5018 = vld [vmem:[%s9 + $0x1c] sm:$0xf]
        %v5019 = vld [vmem:[%s9 + $0x20] sm:$0xf]
        %v5020 = vld [vmem:[%s9 + $0x24] sm:$0xf]
        %v5021 = vld [vmem:[%s9 + $0x28] sm:$0xf]
        %v5022 = vld [vmem:[%s9 + $0x2c] sm:$0xf]
        %v5023 = vld [vmem:[%s9 + $0x30] sm:$0xf]
        %v5024 = vld [vmem:[%s9 + $0x34] sm:$0xf]
        %v5025 = vld [vmem:[%s9 + $0x38] sm:$0xf]
        %v5026 = vld [vmem:[%s9 + $0x3c] sm:$0xf]
        %v5039 = vunpack.c.l.b16 %v5011
        %v5040 = vunpack.c.l.b16 %v5012
        %v5041 = vunpack.c.l.b16 %v5013
        %v5042 = vunpack.c.l.b16 %v5014
        %v5043 = vunpack.c.l.b16 %v5015
        %v5044 = vunpack.c.l.b16 %v5016
        %v5045 = vunpack.c.l.b16 %v5017
        %v5046 = vunpack.c.l.b16 %v5018
        %v5047 = vunpack.c.l.b16 %v5019
        %v5048 = vunpack.c.l.b16 %v5020
        %v5049 = vunpack.c.l.b16 %v5021
        %v5050 = vunpack.c.l.b16 %v5022
        %v5051 = vpack.c.b16 %v5040, %v5039
        %v5052 = vpack.c.b16 %v5042, %v5041
        %v5053 = vpack.c.b16 %v5044, %v5043
        %v5054 = vpack.c.b16 %v5046, %v5045
        %v5055 = vpack.c.b16 %v5048, %v5047
        %v5056 = vpack.c.b16 %v5050, %v5049
        %v5058 = vsel %vm1715, %v5051, 0
        %v5061 = vsel %vm1715, %v5052, 0
        %v5064 = vsel %vm1715, %v5053, 0
        %v5067 = vsel %vm1715, %v5054, 0
        %v5070 = vsel %vm1715, %v5055, 0
        %v5073 = vsel %vm1715, %v5056, 0
        %5075 = vmatpush.bf16.msra.mxu0 0
        %5076 = vmatpush.bf16.msra.mxu0 0
        %5077 = vmatpush.bf16.msra.mxu0 0
        %5078 = vmatpush.bf16.msra.mxu0 0
        %5079 = vmatpush.bf16.msra.mxu0 0
        %5080 = vmatpush.bf16.msra.mxu0 0
        %5081 = vmatpush.bf16.msra.mxu0 %v5010
        %5082 = vmatpush.bf16.msra.mxu0 %v5009
        %5083 = vmatmul.bf16.gmra.mxu0 %v5058
        %v5084 = vpop.f32.mrf.mxu0
        %v5085 = vadd.f32 0.0, %v5084
        %v5086 = vpop.f32.mrf.mxu0
        %v5087 = vadd.f32 0.0, %v5086
        %5088 = vmatmul.bf16.gmra.mxu0 %v5061
        %v5089 = vpop.f32.mrf.mxu0
        %v5090 = vadd.f32 0.0, %v5089
        %v5091 = vpop.f32.mrf.mxu0
        %v5092 = vadd.f32 0.0, %v5091
        %5093 = vmatmul.bf16.gmra.mxu0 %v5064
        %v5094 = vpop.f32.mrf.mxu0
        %v5095 = vadd.f32 0.0, %v5094
        %v5096 = vpop.f32.mrf.mxu0
        %v5097 = vadd.f32 0.0, %v5096
        %5098 = vmatmul.bf16.gmra.mxu0 %v5067
        %v5099 = vpop.f32.mrf.mxu0
        %v5100 = vadd.f32 0.0, %v5099
        %v5101 = vpop.f32.mrf.mxu0
        %v5102 = vadd.f32 0.0, %v5101
        %5103 = vmatmul.bf16.gmra.mxu0 %v5070
        %v5104 = vpop.f32.mrf.mxu0
        %v5105 = vadd.f32 0.0, %v5104
        %v5106 = vpop.f32.mrf.mxu0
        %v5107 = vadd.f32 0.0, %v5106
        %5108 = vmatmul.bf16.gmra.mxu0 %v5073
        %v5109 = vpop.f32.mrf.mxu0
        %v5110 = vadd.f32 0.0, %v5109
        %v5111 = vpop.f32.mrf.mxu0
        %v5112 = vadd.f32 0.0, %v5111
        %5113 = vdwg.mxu0
        %v5114 = vmul.f32 %v5085, 0.17677669
        %v5115 = vmul.f32 %v5087, 0.17677669
        %v5116 = vmul.f32 %v5090, 0.17677669
        %v5117 = vmul.f32 %v5092, 0.17677669
        %v5118 = vpack.c.bf16 %v5115, %v5114
        %v5119 = vpack.c.bf16 %v5117, %v5116
        %v5120 = vpack.c.bf16 %v5097, %v5095
        %v5121 = vpack.c.bf16 %v5102, %v5100
        %5122 = vxpose.xlu0.c.b16.start [1/8] %v5118, 128
        %5123 = vxpose.xlu0.c.b16.cont [2/8] %v5119, 128
        %5124 = vxpose.xlu0.c.b16.cont [3/8] 0, 128
        %5125 = vxpose.xlu0.c.b16.cont [4/8] 0, 128
        %5126 = vxpose.xlu0.c.b16.cont [5/8] 0, 128
        %5127 = vxpose.xlu0.c.b16.cont [6/8] 0, 128
        %5128 = vxpose.xlu0.c.b16.cont [7/8] 0, 128
        %5129 = vxpose.xlu0.c.b16.end [8/8] 0, 128
        %v5130 = vpop.trf.xlu0
        %v5131 = vpop.trf.xlu0
        %v5132 = vpop.trf.xlu0
        %v5133 = vpop.trf.xlu0
        %v5134 = vpop.trf.xlu0
        %v5135 = vpop.trf.xlu0
        %v5136 = vpop.trf.xlu0
        %v5137 = vpop.trf.xlu0
        %v5139 = vsel %vm1715, %v5130, 0
        %v5142 = vsel %vm1715, %v5131, 0
        %v5145 = vsel %vm1715, %v5132, 0
        %v5148 = vsel %vm1715, %v5133, 0
        %v5151 = vsel %vm1715, %v5134, 0
        %v5154 = vsel %vm1715, %v5135, 0
        %v5157 = vsel %vm1715, %v5136, 0
        %v5160 = vsel %vm1715, %v5137, 0
        %5162 = vmatpush.bf16.msra.mxu0 0
        %5163 = vmatpush.bf16.msra.mxu0 0
        %5164 = vmatpush.bf16.msra.mxu0 0
        %5165 = vmatpush.bf16.msra.mxu0 0
        %5166 = vmatpush.bf16.msra.mxu0 0
        %5167 = vmatpush.bf16.msra.mxu0 0
        %5168 = vmatpush.bf16.msra.mxu0 %v5121
        %5169 = vmatpush.bf16.msra.mxu0 %v5120
        %5170 = vmatmul.bf16.gmra.mxu0 %v5139
        %v5171 = vpop.f32.mrf.mxu0
        %v5172 = vadd.f32 0.0, %v5171
        %v5173 = vpop.f32.mrf.mxu0
        %v5174 = vadd.f32 0.0, %v5173
        %5175 = vmatmul.bf16.gmra.mxu0 %v5142
        %v5176 = vpop.f32.mrf.mxu0
        %v5177 = vadd.f32 0.0, %v5176
        %v5178 = vpop.f32.mrf.mxu0
        %v5179 = vadd.f32 0.0, %v5178
        %5180 = vmatmul.bf16.gmra.mxu0 %v5145
        %v5181 = vpop.f32.mrf.mxu0
        %v5182 = vadd.f32 0.0, %v5181
        %v5183 = vpop.f32.mrf.mxu0
        %v5184 = vadd.f32 0.0, %v5183
        %5185 = vmatmul.bf16.gmra.mxu0 %v5148
        %v5186 = vpop.f32.mrf.mxu0
        %v5187 = vadd.f32 0.0, %v5186
        %v5188 = vpop.f32.mrf.mxu0
        %v5189 = vadd.f32 0.0, %v5188
        %5190 = vmatmul.bf16.gmra.mxu0 %v5151
        %v5191 = vpop.f32.mrf.mxu0
        %v5192 = vadd.f32 0.0, %v5191
        %v5193 = vpop.f32.mrf.mxu0
        %v5194 = vadd.f32 0.0, %v5193
        %5195 = vmatmul.bf16.gmra.mxu0 %v5154
        %v5196 = vpop.f32.mrf.mxu0
        %v5197 = vadd.f32 0.0, %v5196
        %v5198 = vpop.f32.mrf.mxu0
        %v5199 = vadd.f32 0.0, %v5198
        %5200 = vmatmul.bf16.gmra.mxu0 %v5157
        %v5201 = vpop.f32.mrf.mxu0
        %v5202 = vadd.f32 0.0, %v5201
        %v5203 = vpop.f32.mrf.mxu0
        %v5204 = vadd.f32 0.0, %v5203
        %5205 = vmatmul.bf16.gmra.mxu0 %v5160
        %v5206 = vpop.f32.mrf.mxu0
        %v5207 = vadd.f32 0.0, %v5206
        %v5208 = vpop.f32.mrf.mxu0
        %v5209 = vadd.f32 0.0, %v5208
        %5210 = vdwg.mxu0
        %5211 = vmax.xlane.f32.xlu0 %v5172
        %v5212 = vpop.xlane.xlu0 %5211
        %5213 = vmax.xlane.f32.xlu0 %v5174
        %v5214 = vpop.xlane.xlu0 %5213
        %5215 = vmax.xlane.f32.xlu0 %v5177
        %v5216 = vpop.xlane.xlu0 %5215
        %5217 = vmax.xlane.f32.xlu0 %v5179
        %v5218 = vpop.xlane.xlu0 %5217
        %5219 = vmax.xlane.f32.xlu0 %v5182
        %v5220 = vpop.xlane.xlu0 %5219
        %5221 = vmax.xlane.f32.xlu0 %v5184
        %v5222 = vpop.xlane.xlu0 %5221
        %5223 = vmax.xlane.f32.xlu0 %v5187
        %v5224 = vpop.xlane.xlu0 %5223
        %5225 = vmax.xlane.f32.xlu0 %v5189
        %v5226 = vpop.xlane.xlu0 %5225
        %5227 = vmax.xlane.f32.xlu0 %v5192
        %v5228 = vpop.xlane.xlu0 %5227
        %5229 = vmax.xlane.f32.xlu0 %v5194
        %v5230 = vpop.xlane.xlu0 %5229
        %5231 = vmax.xlane.f32.xlu0 %v5197
        %v5232 = vpop.xlane.xlu0 %5231
        %5233 = vmax.xlane.f32.xlu0 %v5199
        %v5234 = vpop.xlane.xlu0 %5233
        %5235 = vmax.xlane.f32.xlu0 %v5202
        %v5236 = vpop.xlane.xlu0 %5235
        %5237 = vmax.xlane.f32.xlu0 %v5204
        %v5238 = vpop.xlane.xlu0 %5237
        %5239 = vmax.xlane.f32.xlu0 %v5207
        %v5240 = vpop.xlane.xlu0 %5239
        %5241 = vmax.xlane.f32.xlu0 %v5209
        %v5242 = vpop.xlane.xlu0 %5241
        %v5243 = vsub.f32 %v5172, %v5212
        %v5244 = vsub.f32 %v5174, %v5214
        %v5245 = vsub.f32 %v5177, %v5216
        %v5246 = vsub.f32 %v5179, %v5218
        %v5247 = vsub.f32 %v5182, %v5220
        %v5248 = vsub.f32 %v5184, %v5222
        %v5249 = vsub.f32 %v5187, %v5224
        %v5250 = vsub.f32 %v5189, %v5226
        %v5251 = vsub.f32 %v5192, %v5228
        %v5252 = vsub.f32 %v5194, %v5230
        %v5253 = vsub.f32 %v5197, %v5232
        %v5254 = vsub.f32 %v5199, %v5234
        %v5255 = vsub.f32 %v5202, %v5236
        %v5256 = vsub.f32 %v5204, %v5238
        %v5257 = vsub.f32 %v5207, %v5240
        %v5258 = vsub.f32 %v5209, %v5242
        %v5259 = vmul.f32 %v5243, 1.442695
        %v5260 = vpow.pop %v5259
        %v5261 = vmul.f32 %v5244, 1.442695
        %v5262 = vpow.pop %v5261
        %v5263 = vmul.f32 %v5245, 1.442695
        %v5264 = vpow.pop %v5263
        %v5265 = vmul.f32 %v5246, 1.442695
        %v5266 = vpow.pop %v5265
        %v5267 = vmul.f32 %v5247, 1.442695
        %v5268 = vpow.pop %v5267
        %v5269 = vmul.f32 %v5248, 1.442695
        %v5270 = vpow.pop %v5269
        %v5271 = vmul.f32 %v5249, 1.442695
        %v5272 = vpow.pop %v5271
        %v5273 = vmul.f32 %v5250, 1.442695
        %v5274 = vpow.pop %v5273
        %v5275 = vmul.f32 %v5251, 1.442695
        %v5276 = vpow.pop %v5275
        %v5277 = vmul.f32 %v5252, 1.442695
        %v5278 = vpow.pop %v5277
        %v5279 = vmul.f32 %v5253, 1.442695
        %v5280 = vpow.pop %v5279
        %v5281 = vmul.f32 %v5254, 1.442695
        %v5282 = vpow.pop %v5281
        %v5283 = vmul.f32 %v5255, 1.442695
        %v5284 = vpow.pop %v5283
        %v5285 = vmul.f32 %v5256, 1.442695
        %v5286 = vpow.pop %v5285
        %v5287 = vmul.f32 %v5257, 1.442695
        %v5288 = vpow.pop %v5287
        %v5289 = vmul.f32 %v5258, 1.442695
        %v5290 = vpow.pop %v5289
        %5291 = vadd.xlane.f32.xlu0 %v5260
        %v5292 = vpop.xlane.xlu0 %5291
        %5293 = vadd.xlane.f32.xlu0 %v5262
        %v5294 = vpop.xlane.xlu0 %5293
        %5295 = vadd.xlane.f32.xlu0 %v5264
        %v5296 = vpop.xlane.xlu0 %5295
        %5297 = vadd.xlane.f32.xlu0 %v5266
        %v5298 = vpop.xlane.xlu0 %5297
        %5299 = vadd.xlane.f32.xlu0 %v5268
        %v5300 = vpop.xlane.xlu0 %5299
        %5301 = vadd.xlane.f32.xlu0 %v5270
        %v5302 = vpop.xlane.xlu0 %5301
        %5303 = vadd.xlane.f32.xlu0 %v5272
        %v5304 = vpop.xlane.xlu0 %5303
        %5305 = vadd.xlane.f32.xlu0 %v5274
        %v5306 = vpop.xlane.xlu0 %5305
        %5307 = vadd.xlane.f32.xlu0 %v5276
        %v5308 = vpop.xlane.xlu0 %5307
        %5309 = vadd.xlane.f32.xlu0 %v5278
        %v5310 = vpop.xlane.xlu0 %5309
        %5311 = vadd.xlane.f32.xlu0 %v5280
        %v5312 = vpop.xlane.xlu0 %5311
        %5313 = vadd.xlane.f32.xlu0 %v5282
        %v5314 = vpop.xlane.xlu0 %5313
        %5315 = vadd.xlane.f32.xlu0 %v5284
        %v5316 = vpop.xlane.xlu0 %5315
        %5317 = vadd.xlane.f32.xlu0 %v5286
        %v5318 = vpop.xlane.xlu0 %5317
        %5319 = vadd.xlane.f32.xlu0 %v5288
        %v5320 = vpop.xlane.xlu0 %5319
        %5321 = vadd.xlane.f32.xlu0 %v5290
        %v5322 = vpop.xlane.xlu0 %5321
        %v5323 = vrcp.pop %v5292
        %v5324 = vmul.f32 %v5292, %v5323
        %v5325 = vsub.f32 1.0, %v5324
        %v5326 = vmul.f32 %v5323, %v5325
        %v5327 = vadd.f32 %v5323, %v5326
        %vm5328 = vweird.f32 %v5292
        %vm5329 = vweird.f32 %v5323
        %vm5330 = vmor %vm5328, %vm5329
        %v5331 = vsel %vm5330, %v5323, %v5327
        %v5332 = vand.u32 2147483647, %v5292
        %vm5333 = vcmp.eq.f32.partialorder %v5332, 8.507059e+37
        %v5334 = vand.u32 %v5292, 2147483648
        %v5335 = vor.u32 1.1754944e-38, %v5334
        %v5336 = vsel %vm5333, %v5335, %v5331
        %v5337 = vmul.f32 1.0, %v5336
        %v5338 = vrcp.pop %v5294
        %v5339 = vmul.f32 %v5294, %v5338
        %v5340 = vsub.f32 1.0, %v5339
        %v5341 = vmul.f32 %v5338, %v5340
        %v5342 = vadd.f32 %v5338, %v5341
        %vm5343 = vweird.f32 %v5294
        %vm5344 = vweird.f32 %v5338
        %vm5345 = vmor %vm5343, %vm5344
        %v5346 = vsel %vm5345, %v5338, %v5342
        %v5347 = vand.u32 2147483647, %v5294
        %vm5348 = vcmp.eq.f32.partialorder %v5347, 8.507059e+37
        %v5349 = vand.u32 %v5294, 2147483648
        %v5350 = vor.u32 1.1754944e-38, %v5349
        %v5351 = vsel %vm5348, %v5350, %v5346
        %v5352 = vmul.f32 1.0, %v5351
        %v5353 = vrcp.pop %v5296
        %v5354 = vmul.f32 %v5296, %v5353
        %v5355 = vsub.f32 1.0, %v5354
        %v5356 = vmul.f32 %v5353, %v5355
        %v5357 = vadd.f32 %v5353, %v5356
        %vm5358 = vweird.f32 %v5296
        %vm5359 = vweird.f32 %v5353
        %vm5360 = vmor %vm5358, %vm5359
        %v5361 = vsel %vm5360, %v5353, %v5357
        %v5362 = vand.u32 2147483647, %v5296
        %vm5363 = vcmp.eq.f32.partialorder %v5362, 8.507059e+37
        %v5364 = vand.u32 %v5296, 2147483648
        %v5365 = vor.u32 1.1754944e-38, %v5364
        %v5366 = vsel %vm5363, %v5365, %v5361
        %v5367 = vmul.f32 1.0, %v5366
        %v5368 = vrcp.pop %v5298
        %v5369 = vmul.f32 %v5298, %v5368
        %v5370 = vsub.f32 1.0, %v5369
        %v5371 = vmul.f32 %v5368, %v5370
        %v5372 = vadd.f32 %v5368, %v5371
        %vm5373 = vweird.f32 %v5298
        %vm5374 = vweird.f32 %v5368
        %vm5375 = vmor %vm5373, %vm5374
        %v5376 = vsel %vm5375, %v5368, %v5372
        %v5377 = vand.u32 2147483647, %v5298
        %vm5378 = vcmp.eq.f32.partialorder %v5377, 8.507059e+37
        %v5379 = vand.u32 %v5298, 2147483648
        %v5380 = vor.u32 1.1754944e-38, %v5379
        %v5381 = vsel %vm5378, %v5380, %v5376
        %v5382 = vmul.f32 1.0, %v5381
        %v5383 = vrcp.pop %v5300
        %v5384 = vmul.f32 %v5300, %v5383
        %v5385 = vsub.f32 1.0, %v5384
        %v5386 = vmul.f32 %v5383, %v5385
        %v5387 = vadd.f32 %v5383, %v5386
        %vm5388 = vweird.f32 %v5300
        %vm5389 = vweird.f32 %v5383
        %vm5390 = vmor %vm5388, %vm5389
        %v5391 = vsel %vm5390, %v5383, %v5387
        %v5392 = vand.u32 2147483647, %v5300
        %vm5393 = vcmp.eq.f32.partialorder %v5392, 8.507059e+37
        %v5394 = vand.u32 %v5300, 2147483648
        %v5395 = vor.u32 1.1754944e-38, %v5394
        %v5396 = vsel %vm5393, %v5395, %v5391
        %v5397 = vmul.f32 1.0, %v5396
        %v5398 = vrcp.pop %v5302
        %v5399 = vmul.f32 %v5302, %v5398
        %v5400 = vsub.f32 1.0, %v5399
        %v5401 = vmul.f32 %v5398, %v5400
        %v5402 = vadd.f32 %v5398, %v5401
        %vm5403 = vweird.f32 %v5302
        %vm5404 = vweird.f32 %v5398
        %vm5405 = vmor %vm5403, %vm5404
        %v5406 = vsel %vm5405, %v5398, %v5402
        %v5407 = vand.u32 2147483647, %v5302
        %vm5408 = vcmp.eq.f32.partialorder %v5407, 8.507059e+37
        %v5409 = vand.u32 %v5302, 2147483648
        %v5410 = vor.u32 1.1754944e-38, %v5409
        %v5411 = vsel %vm5408, %v5410, %v5406
        %v5412 = vmul.f32 1.0, %v5411
        %v5413 = vrcp.pop %v5304
        %v5414 = vmul.f32 %v5304, %v5413
        %v5415 = vsub.f32 1.0, %v5414
        %v5416 = vmul.f32 %v5413, %v5415
        %v5417 = vadd.f32 %v5413, %v5416
        %vm5418 = vweird.f32 %v5304
        %vm5419 = vweird.f32 %v5413
        %vm5420 = vmor %vm5418, %vm5419
        %v5421 = vsel %vm5420, %v5413, %v5417
        %v5422 = vand.u32 2147483647, %v5304
        %vm5423 = vcmp.eq.f32.partialorder %v5422, 8.507059e+37
        %v5424 = vand.u32 %v5304, 2147483648
        %v5425 = vor.u32 1.1754944e-38, %v5424
        %v5426 = vsel %vm5423, %v5425, %v5421
        %v5427 = vmul.f32 1.0, %v5426
        %v5428 = vrcp.pop %v5306
        %v5429 = vmul.f32 %v5306, %v5428
        %v5430 = vsub.f32 1.0, %v5429
        %v5431 = vmul.f32 %v5428, %v5430
        %v5432 = vadd.f32 %v5428, %v5431
        %vm5433 = vweird.f32 %v5306
        %vm5434 = vweird.f32 %v5428
        %vm5435 = vmor %vm5433, %vm5434
        %v5436 = vsel %vm5435, %v5428, %v5432
        %v5437 = vand.u32 2147483647, %v5306
        %vm5438 = vcmp.eq.f32.partialorder %v5437, 8.507059e+37
        %v5439 = vand.u32 %v5306, 2147483648
        %v5440 = vor.u32 1.1754944e-38, %v5439
        %v5441 = vsel %vm5438, %v5440, %v5436
        %v5442 = vmul.f32 1.0, %v5441
        %v5443 = vrcp.pop %v5308
        %v5444 = vmul.f32 %v5308, %v5443
        %v5445 = vsub.f32 1.0, %v5444
        %v5446 = vmul.f32 %v5443, %v5445
        %v5447 = vadd.f32 %v5443, %v5446
        %vm5448 = vweird.f32 %v5308
        %vm5449 = vweird.f32 %v5443
        %vm5450 = vmor %vm5448, %vm5449
        %v5451 = vsel %vm5450, %v5443, %v5447
        %v5452 = vand.u32 2147483647, %v5308
        %vm5453 = vcmp.eq.f32.partialorder %v5452, 8.507059e+37
        %v5454 = vand.u32 %v5308, 2147483648
        %v5455 = vor.u32 1.1754944e-38, %v5454
        %v5456 = vsel %vm5453, %v5455, %v5451
        %v5457 = vmul.f32 1.0, %v5456
        %v5458 = vrcp.pop %v5310
        %v5459 = vmul.f32 %v5310, %v5458
        %v5460 = vsub.f32 1.0, %v5459
        %v5461 = vmul.f32 %v5458, %v5460
        %v5462 = vadd.f32 %v5458, %v5461
        %vm5463 = vweird.f32 %v5310
        %vm5464 = vweird.f32 %v5458
        %vm5465 = vmor %vm5463, %vm5464
        %v5466 = vsel %vm5465, %v5458, %v5462
        %v5467 = vand.u32 2147483647, %v5310
        %vm5468 = vcmp.eq.f32.partialorder %v5467, 8.507059e+37
        %v5469 = vand.u32 %v5310, 2147483648
        %v5470 = vor.u32 1.1754944e-38, %v5469
        %v5471 = vsel %vm5468, %v5470, %v5466
        %v5472 = vmul.f32 1.0, %v5471
        %v5473 = vrcp.pop %v5312
        %v5474 = vmul.f32 %v5312, %v5473
        %v5475 = vsub.f32 1.0, %v5474
        %v5476 = vmul.f32 %v5473, %v5475
        %v5477 = vadd.f32 %v5473, %v5476
        %vm5478 = vweird.f32 %v5312
        %vm5479 = vweird.f32 %v5473
        %vm5480 = vmor %vm5478, %vm5479
        %v5481 = vsel %vm5480, %v5473, %v5477
        %v5482 = vand.u32 2147483647, %v5312
        %vm5483 = vcmp.eq.f32.partialorder %v5482, 8.507059e+37
        %v5484 = vand.u32 %v5312, 2147483648
        %v5485 = vor.u32 1.1754944e-38, %v5484
        %v5486 = vsel %vm5483, %v5485, %v5481
        %v5487 = vmul.f32 1.0, %v5486
        %v5488 = vrcp.pop %v5314
        %v5489 = vmul.f32 %v5314, %v5488
        %v5490 = vsub.f32 1.0, %v5489
        %v5491 = vmul.f32 %v5488, %v5490
        %v5492 = vadd.f32 %v5488, %v5491
        %vm5493 = vweird.f32 %v5314
        %vm5494 = vweird.f32 %v5488
        %vm5495 = vmor %vm5493, %vm5494
        %v5496 = vsel %vm5495, %v5488, %v5492
        %v5497 = vand.u32 2147483647, %v5314
        %vm5498 = vcmp.eq.f32.partialorder %v5497, 8.507059e+37
        %v5499 = vand.u32 %v5314, 2147483648
        %v5500 = vor.u32 1.1754944e-38, %v5499
        %v5501 = vsel %vm5498, %v5500, %v5496
        %v5502 = vmul.f32 1.0, %v5501
        %v5503 = vrcp.pop %v5316
        %v5504 = vmul.f32 %v5316, %v5503
        %v5505 = vsub.f32 1.0, %v5504
        %v5506 = vmul.f32 %v5503, %v5505
        %v5507 = vadd.f32 %v5503, %v5506
        %vm5508 = vweird.f32 %v5316
        %vm5509 = vweird.f32 %v5503
        %vm5510 = vmor %vm5508, %vm5509
        %v5511 = vsel %vm5510, %v5503, %v5507
        %v5512 = vand.u32 2147483647, %v5316
        %vm5513 = vcmp.eq.f32.partialorder %v5512, 8.507059e+37
        %v5514 = vand.u32 %v5316, 2147483648
        %v5515 = vor.u32 1.1754944e-38, %v5514
        %v5516 = vsel %vm5513, %v5515, %v5511
        %v5517 = vmul.f32 1.0, %v5516
        %v5518 = vrcp.pop %v5318
        %v5519 = vmul.f32 %v5318, %v5518
        %v5520 = vsub.f32 1.0, %v5519
        %v5521 = vmul.f32 %v5518, %v5520
        %v5522 = vadd.f32 %v5518, %v5521
        %vm5523 = vweird.f32 %v5318
        %vm5524 = vweird.f32 %v5518
        %vm5525 = vmor %vm5523, %vm5524
        %v5526 = vsel %vm5525, %v5518, %v5522
        %v5527 = vand.u32 2147483647, %v5318
        %vm5528 = vcmp.eq.f32.partialorder %v5527, 8.507059e+37
        %v5529 = vand.u32 %v5318, 2147483648
        %v5530 = vor.u32 1.1754944e-38, %v5529
        %v5531 = vsel %vm5528, %v5530, %v5526
        %v5532 = vmul.f32 1.0, %v5531
        %v5533 = vrcp.pop %v5320
        %v5534 = vmul.f32 %v5320, %v5533
        %v5535 = vsub.f32 1.0, %v5534
        %v5536 = vmul.f32 %v5533, %v5535
        %v5537 = vadd.f32 %v5533, %v5536
        %vm5538 = vweird.f32 %v5320
        %vm5539 = vweird.f32 %v5533
        %vm5540 = vmor %vm5538, %vm5539
        %v5541 = vsel %vm5540, %v5533, %v5537
        %v5542 = vand.u32 2147483647, %v5320
        %vm5543 = vcmp.eq.f32.partialorder %v5542, 8.507059e+37
        %v5544 = vand.u32 %v5320, 2147483648
        %v5545 = vor.u32 1.1754944e-38, %v5544
        %v5546 = vsel %vm5543, %v5545, %v5541
        %v5547 = vmul.f32 1.0, %v5546
        %v5548 = vrcp.pop %v5322
        %v5549 = vmul.f32 %v5322, %v5548
        %v5550 = vsub.f32 1.0, %v5549
        %v5551 = vmul.f32 %v5548, %v5550
        %v5552 = vadd.f32 %v5548, %v5551
        %vm5553 = vweird.f32 %v5322
        %vm5554 = vweird.f32 %v5548
        %vm5555 = vmor %vm5553, %vm5554
        %v5556 = vsel %vm5555, %v5548, %v5552
        %v5557 = vand.u32 2147483647, %v5322
        %vm5558 = vcmp.eq.f32.partialorder %v5557, 8.507059e+37
        %v5559 = vand.u32 %v5322, 2147483648
        %v5560 = vor.u32 1.1754944e-38, %v5559
        %v5561 = vsel %vm5558, %v5560, %v5556
        %v5562 = vmul.f32 1.0, %v5561
        %v5563 = vmul.f32 %v5260, %v5337
        %v5564 = vmul.f32 %v5262, %v5352
        %v5565 = vmul.f32 %v5264, %v5367
        %v5566 = vmul.f32 %v5266, %v5382
        %v5567 = vmul.f32 %v5268, %v5397
        %v5568 = vmul.f32 %v5270, %v5412
        %v5569 = vmul.f32 %v5272, %v5427
        %v5570 = vmul.f32 %v5274, %v5442
        %v5571 = vmul.f32 %v5276, %v5457
        %v5572 = vmul.f32 %v5278, %v5472
        %v5573 = vmul.f32 %v5280, %v5487
        %v5574 = vmul.f32 %v5282, %v5502
        %v5575 = vmul.f32 %v5284, %v5517
        %v5576 = vmul.f32 %v5286, %v5532
        %v5577 = vmul.f32 %v5288, %v5547
        %v5578 = vmul.f32 %v5290, %v5562
        %v5579 = vpack.c.bf16 %v5107, %v5105
        %v5580 = vpack.c.bf16 %v5112, %v5110
        %v5581 = vpack.c.bf16 %v5564, %v5563
        %v5582 = vpack.c.bf16 %v5566, %v5565
        %v5583 = vpack.c.bf16 %v5568, %v5567
        %v5584 = vpack.c.bf16 %v5570, %v5569
        %v5585 = vpack.c.bf16 %v5572, %v5571
        %v5586 = vpack.c.bf16 %v5574, %v5573
        %v5587 = vpack.c.bf16 %v5576, %v5575
        %v5588 = vpack.c.bf16 %v5578, %v5577
        %5589 = vmatpush.bf16.xpose.msra.mxu0 %v5588
        %5590 = vmatpush.bf16.xpose.msra.mxu0 %v5587
        %5591 = vmatpush.bf16.xpose.msra.mxu0 %v5586
        %5592 = vmatpush.bf16.xpose.msra.mxu0 %v5585
        %5593 = vmatpush.bf16.xpose.msra.mxu0 %v5584
        %5594 = vmatpush.bf16.xpose.msra.mxu0 %v5583
        %5595 = vmatpush.bf16.xpose.msra.mxu0 %v5582
        %5596 = vmatpush.bf16.xpose.msra.mxu0 %v5581
        %5597 = vmatmul.bf16.gmra.mxu0 %v5579
        %v5598 = vpop.f32.mrf.mxu0
        %v5599 = vadd.f32 0.0, %v5598
        %v5600 = vpop.f32.mrf.mxu0
        %v5601 = vadd.f32 0.0, %v5600
        %5602 = vmatmul.bf16.gmra.mxu0 %v5580
        %v5603 = vpop.f32.mrf.mxu0
        %v5604 = vadd.f32 0.0, %v5603
        %v5605 = vpop.f32.mrf.mxu0
        %v5606 = vadd.f32 0.0, %v5605
        %5607 = vdwg.mxu0
        %v5608 = vpack.c.bf16 %v5601, %v5599
        %v5609 = vpack.c.bf16 %v5606, %v5604
        %5611 = vset.pattern.permute.xlu0 0
        %5612 = vperm.xlu0 %5611, %v4882
        %v5613 = vpop.permute.xlu0 %5612
        %5616 = vset.pattern.permute.xlu0 0
        %5617 = vperm.xlu0 %5616, %v4883
        %v5618 = vpop.permute.xlu0 %5617
        %5621 = vset.pattern.permute.xlu0 0
        %5622 = vperm.xlu0 %5621, %v4884
        %v5623 = vpop.permute.xlu0 %5622
        %5626 = vset.pattern.permute.xlu0 0
        %5627 = vperm.xlu0 %5626, %v4885
        %v5628 = vpop.permute.xlu0 %5627
        %v5634 = vunpack.c.l.b16 %v5023
        %v5635 = vunpack.c.l.b16 %v5024
        %v5636 = vunpack.c.l.b16 %v5025
        %v5637 = vunpack.c.l.b16 %v5026
        %v5638 = vpack.c.b16 %v5635, %v5634
        %v5639 = vpack.c.b16 %v5637, %v5636
        %v5641 = vsel %vm1715, %v5638, 0
        %v5644 = vsel %vm1715, %v5639, 0
        %5646 = vmatpush.bf16.msra.mxu0 0
        %5647 = vmatpush.bf16.msra.mxu0 0
        %5648 = vmatpush.bf16.msra.mxu0 0
        %5649 = vmatpush.bf16.msra.mxu0 0
        %5650 = vmatpush.bf16.msra.mxu0 0
        %5651 = vmatpush.bf16.msra.mxu0 0
        %5652 = vmatpush.bf16.msra.mxu0 %v5609
        %5653 = vmatpush.bf16.msra.mxu0 %v5608
        %5654 = vmatmul.bf16.gmra.mxu0 %v5641
        %v5655 = vpop.f32.mrf.mxu0
        %v5656 = vadd.f32 %v5613, %v5655
        %v5657 = vpop.f32.mrf.mxu0
        %v5658 = vadd.f32 %v5618, %v5657
        %5659 = vmatmul.bf16.gmra.mxu0 %v5644
        %v5660 = vpop.f32.mrf.mxu0
        %v5661 = vadd.f32 %v5623, %v5660
        %v5662 = vpop.f32.mrf.mxu0
        %v5663 = vadd.f32 %v5628, %v5662
        %5664 = vdwg.mxu0
        %v5665 = vadd.f32 %v5000, %v5656
        %v5666 = vadd.f32 %v5002, %v5658
        %v5667 = vadd.f32 %v5005, %v5661
        %v5668 = vadd.f32 %v5007, %v5663
        %v5669 = vadd.f32 %v5665, %v5666
        %v5670 = vadd.f32 %v5669, %v5667
        %v5671 = vadd.f32 %v5670, %v5668
        %v5672 = vrot.slane %v5671, 4
        %v5673 = vadd.f32 %v5671, %v5672
        %v5674 = vrot.slane %v5673, 2
        %v5675 = vadd.f32 %v5673, %v5674
        %v5676 = vrot.slane %v5675, 1
        %v5677 = vadd.f32 %v5675, %v5676
        %v5678 = vrcp.pop 32.0
        %v5679 = vmul.f32 32.0, %v5678
        %v5680 = vsub.f32 1.0, %v5679
        %v5681 = vmul.f32 %v5678, %v5680
        %v5682 = vadd.f32 %v5678, %v5681
        %vm5683 = vweird.f32 %v5678
        %v5684 = vsel %vm5683, %v5678, %v5682
        %v5685 = vmul.f32 %v5677, %v5684
        %v5686 = vsub.f32 %v5665, %v5685
        %v5687 = vsub.f32 %v5666, %v5685
        %v5688 = vsub.f32 %v5667, %v5685
        %v5689 = vsub.f32 %v5668, %v5685
        %v5690 = vmul.f32 %v5686, %v5686
        %v5691 = vmul.f32 %v5687, %v5687
        %v5692 = vmul.f32 %v5688, %v5688
        %v5693 = vmul.f32 %v5689, %v5689
        %v5694 = vadd.f32 %v5690, %v5691
        %v5695 = vadd.f32 %v5694, %v5692
        %v5696 = vadd.f32 %v5695, %v5693
        %v5697 = vrot.slane %v5696, 4
        %v5698 = vadd.f32 %v5696, %v5697
        %v5699 = vrot.slane %v5698, 2
        %v5700 = vadd.f32 %v5698, %v5699
        %v5701 = vrot.slane %v5700, 1
        %v5702 = vadd.f32 %v5700, %v5701
        %v5703 = vmul.f32 %v5702, %v5684
        %v5704 = vadd.f32 %v5703, 1e-05
        %v5705 = vrsqrt.pop %v5704
        %v5706 = vmul.f32 %v5705, %v5704
        %v5707 = vmul.f32 %v5706, %v5705
        %v5708 = vmul.f32 0.5, %v5707
        %v5709 = vsub.f32 1.5, %v5708
        %v5710 = vmul.f32 %v5705, %v5709
        %vm5711 = vweird.f32 %v5704
        %vm5712 = vweird.f32 %v5705
        %vm5713 = vmor %vm5711, %vm5712
        %v5714 = vsel %vm5713, %v5705, %v5710
        %v5715 = vmul.f32 %v5686, %v5714
        %v5716 = vmul.f32 %v5687, %v5714
        %v5717 = vmul.f32 %v5688, %v5714
        %v5718 = vmul.f32 %v5689, %v5714
        %5720 = vset.pattern.permute.xlu0 0
        %5721 = vperm.xlu0 %5720, %v4887
        %v5722 = vpop.permute.xlu0 %5721
        %5725 = vset.pattern.permute.xlu0 0
        %5726 = vperm.xlu0 %5725, %v4888
        %v5727 = vpop.permute.xlu0 %5726
        %5730 = vset.pattern.permute.xlu0 0
        %5731 = vperm.xlu0 %5730, %v4889
        %v5732 = vpop.permute.xlu0 %5731
        %5735 = vset.pattern.permute.xlu0 0
        %5736 = vperm.xlu0 %5735, %v4890
        %v5737 = vpop.permute.xlu0 %5736
        %v5739 = vmul.f32 %v5715, %v5722
        %v5740 = vmul.f32 %v5716, %v5727
        %v5741 = vmul.f32 %v5717, %v5732
        %v5742 = vmul.f32 %v5718, %v5737
        %5744 = vset.pattern.permute.xlu0 0
        %5745 = vperm.xlu0 %5744, %v4892
        %v5746 = vpop.permute.xlu0 %5745
        %5749 = vset.pattern.permute.xlu0 0
        %5750 = vperm.xlu0 %5749, %v4893
        %v5751 = vpop.permute.xlu0 %5750
        %5754 = vset.pattern.permute.xlu0 0
        %5755 = vperm.xlu0 %5754, %v4894
        %v5756 = vpop.permute.xlu0 %5755
        %5759 = vset.pattern.permute.xlu0 0
        %5760 = vperm.xlu0 %5759, %v4895
        %v5761 = vpop.permute.xlu0 %5760
        %v5763 = vadd.f32 %v5739, %v5746
        %v5764 = vadd.f32 %v5740, %v5751
        %v5765 = vadd.f32 %v5741, %v5756
        %v5766 = vadd.f32 %v5742, %v5761
        %v5767 = vld [vmem:[%s10] sm:$0xf]
        %v5768 = vld [vmem:[%s10 + $0x4] sm:$0xf]
        %v5769 = vld [vmem:[%s10 + $0x8] sm:$0xf]
        %v5770 = vld [vmem:[%s10 + $0xc] sm:$0xf]
        %v5771 = vld [vmem:[%s10 + $0x10] sm:$0xf]
        %v5772 = vld [vmem:[%s10 + $0x14] sm:$0xf]
        %v5773 = vld [vmem:[%s10 + $0x18] sm:$0xf]
        %v5774 = vld [vmem:[%s10 + $0x1c] sm:$0xf]
        %v5775 = vld [vmem:[%s10 + $0x20] sm:$0xf]
        %v5776 = vld [vmem:[%s10 + $0x24] sm:$0xf]
        %v5777 = vld [vmem:[%s10 + $0x28] sm:$0xf]
        %v5778 = vld [vmem:[%s10 + $0x2c] sm:$0xf]
        %v5779 = vld [vmem:[%s10 + $0x30] sm:$0xf]
        %v5780 = vld [vmem:[%s10 + $0x34] sm:$0xf]
        %v5781 = vld [vmem:[%s10 + $0x38] sm:$0xf]
        %v5782 = vld [vmem:[%s10 + $0x3c] sm:$0xf]
        %v5783 = vpack.c.bf16 %v5764, %v5763
        %v5784 = vpack.c.bf16 %v5766, %v5765
        %v5785 = vld [vmem:[%s11] sm:$0xff]
        %v5786 = vld [vmem:[%s11 + $0x8] sm:$0xff]
        %v5787 = vld [vmem:[%s11 + $0x10] sm:$0xff]
        %v5788 = vld [vmem:[%s11 + $0x18] sm:$0xff]
        %v5789 = vld [vmem:[%s11 + $0x20] sm:$0xff]
        %v5790 = vld [vmem:[%s11 + $0x28] sm:$0xff]
        %v5791 = vld [vmem:[%s11 + $0x30] sm:$0xff]
        %v5792 = vld [vmem:[%s11 + $0x38] sm:$0xff]
        %v5793 = vld [vmem:[%s11 + $0x40] sm:$0xff]
        %v5794 = vld [vmem:[%s11 + $0x48] sm:$0xff]
        %v5795 = vld [vmem:[%s11 + $0x50] sm:$0xff]
        %v5796 = vld [vmem:[%s11 + $0x58] sm:$0xff]
        %v5797 = vld [vmem:[%s11 + $0x60] sm:$0xff]
        %v5798 = vld [vmem:[%s11 + $0x68] sm:$0xff]
        %v5799 = vld [vmem:[%s11 + $0x70] sm:$0xff]
        %v5800 = vld [vmem:[%s11 + $0x78] sm:$0xff]
        %5802 = vset.pattern.permute.xlu0 0
        %5803 = vperm.xlu0 %5802, %v5785
        %v5804 = vpop.permute.xlu0 %5803
        %5807 = vset.pattern.permute.xlu0 0
        %5808 = vperm.xlu0 %5807, %v5786
        %v5809 = vpop.permute.xlu0 %5808
        %5812 = vset.pattern.permute.xlu0 0
        %5813 = vperm.xlu0 %5812, %v5787
        %v5814 = vpop.permute.xlu0 %5813
        %5817 = vset.pattern.permute.xlu0 0
        %5818 = vperm.xlu0 %5817, %v5788
        %v5819 = vpop.permute.xlu0 %5818
        %5822 = vset.pattern.permute.xlu0 0
        %5823 = vperm.xlu0 %5822, %v5789
        %v5824 = vpop.permute.xlu0 %5823
        %5827 = vset.pattern.permute.xlu0 0
        %5828 = vperm.xlu0 %5827, %v5790
        %v5829 = vpop.permute.xlu0 %5828
        %5832 = vset.pattern.permute.xlu0 0
        %5833 = vperm.xlu0 %5832, %v5791
        %v5834 = vpop.permute.xlu0 %5833
        %5837 = vset.pattern.permute.xlu0 0
        %5838 = vperm.xlu0 %5837, %v5792
        %v5839 = vpop.permute.xlu0 %5838
        %5842 = vset.pattern.permute.xlu0 0
        %5843 = vperm.xlu0 %5842, %v5793
        %v5844 = vpop.permute.xlu0 %5843
        %5847 = vset.pattern.permute.xlu0 0
        %5848 = vperm.xlu0 %5847, %v5794
        %v5849 = vpop.permute.xlu0 %5848
        %5852 = vset.pattern.permute.xlu0 0
        %5853 = vperm.xlu0 %5852, %v5795
        %v5854 = vpop.permute.xlu0 %5853
        %5857 = vset.pattern.permute.xlu0 0
        %5858 = vperm.xlu0 %5857, %v5796
        %v5859 = vpop.permute.xlu0 %5858
        %5862 = vset.pattern.permute.xlu0 0
        %5863 = vperm.xlu0 %5862, %v5797
        %v5864 = vpop.permute.xlu0 %5863
        %5867 = vset.pattern.permute.xlu0 0
        %5868 = vperm.xlu0 %5867, %v5798
        %v5869 = vpop.permute.xlu0 %5868
        %5872 = vset.pattern.permute.xlu0 0
        %5873 = vperm.xlu0 %5872, %v5799
        %v5874 = vpop.permute.xlu0 %5873
        %5877 = vset.pattern.permute.xlu0 0
        %5878 = vperm.xlu0 %5877, %v5800
        %v5879 = vpop.permute.xlu0 %5878
        %v5897 = vunpack.c.l.b16 %v5767
        %v5898 = vunpack.c.l.b16 %v5768
        %v5899 = vunpack.c.l.b16 %v5769
        %v5900 = vunpack.c.l.b16 %v5770
        %v5901 = vunpack.c.l.b16 %v5771
        %v5902 = vunpack.c.l.b16 %v5772
        %v5903 = vunpack.c.l.b16 %v5773
        %v5904 = vunpack.c.l.b16 %v5774
        %v5905 = vunpack.c.l.b16 %v5775
        %v5906 = vunpack.c.l.b16 %v5776
        %v5907 = vunpack.c.l.b16 %v5777
        %v5908 = vunpack.c.l.b16 %v5778
        %v5909 = vunpack.c.l.b16 %v5779
        %v5910 = vunpack.c.l.b16 %v5780
        %v5911 = vunpack.c.l.b16 %v5781
        %v5912 = vunpack.c.l.b16 %v5782
        %v5913 = vpack.c.b16 %v5898, %v5897
        %v5914 = vpack.c.b16 %v5900, %v5899
        %v5915 = vpack.c.b16 %v5902, %v5901
        %v5916 = vpack.c.b16 %v5904, %v5903
        %v5917 = vpack.c.b16 %v5906, %v5905
        %v5918 = vpack.c.b16 %v5908, %v5907
        %v5919 = vpack.c.b16 %v5910, %v5909
        %v5920 = vpack.c.b16 %v5912, %v5911
        %v5922 = vsel %vm1715, %v5913, 0
        %v5925 = vsel %vm1715, %v5914, 0
        %v5928 = vsel %vm1715, %v5915, 0
        %v5931 = vsel %vm1715, %v5916, 0
        %v5934 = vsel %vm1715, %v5917, 0
        %v5937 = vsel %vm1715, %v5918, 0
        %v5940 = vsel %vm1715, %v5919, 0
        %v5943 = vsel %vm1715, %v5920, 0
        %5945 = vmatpush.bf16.msra.mxu0 0
        %5946 = vmatpush.bf16.msra.mxu0 0
        %5947 = vmatpush.bf16.msra.mxu0 0
        %5948 = vmatpush.bf16.msra.mxu0 0
        %5949 = vmatpush.bf16.msra.mxu0 0
        %5950 = vmatpush.bf16.msra.mxu0 0
        %5951 = vmatpush.bf16.msra.mxu0 %v5784
        %5952 = vmatpush.bf16.msra.mxu0 %v5783
        %5953 = vmatmul.bf16.gmra.mxu0 %v5922
        %v5954 = vpop.f32.mrf.mxu0
        %v5955 = vadd.f32 %v5804, %v5954
        %v5956 = vpop.f32.mrf.mxu0
        %v5957 = vadd.f32 %v5809, %v5956
        %5958 = vmatmul.bf16.gmra.mxu0 %v5925
        %v5959 = vpop.f32.mrf.mxu0
        %v5960 = vadd.f32 %v5814, %v5959
        %v5961 = vpop.f32.mrf.mxu0
        %v5962 = vadd.f32 %v5819, %v5961
        %5963 = vmatmul.bf16.gmra.mxu0 %v5928
        %v5964 = vpop.f32.mrf.mxu0
        %v5965 = vadd.f32 %v5824, %v5964
        %v5966 = vpop.f32.mrf.mxu0
        %v5967 = vadd.f32 %v5829, %v5966
        %5968 = vmatmul.bf16.gmra.mxu0 %v5931
        %v5969 = vpop.f32.mrf.mxu0
        %v5970 = vadd.f32 %v5834, %v5969
        %v5971 = vpop.f32.mrf.mxu0
        %v5972 = vadd.f32 %v5839, %v5971
        %5973 = vmatmul.bf16.gmra.mxu0 %v5934
        %v5974 = vpop.f32.mrf.mxu0
        %v5975 = vadd.f32 %v5844, %v5974
        %v5976 = vpop.f32.mrf.mxu0
        %v5977 = vadd.f32 %v5849, %v5976
        %5978 = vmatmul.bf16.gmra.mxu0 %v5937
        %v5979 = vpop.f32.mrf.mxu0
        %v5980 = vadd.f32 %v5854, %v5979
        %v5981 = vpop.f32.mrf.mxu0
        %v5982 = vadd.f32 %v5859, %v5981
        %5983 = vmatmul.bf16.gmra.mxu0 %v5940
        %v5984 = vpop.f32.mrf.mxu0
        %v5985 = vadd.f32 %v5864, %v5984
        %v5986 = vpop.f32.mrf.mxu0
        %v5987 = vadd.f32 %v5869, %v5986
        %5988 = vmatmul.bf16.gmra.mxu0 %v5943
        %v5989 = vpop.f32.mrf.mxu0
        %v5990 = vadd.f32 %v5874, %v5989
        %v5991 = vpop.f32.mrf.mxu0
        %v5992 = vadd.f32 %v5879, %v5991
        %5993 = vdwg.mxu0
        %v5994 = vmax.f32 %v5955, 0.0
        %v5995 = vmax.f32 %v5957, 0.0
        %v5996 = vmax.f32 %v5960, 0.0
        %v5997 = vmax.f32 %v5962, 0.0
        %v5998 = vmax.f32 %v5965, 0.0
        %v5999 = vmax.f32 %v5967, 0.0
        %v6000 = vmax.f32 %v5970, 0.0
        %v6001 = vmax.f32 %v5972, 0.0
        %v6002 = vmax.f32 %v5975, 0.0
        %v6003 = vmax.f32 %v5977, 0.0
        %v6004 = vmax.f32 %v5980, 0.0
        %v6005 = vmax.f32 %v5982, 0.0
        %v6006 = vmax.f32 %v5985, 0.0
        %v6007 = vmax.f32 %v5987, 0.0
        %v6008 = vmax.f32 %v5990, 0.0
        %v6009 = vmax.f32 %v5992, 0.0
        %v6010 = vld [vmem:[#allocation11] sm:$0xf]
        %v6011 = vld [vmem:[#allocation11 + $0x4] sm:$0xf]
        %v6012 = vld [vmem:[#allocation11 + $0x8] sm:$0xf]
        %v6013 = vld [vmem:[#allocation11 + $0xc] sm:$0xf]
        %v6014 = vpack.c.bf16 %v5995, %v5994
        %v6015 = vpack.c.bf16 %v5997, %v5996
        %v6016 = vpack.c.bf16 %v5999, %v5998
        %v6017 = vpack.c.bf16 %v6001, %v6000
        %v6018 = vpack.c.bf16 %v6003, %v6002
        %v6019 = vpack.c.bf16 %v6005, %v6004
        %v6020 = vpack.c.bf16 %v6007, %v6006
        %v6021 = vpack.c.bf16 %v6009, %v6008
        %v6026 = vunpack.c.l.b16 %v6010
        %v6027 = vunpack.c.l.b16 %v6011
        %v6028 = vunpack.c.l.b16 %v6012
        %v6029 = vunpack.c.l.b16 %v6013
        %v6030 = vpack.c.b16 %v6027, %v6026
        %v6031 = vpack.c.b16 %v6029, %v6028
        %6034 = vmatpush.bf16.msra.mxu0 %v6021
        %6035 = vmatpush.bf16.msra.mxu0 %v6020
        %6036 = vmatpush.bf16.msra.mxu0 %v6019
        %6037 = vmatpush.bf16.msra.mxu0 %v6018
        %6038 = vmatpush.bf16.msra.mxu0 %v6017
        %6039 = vmatpush.bf16.msra.mxu0 %v6016
        %6040 = vmatpush.bf16.msra.mxu0 %v6015
        %6041 = vmatpush.bf16.msra.mxu0 %v6014
        %6042 = vmatmul.bf16.gmra.mxu0 %v6030
        %v6043 = vpop.f32.mrf.mxu0
        %v6044 = vadd.f32 0.0, %v6043
        %v6045 = vpop.f32.mrf.mxu0
        %v6046 = vadd.f32 0.0, %v6045
        %6047 = vmatmul.bf16.gmra.mxu0 %v6031
        %v6048 = vpop.f32.mrf.mxu0
        %v6049 = vadd.f32 0.0, %v6048
        %v6050 = vpop.f32.mrf.mxu0
        %v6051 = vadd.f32 0.0, %v6050
        %6052 = vdwg.mxu0
        %v6053 = vadd.f32 %v5763, %v6044
        %v6054 = vadd.f32 %v5764, %v6046
        %v6055 = vadd.f32 %v5765, %v6049
        %v6056 = vadd.f32 %v5766, %v6051
        %6058 = vset.pattern.permute.xlu0 0
        %6059 = vperm.xlu0 %6058, %v4897
        %v6060 = vpop.permute.xlu0 %6059
        %6063 = vset.pattern.permute.xlu0 0
        %6064 = vperm.xlu0 %6063, %v4898
        %v6065 = vpop.permute.xlu0 %6064
        %6068 = vset.pattern.permute.xlu0 0
        %6069 = vperm.xlu0 %6068, %v4899
        %v6070 = vpop.permute.xlu0 %6069
        %6073 = vset.pattern.permute.xlu0 0
        %6074 = vperm.xlu0 %6073, %v4900
        %v6075 = vpop.permute.xlu0 %6074
        %v6077 = vadd.f32 %v6053, %v6060
        %v6078 = vadd.f32 %v6054, %v6065
        %v6079 = vadd.f32 %v6055, %v6070
        %v6080 = vadd.f32 %v6056, %v6075
        %v6081 = vadd.f32 %v6077, %v6078
        %v6082 = vadd.f32 %v6081, %v6079
        %v6083 = vadd.f32 %v6082, %v6080
        %v6084 = vrot.slane %v6083, 4
        %v6085 = vadd.f32 %v6083, %v6084
        %v6086 = vrot.slane %v6085, 2
        %v6087 = vadd.f32 %v6085, %v6086
        %v6088 = vrot.slane %v6087, 1
        %v6089 = vadd.f32 %v6087, %v6088
        %v6090 = vmul.f32 %v6089, %v5684
        %v6091 = vsub.f32 %v6077, %v6090
        %v6092 = vsub.f32 %v6078, %v6090
        %v6093 = vsub.f32 %v6079, %v6090
        %v6094 = vsub.f32 %v6080, %v6090
        %v6095 = vmul.f32 %v6091, %v6091
        %v6096 = vmul.f32 %v6092, %v6092
        %v6097 = vmul.f32 %v6093, %v6093
        %v6098 = vmul.f32 %v6094, %v6094
        %v6099 = vadd.f32 %v6095, %v6096
        %v6100 = vadd.f32 %v6099, %v6097
        %v6101 = vadd.f32 %v6100, %v6098
        %v6102 = vrot.slane %v6101, 4
        %v6103 = vadd.f32 %v6101, %v6102
        %v6104 = vrot.slane %v6103, 2
        %v6105 = vadd.f32 %v6103, %v6104
        %v6106 = vrot.slane %v6105, 1
        %v6107 = vadd.f32 %v6105, %v6106
        %v6108 = vmul.f32 %v6107, %v5684
        %v6109 = vadd.f32 %v6108, 1e-05
        %v6110 = vrsqrt.pop %v6109
        %v6111 = vmul.f32 %v6110, %v6109
        %v6112 = vmul.f32 %v6111, %v6110
        %v6113 = vmul.f32 0.5, %v6112
        %v6114 = vsub.f32 1.5, %v6113
        %v6115 = vmul.f32 %v6110, %v6114
        %vm6116 = vweird.f32 %v6109
        %vm6117 = vweird.f32 %v6110
        %vm6118 = vmor %vm6116, %vm6117
        %v6119 = vsel %vm6118, %v6110, %v6115
        %v6120 = vmul.f32 %v6091, %v6119
        %v6121 = vmul.f32 %v6092, %v6119
        %v6122 = vmul.f32 %v6093, %v6119
        %v6123 = vmul.f32 %v6094, %v6119
        %6125 = vset.pattern.permute.xlu0 0
        %6126 = vperm.xlu0 %6125, %v4902
        %v6127 = vpop.permute.xlu0 %6126
        %6130 = vset.pattern.permute.xlu0 0
        %6131 = vperm.xlu0 %6130, %v4903
        %v6132 = vpop.permute.xlu0 %6131
        %6135 = vset.pattern.permute.xlu0 0
        %6136 = vperm.xlu0 %6135, %v4904
        %v6137 = vpop.permute.xlu0 %6136
        %6140 = vset.pattern.permute.xlu0 0
        %6141 = vperm.xlu0 %6140, %v4905
        %v6142 = vpop.permute.xlu0 %6141
        %v6144 = vmul.f32 %v6120, %v6127
        %v6145 = vmul.f32 %v6121, %v6132
        %v6146 = vmul.f32 %v6122, %v6137
        %v6147 = vmul.f32 %v6123, %v6142
        %6149 = vset.pattern.permute.xlu0 0
        %6150 = vperm.xlu0 %6149, %v4907
        %v6151 = vpop.permute.xlu0 %6150
        %6154 = vset.pattern.permute.xlu0 0
        %6155 = vperm.xlu0 %6154, %v4908
        %v6156 = vpop.permute.xlu0 %6155
        %6159 = vset.pattern.permute.xlu0 0
        %6160 = vperm.xlu0 %6159, %v4909
        %v6161 = vpop.permute.xlu0 %6160
        %6164 = vset.pattern.permute.xlu0 0
        %6165 = vperm.xlu0 %6164, %v4910
        %v6166 = vpop.permute.xlu0 %6165
        %v6168 = vadd.f32 %v6144, %v6151
        %v6169 = vadd.f32 %v6145, %v6156
        %v6170 = vadd.f32 %v6146, %v6161
        %v6171 = vadd.f32 %v6147, %v6166
        %v6172 = vld [vmem:[#allocation13] sm:$0xf]
        %v6173 = vpack.c.bf16 %v6169, %v6168
        %v6174 = vpack.c.bf16 %v6171, %v6170
        %v6175 = vld [vmem:[%s14] sm:$0xff]
        %6177 = vset.pattern.permute.xlu0 0
        %6178 = vperm.xlu0 %6177, %v6175
        %v6179 = vpop.permute.xlu0 %6178
        %v6182 = vsel %vm1715, %v6172, 0
        %6184 = vmatpush.bf16.msra.mxu0 0
        %6185 = vmatpush.bf16.msra.mxu0 0
        %6186 = vmatpush.bf16.msra.mxu0 0
        %6187 = vmatpush.bf16.msra.mxu0 0
        %6188 = vmatpush.bf16.msra.mxu0 0
        %6189 = vmatpush.bf16.msra.mxu0 0
        %6190 = vmatpush.bf16.msra.mxu0 %v6174
        %6191 = vmatpush.bf16.msra.mxu0 %v6173
        %6192 = vmatmul.bf16.gmra.mxu0 %v6182
        %v6193 = vpop.f32.mrf.mxu0
        %v6194 = vadd.f32 %v6179, %v6193
        %v6195 = vpop.f32.mrf.mxu0
        %6196 = vdwg.mxu0
        %6197 = vst [vmem:[%s638] sm:$0xff] %v6194
        %s6198 = sand.u32 %s385, 1
        %s6199 = scalar_lea.sflag [#allocation4], %s6198
        %s6200 = sand.u32 %s385, 1
        %s6201 = smul.addr %s6200, 8
        %s6202 = scalar_lea.vmem [#allocation14], %s6201
        // Predicated region
        $region113: #{spa_tem_forward.1} parent=83 // pred_check
          %p6203 = pneg %p395
        $region114: #{spa_tem_forward.1} parent=83 // pred_check_branch
          %6205 = sbr.rel (%p6203) target = $region116
        $region115: #{spa_tem_forward.1} parent=83 // pred_region
          %6207 = vsyncadd %s6199, 0
          %s6208 = smul.addr %s36, 8
          %s6209 = scalar_lea.hbm %s16, %s6208
          %s6211 = sshll.u32 %s6202, 4
          %s6212 = int_to_ptr.vmem [resolvable:$true] %s6211
          %s6213 = sshll.u32 %s6209, 4
          %s6214 = int_to_ptr.hbm [resolvable:$true] %s6213
          %6216 = dma.vmem_to_hbm [thread:$0]  %s6212, 128, %s6214, %s6199
        $region116: #{spa_tem_forward.1} parent=83 // pred_fallthru
          _
      $region84: #{spa_tem_forward.1} parent=5 // pred_fallthru
        _
      %p6217 = scmp.le.s32.totalorder 2, %s31
      // Predicated region
      $region117: #{spa_tem_forward.1} parent=5 // pred_check
        %p6218 = pneg %p6217
      $region118: #{spa_tem_forward.1} parent=5 // pred_check_branch
        %6220 = sbr.rel (%p6218) target = $region120
      $region119: #{spa_tem_forward.1} parent=5 // pred_region
        %s6221 = ssub.s32 %s31, 2
        // Predicated region
        $region121: #{spa_tem_forward.1} parent=119 // pred_check
          %p6222 = pneg %p401
        $region122: #{spa_tem_forward.1} parent=119 // pred_check_branch
          %6224 = sbr.rel (%p6222) target = $region124
        $region123: #{spa_tem_forward.1} parent=119 // pred_region
          %s6225 = sand.u32 %s386, 1
          %s6226 = scalar_lea.sflag [#allocation4], %s6225
          %s6227 = sand.u32 %s386, 1
          %s6228 = smul.addr %s6227, 8
          %s6229 = scalar_lea.vmem [#allocation14], %s6228
          %6231 = dma.done %s6226, 128
        $region124: #{spa_tem_forward.1} parent=119 // pred_fallthru
          _
      $region120: #{spa_tem_forward.1} parent=5 // pred_fallthru
        _
    $region6: #{spa_tem_forward.1} parent=1 // loop_footer
      %s35 = sadd.s32 1, %s31
    $region7: #{spa_tem_forward.1} parent=1 // loop_footer_branch
      %30 = sbr.rel target = $region3
    $region8: #{spa_tem_forward.1} parent=1 // loop_exit
      _
    %6232 = vsyncpa [#allocation3], 1
    %s6233 = scalar_lea.sflag [#allocation3], 1
    %6234 = vsyncpa %s6233, 1
    %6235 = vsyncpa [#allocation6], 1
    %6236 = vsyncpa [#allocation9], 1
    %6237 = vsyncpa [#allocation12], 1
    %6238 = vsyncpa [#allocation4], 1
    %s6239 = scalar_lea.sflag [#allocation4], 1
    %6240 = vsyncpa %s6239, 1

</llo_original>
